<compile_context>
chip_gen: v6e
topology: v6e:2x2x1
jax: 0.10.0
libtpu: 0.0.40
codegen_flags: <defaults>
</compile_context>

<pallas_src>
import functools
import math

import jax
import jax.numpy as jnp
from jax.experimental import pallas as pl
from jax.experimental.pallas import tpu as pltpu

_BN_EPS = 1e-5


# ----------------------------------------------------------------------------
# bilinear (align_corners=True) interpolation matrix, built outside the kernel
# ----------------------------------------------------------------------------
def _bilinear_matrix(n_in, n_out):
    denom = max(n_out - 1, 1)
    src = jnp.arange(n_out, dtype=jnp.float32) * (n_in - 1) / denom
    i0 = jnp.clip(jnp.floor(src).astype(jnp.int32), 0, n_in - 1)
    i1 = jnp.clip(i0 + 1, 0, n_in - 1)
    w1 = src - i0.astype(jnp.float32)
    w0 = 1.0 - w1
    A = jnp.zeros((n_out, n_in), jnp.float32)
    rows = jnp.arange(n_out)
    A = A.at[rows, i0].add(w0)
    A = A.at[rows, i1].add(w1)
    return A


# ----------------------------------------------------------------------------
# Fused kernel: one (batch, direction) per grid step, everything in VMEM.
# Activation layout: (channels, LPAD + (H+2)*(W+2) + RPAD) bf16, spatial flat
# and lane-dense; the zero padding ring of every layer lives in-line.
# ----------------------------------------------------------------------------
def _change_fused_kernel(xa_ref, xb_ref, mask_ref, wfe_ref, scfe_ref, shfe_ref,
                         *rest, H, W, C, F, IC, num_convs, lpad):
    args = list(rest)
    blocks = [(args.pop(0), args.pop(0), args.pop(0)) for _ in range(num_convs)]
    wcls_ref, bcls_ref, ah_ref, awt_ref, o_ref, act_ref = args

    Wp = W + 2
    Np = (H + 2) * Wp

    interior = mask_ref[...] != 0.0          # (1, Np) bool; broadcasts over channels

    def conv3x3(cin, w_ref):
        """3x3 conv on the (channels, flat padded spatial) layout.

        One small MXU matmul per tap: (Cout, cin) @ (cin, Np).  The shifted RHS
        is a static lane-window slice of the activation scratch — the halo is
        already in the flat padded layout, so there are no per-tap masks and no
        im2col staging stores; the output is lane-dense over Np.
        """
        acc = None
        for oy in (-1, 0, 1):
            for ox in (-1, 0, 1):
                t = (oy + 1) * 3 + (ox + 1)
                s = oy * Wp + ox
                shifted = act_ref[:cin, lpad + s:lpad + s + Np]        # (cin, Np) bf16
                part = jnp.dot(w_ref[t], shifted,
                               preferred_element_type=jnp.float32)     # (Cout, Np) f32
                acc = part if acc is None else acc + part
        return acc

    def bn_relu(acc, sc_ref, sh_ref):
        # folded BatchNorm(eval) + ReLU in f32; re-zero the padding ring with
        # jnp.where (never propagates garbage from the uninitialised margins),
        # then store back as bf16.
        y = jnp.maximum(acc * sc_ref[...] + sh_ref[...], 0.0)
        return jnp.where(interior, y, 0.0).astype(jnp.bfloat16)

    # --- dense feature extractor (Conv3x3 + bias + ReLU) on both frames --------
    # xa = first frame in the requested concat order, xb = the other frame.
    act_ref[:C, lpad:lpad + Np] = xb_ref[0, 0]
    fb = bn_relu(conv3x3(C, wfe_ref), scfe_ref, shfe_ref)              # (F, Np) bf16
    act_ref[:C, lpad:lpad + Np] = xa_ref[0, 0]
    fa = bn_relu(conv3x3(C, wfe_ref), scfe_ref, shfe_ref)              # (F, Np) bf16

    # --- ChangeMixin: bitemporal channel concat fused in VMEM ------------------
    act_ref[:F, lpad:lpad + Np] = fa
    act_ref[F:2 * F, lpad:lpad + Np] = fb

    # num_convs x [Conv3x3 + BatchNorm(eval, folded) + ReLU]
    cin = 2 * F
    for (w_ref, sc_ref, sh_ref) in blocks:
        y = bn_relu(conv3x3(cin, w_ref), sc_ref, sh_ref)               # (IC, Np) bf16
        act_ref[:IC, lpad:lpad + Np] = y
        cin = IC

    # --- classification conv (Cout zero-padded to 8; only row 0 is real) -------
    acc = conv3x3(IC, wcls_ref)                                        # (8, Np) f32

    # --- un-flatten interior rows, bilinear upsample (align_corners=True) ------
    rows = [acc[0:1, (y + 1) * Wp + 1:(y + 1) * Wp + 1 + W] for y in range(H)]
    l2d = jnp.concatenate(rows, axis=0) + bcls_ref[...]                # (H, W) f32
    t1 = jnp.dot(ah_ref[...], l2d.astype(jnp.bfloat16),
                 preferred_element_type=jnp.float32)                   # (Ho, W) f32
    up = jnp.dot(t1.astype(jnp.bfloat16), awt_ref[...],
                 preferred_element_type=jnp.float32)                   # (Ho, Wo) f32
    o_ref[0, 0] = jax.nn.sigmoid(up)


def _full_spec(shape):
    n = len(shape)
    return pl.BlockSpec(shape, lambda b, d, _n=n: (0,) * _n)


# ----------------------------------------------------------------------------
# Parameter construction (deterministic, synthetic).  BatchNorm (eval mode) is
# folded with the conv bias into per-channel (scale, shift).
# ----------------------------------------------------------------------------
def init_params(key, C, F, inner_channels, num_convs):
    ks = list(jax.random.split(key, 4 + 6 * num_convs))

    def nk():
        return ks.pop()

    def conv_w(k, shape):  # kaiming-uniform-ish
        fan_in = shape[0] * shape[1] * shape[2]
        bound = 1.0 / jnp.sqrt(jnp.float32(fan_in))
        return jax.random.uniform(k, shape, jnp.float32, -bound, bound)

    params = {
        # dense_feature_extractor stand-in: Conv2d(C -> F, 3, 1, 1) + ReLU
        "fe": {
            "w": conv_w(nk(), (3, 3, C, F)),
            "b": jax.random.uniform(nk(), (F,), jnp.float32, -0.1, 0.1),
        }
    }

    blocks = []
    cin = 2 * F  # ChangeMixin in_channels = sum of bitemporal feature channels
    for _ in range(num_convs):
        w = conv_w(nk(), (3, 3, cin, inner_channels))
        b = jax.random.uniform(nk(), (inner_channels,), jnp.float32, -0.1, 0.1)
        gamma = jax.random.uniform(nk(), (inner_channels,), jnp.float32, 0.5, 1.5)
        beta = 0.1 * jax.random.normal(nk(), (inner_channels,), jnp.float32)
        mean = 0.1 * jax.random.normal(nk(), (inner_channels,), jnp.float32)
        var = jax.random.uniform(nk(), (inner_channels,), jnp.float32, 0.5, 1.5)
        scale = gamma / jnp.sqrt(var + _BN_EPS)            # BN eval-mode fold
        shift = (b - mean) * scale + beta
        blocks.append({"w": w, "scale": scale, "shift": shift})
        cin = inner_channels
    params["blocks"] = blocks

    params["cls"] = {
        "w": conv_w(nk(), (3, 3, inner_channels, 1)),
        "b": jax.random.uniform(nk(), (1,), jnp.float32, -0.1, 0.1),
    }
    return params


# ----------------------------------------------------------------------------
# Change_v1 forward (inference / eval mode)
# ----------------------------------------------------------------------------
def change_v1_forward(params, x_btchw, inference_mode="t1t2", scale_factor=4.0):
    B, T, C, H, W = x_btchw.shape
    assert T == 2, "bitemporal input expected"
    if inference_mode not in ("t1t2", "t2t1", "mean"):
        raise ValueError(f"Unknown inference_mode: {inference_mode}")

    F = params["fe"]["w"].shape[-1]
    IC = params["blocks"][0]["w"].shape[-1]
    num_convs = len(params["blocks"])
    Ho = int(math.floor(H * scale_factor))     # UpsamplingBilinear2d uses floor
    Wo = int(math.floor(W * scale_factor))
    Cmax = max(C, 2 * F, IC)

    Wp = W + 2
    Np = (H + 2) * Wp
    # left margin is a multiple of 128 so write-back stores are lane-aligned;
    # right margin only needs to cover the largest halo shift (W + 3).
    LPAD = ((Wp + 1 + 127) // 128) * 128
    RPAD = Wp + 2
    NPAD = LPAD + Np + RPAD

    # zero-pad + flatten spatial once in the wrapper (layout plumbing, tiny) and
    # cast to bf16: the input is only ever an MXU operand inside the kernel.
    xp = jnp.pad(x_btchw.astype(jnp.float32),
                 ((0, 0), (0, 0), (0, 0), (1, 1), (1, 1)))
    xp = xp.reshape(B, T, C, Np).astype(jnp.bfloat16)

    # interior (non-padding-ring) mask over the flat padded spatial axis
    ys = jnp.arange(H + 2)
    xs = jnp.arange(W + 2)
    m2 = ((ys >= 1) & (ys <= H))[:, None] & ((xs >= 1) & (xs <= W))[None, :]
    mask = m2.reshape(1, Np).astype(jnp.float32)

    def prep_w(w):   # (3,3,cin,cout) -> (9, cout, cin) bf16 per-tap MXU LHS
        k1, k2, cin, cout = w.shape
        return (jnp.transpose(w, (0, 1, 3, 2))
                .reshape(k1 * k2, cout, cin).astype(jnp.bfloat16))

    wfe = prep_w(params["fe"]["w"])                                   # (9, F, C)
    scfe = jnp.ones((F, 1), jnp.float32)
    shfe = params["fe"]["b"].reshape(F, 1).astype(jnp.float32)

    blk_arrays, blk_specs = [], []
    cin = 2 * F
    for blkp in params["blocks"]:
        blk_arrays += [
            prep_w(blkp["w"]),                                        # (9, IC, cin)
            blkp["scale"].reshape(IC, 1).astype(jnp.float32),
            blkp["shift"].reshape(IC, 1).astype(jnp.float32),
        ]
        blk_specs += [_full_spec((9, IC, cin)), _full_spec((IC, 1)),
                      _full_spec((IC, 1))]
        cin = IC

    # cls conv: zero-pad Cout 1 -> 8 so the MXU output is a full sublane tile.
    wcls = (jnp.zeros((9, 8, IC), jnp.float32)
            .at[:, 0:1, :].set(jnp.transpose(params["cls"]["w"], (0, 1, 3, 2))
                               .reshape(9, 1, IC))
            .astype(jnp.bfloat16))
    bcls = params["cls"]["b"].reshape(1, 1).astype(jnp.float32)

    ah = _bilinear_matrix(H, Ho).astype(jnp.bfloat16)                 # (Ho, H)
    awt = _bilinear_matrix(W, Wo).T.astype(jnp.bfloat16)              # (W, Wo)

    # Grid over (batch, direction).  Only the requested temporal order is
    # computed unless inference_mode == 'mean' (then both directions).
    if inference_mode == "mean":
        D = 2
        xa_map = lambda b, d: (b, d, 0, 0)
        xb_map = lambda b, d: (b, 1 - d, 0, 0)
    else:
        D = 1
        o = 0 if inference_mode == "t1t2" else 1
        xa_map = lambda b, d, _o=o: (b, _o, 0, 0)
        xb_map = lambda b, d, _o=o: (b, 1 - _o, 0, 0)

    kernel = functools.partial(_change_fused_kernel, H=H, W=W, C=C, F=F, IC=IC,
                               num_convs=num_convs, lpad=LPAD)

    out = pl.pallas_call(
        kernel,
        out_shape=jax.ShapeDtypeStruct((B, D, Ho, Wo), jnp.float32),
        grid=(B, D),
        in_specs=[
            pl.BlockSpec((1, 1, C, Np), xa_map),
            pl.BlockSpec((1, 1, C, Np), xb_map),
            _full_spec((1, Np)),         # interior mask
            _full_spec((9, F, C)),       # feature-extractor weights
            _full_spec((F, 1)),          # fe scale
            _full_spec((F, 1)),          # fe shift (bias)
            *blk_specs,
            _full_spec((9, 8, IC)),      # cls weights (Cout padded to 8)
            _full_spec((1, 1)),          # cls bias
            _full_spec((Ho, H)),         # row upsample matrix
            _full_spec((W, Wo)),         # col upsample matrix (pre-transposed)
        ],
        out_specs=pl.BlockSpec((1, 1, Ho, Wo), lambda b, d: (b, d, 0, 0)),
        scratch_shapes=[pltpu.VMEM((Cmax, NPAD), jnp.bfloat16)],   # activations
        compiler_params=pltpu.CompilerParams(
            dimension_semantics=("parallel", "parallel")),
    )(xp, xp, mask, wfe, scfe, shfe, *blk_arrays, wcls, bcls, ah, awt)

    prob = out.mean(axis=1) if inference_mode == "mean" else out[:, 0]
    return {"change_prob": prob[:, None, :, :]}       # (B, 1, H*sf, W*sf)


if __name__ == "__main__":
    key = jax.random.PRNGKey(0)
    pkey, xkey = jax.random.split(key)

    # small synthetic config
    B, T, C, H, W = 2, 2, 4, 16, 16
    F, inner_channels, num_convs, scale_factor = 8, 16, 2, 4.0

    params = init_params(pkey, C, F, inner_channels, num_convs)
    x = jax.random.normal(xkey, (B, T, C, H, W), jnp.float32)

    out = change_v1_forward(params, x, inference_mode="t1t2",
                            scale_factor=scale_factor)
    out = jax.block_until_ready(out)

    cp = out["change_prob"]
    assert cp.shape == (B, 1, int(H * scale_factor), int(W * scale_factor)), cp.shape
    assert bool(jnp.all(jnp.isfinite(cp))), "non-finite output"
    assert bool(jnp.all((cp >= 0.0) & (cp <= 1.0))), "probabilities out of range"
    print("KERNEL_OK")
</pallas_src>

<mosaic_0001>
module attributes {stable_mosaic.version = 11 : i64} {
  func.func @_change_fused_kernel(%arg0: i32, %arg1: i32, %arg2: memref<1x1x4x324xbf16, #tpu.memory_space<vmem>>, %arg3: memref<1x1x4x324xbf16, #tpu.memory_space<vmem>>, %arg4: memref<1x324xf32, #tpu.memory_space<vmem>>, %arg5: memref<9x8x4xbf16, #tpu.memory_space<vmem>>, %arg6: memref<8x1xf32, #tpu.memory_space<vmem>>, %arg7: memref<8x1xf32, #tpu.memory_space<vmem>>, %arg8: memref<9x16x16xbf16, #tpu.memory_space<vmem>>, %arg9: memref<16x1xf32, #tpu.memory_space<vmem>>, %arg10: memref<16x1xf32, #tpu.memory_space<vmem>>, %arg11: memref<9x16x16xbf16, #tpu.memory_space<vmem>>, %arg12: memref<16x1xf32, #tpu.memory_space<vmem>>, %arg13: memref<16x1xf32, #tpu.memory_space<vmem>>, %arg14: memref<9x8x16xbf16, #tpu.memory_space<vmem>>, %arg15: memref<1x1xf32, #tpu.memory_space<vmem>>, %arg16: memref<64x16xbf16, #tpu.memory_space<vmem>>, %arg17: memref<16x64xbf16, #tpu.memory_space<vmem>>, %arg18: memref<1x1x64x64xf32, #tpu.memory_space<vmem>>, %arg19: memref<16x472xbf16, #tpu.memory_space<vmem>>) attributes {dimension_semantics = [#tpu.dimension_semantics<parallel>, #tpu.dimension_semantics<parallel>], iteration_bounds = array<i64: 2, 1>, scalar_prefetch = 0 : i64, scratch_operands = 1 : i64, tpu.core_type = #tpu.core_type<tc>, window_params = [{transform_indices = @transform_0, window_bounds = array<i64: 1, 1, 4, 324>}, {transform_indices = @transform_1, window_bounds = array<i64: 1, 1, 4, 324>}, {pipeline_mode = #tpu.pipeline_mode<synchronous>, transform_indices = @transform_2, window_bounds = array<i64: 1, 324>}, {pipeline_mode = #tpu.pipeline_mode<synchronous>, transform_indices = @transform_3, window_bounds = array<i64: 9, 8, 4>}, {pipeline_mode = #tpu.pipeline_mode<synchronous>, transform_indices = @transform_4, window_bounds = array<i64: 8, 1>}, {pipeline_mode = #tpu.pipeline_mode<synchronous>, transform_indices = @transform_5, window_bounds = array<i64: 8, 1>}, {pipeline_mode = #tpu.pipeline_mode<synchronous>, transform_indices = @transform_6, window_bounds = array<i64: 9, 16, 16>}, {pipeline_mode = #tpu.pipeline_mode<synchronous>, transform_indices = @transform_7, window_bounds = array<i64: 16, 1>}, {pipeline_mode = #tpu.pipeline_mode<synchronous>, transform_indices = @transform_8, window_bounds = array<i64: 16, 1>}, {pipeline_mode = #tpu.pipeline_mode<synchronous>, transform_indices = @transform_9, window_bounds = array<i64: 9, 16, 16>}, {pipeline_mode = #tpu.pipeline_mode<synchronous>, transform_indices = @transform_10, window_bounds = array<i64: 16, 1>}, {pipeline_mode = #tpu.pipeline_mode<synchronous>, transform_indices = @transform_11, window_bounds = array<i64: 16, 1>}, {pipeline_mode = #tpu.pipeline_mode<synchronous>, transform_indices = @transform_12, window_bounds = array<i64: 9, 8, 16>}, {pipeline_mode = #tpu.pipeline_mode<synchronous>, transform_indices = @transform_13, window_bounds = array<i64: 1, 1>}, {pipeline_mode = #tpu.pipeline_mode<synchronous>, transform_indices = @transform_14, window_bounds = array<i64: 64, 16>}, {pipeline_mode = #tpu.pipeline_mode<synchronous>, transform_indices = @transform_15, window_bounds = array<i64: 16, 64>}, {transform_indices = @transform_16, window_bounds = array<i64: 1, 1, 64, 64>}]} {
    %c0 = arith.constant 0 : index
    %c0_0 = arith.constant 0 : index
    %0 = vector.load %arg4[%c0, %c0_0] : memref<1x324xf32, #tpu.memory_space<vmem>>, vector<1x324xf32>
    %cst = arith.constant 0.000000e+00 : f32
    %1 = vector.broadcast %cst : f32 to vector<1x324xf32>
    %2 = arith.cmpf one, %0, %1 : vector<1x324xf32>
    %c0_1 = arith.constant 0 : index
    %c0_2 = arith.constant 0 : index
    %c0_3 = arith.constant 0 : index
    %c0_4 = arith.constant 0 : index
    %3 = vector.load %arg3[%c0_1, %c0_2, %c0_3, %c0_4] : memref<1x1x4x324xbf16, #tpu.memory_space<vmem>>, vector<1x1x4x324xbf16>
    %4 = vector.shape_cast %3 : vector<1x1x4x324xbf16> to vector<4x324xbf16>
    %c0_5 = arith.constant 0 : index
    %c128 = arith.constant 128 : index
    %5 = vector.load %arg19[%c0_5, %c128] : memref<16x472xbf16, #tpu.memory_space<vmem>>, vector<4x324xbf16>
    tpu.vector_store %arg19[%c0_5, %c128], %4 {strides = array<i32>} : memref<16x472xbf16, #tpu.memory_space<vmem>>, vector<4x324xbf16>,
    %c0_6 = arith.constant 0 : index
    %c109 = arith.constant 109 : index
    %6 = vector.load %arg19[%c0_6, %c109] : memref<16x472xbf16, #tpu.memory_space<vmem>>, vector<4x324xbf16>
    %c0_7 = arith.constant 0 : index
    %c0_8 = arith.constant 0 : index
    %c0_9 = arith.constant 0 : index
    %7 = vector.load %arg5[%c0_7, %c0_8, %c0_9] : memref<9x8x4xbf16, #tpu.memory_space<vmem>>, vector<1x8x4xbf16>
    %8 = vector.shape_cast %7 : vector<1x8x4xbf16> to vector<8x4xbf16>
    %cst_10 = arith.constant dense<0.000000e+00> : vector<8x324xf32>
    %9 = tpu.matmul %8, %6, %cst_10 {dimension_numbers = #tpu.dot_dimension_numbers<[1], [0], [0], [1], [0, 0, 1, 1], [], []>} : vector<8x4xbf16>, vector<4x324xbf16>, vector<8x324xf32> -> vector<8x324xf32>
    %c0_11 = arith.constant 0 : index
    %c110 = arith.constant 110 : index
    %10 = vector.load %arg19[%c0_11, %c110] : memref<16x472xbf16, #tpu.memory_space<vmem>>, vector<4x324xbf16>
    %c1 = arith.constant 1 : index
    %c0_12 = arith.constant 0 : index
    %c0_13 = arith.constant 0 : index
    %11 = vector.load %arg5[%c1, %c0_12, %c0_13] : memref<9x8x4xbf16, #tpu.memory_space<vmem>>, vector<1x8x4xbf16>
    %12 = vector.shape_cast %11 : vector<1x8x4xbf16> to vector<8x4xbf16>
    %cst_14 = arith.constant dense<0.000000e+00> : vector<8x324xf32>
    %13 = tpu.matmul %12, %10, %cst_14 {dimension_numbers = #tpu.dot_dimension_numbers<[1], [0], [0], [1], [0, 0, 1, 1], [], []>} : vector<8x4xbf16>, vector<4x324xbf16>, vector<8x324xf32> -> vector<8x324xf32>
    %14 = arith.addf %9, %13 : vector<8x324xf32>
    %c0_15 = arith.constant 0 : index
    %c111 = arith.constant 111 : index
    %15 = vector.load %arg19[%c0_15, %c111] : memref<16x472xbf16, #tpu.memory_space<vmem>>, vector<4x324xbf16>
    %c2 = arith.constant 2 : index
    %c0_16 = arith.constant 0 : index
    %c0_17 = arith.constant 0 : index
    %16 = vector.load %arg5[%c2, %c0_16, %c0_17] : memref<9x8x4xbf16, #tpu.memory_space<vmem>>, vector<1x8x4xbf16>
    %17 = vector.shape_cast %16 : vector<1x8x4xbf16> to vector<8x4xbf16>
    %cst_18 = arith.constant dense<0.000000e+00> : vector<8x324xf32>
    %18 = tpu.matmul %17, %15, %cst_18 {dimension_numbers = #tpu.dot_dimension_numbers<[1], [0], [0], [1], [0, 0, 1, 1], [], []>} : vector<8x4xbf16>, vector<4x324xbf16>, vector<8x324xf32> -> vector<8x324xf32>
    %19 = arith.addf %14, %18 : vector<8x324xf32>
    %c0_19 = arith.constant 0 : index
    %c127 = arith.constant 127 : index
    %20 = vector.load %arg19[%c0_19, %c127] : memref<16x472xbf16, #tpu.memory_space<vmem>>, vector<4x324xbf16>
    %c3 = arith.constant 3 : index
    %c0_20 = arith.constant 0 : index
    %c0_21 = arith.constant 0 : index
    %21 = vector.load %arg5[%c3, %c0_20, %c0_21] : memref<9x8x4xbf16, #tpu.memory_space<vmem>>, vector<1x8x4xbf16>
    %22 = vector.shape_cast %21 : vector<1x8x4xbf16> to vector<8x4xbf16>
    %cst_22 = arith.constant dense<0.000000e+00> : vector<8x324xf32>
    %23 = tpu.matmul %22, %20, %cst_22 {dimension_numbers = #tpu.dot_dimension_numbers<[1], [0], [0], [1], [0, 0, 1, 1], [], []>} : vector<8x4xbf16>, vector<4x324xbf16>, vector<8x324xf32> -> vector<8x324xf32>
    %24 = arith.addf %19, %23 : vector<8x324xf32>
    %c0_23 = arith.constant 0 : index
    %c128_24 = arith.constant 128 : index
    %25 = vector.load %arg19[%c0_23, %c128_24] : memref<16x472xbf16, #tpu.memory_space<vmem>>, vector<4x324xbf16>
    %c4 = arith.constant 4 : index
    %c0_25 = arith.constant 0 : index
    %c0_26 = arith.constant 0 : index
    %26 = vector.load %arg5[%c4, %c0_25, %c0_26] : memref<9x8x4xbf16, #tpu.memory_space<vmem>>, vector<1x8x4xbf16>
    %27 = vector.shape_cast %26 : vector<1x8x4xbf16> to vector<8x4xbf16>
    %cst_27 = arith.constant dense<0.000000e+00> : vector<8x324xf32>
    %28 = tpu.matmul %27, %25, %cst_27 {dimension_numbers = #tpu.dot_dimension_numbers<[1], [0], [0], [1], [0, 0, 1, 1], [], []>} : vector<8x4xbf16>, vector<4x324xbf16>, vector<8x324xf32> -> vector<8x324xf32>
    %29 = arith.addf %24, %28 : vector<8x324xf32>
    %c0_28 = arith.constant 0 : index
    %c129 = arith.constant 129 : index
    %30 = vector.load %arg19[%c0_28, %c129] : memref<16x472xbf16, #tpu.memory_space<vmem>>, vector<4x324xbf16>
    %c5 = arith.constant 5 : index
    %c0_29 = arith.constant 0 : index
    %c0_30 = arith.constant 0 : index
    %31 = vector.load %arg5[%c5, %c0_29, %c0_30] : memref<9x8x4xbf16, #tpu.memory_space<vmem>>, vector<1x8x4xbf16>
    %32 = vector.shape_cast %31 : vector<1x8x4xbf16> to vector<8x4xbf16>
    %cst_31 = arith.constant dense<0.000000e+00> : vector<8x324xf32>
    %33 = tpu.matmul %32, %30, %cst_31 {dimension_numbers = #tpu.dot_dimension_numbers<[1], [0], [0], [1], [0, 0, 1, 1], [], []>} : vector<8x4xbf16>, vector<4x324xbf16>, vector<8x324xf32> -> vector<8x324xf32>
    %34 = arith.addf %29, %33 : vector<8x324xf32>
    %c0_32 = arith.constant 0 : index
    %c145 = arith.constant 145 : index
    %35 = vector.load %arg19[%c0_32, %c145] : memref<16x472xbf16, #tpu.memory_space<vmem>>, vector<4x324xbf16>
    %c6 = arith.constant 6 : index
    %c0_33 = arith.constant 0 : index
    %c0_34 = arith.constant 0 : index
    %36 = vector.load %arg5[%c6, %c0_33, %c0_34] : memref<9x8x4xbf16, #tpu.memory_space<vmem>>, vector<1x8x4xbf16>
    %37 = vector.shape_cast %36 : vector<1x8x4xbf16> to vector<8x4xbf16>
    %cst_35 = arith.constant dense<0.000000e+00> : vector<8x324xf32>
    %38 = tpu.matmul %37, %35, %cst_35 {dimension_numbers = #tpu.dot_dimension_numbers<[1], [0], [0], [1], [0, 0, 1, 1], [], []>} : vector<8x4xbf16>, vector<4x324xbf16>, vector<8x324xf32> -> vector<8x324xf32>
    %39 = arith.addf %34, %38 : vector<8x324xf32>
    %c0_36 = arith.constant 0 : index
    %c146 = arith.constant 146 : index
    %40 = vector.load %arg19[%c0_36, %c146] : memref<16x472xbf16, #tpu.memory_space<vmem>>, vector<4x324xbf16>
    %c7 = arith.constant 7 : index
    %c0_37 = arith.constant 0 : index
    %c0_38 = arith.constant 0 : index
    %41 = vector.load %arg5[%c7, %c0_37, %c0_38] : memref<9x8x4xbf16, #tpu.memory_space<vmem>>, vector<1x8x4xbf16>
    %42 = vector.shape_cast %41 : vector<1x8x4xbf16> to vector<8x4xbf16>
    %cst_39 = arith.constant dense<0.000000e+00> : vector<8x324xf32>
    %43 = tpu.matmul %42, %40, %cst_39 {dimension_numbers = #tpu.dot_dimension_numbers<[1], [0], [0], [1], [0, 0, 1, 1], [], []>} : vector<8x4xbf16>, vector<4x324xbf16>, vector<8x324xf32> -> vector<8x324xf32>
    %44 = arith.addf %39, %43 : vector<8x324xf32>
    %c0_40 = arith.constant 0 : index
    %c147 = arith.constant 147 : index
    %45 = vector.load %arg19[%c0_40, %c147] : memref<16x472xbf16, #tpu.memory_space<vmem>>, vector<4x324xbf16>
    %c8 = arith.constant 8 : index
    %c0_41 = arith.constant 0 : index
    %c0_42 = arith.constant 0 : index
    %46 = vector.load %arg5[%c8, %c0_41, %c0_42] : memref<9x8x4xbf16, #tpu.memory_space<vmem>>, vector<1x8x4xbf16>
    %47 = vector.shape_cast %46 : vector<1x8x4xbf16> to vector<8x4xbf16>
    %cst_43 = arith.constant dense<0.000000e+00> : vector<8x324xf32>
    %48 = tpu.matmul %47, %45, %cst_43 {dimension_numbers = #tpu.dot_dimension_numbers<[1], [0], [0], [1], [0, 0, 1, 1], [], []>} : vector<8x4xbf16>, vector<4x324xbf16>, vector<8x324xf32> -> vector<8x324xf32>
    %49 = arith.addf %44, %48 : vector<8x324xf32>
    %c0_44 = arith.constant 0 : index
    %c0_45 = arith.constant 0 : index
    %50 = vector.load %arg6[%c0_44, %c0_45] : memref<8x1xf32, #tpu.memory_space<vmem>>, vector<8x1xf32>
    %51 = vector.broadcast %50 : vector<8x1xf32> to vector<8x324xf32>
    %52 = arith.mulf %49, %51 : vector<8x324xf32>
    %c0_46 = arith.constant 0 : index
    %c0_47 = arith.constant 0 : index
    %53 = vector.load %arg7[%c0_46, %c0_47] : memref<8x1xf32, #tpu.memory_space<vmem>>, vector<8x1xf32>
    %54 = vector.broadcast %53 : vector<8x1xf32> to vector<8x324xf32>
    %55 = arith.addf %52, %54 : vector<8x324xf32>
    %cst_48 = arith.constant 0.000000e+00 : f32
    %56 = vector.broadcast %cst_48 : f32 to vector<8x324xf32>
    %57 = arith.maximumf %55, %56 : vector<8x324xf32>
    %cst_49 = arith.constant 0.000000e+00 : f32
    %58 = vector.shape_cast %2 : vector<1x324xi1> to vector<1x324xi1>
    %59 = vector.broadcast %58 : vector<1x324xi1> to vector<8x324xi1>
    %60 = vector.broadcast %cst_49 : f32 to vector<8x324xf32>
    %61 = arith.select %59, %57, %60 : vector<8x324xi1>, vector<8x324xf32>
    %62 = arith.truncf %61 : vector<8x324xf32> to vector<8x324xbf16>
    %c0_50 = arith.constant 0 : index
    %c0_51 = arith.constant 0 : index
    %c0_52 = arith.constant 0 : index
    %c0_53 = arith.constant 0 : index
    %63 = vector.load %arg2[%c0_50, %c0_51, %c0_52, %c0_53] : memref<1x1x4x324xbf16, #tpu.memory_space<vmem>>, vector<1x1x4x324xbf16>
    %64 = vector.shape_cast %63 : vector<1x1x4x324xbf16> to vector<4x324xbf16>
    %c0_54 = arith.constant 0 : index
    %c128_55 = arith.constant 128 : index
    %65 = vector.load %arg19[%c0_54, %c128_55] : memref<16x472xbf16, #tpu.memory_space<vmem>>, vector<4x324xbf16>
    tpu.vector_store %arg19[%c0_54, %c128_55], %64 {strides = array<i32>} : memref<16x472xbf16, #tpu.memory_space<vmem>>, vector<4x324xbf16>,
    %c0_56 = arith.constant 0 : index
    %c109_57 = arith.constant 109 : index
    %66 = vector.load %arg19[%c0_56, %c109_57] : memref<16x472xbf16, #tpu.memory_space<vmem>>, vector<4x324xbf16>
    %c0_58 = arith.constant 0 : index
    %c0_59 = arith.constant 0 : index
    %c0_60 = arith.constant 0 : index
    %67 = vector.load %arg5[%c0_58, %c0_59, %c0_60] : memref<9x8x4xbf16, #tpu.memory_space<vmem>>, vector<1x8x4xbf16>
    %68 = vector.shape_cast %67 : vector<1x8x4xbf16> to vector<8x4xbf16>
    %cst_61 = arith.constant dense<0.000000e+00> : vector<8x324xf32>
    %69 = tpu.matmul %68, %66, %cst_61 {dimension_numbers = #tpu.dot_dimension_numbers<[1], [0], [0], [1], [0, 0, 1, 1], [], []>} : vector<8x4xbf16>, vector<4x324xbf16>, vector<8x324xf32> -> vector<8x324xf32>
    %c0_62 = arith.constant 0 : index
    %c110_63 = arith.constant 110 : index
    %70 = vector.load %arg19[%c0_62, %c110_63] : memref<16x472xbf16, #tpu.memory_space<vmem>>, vector<4x324xbf16>
    %c1_64 = arith.constant 1 : index
    %c0_65 = arith.constant 0 : index
    %c0_66 = arith.constant 0 : index
    %71 = vector.load %arg5[%c1_64, %c0_65, %c0_66] : memref<9x8x4xbf16, #tpu.memory_space<vmem>>, vector<1x8x4xbf16>
    %72 = vector.shape_cast %71 : vector<1x8x4xbf16> to vector<8x4xbf16>
    %cst_67 = arith.constant dense<0.000000e+00> : vector<8x324xf32>
    %73 = tpu.matmul %72, %70, %cst_67 {dimension_numbers = #tpu.dot_dimension_numbers<[1], [0], [0], [1], [0, 0, 1, 1], [], []>} : vector<8x4xbf16>, vector<4x324xbf16>, vector<8x324xf32> -> vector<8x324xf32>
    %74 = arith.addf %69, %73 : vector<8x324xf32>
    %c0_68 = arith.constant 0 : index
    %c111_69 = arith.constant 111 : index
    %75 = vector.load %arg19[%c0_68, %c111_69] : memref<16x472xbf16, #tpu.memory_space<vmem>>, vector<4x324xbf16>
    %c2_70 = arith.constant 2 : index
    %c0_71 = arith.constant 0 : index
    %c0_72 = arith.constant 0 : index
    %76 = vector.load %arg5[%c2_70, %c0_71, %c0_72] : memref<9x8x4xbf16, #tpu.memory_space<vmem>>, vector<1x8x4xbf16>
    %77 = vector.shape_cast %76 : vector<1x8x4xbf16> to vector<8x4xbf16>
    %cst_73 = arith.constant dense<0.000000e+00> : vector<8x324xf32>
    %78 = tpu.matmul %77, %75, %cst_73 {dimension_numbers = #tpu.dot_dimension_numbers<[1], [0], [0], [1], [0, 0, 1, 1], [], []>} : vector<8x4xbf16>, vector<4x324xbf16>, vector<8x324xf32> -> vector<8x324xf32>
    %79 = arith.addf %74, %78 : vector<8x324xf32>
    %c0_74 = arith.constant 0 : index
    %c127_75 = arith.constant 127 : index
    %80 = vector.load %arg19[%c0_74, %c127_75] : memref<16x472xbf16, #tpu.memory_space<vmem>>, vector<4x324xbf16>
    %c3_76 = arith.constant 3 : index
    %c0_77 = arith.constant 0 : index
    %c0_78 = arith.constant 0 : index
    %81 = vector.load %arg5[%c3_76, %c0_77, %c0_78] : memref<9x8x4xbf16, #tpu.memory_space<vmem>>, vector<1x8x4xbf16>
    %82 = vector.shape_cast %81 : vector<1x8x4xbf16> to vector<8x4xbf16>
    %cst_79 = arith.constant dense<0.000000e+00> : vector<8x324xf32>
    %83 = tpu.matmul %82, %80, %cst_79 {dimension_numbers = #tpu.dot_dimension_numbers<[1], [0], [0], [1], [0, 0, 1, 1], [], []>} : vector<8x4xbf16>, vector<4x324xbf16>, vector<8x324xf32> -> vector<8x324xf32>
    %84 = arith.addf %79, %83 : vector<8x324xf32>
    %c0_80 = arith.constant 0 : index
    %c128_81 = arith.constant 128 : index
    %85 = vector.load %arg19[%c0_80, %c128_81] : memref<16x472xbf16, #tpu.memory_space<vmem>>, vector<4x324xbf16>
    %c4_82 = arith.constant 4 : index
    %c0_83 = arith.constant 0 : index
    %c0_84 = arith.constant 0 : index
    %86 = vector.load %arg5[%c4_82, %c0_83, %c0_84] : memref<9x8x4xbf16, #tpu.memory_space<vmem>>, vector<1x8x4xbf16>
    %87 = vector.shape_cast %86 : vector<1x8x4xbf16> to vector<8x4xbf16>
    %cst_85 = arith.constant dense<0.000000e+00> : vector<8x324xf32>
    %88 = tpu.matmul %87, %85, %cst_85 {dimension_numbers = #tpu.dot_dimension_numbers<[1], [0], [0], [1], [0, 0, 1, 1], [], []>} : vector<8x4xbf16>, vector<4x324xbf16>, vector<8x324xf32> -> vector<8x324xf32>
    %89 = arith.addf %84, %88 : vector<8x324xf32>
    %c0_86 = arith.constant 0 : index
    %c129_87 = arith.constant 129 : index
    %90 = vector.load %arg19[%c0_86, %c129_87] : memref<16x472xbf16, #tpu.memory_space<vmem>>, vector<4x324xbf16>
    %c5_88 = arith.constant 5 : index
    %c0_89 = arith.constant 0 : index
    %c0_90 = arith.constant 0 : index
    %91 = vector.load %arg5[%c5_88, %c0_89, %c0_90] : memref<9x8x4xbf16, #tpu.memory_space<vmem>>, vector<1x8x4xbf16>
    %92 = vector.shape_cast %91 : vector<1x8x4xbf16> to vector<8x4xbf16>
    %cst_91 = arith.constant dense<0.000000e+00> : vector<8x324xf32>
    %93 = tpu.matmul %92, %90, %cst_91 {dimension_numbers = #tpu.dot_dimension_numbers<[1], [0], [0], [1], [0, 0, 1, 1], [], []>} : vector<8x4xbf16>, vector<4x324xbf16>, vector<8x324xf32> -> vector<8x324xf32>
    %94 = arith.addf %89, %93 : vector<8x324xf32>
    %c0_92 = arith.constant 0 : index
    %c145_93 = arith.constant 145 : index
    %95 = vector.load %arg19[%c0_92, %c145_93] : memref<16x472xbf16, #tpu.memory_space<vmem>>, vector<4x324xbf16>
    %c6_94 = arith.constant 6 : index
    %c0_95 = arith.constant 0 : index
    %c0_96 = arith.constant 0 : index
    %96 = vector.load %arg5[%c6_94, %c0_95, %c0_96] : memref<9x8x4xbf16, #tpu.memory_space<vmem>>, vector<1x8x4xbf16>
    %97 = vector.shape_cast %96 : vector<1x8x4xbf16> to vector<8x4xbf16>
    %cst_97 = arith.constant dense<0.000000e+00> : vector<8x324xf32>
    %98 = tpu.matmul %97, %95, %cst_97 {dimension_numbers = #tpu.dot_dimension_numbers<[1], [0], [0], [1], [0, 0, 1, 1], [], []>} : vector<8x4xbf16>, vector<4x324xbf16>, vector<8x324xf32> -> vector<8x324xf32>
    %99 = arith.addf %94, %98 : vector<8x324xf32>
    %c0_98 = arith.constant 0 : index
    %c146_99 = arith.constant 146 : index
    %100 = vector.load %arg19[%c0_98, %c146_99] : memref<16x472xbf16, #tpu.memory_space<vmem>>, vector<4x324xbf16>
    %c7_100 = arith.constant 7 : index
    %c0_101 = arith.constant 0 : index
    %c0_102 = arith.constant 0 : index
    %101 = vector.load %arg5[%c7_100, %c0_101, %c0_102] : memref<9x8x4xbf16, #tpu.memory_space<vmem>>, vector<1x8x4xbf16>
    %102 = vector.shape_cast %101 : vector<1x8x4xbf16> to vector<8x4xbf16>
    %cst_103 = arith.constant dense<0.000000e+00> : vector<8x324xf32>
    %103 = tpu.matmul %102, %100, %cst_103 {dimension_numbers = #tpu.dot_dimension_numbers<[1], [0], [0], [1], [0, 0, 1, 1], [], []>} : vector<8x4xbf16>, vector<4x324xbf16>, vector<8x324xf32> -> vector<8x324xf32>
    %104 = arith.addf %99, %103 : vector<8x324xf32>
    %c0_104 = arith.constant 0 : index
    %c147_105 = arith.constant 147 : index
    %105 = vector.load %arg19[%c0_104, %c147_105] : memref<16x472xbf16, #tpu.memory_space<vmem>>, vector<4x324xbf16>
    %c8_106 = arith.constant 8 : index
    %c0_107 = arith.constant 0 : index
    %c0_108 = arith.constant 0 : index
    %106 = vector.load %arg5[%c8_106, %c0_107, %c0_108] : memref<9x8x4xbf16, #tpu.memory_space<vmem>>, vector<1x8x4xbf16>
    %107 = vector.shape_cast %106 : vector<1x8x4xbf16> to vector<8x4xbf16>
    %cst_109 = arith.constant dense<0.000000e+00> : vector<8x324xf32>
    %108 = tpu.matmul %107, %105, %cst_109 {dimension_numbers = #tpu.dot_dimension_numbers<[1], [0], [0], [1], [0, 0, 1, 1], [], []>} : vector<8x4xbf16>, vector<4x324xbf16>, vector<8x324xf32> -> vector<8x324xf32>
    %109 = arith.addf %104, %108 : vector<8x324xf32>
    %c0_110 = arith.constant 0 : index
    %c0_111 = arith.constant 0 : index
    %110 = vector.load %arg6[%c0_110, %c0_111] : memref<8x1xf32, #tpu.memory_space<vmem>>, vector<8x1xf32>
    %111 = vector.broadcast %110 : vector<8x1xf32> to vector<8x324xf32>
    %112 = arith.mulf %109, %111 : vector<8x324xf32>
    %c0_112 = arith.constant 0 : index
    %c0_113 = arith.constant 0 : index
    %113 = vector.load %arg7[%c0_112, %c0_113] : memref<8x1xf32, #tpu.memory_space<vmem>>, vector<8x1xf32>
    %114 = vector.broadcast %113 : vector<8x1xf32> to vector<8x324xf32>
    %115 = arith.addf %112, %114 : vector<8x324xf32>
    %cst_114 = arith.constant 0.000000e+00 : f32
    %116 = vector.broadcast %cst_114 : f32 to vector<8x324xf32>
    %117 = arith.maximumf %115, %116 : vector<8x324xf32>
    %cst_115 = arith.constant 0.000000e+00 : f32
    %118 = vector.shape_cast %2 : vector<1x324xi1> to vector<1x324xi1>
    %119 = vector.broadcast %118 : vector<1x324xi1> to vector<8x324xi1>
    %120 = vector.broadcast %cst_115 : f32 to vector<8x324xf32>
    %121 = arith.select %119, %117, %120 : vector<8x324xi1>, vector<8x324xf32>
    %122 = arith.truncf %121 : vector<8x324xf32> to vector<8x324xbf16>
    %c0_116 = arith.constant 0 : index
    %c128_117 = arith.constant 128 : index
    %123 = vector.load %arg19[%c0_116, %c128_117] : memref<16x472xbf16, #tpu.memory_space<vmem>>, vector<8x324xbf16>
    tpu.vector_store %arg19[%c0_116, %c128_117], %122 {strides = array<i32>} : memref<16x472xbf16, #tpu.memory_space<vmem>>, vector<8x324xbf16>,
    %c8_118 = arith.constant 8 : index
    %c128_119 = arith.constant 128 : index
    %124 = vector.load %arg19[%c8_118, %c128_119] : memref<16x472xbf16, #tpu.memory_space<vmem>>, vector<8x324xbf16>
    tpu.vector_store %arg19[%c8_118, %c128_119], %62 {strides = array<i32>} : memref<16x472xbf16, #tpu.memory_space<vmem>>, vector<8x324xbf16>,
    %c0_120 = arith.constant 0 : index
    %c109_121 = arith.constant 109 : index
    %125 = vector.load %arg19[%c0_120, %c109_121] : memref<16x472xbf16, #tpu.memory_space<vmem>>, vector<16x324xbf16>
    %c0_122 = arith.constant 0 : index
    %c0_123 = arith.constant 0 : index
    %c0_124 = arith.constant 0 : index
    %126 = vector.load %arg8[%c0_122, %c0_123, %c0_124] : memref<9x16x16xbf16, #tpu.memory_space<vmem>>, vector<1x16x16xbf16>
    %127 = vector.shape_cast %126 : vector<1x16x16xbf16> to vector<16x16xbf16>
    %cst_125 = arith.constant dense<0.000000e+00> : vector<16x324xf32>
    %128 = tpu.matmul %127, %125, %cst_125 {dimension_numbers = #tpu.dot_dimension_numbers<[1], [0], [0], [1], [0, 0, 1, 1], [], []>} : vector<16x16xbf16>, vector<16x324xbf16>, vector<16x324xf32> -> vector<16x324xf32>
    %c0_126 = arith.constant 0 : index
    %c110_127 = arith.constant 110 : index
    %129 = vector.load %arg19[%c0_126, %c110_127] : memref<16x472xbf16, #tpu.memory_space<vmem>>, vector<16x324xbf16>
    %c1_128 = arith.constant 1 : index
    %c0_129 = arith.constant 0 : index
    %c0_130 = arith.constant 0 : index
    %130 = vector.load %arg8[%c1_128, %c0_129, %c0_130] : memref<9x16x16xbf16, #tpu.memory_space<vmem>>, vector<1x16x16xbf16>
    %131 = vector.shape_cast %130 : vector<1x16x16xbf16> to vector<16x16xbf16>
    %cst_131 = arith.constant dense<0.000000e+00> : vector<16x324xf32>
    %132 = tpu.matmul %131, %129, %cst_131 {dimension_numbers = #tpu.dot_dimension_numbers<[1], [0], [0], [1], [0, 0, 1, 1], [], []>} : vector<16x16xbf16>, vector<16x324xbf16>, vector<16x324xf32> -> vector<16x324xf32>
    %133 = arith.addf %128, %132 : vector<16x324xf32>
    %c0_132 = arith.constant 0 : index
    %c111_133 = arith.constant 111 : index
    %134 = vector.load %arg19[%c0_132, %c111_133] : memref<16x472xbf16, #tpu.memory_space<vmem>>, vector<16x324xbf16>
    %c2_134 = arith.constant 2 : index
    %c0_135 = arith.constant 0 : index
    %c0_136 = arith.constant 0 : index
    %135 = vector.load %arg8[%c2_134, %c0_135, %c0_136] : memref<9x16x16xbf16, #tpu.memory_space<vmem>>, vector<1x16x16xbf16>
    %136 = vector.shape_cast %135 : vector<1x16x16xbf16> to vector<16x16xbf16>
    %cst_137 = arith.constant dense<0.000000e+00> : vector<16x324xf32>
    %137 = tpu.matmul %136, %134, %cst_137 {dimension_numbers = #tpu.dot_dimension_numbers<[1], [0], [0], [1], [0, 0, 1, 1], [], []>} : vector<16x16xbf16>, vector<16x324xbf16>, vector<16x324xf32> -> vector<16x324xf32>
    %138 = arith.addf %133, %137 : vector<16x324xf32>
    %c0_138 = arith.constant 0 : index
    %c127_139 = arith.constant 127 : index
    %139 = vector.load %arg19[%c0_138, %c127_139] : memref<16x472xbf16, #tpu.memory_space<vmem>>, vector<16x324xbf16>
    %c3_140 = arith.constant 3 : index
    %c0_141 = arith.constant 0 : index
    %c0_142 = arith.constant 0 : index
    %140 = vector.load %arg8[%c3_140, %c0_141, %c0_142] : memref<9x16x16xbf16, #tpu.memory_space<vmem>>, vector<1x16x16xbf16>
    %141 = vector.shape_cast %140 : vector<1x16x16xbf16> to vector<16x16xbf16>
    %cst_143 = arith.constant dense<0.000000e+00> : vector<16x324xf32>
    %142 = tpu.matmul %141, %139, %cst_143 {dimension_numbers = #tpu.dot_dimension_numbers<[1], [0], [0], [1], [0, 0, 1, 1], [], []>} : vector<16x16xbf16>, vector<16x324xbf16>, vector<16x324xf32> -> vector<16x324xf32>
    %143 = arith.addf %138, %142 : vector<16x324xf32>
    %c0_144 = arith.constant 0 : index
    %c128_145 = arith.constant 128 : index
    %144 = vector.load %arg19[%c0_144, %c128_145] : memref<16x472xbf16, #tpu.memory_space<vmem>>, vector<16x324xbf16>
    %c4_146 = arith.constant 4 : index
    %c0_147 = arith.constant 0 : index
    %c0_148 = arith.constant 0 : index
    %145 = vector.load %arg8[%c4_146, %c0_147, %c0_148] : memref<9x16x16xbf16, #tpu.memory_space<vmem>>, vector<1x16x16xbf16>
    %146 = vector.shape_cast %145 : vector<1x16x16xbf16> to vector<16x16xbf16>
    %cst_149 = arith.constant dense<0.000000e+00> : vector<16x324xf32>
    %147 = tpu.matmul %146, %144, %cst_149 {dimension_numbers = #tpu.dot_dimension_numbers<[1], [0], [0], [1], [0, 0, 1, 1], [], []>} : vector<16x16xbf16>, vector<16x324xbf16>, vector<16x324xf32> -> vector<16x324xf32>
    %148 = arith.addf %143, %147 : vector<16x324xf32>
    %c0_150 = arith.constant 0 : index
    %c129_151 = arith.constant 129 : index
    %149 = vector.load %arg19[%c0_150, %c129_151] : memref<16x472xbf16, #tpu.memory_space<vmem>>, vector<16x324xbf16>
    %c5_152 = arith.constant 5 : index
    %c0_153 = arith.constant 0 : index
    %c0_154 = arith.constant 0 : index
    %150 = vector.load %arg8[%c5_152, %c0_153, %c0_154] : memref<9x16x16xbf16, #tpu.memory_space<vmem>>, vector<1x16x16xbf16>
    %151 = vector.shape_cast %150 : vector<1x16x16xbf16> to vector<16x16xbf16>
    %cst_155 = arith.constant dense<0.000000e+00> : vector<16x324xf32>
    %152 = tpu.matmul %151, %149, %cst_155 {dimension_numbers = #tpu.dot_dimension_numbers<[1], [0], [0], [1], [0, 0, 1, 1], [], []>} : vector<16x16xbf16>, vector<16x324xbf16>, vector<16x324xf32> -> vector<16x324xf32>
    %153 = arith.addf %148, %152 : vector<16x324xf32>
    %c0_156 = arith.constant 0 : index
    %c145_157 = arith.constant 145 : index
    %154 = vector.load %arg19[%c0_156, %c145_157] : memref<16x472xbf16, #tpu.memory_space<vmem>>, vector<16x324xbf16>
    %c6_158 = arith.constant 6 : index
    %c0_159 = arith.constant 0 : index
    %c0_160 = arith.constant 0 : index
    %155 = vector.load %arg8[%c6_158, %c0_159, %c0_160] : memref<9x16x16xbf16, #tpu.memory_space<vmem>>, vector<1x16x16xbf16>
    %156 = vector.shape_cast %155 : vector<1x16x16xbf16> to vector<16x16xbf16>
    %cst_161 = arith.constant dense<0.000000e+00> : vector<16x324xf32>
    %157 = tpu.matmul %156, %154, %cst_161 {dimension_numbers = #tpu.dot_dimension_numbers<[1], [0], [0], [1], [0, 0, 1, 1], [], []>} : vector<16x16xbf16>, vector<16x324xbf16>, vector<16x324xf32> -> vector<16x324xf32>
    %158 = arith.addf %153, %157 : vector<16x324xf32>
    %c0_162 = arith.constant 0 : index
    %c146_163 = arith.constant 146 : index
    %159 = vector.load %arg19[%c0_162, %c146_163] : memref<16x472xbf16, #tpu.memory_space<vmem>>, vector<16x324xbf16>
    %c7_164 = arith.constant 7 : index
    %c0_165 = arith.constant 0 : index
    %c0_166 = arith.constant 0 : index
    %160 = vector.load %arg8[%c7_164, %c0_165, %c0_166] : memref<9x16x16xbf16, #tpu.memory_space<vmem>>, vector<1x16x16xbf16>
    %161 = vector.shape_cast %160 : vector<1x16x16xbf16> to vector<16x16xbf16>
    %cst_167 = arith.constant dense<0.000000e+00> : vector<16x324xf32>
    %162 = tpu.matmul %161, %159, %cst_167 {dimension_numbers = #tpu.dot_dimension_numbers<[1], [0], [0], [1], [0, 0, 1, 1], [], []>} : vector<16x16xbf16>, vector<16x324xbf16>, vector<16x324xf32> -> vector<16x324xf32>
    %163 = arith.addf %158, %162 : vector<16x324xf32>
    %c0_168 = arith.constant 0 : index
    %c147_169 = arith.constant 147 : index
    %164 = vector.load %arg19[%c0_168, %c147_169] : memref<16x472xbf16, #tpu.memory_space<vmem>>, vector<16x324xbf16>
    %c8_170 = arith.constant 8 : index
    %c0_171 = arith.constant 0 : index
    %c0_172 = arith.constant 0 : index
    %165 = vector.load %arg8[%c8_170, %c0_171, %c0_172] : memref<9x16x16xbf16, #tpu.memory_space<vmem>>, vector<1x16x16xbf16>
    %166 = vector.shape_cast %165 : vector<1x16x16xbf16> to vector<16x16xbf16>
    %cst_173 = arith.constant dense<0.000000e+00> : vector<16x324xf32>
    %167 = tpu.matmul %166, %164, %cst_173 {dimension_numbers = #tpu.dot_dimension_numbers<[1], [0], [0], [1], [0, 0, 1, 1], [], []>} : vector<16x16xbf16>, vector<16x324xbf16>, vector<16x324xf32> -> vector<16x324xf32>
    %168 = arith.addf %163, %167 : vector<16x324xf32>
    %c0_174 = arith.constant 0 : index
    %c0_175 = arith.constant 0 : index
    %169 = vector.load %arg9[%c0_174, %c0_175] : memref<16x1xf32, #tpu.memory_space<vmem>>, vector<16x1xf32>
    %170 = vector.broadcast %169 : vector<16x1xf32> to vector<16x324xf32>
    %171 = arith.mulf %168, %170 : vector<16x324xf32>
    %c0_176 = arith.constant 0 : index
    %c0_177 = arith.constant 0 : index
    %172 = vector.load %arg10[%c0_176, %c0_177] : memref<16x1xf32, #tpu.memory_space<vmem>>, vector<16x1xf32>
    %173 = vector.broadcast %172 : vector<16x1xf32> to vector<16x324xf32>
    %174 = arith.addf %171, %173 : vector<16x324xf32>
    %cst_178 = arith.constant 0.000000e+00 : f32
    %175 = vector.broadcast %cst_178 : f32 to vector<16x324xf32>
    %176 = arith.maximumf %174, %175 : vector<16x324xf32>
    %cst_179 = arith.constant 0.000000e+00 : f32
    %177 = vector.shape_cast %2 : vector<1x324xi1> to vector<1x324xi1>
    %178 = vector.broadcast %177 : vector<1x324xi1> to vector<16x324xi1>
    %179 = vector.broadcast %cst_179 : f32 to vector<16x324xf32>
    %180 = arith.select %178, %176, %179 : vector<16x324xi1>, vector<16x324xf32>
    %181 = arith.truncf %180 : vector<16x324xf32> to vector<16x324xbf16>
    %c0_180 = arith.constant 0 : index
    %c128_181 = arith.constant 128 : index
    %182 = vector.load %arg19[%c0_180, %c128_181] : memref<16x472xbf16, #tpu.memory_space<vmem>>, vector<16x324xbf16>
    tpu.vector_store %arg19[%c0_180, %c128_181], %181 {strides = array<i32>} : memref<16x472xbf16, #tpu.memory_space<vmem>>, vector<16x324xbf16>,
    %c0_182 = arith.constant 0 : index
    %c109_183 = arith.constant 109 : index
    %183 = vector.load %arg19[%c0_182, %c109_183] : memref<16x472xbf16, #tpu.memory_space<vmem>>, vector<16x324xbf16>
    %c0_184 = arith.constant 0 : index
    %c0_185 = arith.constant 0 : index
    %c0_186 = arith.constant 0 : index
    %184 = vector.load %arg11[%c0_184, %c0_185, %c0_186] : memref<9x16x16xbf16, #tpu.memory_space<vmem>>, vector<1x16x16xbf16>
    %185 = vector.shape_cast %184 : vector<1x16x16xbf16> to vector<16x16xbf16>
    %cst_187 = arith.constant dense<0.000000e+00> : vector<16x324xf32>
    %186 = tpu.matmul %185, %183, %cst_187 {dimension_numbers = #tpu.dot_dimension_numbers<[1], [0], [0], [1], [0, 0, 1, 1], [], []>} : vector<16x16xbf16>, vector<16x324xbf16>, vector<16x324xf32> -> vector<16x324xf32>
    %c0_188 = arith.constant 0 : index
    %c110_189 = arith.constant 110 : index
    %187 = vector.load %arg19[%c0_188, %c110_189] : memref<16x472xbf16, #tpu.memory_space<vmem>>, vector<16x324xbf16>
    %c1_190 = arith.constant 1 : index
    %c0_191 = arith.constant 0 : index
    %c0_192 = arith.constant 0 : index
    %188 = vector.load %arg11[%c1_190, %c0_191, %c0_192] : memref<9x16x16xbf16, #tpu.memory_space<vmem>>, vector<1x16x16xbf16>
    %189 = vector.shape_cast %188 : vector<1x16x16xbf16> to vector<16x16xbf16>
    %cst_193 = arith.constant dense<0.000000e+00> : vector<16x324xf32>
    %190 = tpu.matmul %189, %187, %cst_193 {dimension_numbers = #tpu.dot_dimension_numbers<[1], [0], [0], [1], [0, 0, 1, 1], [], []>} : vector<16x16xbf16>, vector<16x324xbf16>, vector<16x324xf32> -> vector<16x324xf32>
    %191 = arith.addf %186, %190 : vector<16x324xf32>
    %c0_194 = arith.constant 0 : index
    %c111_195 = arith.constant 111 : index
    %192 = vector.load %arg19[%c0_194, %c111_195] : memref<16x472xbf16, #tpu.memory_space<vmem>>, vector<16x324xbf16>
    %c2_196 = arith.constant 2 : index
    %c0_197 = arith.constant 0 : index
    %c0_198 = arith.constant 0 : index
    %193 = vector.load %arg11[%c2_196, %c0_197, %c0_198] : memref<9x16x16xbf16, #tpu.memory_space<vmem>>, vector<1x16x16xbf16>
    %194 = vector.shape_cast %193 : vector<1x16x16xbf16> to vector<16x16xbf16>
    %cst_199 = arith.constant dense<0.000000e+00> : vector<16x324xf32>
    %195 = tpu.matmul %194, %192, %cst_199 {dimension_numbers = #tpu.dot_dimension_numbers<[1], [0], [0], [1], [0, 0, 1, 1], [], []>} : vector<16x16xbf16>, vector<16x324xbf16>, vector<16x324xf32> -> vector<16x324xf32>
    %196 = arith.addf %191, %195 : vector<16x324xf32>
    %c0_200 = arith.constant 0 : index
    %c127_201 = arith.constant 127 : index
    %197 = vector.load %arg19[%c0_200, %c127_201] : memref<16x472xbf16, #tpu.memory_space<vmem>>, vector<16x324xbf16>
    %c3_202 = arith.constant 3 : index
    %c0_203 = arith.constant 0 : index
    %c0_204 = arith.constant 0 : index
    %198 = vector.load %arg11[%c3_202, %c0_203, %c0_204] : memref<9x16x16xbf16, #tpu.memory_space<vmem>>, vector<1x16x16xbf16>
    %199 = vector.shape_cast %198 : vector<1x16x16xbf16> to vector<16x16xbf16>
    %cst_205 = arith.constant dense<0.000000e+00> : vector<16x324xf32>
    %200 = tpu.matmul %199, %197, %cst_205 {dimension_numbers = #tpu.dot_dimension_numbers<[1], [0], [0], [1], [0, 0, 1, 1], [], []>} : vector<16x16xbf16>, vector<16x324xbf16>, vector<16x324xf32> -> vector<16x324xf32>
    %201 = arith.addf %196, %200 : vector<16x324xf32>
    %c0_206 = arith.constant 0 : index
    %c128_207 = arith.constant 128 : index
    %202 = vector.load %arg19[%c0_206, %c128_207] : memref<16x472xbf16, #tpu.memory_space<vmem>>, vector<16x324xbf16>
    %c4_208 = arith.constant 4 : index
    %c0_209 = arith.constant 0 : index
    %c0_210 = arith.constant 0 : index
    %203 = vector.load %arg11[%c4_208, %c0_209, %c0_210] : memref<9x16x16xbf16, #tpu.memory_space<vmem>>, vector<1x16x16xbf16>
    %204 = vector.shape_cast %203 : vector<1x16x16xbf16> to vector<16x16xbf16>
    %cst_211 = arith.constant dense<0.000000e+00> : vector<16x324xf32>
    %205 = tpu.matmul %204, %202, %cst_211 {dimension_numbers = #tpu.dot_dimension_numbers<[1], [0], [0], [1], [0, 0, 1, 1], [], []>} : vector<16x16xbf16>, vector<16x324xbf16>, vector<16x324xf32> -> vector<16x324xf32>
    %206 = arith.addf %201, %205 : vector<16x324xf32>
    %c0_212 = arith.constant 0 : index
    %c129_213 = arith.constant 129 : index
    %207 = vector.load %arg19[%c0_212, %c129_213] : memref<16x472xbf16, #tpu.memory_space<vmem>>, vector<16x324xbf16>
    %c5_214 = arith.constant 5 : index
    %c0_215 = arith.constant 0 : index
    %c0_216 = arith.constant 0 : index
    %208 = vector.load %arg11[%c5_214, %c0_215, %c0_216] : memref<9x16x16xbf16, #tpu.memory_space<vmem>>, vector<1x16x16xbf16>
    %209 = vector.shape_cast %208 : vector<1x16x16xbf16> to vector<16x16xbf16>
    %cst_217 = arith.constant dense<0.000000e+00> : vector<16x324xf32>
    %210 = tpu.matmul %209, %207, %cst_217 {dimension_numbers = #tpu.dot_dimension_numbers<[1], [0], [0], [1], [0, 0, 1, 1], [], []>} : vector<16x16xbf16>, vector<16x324xbf16>, vector<16x324xf32> -> vector<16x324xf32>
    %211 = arith.addf %206, %210 : vector<16x324xf32>
    %c0_218 = arith.constant 0 : index
    %c145_219 = arith.constant 145 : index
    %212 = vector.load %arg19[%c0_218, %c145_219] : memref<16x472xbf16, #tpu.memory_space<vmem>>, vector<16x324xbf16>
    %c6_220 = arith.constant 6 : index
    %c0_221 = arith.constant 0 : index
    %c0_222 = arith.constant 0 : index
    %213 = vector.load %arg11[%c6_220, %c0_221, %c0_222] : memref<9x16x16xbf16, #tpu.memory_space<vmem>>, vector<1x16x16xbf16>
    %214 = vector.shape_cast %213 : vector<1x16x16xbf16> to vector<16x16xbf16>
    %cst_223 = arith.constant dense<0.000000e+00> : vector<16x324xf32>
    %215 = tpu.matmul %214, %212, %cst_223 {dimension_numbers = #tpu.dot_dimension_numbers<[1], [0], [0], [1], [0, 0, 1, 1], [], []>} : vector<16x16xbf16>, vector<16x324xbf16>, vector<16x324xf32> -> vector<16x324xf32>
    %216 = arith.addf %211, %215 : vector<16x324xf32>
    %c0_224 = arith.constant 0 : index
    %c146_225 = arith.constant 146 : index
    %217 = vector.load %arg19[%c0_224, %c146_225] : memref<16x472xbf16, #tpu.memory_space<vmem>>, vector<16x324xbf16>
    %c7_226 = arith.constant 7 : index
    %c0_227 = arith.constant 0 : index
    %c0_228 = arith.constant 0 : index
    %218 = vector.load %arg11[%c7_226, %c0_227, %c0_228] : memref<9x16x16xbf16, #tpu.memory_space<vmem>>, vector<1x16x16xbf16>
    %219 = vector.shape_cast %218 : vector<1x16x16xbf16> to vector<16x16xbf16>
    %cst_229 = arith.constant dense<0.000000e+00> : vector<16x324xf32>
    %220 = tpu.matmul %219, %217, %cst_229 {dimension_numbers = #tpu.dot_dimension_numbers<[1], [0], [0], [1], [0, 0, 1, 1], [], []>} : vector<16x16xbf16>, vector<16x324xbf16>, vector<16x324xf32> -> vector<16x324xf32>
    %221 = arith.addf %216, %220 : vector<16x324xf32>
    %c0_230 = arith.constant 0 : index
    %c147_231 = arith.constant 147 : index
    %222 = vector.load %arg19[%c0_230, %c147_231] : memref<16x472xbf16, #tpu.memory_space<vmem>>, vector<16x324xbf16>
    %c8_232 = arith.constant 8 : index
    %c0_233 = arith.constant 0 : index
    %c0_234 = arith.constant 0 : index
    %223 = vector.load %arg11[%c8_232, %c0_233, %c0_234] : memref<9x16x16xbf16, #tpu.memory_space<vmem>>, vector<1x16x16xbf16>
    %224 = vector.shape_cast %223 : vector<1x16x16xbf16> to vector<16x16xbf16>
    %cst_235 = arith.constant dense<0.000000e+00> : vector<16x324xf32>
    %225 = tpu.matmul %224, %222, %cst_235 {dimension_numbers = #tpu.dot_dimension_numbers<[1], [0], [0], [1], [0, 0, 1, 1], [], []>} : vector<16x16xbf16>, vector<16x324xbf16>, vector<16x324xf32> -> vector<16x324xf32>
    %226 = arith.addf %221, %225 : vector<16x324xf32>
    %c0_236 = arith.constant 0 : index
    %c0_237 = arith.constant 0 : index
    %227 = vector.load %arg12[%c0_236, %c0_237] : memref<16x1xf32, #tpu.memory_space<vmem>>, vector<16x1xf32>
    %228 = vector.broadcast %227 : vector<16x1xf32> to vector<16x324xf32>
    %229 = arith.mulf %226, %228 : vector<16x324xf32>
    %c0_238 = arith.constant 0 : index
    %c0_239 = arith.constant 0 : index
    %230 = vector.load %arg13[%c0_238, %c0_239] : memref<16x1xf32, #tpu.memory_space<vmem>>, vector<16x1xf32>
    %231 = vector.broadcast %230 : vector<16x1xf32> to vector<16x324xf32>
    %232 = arith.addf %229, %231 : vector<16x324xf32>
    %cst_240 = arith.constant 0.000000e+00 : f32
    %233 = vector.broadcast %cst_240 : f32 to vector<16x324xf32>
    %234 = arith.maximumf %232, %233 : vector<16x324xf32>
    %cst_241 = arith.constant 0.000000e+00 : f32
    %235 = vector.shape_cast %2 : vector<1x324xi1> to vector<1x324xi1>
    %236 = vector.broadcast %235 : vector<1x324xi1> to vector<16x324xi1>
    %237 = vector.broadcast %cst_241 : f32 to vector<16x324xf32>
    %238 = arith.select %236, %234, %237 : vector<16x324xi1>, vector<16x324xf32>
    %239 = arith.truncf %238 : vector<16x324xf32> to vector<16x324xbf16>
    %c0_242 = arith.constant 0 : index
    %c128_243 = arith.constant 128 : index
    %240 = vector.load %arg19[%c0_242, %c128_243] : memref<16x472xbf16, #tpu.memory_space<vmem>>, vector<16x324xbf16>
    tpu.vector_store %arg19[%c0_242, %c128_243], %239 {strides = array<i32>} : memref<16x472xbf16, #tpu.memory_space<vmem>>, vector<16x324xbf16>,
    %c0_244 = arith.constant 0 : index
    %c109_245 = arith.constant 109 : index
    %241 = vector.load %arg19[%c0_244, %c109_245] : memref<16x472xbf16, #tpu.memory_space<vmem>>, vector<16x324xbf16>
    %c0_246 = arith.constant 0 : index
    %c0_247 = arith.constant 0 : index
    %c0_248 = arith.constant 0 : index
    %242 = vector.load %arg14[%c0_246, %c0_247, %c0_248] : memref<9x8x16xbf16, #tpu.memory_space<vmem>>, vector<1x8x16xbf16>
    %243 = vector.shape_cast %242 : vector<1x8x16xbf16> to vector<8x16xbf16>
    %cst_249 = arith.constant dense<0.000000e+00> : vector<8x324xf32>
    %244 = tpu.matmul %243, %241, %cst_249 {dimension_numbers = #tpu.dot_dimension_numbers<[1], [0], [0], [1], [0, 0, 1, 1], [], []>} : vector<8x16xbf16>, vector<16x324xbf16>, vector<8x324xf32> -> vector<8x324xf32>
    %c0_250 = arith.constant 0 : index
    %c110_251 = arith.constant 110 : index
    %245 = vector.load %arg19[%c0_250, %c110_251] : memref<16x472xbf16, #tpu.memory_space<vmem>>, vector<16x324xbf16>
    %c1_252 = arith.constant 1 : index
    %c0_253 = arith.constant 0 : index
    %c0_254 = arith.constant 0 : index
    %246 = vector.load %arg14[%c1_252, %c0_253, %c0_254] : memref<9x8x16xbf16, #tpu.memory_space<vmem>>, vector<1x8x16xbf16>
    %247 = vector.shape_cast %246 : vector<1x8x16xbf16> to vector<8x16xbf16>
    %cst_255 = arith.constant dense<0.000000e+00> : vector<8x324xf32>
    %248 = tpu.matmul %247, %245, %cst_255 {dimension_numbers = #tpu.dot_dimension_numbers<[1], [0], [0], [1], [0, 0, 1, 1], [], []>} : vector<8x16xbf16>, vector<16x324xbf16>, vector<8x324xf32> -> vector<8x324xf32>
    %249 = arith.addf %244, %248 : vector<8x324xf32>
    %c0_256 = arith.constant 0 : index
    %c111_257 = arith.constant 111 : index
    %250 = vector.load %arg19[%c0_256, %c111_257] : memref<16x472xbf16, #tpu.memory_space<vmem>>, vector<16x324xbf16>
    %c2_258 = arith.constant 2 : index
    %c0_259 = arith.constant 0 : index
    %c0_260 = arith.constant 0 : index
    %251 = vector.load %arg14[%c2_258, %c0_259, %c0_260] : memref<9x8x16xbf16, #tpu.memory_space<vmem>>, vector<1x8x16xbf16>
    %252 = vector.shape_cast %251 : vector<1x8x16xbf16> to vector<8x16xbf16>
    %cst_261 = arith.constant dense<0.000000e+00> : vector<8x324xf32>
    %253 = tpu.matmul %252, %250, %cst_261 {dimension_numbers = #tpu.dot_dimension_numbers<[1], [0], [0], [1], [0, 0, 1, 1], [], []>} : vector<8x16xbf16>, vector<16x324xbf16>, vector<8x324xf32> -> vector<8x324xf32>
    %254 = arith.addf %249, %253 : vector<8x324xf32>
    %c0_262 = arith.constant 0 : index
    %c127_263 = arith.constant 127 : index
    %255 = vector.load %arg19[%c0_262, %c127_263] : memref<16x472xbf16, #tpu.memory_space<vmem>>, vector<16x324xbf16>
    %c3_264 = arith.constant 3 : index
    %c0_265 = arith.constant 0 : index
    %c0_266 = arith.constant 0 : index
    %256 = vector.load %arg14[%c3_264, %c0_265, %c0_266] : memref<9x8x16xbf16, #tpu.memory_space<vmem>>, vector<1x8x16xbf16>
    %257 = vector.shape_cast %256 : vector<1x8x16xbf16> to vector<8x16xbf16>
    %cst_267 = arith.constant dense<0.000000e+00> : vector<8x324xf32>
    %258 = tpu.matmul %257, %255, %cst_267 {dimension_numbers = #tpu.dot_dimension_numbers<[1], [0], [0], [1], [0, 0, 1, 1], [], []>} : vector<8x16xbf16>, vector<16x324xbf16>, vector<8x324xf32> -> vector<8x324xf32>
    %259 = arith.addf %254, %258 : vector<8x324xf32>
    %c0_268 = arith.constant 0 : index
    %c128_269 = arith.constant 128 : index
    %260 = vector.load %arg19[%c0_268, %c128_269] : memref<16x472xbf16, #tpu.memory_space<vmem>>, vector<16x324xbf16>
    %c4_270 = arith.constant 4 : index
    %c0_271 = arith.constant 0 : index
    %c0_272 = arith.constant 0 : index
    %261 = vector.load %arg14[%c4_270, %c0_271, %c0_272] : memref<9x8x16xbf16, #tpu.memory_space<vmem>>, vector<1x8x16xbf16>
    %262 = vector.shape_cast %261 : vector<1x8x16xbf16> to vector<8x16xbf16>
    %cst_273 = arith.constant dense<0.000000e+00> : vector<8x324xf32>
    %263 = tpu.matmul %262, %260, %cst_273 {dimension_numbers = #tpu.dot_dimension_numbers<[1], [0], [0], [1], [0, 0, 1, 1], [], []>} : vector<8x16xbf16>, vector<16x324xbf16>, vector<8x324xf32> -> vector<8x324xf32>
    %264 = arith.addf %259, %263 : vector<8x324xf32>
    %c0_274 = arith.constant 0 : index
    %c129_275 = arith.constant 129 : index
    %265 = vector.load %arg19[%c0_274, %c129_275] : memref<16x472xbf16, #tpu.memory_space<vmem>>, vector<16x324xbf16>
    %c5_276 = arith.constant 5 : index
    %c0_277 = arith.constant 0 : index
    %c0_278 = arith.constant 0 : index
    %266 = vector.load %arg14[%c5_276, %c0_277, %c0_278] : memref<9x8x16xbf16, #tpu.memory_space<vmem>>, vector<1x8x16xbf16>
    %267 = vector.shape_cast %266 : vector<1x8x16xbf16> to vector<8x16xbf16>
    %cst_279 = arith.constant dense<0.000000e+00> : vector<8x324xf32>
    %268 = tpu.matmul %267, %265, %cst_279 {dimension_numbers = #tpu.dot_dimension_numbers<[1], [0], [0], [1], [0, 0, 1, 1], [], []>} : vector<8x16xbf16>, vector<16x324xbf16>, vector<8x324xf32> -> vector<8x324xf32>
    %269 = arith.addf %264, %268 : vector<8x324xf32>
    %c0_280 = arith.constant 0 : index
    %c145_281 = arith.constant 145 : index
    %270 = vector.load %arg19[%c0_280, %c145_281] : memref<16x472xbf16, #tpu.memory_space<vmem>>, vector<16x324xbf16>
    %c6_282 = arith.constant 6 : index
    %c0_283 = arith.constant 0 : index
    %c0_284 = arith.constant 0 : index
    %271 = vector.load %arg14[%c6_282, %c0_283, %c0_284] : memref<9x8x16xbf16, #tpu.memory_space<vmem>>, vector<1x8x16xbf16>
    %272 = vector.shape_cast %271 : vector<1x8x16xbf16> to vector<8x16xbf16>
    %cst_285 = arith.constant dense<0.000000e+00> : vector<8x324xf32>
    %273 = tpu.matmul %272, %270, %cst_285 {dimension_numbers = #tpu.dot_dimension_numbers<[1], [0], [0], [1], [0, 0, 1, 1], [], []>} : vector<8x16xbf16>, vector<16x324xbf16>, vector<8x324xf32> -> vector<8x324xf32>
    %274 = arith.addf %269, %273 : vector<8x324xf32>
    %c0_286 = arith.constant 0 : index
    %c146_287 = arith.constant 146 : index
    %275 = vector.load %arg19[%c0_286, %c146_287] : memref<16x472xbf16, #tpu.memory_space<vmem>>, vector<16x324xbf16>
    %c7_288 = arith.constant 7 : index
    %c0_289 = arith.constant 0 : index
    %c0_290 = arith.constant 0 : index
    %276 = vector.load %arg14[%c7_288, %c0_289, %c0_290] : memref<9x8x16xbf16, #tpu.memory_space<vmem>>, vector<1x8x16xbf16>
    %277 = vector.shape_cast %276 : vector<1x8x16xbf16> to vector<8x16xbf16>
    %cst_291 = arith.constant dense<0.000000e+00> : vector<8x324xf32>
    %278 = tpu.matmul %277, %275, %cst_291 {dimension_numbers = #tpu.dot_dimension_numbers<[1], [0], [0], [1], [0, 0, 1, 1], [], []>} : vector<8x16xbf16>, vector<16x324xbf16>, vector<8x324xf32> -> vector<8x324xf32>
    %279 = arith.addf %274, %278 : vector<8x324xf32>
    %c0_292 = arith.constant 0 : index
    %c147_293 = arith.constant 147 : index
    %280 = vector.load %arg19[%c0_292, %c147_293] : memref<16x472xbf16, #tpu.memory_space<vmem>>, vector<16x324xbf16>
    %c8_294 = arith.constant 8 : index
    %c0_295 = arith.constant 0 : index
    %c0_296 = arith.constant 0 : index
    %281 = vector.load %arg14[%c8_294, %c0_295, %c0_296] : memref<9x8x16xbf16, #tpu.memory_space<vmem>>, vector<1x8x16xbf16>
    %282 = vector.shape_cast %281 : vector<1x8x16xbf16> to vector<8x16xbf16>
    %cst_297 = arith.constant dense<0.000000e+00> : vector<8x324xf32>
    %283 = tpu.matmul %282, %280, %cst_297 {dimension_numbers = #tpu.dot_dimension_numbers<[1], [0], [0], [1], [0, 0, 1, 1], [], []>} : vector<8x16xbf16>, vector<16x324xbf16>, vector<8x324xf32> -> vector<8x324xf32>
    %284 = arith.addf %279, %283 : vector<8x324xf32>
    %285 = vector.extract_strided_slice %284 {offsets = [0, 19], sizes = [1, 16], strides = [1, 1]} : vector<8x324xf32> to vector<1x16xf32>
    %286 = vector.extract_strided_slice %284 {offsets = [0, 37], sizes = [1, 16], strides = [1, 1]} : vector<8x324xf32> to vector<1x16xf32>
    %287 = vector.extract_strided_slice %284 {offsets = [0, 55], sizes = [1, 16], strides = [1, 1]} : vector<8x324xf32> to vector<1x16xf32>
    %288 = vector.extract_strided_slice %284 {offsets = [0, 73], sizes = [1, 16], strides = [1, 1]} : vector<8x324xf32> to vector<1x16xf32>
    %289 = vector.extract_strided_slice %284 {offsets = [0, 91], sizes = [1, 16], strides = [1, 1]} : vector<8x324xf32> to vector<1x16xf32>
    %290 = vector.extract_strided_slice %284 {offsets = [0, 109], sizes = [1, 16], strides = [1, 1]} : vector<8x324xf32> to vector<1x16xf32>
    %291 = vector.extract_strided_slice %284 {offsets = [0, 127], sizes = [1, 16], strides = [1, 1]} : vector<8x324xf32> to vector<1x16xf32>
    %292 = vector.extract_strided_slice %284 {offsets = [0, 145], sizes = [1, 16], strides = [1, 1]} : vector<8x324xf32> to vector<1x16xf32>
    %293 = vector.extract_strided_slice %284 {offsets = [0, 163], sizes = [1, 16], strides = [1, 1]} : vector<8x324xf32> to vector<1x16xf32>
    %294 = vector.extract_strided_slice %284 {offsets = [0, 181], sizes = [1, 16], strides = [1, 1]} : vector<8x324xf32> to vector<1x16xf32>
    %295 = vector.extract_strided_slice %284 {offsets = [0, 199], sizes = [1, 16], strides = [1, 1]} : vector<8x324xf32> to vector<1x16xf32>
    %296 = vector.extract_strided_slice %284 {offsets = [0, 217], sizes = [1, 16], strides = [1, 1]} : vector<8x324xf32> to vector<1x16xf32>
    %297 = vector.extract_strided_slice %284 {offsets = [0, 235], sizes = [1, 16], strides = [1, 1]} : vector<8x324xf32> to vector<1x16xf32>
    %298 = vector.extract_strided_slice %284 {offsets = [0, 253], sizes = [1, 16], strides = [1, 1]} : vector<8x324xf32> to vector<1x16xf32>
    %299 = vector.extract_strided_slice %284 {offsets = [0, 271], sizes = [1, 16], strides = [1, 1]} : vector<8x324xf32> to vector<1x16xf32>
    %300 = vector.extract_strided_slice %284 {offsets = [0, 289], sizes = [1, 16], strides = [1, 1]} : vector<8x324xf32> to vector<1x16xf32>
    %301 = tpu.concatenate %285, %286, %287, %288, %289, %290, %291, %292, %293, %294, %295, %296, %297, %298, %299, %300 in 0 : vector<1x16xf32>, vector<1x16xf32>, vector<1x16xf32>, vector<1x16xf32>, vector<1x16xf32>, vector<1x16xf32>, vector<1x16xf32>, vector<1x16xf32>, vector<1x16xf32>, vector<1x16xf32>, vector<1x16xf32>, vector<1x16xf32>, vector<1x16xf32>, vector<1x16xf32>, vector<1x16xf32>, vector<1x16xf32> -> vector<16x16xf32>
    %c0_298 = arith.constant 0 : index
    %c0_299 = arith.constant 0 : index
    %302 = vector.load %arg15[%c0_298, %c0_299] : memref<1x1xf32, #tpu.memory_space<vmem>>, vector<1x1xf32>
    %303 = vector.broadcast %302 : vector<1x1xf32> to vector<16x16xf32>
    %304 = arith.addf %301, %303 : vector<16x16xf32>
    %c0_300 = arith.constant 0 : index
    %c0_301 = arith.constant 0 : index
    %305 = vector.load %arg16[%c0_300, %c0_301] : memref<64x16xbf16, #tpu.memory_space<vmem>>, vector<64x16xbf16>
    %306 = arith.truncf %304 : vector<16x16xf32> to vector<16x16xbf16>
    %cst_302 = arith.constant dense<0.000000e+00> : vector<64x16xf32>
    %307 = tpu.matmul %305, %306, %cst_302 {dimension_numbers = #tpu.dot_dimension_numbers<[1], [0], [0], [1], [0, 0, 1, 1], [], []>} : vector<64x16xbf16>, vector<16x16xbf16>, vector<64x16xf32> -> vector<64x16xf32>
    %308 = arith.truncf %307 : vector<64x16xf32> to vector<64x16xbf16>
    %c0_303 = arith.constant 0 : index
    %c0_304 = arith.constant 0 : index
    %309 = vector.load %arg17[%c0_303, %c0_304] : memref<16x64xbf16, #tpu.memory_space<vmem>>, vector<16x64xbf16>
    %cst_305 = arith.constant dense<0.000000e+00> : vector<64x64xf32>
    %310 = tpu.matmul %308, %309, %cst_305 {dimension_numbers = #tpu.dot_dimension_numbers<[1], [0], [0], [1], [0, 0, 1, 1], [], []>} : vector<64x16xbf16>, vector<16x64xbf16>, vector<64x64xf32> -> vector<64x64xf32>
    %311 = arith.negf %310 : vector<64x64xf32>
    %312 = math.exp %311 : vector<64x64xf32>
    %cst_306 = arith.constant 1.000000e+00 : f32
    %313 = vector.broadcast %cst_306 : f32 to vector<64x64xf32>
    %314 = arith.addf %313, %312 : vector<64x64xf32>
    %315 = arith.divf %313, %314 : vector<64x64xf32>
    %c0_307 = arith.constant 0 : index
    %c0_308 = arith.constant 0 : index
    %c0_309 = arith.constant 0 : index
    %c0_310 = arith.constant 0 : index
    %316 = vector.load %arg18[%c0_307, %c0_308, %c0_309, %c0_310] : memref<1x1x64x64xf32, #tpu.memory_space<vmem>>, vector<1x1x64x64xf32>
    %317 = vector.shape_cast %316 : vector<1x1x64x64xf32> to vector<64x64xf32>
    %318 = vector.shape_cast %315 : vector<64x64xf32> to vector<1x1x64x64xf32>
    tpu.vector_store %arg18[%c0_307, %c0_308, %c0_309, %c0_310], %318 {strides = array<i32>} : memref<1x1x64x64xf32, #tpu.memory_space<vmem>>, vector<1x1x64x64xf32>,
    return
  }
  func.func @transform_0(%arg0: i32, %arg1: i32) -> (i32, i32, i32, i32) {
    %c0_i32 = arith.constant 0 : i32
    %c0_i32_0 = arith.constant 0 : i32
    %c0_i32_1 = arith.constant 0 : i32
    %c0_i32_2 = arith.constant 0 : i32
    return %arg0, %c0_i32, %c0_i32_0, %c0_i32_1 : i32, i32, i32, i32
  }
  func.func @transform_1(%arg0: i32, %arg1: i32) -> (i32, i32, i32, i32) {
    %c1_i32 = arith.constant 1 : i32
    %c0_i32 = arith.constant 0 : i32
    %c0_i32_0 = arith.constant 0 : i32
    %c0_i32_1 = arith.constant 0 : i32
    return %arg0, %c1_i32, %c0_i32, %c0_i32_0 : i32, i32, i32, i32
  }
  func.func @transform_2(%arg0: i32, %arg1: i32) -> (i32, i32) {
    %c0_i32 = arith.constant 0 : i32
    %c0_i32_0 = arith.constant 0 : i32
    %c0_i32_1 = arith.constant 0 : i32
    return %c0_i32, %c0_i32_0 : i32, i32
  }
  func.func @transform_3(%arg0: i32, %arg1: i32) -> (i32, i32, i32) {
    %c0_i32 = arith.constant 0 : i32
    %c0_i32_0 = arith.constant 0 : i32
    %c0_i32_1 = arith.constant 0 : i32
    %c0_i32_2 = arith.constant 0 : i32
    return %c0_i32, %c0_i32_0, %c0_i32_1 : i32, i32, i32
  }
  func.func @transform_4(%arg0: i32, %arg1: i32) -> (i32, i32) {
    %c0_i32 = arith.constant 0 : i32
    %c0_i32_0 = arith.constant 0 : i32
    %c0_i32_1 = arith.constant 0 : i32
    return %c0_i32, %c0_i32_0 : i32, i32
  }
  func.func @transform_5(%arg0: i32, %arg1: i32) -> (i32, i32) {
    %c0_i32 = arith.constant 0 : i32
    %c0_i32_0 = arith.constant 0 : i32
    %c0_i32_1 = arith.constant 0 : i32
    return %c0_i32, %c0_i32_0 : i32, i32
  }
  func.func @transform_6(%arg0: i32, %arg1: i32) -> (i32, i32, i32) {
    %c0_i32 = arith.constant 0 : i32
    %c0_i32_0 = arith.constant 0 : i32
    %c0_i32_1 = arith.constant 0 : i32
    %c0_i32_2 = arith.constant 0 : i32
    return %c0_i32, %c0_i32_0, %c0_i32_1 : i32, i32, i32
  }
  func.func @transform_7(%arg0: i32, %arg1: i32) -> (i32, i32) {
    %c0_i32 = arith.constant 0 : i32
    %c0_i32_0 = arith.constant 0 : i32
    %c0_i32_1 = arith.constant 0 : i32
    return %c0_i32, %c0_i32_0 : i32, i32
  }
  func.func @transform_8(%arg0: i32, %arg1: i32) -> (i32, i32) {
    %c0_i32 = arith.constant 0 : i32
    %c0_i32_0 = arith.constant 0 : i32
    %c0_i32_1 = arith.constant 0 : i32
    return %c0_i32, %c0_i32_0 : i32, i32
  }
  func.func @transform_9(%arg0: i32, %arg1: i32) -> (i32, i32, i32) {
    %c0_i32 = arith.constant 0 : i32
    %c0_i32_0 = arith.constant 0 : i32
    %c0_i32_1 = arith.constant 0 : i32
    %c0_i32_2 = arith.constant 0 : i32
    return %c0_i32, %c0_i32_0, %c0_i32_1 : i32, i32, i32
  }
  func.func @transform_10(%arg0: i32, %arg1: i32) -> (i32, i32) {
    %c0_i32 = arith.constant 0 : i32
    %c0_i32_0 = arith.constant 0 : i32
    %c0_i32_1 = arith.constant 0 : i32
    return %c0_i32, %c0_i32_0 : i32, i32
  }
  func.func @transform_11(%arg0: i32, %arg1: i32) -> (i32, i32) {
    %c0_i32 = arith.constant 0 : i32
    %c0_i32_0 = arith.constant 0 : i32
    %c0_i32_1 = arith.constant 0 : i32
    return %c0_i32, %c0_i32_0 : i32, i32
  }
  func.func @transform_12(%arg0: i32, %arg1: i32) -> (i32, i32, i32) {
    %c0_i32 = arith.constant 0 : i32
    %c0_i32_0 = arith.constant 0 : i32
    %c0_i32_1 = arith.constant 0 : i32
    %c0_i32_2 = arith.constant 0 : i32
    return %c0_i32, %c0_i32_0, %c0_i32_1 : i32, i32, i32
  }
  func.func @transform_13(%arg0: i32, %arg1: i32) -> (i32, i32) {
    %c0_i32 = arith.constant 0 : i32
    %c0_i32_0 = arith.constant 0 : i32
    %c0_i32_1 = arith.constant 0 : i32
    return %c0_i32, %c0_i32_0 : i32, i32
  }
  func.func @transform_14(%arg0: i32, %arg1: i32) -> (i32, i32) {
    %c0_i32 = arith.constant 0 : i32
    %c0_i32_0 = arith.constant 0 : i32
    %c0_i32_1 = arith.constant 0 : i32
    return %c0_i32, %c0_i32_0 : i32, i32
  }
  func.func @transform_15(%arg0: i32, %arg1: i32) -> (i32, i32) {
    %c0_i32 = arith.constant 0 : i32
    %c0_i32_0 = arith.constant 0 : i32
    %c0_i32_1 = arith.constant 0 : i32
    return %c0_i32, %c0_i32_0 : i32, i32
  }
  func.func @transform_16(%arg0: i32, %arg1: i32) -> (i32, i32, i32, i32) {
    %c0_i32 = arith.constant 0 : i32
    %c0_i32_0 = arith.constant 0 : i32
    %c0_i32_1 = arith.constant 0 : i32
    return %arg0, %arg1, %c0_i32, %c0_i32_0 : i32, i32, i32, i32
  }
}

</mosaic_0001>

<llo_original>
// kernel: tpu_custom_call.1
$region0: #{tpu_custom_call.1}
  #allocation0 [shape = 'u32[]', space=smem, size = 0x4, offset = 0x4, fixed_abs, tag = 'smem constant byte address 0x4 - core index']
  #allocation1 [shape = 'u32[144,128]{1,0:T(1,128)}', space=vmem, size = 0x12000, scoped, tag = 'internal scratch']
  #allocation2 [shape = 'bf16[16,472]{1,0:T(8,128)(2,1)}', space=vmem, size = 0x4000, scoped, tag = 'scratch operand']
  #allocation3 [shape = 'f32[1,1]{1,0:T(1,128)S(1)}', space=vmem, size = 0x200, scoped, tag = 'scoped memory for tpu_custom_call.1']
  %s0 = inlined_call_operand.hbm [shape: bf16[2,2,4,324], index: 0, kind: input, shape index: {}]
  %s1 = inlined_call_operand.hbm [shape: bf16[2,2,4,324], index: 1, kind: input, shape index: {}]
  %s2 = inlined_call_operand.hbm [shape: f32[1,324], index: 2, kind: input, shape index: {}]
  %s3 = inlined_call_operand.vmem [shape: bf16[9,8,4], index: 3, kind: input, shape index: {}]
  %s4 = inlined_call_operand.vmem [shape: f32[8,1], index: 4, kind: input, shape index: {}]
  %s5 = inlined_call_operand.vmem [shape: f32[8,1], index: 5, kind: input, shape index: {}]
  %s6 = inlined_call_operand.vmem [shape: bf16[9,16,16], index: 6, kind: input, shape index: {}]
  %s7 = inlined_call_operand.vmem [shape: f32[16,1], index: 7, kind: input, shape index: {}]
  %s8 = inlined_call_operand.vmem [shape: f32[16,1], index: 8, kind: input, shape index: {}]
  %s9 = inlined_call_operand.vmem [shape: bf16[9,16,16], index: 9, kind: input, shape index: {}]
  %s10 = inlined_call_operand.vmem [shape: f32[16,1], index: 10, kind: input, shape index: {}]
  %s11 = inlined_call_operand.vmem [shape: f32[16,1], index: 11, kind: input, shape index: {}]
  %s12 = inlined_call_operand.vmem [shape: bf16[9,8,16], index: 12, kind: input, shape index: {}]
  %s13 = inlined_call_operand.<no memory space> [shape: f32[1,1], index: 13, kind: input, shape index: {}]
  %s14 = inlined_call_operand.vmem [shape: bf16[64,16], index: 14, kind: input, shape index: {}]
  %s15 = inlined_call_operand.vmem [shape: bf16[16,64], index: 15, kind: input, shape index: {}]
  %s16 = inlined_call_operand.hbm [shape: f32[2,1,64,64], index: 16, kind: output, shape index: {}]
  %s17 = sld [smem:[#allocation0]]
  $region109: #{tpu_custom_call.1} parent=0
    _
  %s19 = ssub.s32 1, %s17
  %s20 = scalar_select 0, %s19, %s17
  %v21 = vstv %s13
  %22 = vst [vmem:[#allocation3] sm:$0x1] %v21
  $region1: #{tpu_custom_call.1} parent=0
    #allocation4 [shape = 'u8[6144]{0}', space=vmem, size = 0x1800, scoped, tag = 'input window, operand 0']
    #allocation5 [shape = 's32[2]{0}', space=sflag, size = 0x8, scoped, tag = 'scoped memory for tpu_custom_call.1']
    #allocation6 [shape = 's32[2]{0}', space=sflag, size = 0x8, scoped, tag = 'scoped memory for tpu_custom_call.1']
    #allocation7 [shape = 'u8[6144]{0}', space=vmem, size = 0x1800, scoped, tag = 'input window, operand 1']
    #allocation8 [shape = 's32[2]{0}', space=sflag, size = 0x8, scoped, tag = 'scoped memory for tpu_custom_call.1']
    #allocation9 [shape = 'u8[1536]{0}', space=vmem, size = 0x800, scoped, tag = 'input window, operand 2, single buffered']
    #allocation10 [shape = 'u8[65536]{0}', space=vmem, size = 0x10000, scoped, tag = 'output window, operand 0']
    %23 = vsyncpa [#allocation5], 0
    %s24 = scalar_lea.sflag [#allocation5], 1
    %25 = vsyncpa %s24, 0
    %26 = vsyncpa [#allocation8], 0
    %s27 = scalar_lea.sflag [#allocation8], 1
    %28 = vsyncpa %s27, 0
    %29 = vsyncpa [#allocation6], 0
    %s30 = scalar_lea.sflag [#allocation6], 1
    %31 = vsyncpa %s30, 0
    loop: start=0, step=1, limit=4
    $region2: #{tpu_custom_call.1} parent=1 // loop_pre_header
      _
    $region3: #{tpu_custom_call.1} parent=1 // loop_header
      %s33 = sphi 0, %s37
      %p34 = scmp.ge.s32.totalorder %s33, 4
      %s40 = sphi 0, %s52
      %s41 = sphi 0, %s48
      %s42 = sphi 0, %s40
      %s43 = sphi 0, %s41
      %s44 = sphi 0, %s42
      %s45 = sphi 0, %s43
      %s55 = sphi 0, %s57
      %s58 = sphi 0, %s55
      %s59 = sphi 0, %s58
      %s75 = sphi 0, %s59
      %s81 = sphi 0, %s83
      %s84 = sphi 0, %s81
      %s85 = sphi 0, %s84
      %s101 = sphi 0, %s85
      %s105 = sphi 0, %s105
      %s107 = sphi 0, %s105
      %s108 = sphi 0, %s107
      %s122 = sphi 0, %s108
      %s126 = sphi 0, %s126
      %s128 = sphi 0, %s126
      %s129 = sphi 0, %s128
      %s143 = sphi 0, %s129
      %s147 = sphi 0, %s147
      %s149 = sphi 0, %s147
      %s150 = sphi 0, %s149
      %s164 = sphi 0, %s150
      %s168 = sphi 0, %s168
      %s170 = sphi 0, %s168
      %s171 = sphi 0, %s170
      %s185 = sphi 0, %s171
      %s189 = sphi 0, %s189
      %s191 = sphi 0, %s189
      %s192 = sphi 0, %s191
      %s206 = sphi 0, %s192
      %s210 = sphi 0, %s210
      %s212 = sphi 0, %s210
      %s213 = sphi 0, %s212
      %s227 = sphi 0, %s213
      %s231 = sphi 0, %s231
      %s233 = sphi 0, %s231
      %s234 = sphi 0, %s233
      %s248 = sphi 0, %s234
      %s252 = sphi 0, %s252
      %s254 = sphi 0, %s252
      %s255 = sphi 0, %s254
      %s269 = sphi 0, %s255
      %s273 = sphi 0, %s273
      %s275 = sphi 0, %s273
      %s276 = sphi 0, %s275
      %s290 = sphi 0, %s276
      %s294 = sphi 0, %s294
      %s296 = sphi 0, %s294
      %s297 = sphi 0, %s296
      %s311 = sphi 0, %s297
      %s315 = sphi 0, %s315
      %s317 = sphi 0, %s315
      %s318 = sphi 0, %s317
      %s332 = sphi 0, %s318
      %s336 = sphi 0, %s336
      %s338 = sphi 0, %s336
      %s339 = sphi 0, %s338
      %s353 = sphi 0, %s339
      %s357 = sphi 0, %s357
      %s359 = sphi 0, %s357
      %s360 = sphi 0, %s359
      %s374 = sphi 0, %s360
      %s378 = sphi 0, %s378
      %s380 = sphi 0, %s378
      %s381 = sphi 0, %s380
      %s395 = sphi 0, %s381
      %s403 = sphi 0, %s405
      %s406 = sphi 0, %s403
      %s407 = sphi 0, %s406
      %s423 = sphi 0, %s407
    $region4: #{tpu_custom_call.1} parent=1 // loop_header_branch
      %36 = sbr.rel (%p34) target = $region8
    $region5: #{tpu_custom_call.1} parent=1 // loop_body
      %s38 = ssub.s32 %s33, 1
      %s39 = ssub.s32 %s33, 2
      %s46 = sadd.s32 1, %s41
      %p47 = scmp.ge.s32.totalorder %s46, 1
      %s48 = scalar_select %p47, 0, %s46
      %s49 = sadd.s32 1, %s40
      %s50 = scalar_select %p47, %s49, %s40
      %p51 = scmp.ge.s32.totalorder %s50, 2
      %s52 = scalar_select %p51, 0, %s50
      %s53 = ssub.s32 %s40, %s52
      %p54 = scmp.eq.s32.totalorder %s53, 0
      %s56 = sadd.s32 %s55, 1
      %s57 = scalar_select %p54, %s55, %s56
      %p60 = pneg %p54
      %p61 = scmp.eq.s32.totalorder %s33, 1
      %p62 = por %p60, %p61
      %p63 = scmp.ne.s32.totalorder %s55, %s58
      %p64 = scmp.eq.s32.totalorder %s33, 0
      %p65 = por %p63, %p64
      %p66 = scmp.ne.s32.totalorder %s55, %s58
      %p67 = scmp.eq.s32.totalorder %s38, 1
      %p68 = por %p66, %p67
      %p69 = scmp.ne.s32.totalorder %s58, %s59
      %p70 = scmp.eq.s32.totalorder %s38, 0
      %p71 = por %p69, %p70
      %p72 = scmp.ne.s32.totalorder %s58, %s59
      %p73 = scmp.eq.s32.totalorder %s39, 1
      %p74 = por %p72, %p73
      %p76 = scmp.ne.s32.totalorder %s59, %s75
      %p77 = scmp.eq.s32.totalorder %s39, 0
      %p78 = por %p76, %p77
      %s79 = ssub.s32 %s40, %s52
      %p80 = scmp.eq.s32.totalorder %s79, 0
      %s82 = sadd.s32 %s81, 1
      %s83 = scalar_select %p80, %s81, %s82
      %p86 = pneg %p80
      %p87 = scmp.eq.s32.totalorder %s33, 1
      %p88 = por %p86, %p87
      %p89 = scmp.ne.s32.totalorder %s81, %s84
      %p90 = scmp.eq.s32.totalorder %s33, 0
      %p91 = por %p89, %p90
      %p92 = scmp.ne.s32.totalorder %s81, %s84
      %p93 = scmp.eq.s32.totalorder %s38, 1
      %p94 = por %p92, %p93
      %p95 = scmp.ne.s32.totalorder %s84, %s85
      %p96 = scmp.eq.s32.totalorder %s38, 0
      %p97 = por %p95, %p96
      %p98 = scmp.ne.s32.totalorder %s84, %s85
      %p99 = scmp.eq.s32.totalorder %s39, 1
      %p100 = por %p98, %p99
      %p102 = scmp.ne.s32.totalorder %s85, %s101
      %p103 = scmp.eq.s32.totalorder %s39, 0
      %p104 = por %p102, %p103
      %s106 = sadd.s32 %s105, 1
      %p109 = scmp.eq.s32.totalorder %s33, 1
      %p110 = scmp.ne.s32.totalorder %s105, %s107
      %p111 = scmp.eq.s32.totalorder %s33, 0
      %p112 = por %p110, %p111
      %p113 = scmp.ne.s32.totalorder %s105, %s107
      %p114 = scmp.eq.s32.totalorder %s38, 1
      %p115 = por %p113, %p114
      %p116 = scmp.ne.s32.totalorder %s107, %s108
      %p117 = scmp.eq.s32.totalorder %s38, 0
      %p118 = por %p116, %p117
      %p119 = scmp.ne.s32.totalorder %s107, %s108
      %p120 = scmp.eq.s32.totalorder %s39, 1
      %p121 = por %p119, %p120
      %p123 = scmp.ne.s32.totalorder %s108, %s122
      %p124 = scmp.eq.s32.totalorder %s39, 0
      %p125 = por %p123, %p124
      %s127 = sadd.s32 %s126, 1
      %p130 = scmp.eq.s32.totalorder %s33, 1
      %p131 = scmp.ne.s32.totalorder %s126, %s128
      %p132 = scmp.eq.s32.totalorder %s33, 0
      %p133 = por %p131, %p132
      %p134 = scmp.ne.s32.totalorder %s126, %s128
      %p135 = scmp.eq.s32.totalorder %s38, 1
      %p136 = por %p134, %p135
      %p137 = scmp.ne.s32.totalorder %s128, %s129
      %p138 = scmp.eq.s32.totalorder %s38, 0
      %p139 = por %p137, %p138
      %p140 = scmp.ne.s32.totalorder %s128, %s129
      %p141 = scmp.eq.s32.totalorder %s39, 1
      %p142 = por %p140, %p141
      %p144 = scmp.ne.s32.totalorder %s129, %s143
      %p145 = scmp.eq.s32.totalorder %s39, 0
      %p146 = por %p144, %p145
      %s148 = sadd.s32 %s147, 1
      %p151 = scmp.eq.s32.totalorder %s33, 1
      %p152 = scmp.ne.s32.totalorder %s147, %s149
      %p153 = scmp.eq.s32.totalorder %s33, 0
      %p154 = por %p152, %p153
      %p155 = scmp.ne.s32.totalorder %s147, %s149
      %p156 = scmp.eq.s32.totalorder %s38, 1
      %p157 = por %p155, %p156
      %p158 = scmp.ne.s32.totalorder %s149, %s150
      %p159 = scmp.eq.s32.totalorder %s38, 0
      %p160 = por %p158, %p159
      %p161 = scmp.ne.s32.totalorder %s149, %s150
      %p162 = scmp.eq.s32.totalorder %s39, 1
      %p163 = por %p161, %p162
      %p165 = scmp.ne.s32.totalorder %s150, %s164
      %p166 = scmp.eq.s32.totalorder %s39, 0
      %p167 = por %p165, %p166
      %s169 = sadd.s32 %s168, 1
      %p172 = scmp.eq.s32.totalorder %s33, 1
      %p173 = scmp.ne.s32.totalorder %s168, %s170
      %p174 = scmp.eq.s32.totalorder %s33, 0
      %p175 = por %p173, %p174
      %p176 = scmp.ne.s32.totalorder %s168, %s170
      %p177 = scmp.eq.s32.totalorder %s38, 1
      %p178 = por %p176, %p177
      %p179 = scmp.ne.s32.totalorder %s170, %s171
      %p180 = scmp.eq.s32.totalorder %s38, 0
      %p181 = por %p179, %p180
      %p182 = scmp.ne.s32.totalorder %s170, %s171
      %p183 = scmp.eq.s32.totalorder %s39, 1
      %p184 = por %p182, %p183
      %p186 = scmp.ne.s32.totalorder %s171, %s185
      %p187 = scmp.eq.s32.totalorder %s39, 0
      %p188 = por %p186, %p187
      %s190 = sadd.s32 %s189, 1
      %p193 = scmp.eq.s32.totalorder %s33, 1
      %p194 = scmp.ne.s32.totalorder %s189, %s191
      %p195 = scmp.eq.s32.totalorder %s33, 0
      %p196 = por %p194, %p195
      %p197 = scmp.ne.s32.totalorder %s189, %s191
      %p198 = scmp.eq.s32.totalorder %s38, 1
      %p199 = por %p197, %p198
      %p200 = scmp.ne.s32.totalorder %s191, %s192
      %p201 = scmp.eq.s32.totalorder %s38, 0
      %p202 = por %p200, %p201
      %p203 = scmp.ne.s32.totalorder %s191, %s192
      %p204 = scmp.eq.s32.totalorder %s39, 1
      %p205 = por %p203, %p204
      %p207 = scmp.ne.s32.totalorder %s192, %s206
      %p208 = scmp.eq.s32.totalorder %s39, 0
      %p209 = por %p207, %p208
      %s211 = sadd.s32 %s210, 1
      %p214 = scmp.eq.s32.totalorder %s33, 1
      %p215 = scmp.ne.s32.totalorder %s210, %s212
      %p216 = scmp.eq.s32.totalorder %s33, 0
      %p217 = por %p215, %p216
      %p218 = scmp.ne.s32.totalorder %s210, %s212
      %p219 = scmp.eq.s32.totalorder %s38, 1
      %p220 = por %p218, %p219
      %p221 = scmp.ne.s32.totalorder %s212, %s213
      %p222 = scmp.eq.s32.totalorder %s38, 0
      %p223 = por %p221, %p222
      %p224 = scmp.ne.s32.totalorder %s212, %s213
      %p225 = scmp.eq.s32.totalorder %s39, 1
      %p226 = por %p224, %p225
      %p228 = scmp.ne.s32.totalorder %s213, %s227
      %p229 = scmp.eq.s32.totalorder %s39, 0
      %p230 = por %p228, %p229
      %s232 = sadd.s32 %s231, 1
      %p235 = scmp.eq.s32.totalorder %s33, 1
      %p236 = scmp.ne.s32.totalorder %s231, %s233
      %p237 = scmp.eq.s32.totalorder %s33, 0
      %p238 = por %p236, %p237
      %p239 = scmp.ne.s32.totalorder %s231, %s233
      %p240 = scmp.eq.s32.totalorder %s38, 1
      %p241 = por %p239, %p240
      %p242 = scmp.ne.s32.totalorder %s233, %s234
      %p243 = scmp.eq.s32.totalorder %s38, 0
      %p244 = por %p242, %p243
      %p245 = scmp.ne.s32.totalorder %s233, %s234
      %p246 = scmp.eq.s32.totalorder %s39, 1
      %p247 = por %p245, %p246
      %p249 = scmp.ne.s32.totalorder %s234, %s248
      %p250 = scmp.eq.s32.totalorder %s39, 0
      %p251 = por %p249, %p250
      %s253 = sadd.s32 %s252, 1
      %p256 = scmp.eq.s32.totalorder %s33, 1
      %p257 = scmp.ne.s32.totalorder %s252, %s254
      %p258 = scmp.eq.s32.totalorder %s33, 0
      %p259 = por %p257, %p258
      %p260 = scmp.ne.s32.totalorder %s252, %s254
      %p261 = scmp.eq.s32.totalorder %s38, 1
      %p262 = por %p260, %p261
      %p263 = scmp.ne.s32.totalorder %s254, %s255
      %p264 = scmp.eq.s32.totalorder %s38, 0
      %p265 = por %p263, %p264
      %p266 = scmp.ne.s32.totalorder %s254, %s255
      %p267 = scmp.eq.s32.totalorder %s39, 1
      %p268 = por %p266, %p267
      %p270 = scmp.ne.s32.totalorder %s255, %s269
      %p271 = scmp.eq.s32.totalorder %s39, 0
      %p272 = por %p270, %p271
      %s274 = sadd.s32 %s273, 1
      %p277 = scmp.eq.s32.totalorder %s33, 1
      %p278 = scmp.ne.s32.totalorder %s273, %s275
      %p279 = scmp.eq.s32.totalorder %s33, 0
      %p280 = por %p278, %p279
      %p281 = scmp.ne.s32.totalorder %s273, %s275
      %p282 = scmp.eq.s32.totalorder %s38, 1
      %p283 = por %p281, %p282
      %p284 = scmp.ne.s32.totalorder %s275, %s276
      %p285 = scmp.eq.s32.totalorder %s38, 0
      %p286 = por %p284, %p285
      %p287 = scmp.ne.s32.totalorder %s275, %s276
      %p288 = scmp.eq.s32.totalorder %s39, 1
      %p289 = por %p287, %p288
      %p291 = scmp.ne.s32.totalorder %s276, %s290
      %p292 = scmp.eq.s32.totalorder %s39, 0
      %p293 = por %p291, %p292
      %s295 = sadd.s32 %s294, 1
      %p298 = scmp.eq.s32.totalorder %s33, 1
      %p299 = scmp.ne.s32.totalorder %s294, %s296
      %p300 = scmp.eq.s32.totalorder %s33, 0
      %p301 = por %p299, %p300
      %p302 = scmp.ne.s32.totalorder %s294, %s296
      %p303 = scmp.eq.s32.totalorder %s38, 1
      %p304 = por %p302, %p303
      %p305 = scmp.ne.s32.totalorder %s296, %s297
      %p306 = scmp.eq.s32.totalorder %s38, 0
      %p307 = por %p305, %p306
      %p308 = scmp.ne.s32.totalorder %s296, %s297
      %p309 = scmp.eq.s32.totalorder %s39, 1
      %p310 = por %p308, %p309
      %p312 = scmp.ne.s32.totalorder %s297, %s311
      %p313 = scmp.eq.s32.totalorder %s39, 0
      %p314 = por %p312, %p313
      %s316 = sadd.s32 %s315, 1
      %p319 = scmp.eq.s32.totalorder %s33, 1
      %p320 = scmp.ne.s32.totalorder %s315, %s317
      %p321 = scmp.eq.s32.totalorder %s33, 0
      %p322 = por %p320, %p321
      %p323 = scmp.ne.s32.totalorder %s315, %s317
      %p324 = scmp.eq.s32.totalorder %s38, 1
      %p325 = por %p323, %p324
      %p326 = scmp.ne.s32.totalorder %s317, %s318
      %p327 = scmp.eq.s32.totalorder %s38, 0
      %p328 = por %p326, %p327
      %p329 = scmp.ne.s32.totalorder %s317, %s318
      %p330 = scmp.eq.s32.totalorder %s39, 1
      %p331 = por %p329, %p330
      %p333 = scmp.ne.s32.totalorder %s318, %s332
      %p334 = scmp.eq.s32.totalorder %s39, 0
      %p335 = por %p333, %p334
      %s337 = sadd.s32 %s336, 1
      %p340 = scmp.eq.s32.totalorder %s33, 1
      %p341 = scmp.ne.s32.totalorder %s336, %s338
      %p342 = scmp.eq.s32.totalorder %s33, 0
      %p343 = por %p341, %p342
      %p344 = scmp.ne.s32.totalorder %s336, %s338
      %p345 = scmp.eq.s32.totalorder %s38, 1
      %p346 = por %p344, %p345
      %p347 = scmp.ne.s32.totalorder %s338, %s339
      %p348 = scmp.eq.s32.totalorder %s38, 0
      %p349 = por %p347, %p348
      %p350 = scmp.ne.s32.totalorder %s338, %s339
      %p351 = scmp.eq.s32.totalorder %s39, 1
      %p352 = por %p350, %p351
      %p354 = scmp.ne.s32.totalorder %s339, %s353
      %p355 = scmp.eq.s32.totalorder %s39, 0
      %p356 = por %p354, %p355
      %s358 = sadd.s32 %s357, 1
      %p361 = scmp.eq.s32.totalorder %s33, 1
      %p362 = scmp.ne.s32.totalorder %s357, %s359
      %p363 = scmp.eq.s32.totalorder %s33, 0
      %p364 = por %p362, %p363
      %p365 = scmp.ne.s32.totalorder %s357, %s359
      %p366 = scmp.eq.s32.totalorder %s38, 1
      %p367 = por %p365, %p366
      %p368 = scmp.ne.s32.totalorder %s359, %s360
      %p369 = scmp.eq.s32.totalorder %s38, 0
      %p370 = por %p368, %p369
      %p371 = scmp.ne.s32.totalorder %s359, %s360
      %p372 = scmp.eq.s32.totalorder %s39, 1
      %p373 = por %p371, %p372
      %p375 = scmp.ne.s32.totalorder %s360, %s374
      %p376 = scmp.eq.s32.totalorder %s39, 0
      %p377 = por %p375, %p376
      %s379 = sadd.s32 %s378, 1
      %p382 = scmp.eq.s32.totalorder %s33, 1
      %p383 = scmp.ne.s32.totalorder %s378, %s380
      %p384 = scmp.eq.s32.totalorder %s33, 0
      %p385 = por %p383, %p384
      %p386 = scmp.ne.s32.totalorder %s378, %s380
      %p387 = scmp.eq.s32.totalorder %s38, 1
      %p388 = por %p386, %p387
      %p389 = scmp.ne.s32.totalorder %s380, %s381
      %p390 = scmp.eq.s32.totalorder %s38, 0
      %p391 = por %p389, %p390
      %p392 = scmp.ne.s32.totalorder %s380, %s381
      %p393 = scmp.eq.s32.totalorder %s39, 1
      %p394 = por %p392, %p393
      %p396 = scmp.ne.s32.totalorder %s381, %s395
      %p397 = scmp.eq.s32.totalorder %s39, 0
      %p398 = por %p396, %p397
      %s399 = ssub.s32 %s40, %s52
      %s400 = ssub.s32 %s41, %s48
      %s401 = sor.u32 %s399, %s400
      %p402 = scmp.eq.s32.totalorder %s401, 0
      %s404 = sadd.s32 %s403, 1
      %s405 = scalar_select %p402, %s403, %s404
      %p408 = pneg %p402
      %p409 = scmp.eq.s32.totalorder %s33, 1
      %p410 = por %p408, %p409
      %p411 = scmp.ne.s32.totalorder %s403, %s406
      %p412 = scmp.eq.s32.totalorder %s33, 0
      %p413 = por %p411, %p412
      %p414 = scmp.ne.s32.totalorder %s403, %s406
      %p415 = scmp.eq.s32.totalorder %s38, 1
      %p416 = por %p414, %p415
      %p417 = scmp.ne.s32.totalorder %s406, %s407
      %p418 = scmp.eq.s32.totalorder %s38, 0
      %p419 = por %p417, %p418
      %p420 = scmp.ne.s32.totalorder %s406, %s407
      %p421 = scmp.eq.s32.totalorder %s39, 1
      %p422 = por %p420, %p421
      %p424 = scmp.ne.s32.totalorder %s407, %s423
      %p425 = scmp.eq.s32.totalorder %s39, 0
      %p426 = por %p424, %p425
      %p427 = scmp.le.s32.totalorder 1, %s33
      %p428 = scmp.lt.s32.totalorder %s33, 3
      %p429 = pnand %p427, %p428
      %p430 = pneg %p429
      // Predicated region
      $region9: #{tpu_custom_call.1} parent=5 // pred_check
        _
      $region10: #{tpu_custom_call.1} parent=5 // pred_check_branch
        %432 = sbr.rel (%p429) target = $region12
      $region11: #{tpu_custom_call.1} parent=5 // pred_region
        %s433 = ssub.s32 %s33, 1
        // Predicated region
        $region13: #{tpu_custom_call.1} parent=11 // pred_check
          %p434 = pneg %p118
        $region14: #{tpu_custom_call.1} parent=11 // pred_check_branch
          %436 = sbr.rel (%p434) target = $region16
        $region15: #{tpu_custom_call.1} parent=11 // pred_region
          %s438 = ssub.s32 48, 48
          %439 = vsyncadd [#allocation8], %s438
          %s441 = sshll.u32 [#allocation9], 4
          %s442 = int_to_ptr.vmem [resolvable:$true] %s441
          %444 = dma.hbm_to_vmem [thread:$0]  %s2, 48, %s442, [#allocation8]
        $region16: #{tpu_custom_call.1} parent=11 // pred_fallthru
          _
        // Predicated region
        $region17: #{tpu_custom_call.1} parent=11 // pred_check
          %p445 = pneg %p139
        $region18: #{tpu_custom_call.1} parent=11 // pred_check_branch
          %447 = sbr.rel (%p445) target = $region20
        $region19: #{tpu_custom_call.1} parent=11 // pred_region
          _
        $region20: #{tpu_custom_call.1} parent=11 // pred_fallthru
          _
        // Predicated region
        $region21: #{tpu_custom_call.1} parent=11 // pred_check
          %p448 = pneg %p160
        $region22: #{tpu_custom_call.1} parent=11 // pred_check_branch
          %450 = sbr.rel (%p448) target = $region24
        $region23: #{tpu_custom_call.1} parent=11 // pred_region
          _
        $region24: #{tpu_custom_call.1} parent=11 // pred_fallthru
          _
        // Predicated region
        $region25: #{tpu_custom_call.1} parent=11 // pred_check
          %p451 = pneg %p181
        $region26: #{tpu_custom_call.1} parent=11 // pred_check_branch
          %453 = sbr.rel (%p451) target = $region28
        $region27: #{tpu_custom_call.1} parent=11 // pred_region
          _
        $region28: #{tpu_custom_call.1} parent=11 // pred_fallthru
          _
        // Predicated region
        $region29: #{tpu_custom_call.1} parent=11 // pred_check
          %p454 = pneg %p202
        $region30: #{tpu_custom_call.1} parent=11 // pred_check_branch
          %456 = sbr.rel (%p454) target = $region32
        $region31: #{tpu_custom_call.1} parent=11 // pred_region
          _
        $region32: #{tpu_custom_call.1} parent=11 // pred_fallthru
          _
        // Predicated region
        $region33: #{tpu_custom_call.1} parent=11 // pred_check
          %p457 = pneg %p223
        $region34: #{tpu_custom_call.1} parent=11 // pred_check_branch
          %459 = sbr.rel (%p457) target = $region36
        $region35: #{tpu_custom_call.1} parent=11 // pred_region
          _
        $region36: #{tpu_custom_call.1} parent=11 // pred_fallthru
          _
        // Predicated region
        $region37: #{tpu_custom_call.1} parent=11 // pred_check
          %p460 = pneg %p244
        $region38: #{tpu_custom_call.1} parent=11 // pred_check_branch
          %462 = sbr.rel (%p460) target = $region40
        $region39: #{tpu_custom_call.1} parent=11 // pred_region
          _
        $region40: #{tpu_custom_call.1} parent=11 // pred_fallthru
          _
        // Predicated region
        $region41: #{tpu_custom_call.1} parent=11 // pred_check
          %p463 = pneg %p265
        $region42: #{tpu_custom_call.1} parent=11 // pred_check_branch
          %465 = sbr.rel (%p463) target = $region44
        $region43: #{tpu_custom_call.1} parent=11 // pred_region
          _
        $region44: #{tpu_custom_call.1} parent=11 // pred_fallthru
          _
        // Predicated region
        $region45: #{tpu_custom_call.1} parent=11 // pred_check
          %p466 = pneg %p286
        $region46: #{tpu_custom_call.1} parent=11 // pred_check_branch
          %468 = sbr.rel (%p466) target = $region48
        $region47: #{tpu_custom_call.1} parent=11 // pred_region
          _
        $region48: #{tpu_custom_call.1} parent=11 // pred_fallthru
          _
        // Predicated region
        $region49: #{tpu_custom_call.1} parent=11 // pred_check
          %p469 = pneg %p307
        $region50: #{tpu_custom_call.1} parent=11 // pred_check_branch
          %471 = sbr.rel (%p469) target = $region52
        $region51: #{tpu_custom_call.1} parent=11 // pred_region
          _
        $region52: #{tpu_custom_call.1} parent=11 // pred_fallthru
          _
        // Predicated region
        $region53: #{tpu_custom_call.1} parent=11 // pred_check
          %p472 = pneg %p328
        $region54: #{tpu_custom_call.1} parent=11 // pred_check_branch
          %474 = sbr.rel (%p472) target = $region56
        $region55: #{tpu_custom_call.1} parent=11 // pred_region
          _
        $region56: #{tpu_custom_call.1} parent=11 // pred_fallthru
          _
        // Predicated region
        $region57: #{tpu_custom_call.1} parent=11 // pred_check
          %p475 = pneg %p349
        $region58: #{tpu_custom_call.1} parent=11 // pred_check_branch
          %477 = sbr.rel (%p475) target = $region60
        $region59: #{tpu_custom_call.1} parent=11 // pred_region
          _
        $region60: #{tpu_custom_call.1} parent=11 // pred_fallthru
          _
        // Predicated region
        $region61: #{tpu_custom_call.1} parent=11 // pred_check
          %p478 = pneg %p370
        $region62: #{tpu_custom_call.1} parent=11 // pred_check_branch
          %480 = sbr.rel (%p478) target = $region64
        $region63: #{tpu_custom_call.1} parent=11 // pred_region
          _
        $region64: #{tpu_custom_call.1} parent=11 // pred_fallthru
          _
        // Predicated region
        $region65: #{tpu_custom_call.1} parent=11 // pred_check
          %p481 = pneg %p391
        $region66: #{tpu_custom_call.1} parent=11 // pred_check_branch
          %483 = sbr.rel (%p481) target = $region68
        $region67: #{tpu_custom_call.1} parent=11 // pred_region
          _
        $region68: #{tpu_custom_call.1} parent=11 // pred_fallthru
          _
      $region12: #{tpu_custom_call.1} parent=5 // pred_fallthru
        _
      %p484 = scmp.lt.s32.totalorder %s33, 2
      // Predicated region
      $region69: #{tpu_custom_call.1} parent=5 // pred_check
        %p485 = pneg %p484
      $region70: #{tpu_custom_call.1} parent=5 // pred_check_branch
        %487 = sbr.rel (%p485) target = $region72
      $region71: #{tpu_custom_call.1} parent=5 // pred_region
        // Predicated region
        $region73: #{tpu_custom_call.1} parent=71 // pred_check
          %p488 = pneg %p65
        $region74: #{tpu_custom_call.1} parent=71 // pred_check_branch
          %490 = sbr.rel (%p488) target = $region76
        $region75: #{tpu_custom_call.1} parent=71 // pred_region
          %s491 = sand.u32 %s55, 1
          %s492 = scalar_lea.sflag [#allocation5], %s491
          %s493 = sand.u32 %s55, 1
          %s494 = smul.addr %s493, 6
          %s495 = scalar_lea.vmem [#allocation4], %s494
          %s497 = ssub.s32 96, 96
          %498 = vsyncadd %s492, %s497
          %s499 = smul.addr %s40, 6
          %s500 = smul.addr %s499, 32
          %s501 = scalar_lea.hbm %s0, %s500
          %s503 = sshll.u32 %s495, 4
          %s504 = int_to_ptr.vmem [resolvable:$true] %s503
          %506 = dma.hbm_to_vmem [thread:$0]  %s501, 96, %s504, %s492
        $region76: #{tpu_custom_call.1} parent=71 // pred_fallthru
          _
        // Predicated region
        $region77: #{tpu_custom_call.1} parent=71 // pred_check
          %p507 = pneg %p91
        $region78: #{tpu_custom_call.1} parent=71 // pred_check_branch
          %509 = sbr.rel (%p507) target = $region80
        $region79: #{tpu_custom_call.1} parent=71 // pred_region
          %s510 = sand.u32 %s33, 1
          %s511 = scalar_lea.sflag [#allocation8], %s510
          %s512 = sand.u32 %s81, 1
          %s513 = smul.addr %s512, 6
          %s514 = scalar_lea.vmem [#allocation7], %s513
          %s516 = ssub.s32 96, 96
          %517 = vsyncadd %s511, %s516
          %s518 = smul.addr %s40, 6
          %s519 = sadd.s32 3, %s518
          %s520 = smul.addr %s519, 32
          %s521 = scalar_lea.hbm %s1, %s520
          %s523 = sshll.u32 %s514, 4
          %s524 = int_to_ptr.vmem [resolvable:$true] %s523
          %526 = dma.hbm_to_vmem [thread:$0]  %s521, 96, %s524, %s511
        $region80: #{tpu_custom_call.1} parent=71 // pred_fallthru
          _
      $region72: #{tpu_custom_call.1} parent=5 // pred_fallthru
        _
      %p527 = scmp.le.s32.totalorder 1, %s33
      %p528 = scmp.lt.s32.totalorder %s33, 3
      %p529 = pnand %p527, %p528
      %p530 = pneg %p529
      // Predicated region
      $region81: #{tpu_custom_call.1} parent=5 // pred_check
        _
      $region82: #{tpu_custom_call.1} parent=5 // pred_check_branch
        %532 = sbr.rel (%p529) target = $region84
      $region83: #{tpu_custom_call.1} parent=5 // pred_region
        %s533 = ssub.s32 %s33, 1
        %s534 = sand.u32 %s58, 1
        %s535 = scalar_lea.sflag [#allocation5], %s534
        %s536 = sand.u32 %s58, 1
        %s537 = smul.addr %s536, 6
        %s538 = scalar_lea.vmem [#allocation4], %s537
        // Predicated region
        $region85: #{tpu_custom_call.1} parent=83 // pred_check
          %p539 = pneg %p71
        $region86: #{tpu_custom_call.1} parent=83 // pred_check_branch
          %541 = sbr.rel (%p539) target = $region88
        $region87: #{tpu_custom_call.1} parent=83 // pred_region
          %542 = dma.done %s535, 96
        $region88: #{tpu_custom_call.1} parent=83 // pred_fallthru
          _
        %s543 = sand.u32 %s38, 1
        %s544 = scalar_lea.sflag [#allocation8], %s543
        %s545 = sand.u32 %s84, 1
        %s546 = smul.addr %s545, 6
        %s547 = scalar_lea.vmem [#allocation7], %s546
        // Predicated region
        $region89: #{tpu_custom_call.1} parent=83 // pred_check
          %p548 = pneg %p97
        $region90: #{tpu_custom_call.1} parent=83 // pred_check_branch
          %550 = sbr.rel (%p548) target = $region92
        $region91: #{tpu_custom_call.1} parent=83 // pred_region
          %551 = dma.done %s544, 96
        $region92: #{tpu_custom_call.1} parent=83 // pred_fallthru
          _
        // Predicated region
        $region93: #{tpu_custom_call.1} parent=83 // pred_check
          %p552 = pneg %p118
        $region94: #{tpu_custom_call.1} parent=83 // pred_check_branch
          %554 = sbr.rel (%p552) target = $region96
        $region95: #{tpu_custom_call.1} parent=83 // pred_region
          %555 = dma.done [#allocation8], 48
        $region96: #{tpu_custom_call.1} parent=83 // pred_fallthru
          _
        %s556 = sand.u32 %s58, 1
        %s557 = scalar_lea.sflag [#allocation5], %s556
        %s558 = sand.u32 %s58, 1
        %s559 = smul.addr %s558, 6
        %s560 = scalar_lea.vmem [#allocation4], %s559
        %p561 = pneg %p71
        %p562 = pneg %p68
        %s563 = sand.u32 %s38, 1
        %s564 = scalar_lea.sflag [#allocation8], %s563
        %s565 = sand.u32 %s84, 1
        %s566 = smul.addr %s565, 6
        %s567 = scalar_lea.vmem [#allocation7], %s566
        %p568 = pneg %p97
        %p569 = pneg %p94
        %p570 = pneg %p118
        %p571 = pneg %p115
        %p572 = pneg %p139
        %p573 = pneg %p136
        %p574 = pneg %p160
        %p575 = pneg %p157
        %p576 = pneg %p181
        %p577 = pneg %p178
        %p578 = pneg %p202
        %p579 = pneg %p199
        %p580 = pneg %p223
        %p581 = pneg %p220
        %p582 = pneg %p244
        %p583 = pneg %p241
        %p584 = pneg %p265
        %p585 = pneg %p262
        %p586 = pneg %p286
        %p587 = pneg %p283
        %p588 = pneg %p307
        %p589 = pneg %p304
        %p590 = pneg %p328
        %p591 = pneg %p325
        %p592 = pneg %p349
        %p593 = pneg %p346
        %p594 = pneg %p370
        %p595 = pneg %p367
        %p596 = pneg %p391
        %p597 = pneg %p388
        %p598 = pneg %p419
        %p599 = pneg %p416
        %s600 = sand.u32 %s406, 1
        %s601 = scalar_lea.sflag [#allocation6], %s600
        %s602 = sand.u32 %s406, 1
        %s603 = smul.addr %s602, 64
        %s604 = scalar_lea.vmem [#allocation10], %s603
        %v606 = vld [vmem:[#allocation9] sm:$0x7]
        %vm607 = vcmp.ne.f32.partialorder %v606, 0.0
        %v608 = vld [vmem:[%s547] sm:$0x3f]
        %v610 = vcombine.high %v608, %v608
        %v612 = vunpack.c.l.s4 1983009808
        %v613 = vunpack.c.0.s8 %v612
        %v614 = vlaneseq
        %v615 = vshrl.u32 %v614, 7
        %v616 = vsub.s32 %v613, %v615
        %v617 = vrot.slane %v608, %v616
        %v619 = vunpack.c.l.s4 1983009808
        %v620 = vunpack.c.0.s8 %v619
        %v621 = vlaneseq
        %v622 = vshrl.u32 %v621, 7
        %v623 = vsub.s32 %v620, %v622
        %v624 = vrot.slane %v610, %v623
        %627 = vst [vmem:[#allocation2 + $0x4] sm:$0x33] %v617
        %vm628 = vcmask 549888
        %629 = vst.msk [vmem:[#allocation2 + $0xc] sm:$0x3] %vm628, %v624
        %v630 = vld [vmem:[#allocation2] sm:$0x33]
        %v631 = vld [vmem:[#allocation2 + $0x8] sm:$0x33]
        %v632 = vld [vmem:[%s3] sm:$0xf]
        %s633 = scalar_lea.vmem %s3, 4
        %v634 = vld [vmem:[%s633] sm:$0xf]
        %v637 = vunpack.c.l.b16 %v630
        %v638 = vunpack.c.h.b16 %v630
        %v639 = vunpack.c.l.b16 %v631
        %v640 = vunpack.c.h.b16 %v631
        %v641 = vpack.c.b16 %v637, %v637
        %v642 = vpack.c.b16 %v638, %v638
        %v643 = vpack.c.b16 %v639, %v639
        %v644 = vpack.c.b16 %v640, %v640
        %645 = vrot.lane.b32.xlu0 %v641, 18
        %v646 = vpop.permute.xlu0 %645
        %647 = vrot.lane.b32.xlu0 %v642, 18
        %v648 = vpop.permute.xlu0 %647
        %649 = vrot.lane.b32.xlu0 %v643, 18
        %v650 = vpop.permute.xlu0 %649
        %651 = vrot.lane.b32.xlu0 %v644, 18
        %v652 = vpop.permute.xlu0 %651
        %vm653 = vcmask 146432
        %v654 = vsel %vm653, %v646, %v648
        %v655 = vsel %vm653, %v648, %v650
        %v656 = vsel %vm653, %v650, %v652
        %vm657 = vcmask 31744
        %v659 = vsel %vm657, %v634, 0
        %vm661 = vcmask 1041408
        %v663 = vsel %vm661, %v654, 0
        %v666 = vsel %vm661, %v655, 0
        %v669 = vsel %vm661, %v656, 0
        %671 = vmatprep.subr.bf16.mxu0 0
        %672 = vmatpush1.bf16.msra.mxu0 0
        %673 = vmatprep.subr.bf16.mxu0 0
        %674 = vmatpush1.bf16.msra.mxu0 0
        %675 = vmatprep.subr.bf16.mxu0 0
        %676 = vmatpush1.bf16.msra.mxu0 0
        %677 = vmatprep.subr.bf16.mxu0 0
        %678 = vmatpush1.bf16.msra.mxu0 0
        %679 = vmatprep.subr.bf16.mxu0 0
        %680 = vmatpush1.bf16.msra.mxu0 0
        %681 = vmatprep.subr.bf16.mxu0 0
        %682 = vmatpush1.bf16.msra.mxu0 0
        %683 = vmatprep.subr.bf16.mxu0 0
        %684 = vmatpush1.bf16.msra.mxu0 0
        %685 = vmatprep.subr.bf16.mxu0 %v666
        %686 = vmatpush1.bf16.msra.mxu0 %v663
        %687 = vmatprep.subr.bf16.mxu0 0
        %688 = vmatpush2.bf16.msra.mxu0 0
        %689 = vmatprep.subr.bf16.mxu0 0
        %690 = vmatpush2.bf16.msra.mxu0 0
        %691 = vmatprep.subr.bf16.mxu0 0
        %692 = vmatpush2.bf16.msra.mxu0 0
        %693 = vmatprep.subr.bf16.mxu0 0
        %694 = vmatpush2.bf16.msra.mxu0 0
        %695 = vmatprep.subr.bf16.mxu0 0
        %696 = vmatpush2.bf16.msra.mxu0 0
        %697 = vmatprep.subr.bf16.mxu0 0
        %698 = vmatpush2.bf16.msra.mxu0 0
        %699 = vmatprep.subr.bf16.mxu0 0
        %700 = vmatpush2.bf16.msra.mxu0 0
        %701 = vmatprep.subr.bf16.mxu0 0
        %702 = vmatpush2.bf16.msra.mxu0 0
        %703 = vmatprep.mubr.bf16.mxu0 0
        %704 = vmatmul.mubr.bf16.gmra.mxu0 %v659
        %v705 = vpop.f32.mrf.mxu0
        %v706 = vadd.f32 0.0, %v705
        %v707 = vpop.f32.mrf.mxu0
        %v708 = vadd.f32 0.0, %v707
        %v709 = vpop.f32.mrf.mxu0
        %v710 = vpop.f32.mrf.mxu0
        %711 = vdwg.mxu0
        %712 = vmatprep.subr.bf16.mxu0 0
        %713 = vmatpush1.bf16.msra.mxu0 0
        %714 = vmatprep.subr.bf16.mxu0 0
        %715 = vmatpush1.bf16.msra.mxu0 0
        %716 = vmatprep.subr.bf16.mxu0 0
        %717 = vmatpush1.bf16.msra.mxu0 0
        %718 = vmatprep.subr.bf16.mxu0 0
        %719 = vmatpush1.bf16.msra.mxu0 0
        %720 = vmatprep.subr.bf16.mxu0 0
        %721 = vmatpush1.bf16.msra.mxu0 0
        %722 = vmatprep.subr.bf16.mxu0 0
        %723 = vmatpush1.bf16.msra.mxu0 0
        %724 = vmatprep.subr.bf16.mxu0 0
        %725 = vmatpush1.bf16.msra.mxu0 0
        %726 = vmatprep.subr.bf16.mxu0 0
        %727 = vmatpush1.bf16.msra.mxu0 %v669
        %728 = vmatprep.subr.bf16.mxu0 0
        %729 = vmatpush2.bf16.msra.mxu0 0
        %730 = vmatprep.subr.bf16.mxu0 0
        %731 = vmatpush2.bf16.msra.mxu0 0
        %732 = vmatprep.subr.bf16.mxu0 0
        %733 = vmatpush2.bf16.msra.mxu0 0
        %734 = vmatprep.subr.bf16.mxu0 0
        %735 = vmatpush2.bf16.msra.mxu0 0
        %736 = vmatprep.subr.bf16.mxu0 0
        %737 = vmatpush2.bf16.msra.mxu0 0
        %738 = vmatprep.subr.bf16.mxu0 0
        %739 = vmatpush2.bf16.msra.mxu0 0
        %740 = vmatprep.subr.bf16.mxu0 0
        %741 = vmatpush2.bf16.msra.mxu0 0
        %742 = vmatprep.subr.bf16.mxu0 0
        %743 = vmatpush2.bf16.msra.mxu0 0
        %744 = vmatprep.mubr.bf16.mxu0 0
        %745 = vmatmul.mubr.bf16.gmra.mxu0 %v659
        %v746 = vpop.f32.mrf.mxu0
        %v747 = vadd.f32 0.0, %v746
        %v748 = vpop.f32.mrf.mxu0
        %v749 = vpop.f32.mrf.mxu0
        %v750 = vpop.f32.mrf.mxu0
        %751 = vdwg.mxu0
        %752 = vrot.lane.b32.xlu0 %v641, 19
        %v753 = vpop.permute.xlu0 %752
        %754 = vrot.lane.b32.xlu0 %v642, 19
        %v755 = vpop.permute.xlu0 %754
        %756 = vrot.lane.b32.xlu0 %v643, 19
        %v757 = vpop.permute.xlu0 %756
        %758 = vrot.lane.b32.xlu0 %v644, 19
        %v759 = vpop.permute.xlu0 %758
        %vm760 = vcmask 154624
        %v761 = vsel %vm760, %v753, %v755
        %v762 = vsel %vm760, %v755, %v757
        %v763 = vsel %vm760, %v757, %v759
        %v765 = vsel %vm657, %v632, 0
        %v768 = vsel %vm661, %v761, 0
        %v771 = vsel %vm661, %v762, 0
        %v774 = vsel %vm661, %v763, 0
        %776 = vmatprep.subr.bf16.mxu0 0
        %777 = vmatpush1.bf16.msra.mxu0 0
        %778 = vmatprep.subr.bf16.mxu0 0
        %779 = vmatpush1.bf16.msra.mxu0 0
        %780 = vmatprep.subr.bf16.mxu0 0
        %781 = vmatpush1.bf16.msra.mxu0 0
        %782 = vmatprep.subr.bf16.mxu0 0
        %783 = vmatpush1.bf16.msra.mxu0 0
        %784 = vmatprep.subr.bf16.mxu0 0
        %785 = vmatpush1.bf16.msra.mxu0 0
        %786 = vmatprep.subr.bf16.mxu0 0
        %787 = vmatpush1.bf16.msra.mxu0 0
        %788 = vmatprep.subr.bf16.mxu0 0
        %789 = vmatpush1.bf16.msra.mxu0 0
        %790 = vmatprep.subr.bf16.mxu0 %v771
        %791 = vmatpush1.bf16.msra.mxu0 %v768
        %792 = vmatprep.subr.bf16.mxu0 0
        %793 = vmatpush2.bf16.msra.mxu0 0
        %794 = vmatprep.subr.bf16.mxu0 0
        %795 = vmatpush2.bf16.msra.mxu0 0
        %796 = vmatprep.subr.bf16.mxu0 0
        %797 = vmatpush2.bf16.msra.mxu0 0
        %798 = vmatprep.subr.bf16.mxu0 0
        %799 = vmatpush2.bf16.msra.mxu0 0
        %800 = vmatprep.subr.bf16.mxu0 0
        %801 = vmatpush2.bf16.msra.mxu0 0
        %802 = vmatprep.subr.bf16.mxu0 0
        %803 = vmatpush2.bf16.msra.mxu0 0
        %804 = vmatprep.subr.bf16.mxu0 0
        %805 = vmatpush2.bf16.msra.mxu0 0
        %806 = vmatprep.subr.bf16.mxu0 0
        %807 = vmatpush2.bf16.msra.mxu0 0
        %808 = vmatprep.mubr.bf16.mxu0 0
        %809 = vmatmul.mubr.bf16.gmra.mxu0 %v765
        %v810 = vpop.f32.mrf.mxu0
        %v811 = vadd.f32 %v706, %v810
        %v812 = vpop.f32.mrf.mxu0
        %v813 = vadd.f32 %v708, %v812
        %v814 = vpop.f32.mrf.mxu0
        %v815 = vpop.f32.mrf.mxu0
        %816 = vdwg.mxu0
        %817 = vmatprep.subr.bf16.mxu0 0
        %818 = vmatpush1.bf16.msra.mxu0 0
        %819 = vmatprep.subr.bf16.mxu0 0
        %820 = vmatpush1.bf16.msra.mxu0 0
        %821 = vmatprep.subr.bf16.mxu0 0
        %822 = vmatpush1.bf16.msra.mxu0 0
        %823 = vmatprep.subr.bf16.mxu0 0
        %824 = vmatpush1.bf16.msra.mxu0 0
        %825 = vmatprep.subr.bf16.mxu0 0
        %826 = vmatpush1.bf16.msra.mxu0 0
        %827 = vmatprep.subr.bf16.mxu0 0
        %828 = vmatpush1.bf16.msra.mxu0 0
        %829 = vmatprep.subr.bf16.mxu0 0
        %830 = vmatpush1.bf16.msra.mxu0 0
        %831 = vmatprep.subr.bf16.mxu0 0
        %832 = vmatpush1.bf16.msra.mxu0 %v774
        %833 = vmatprep.subr.bf16.mxu0 0
        %834 = vmatpush2.bf16.msra.mxu0 0
        %835 = vmatprep.subr.bf16.mxu0 0
        %836 = vmatpush2.bf16.msra.mxu0 0
        %837 = vmatprep.subr.bf16.mxu0 0
        %838 = vmatpush2.bf16.msra.mxu0 0
        %839 = vmatprep.subr.bf16.mxu0 0
        %840 = vmatpush2.bf16.msra.mxu0 0
        %841 = vmatprep.subr.bf16.mxu0 0
        %842 = vmatpush2.bf16.msra.mxu0 0
        %843 = vmatprep.subr.bf16.mxu0 0
        %844 = vmatpush2.bf16.msra.mxu0 0
        %845 = vmatprep.subr.bf16.mxu0 0
        %846 = vmatpush2.bf16.msra.mxu0 0
        %847 = vmatprep.subr.bf16.mxu0 0
        %848 = vmatpush2.bf16.msra.mxu0 0
        %849 = vmatprep.mubr.bf16.mxu0 0
        %850 = vmatmul.mubr.bf16.gmra.mxu0 %v765
        %v851 = vpop.f32.mrf.mxu0
        %v852 = vadd.f32 %v747, %v851
        %v853 = vpop.f32.mrf.mxu0
        %v854 = vpop.f32.mrf.mxu0
        %v855 = vpop.f32.mrf.mxu0
        %856 = vdwg.mxu0
        %s857 = scalar_lea.vmem %s3, 8
        %v858 = vld [vmem:[%s857] sm:$0xf]
        %859 = vrot.lane.b32.xlu0 %v641, 17
        %v860 = vpop.permute.xlu0 %859
        %861 = vrot.lane.b32.xlu0 %v642, 17
        %v862 = vpop.permute.xlu0 %861
        %863 = vrot.lane.b32.xlu0 %v643, 17
        %v864 = vpop.permute.xlu0 %863
        %865 = vrot.lane.b32.xlu0 %v644, 17
        %v866 = vpop.permute.xlu0 %865
        %vm867 = vcmask 138240
        %v868 = vsel %vm867, %v860, %v862
        %v869 = vsel %vm867, %v862, %v864
        %v870 = vsel %vm867, %v864, %v866
        %v872 = vsel %vm657, %v858, 0
        %v875 = vsel %vm661, %v868, 0
        %v878 = vsel %vm661, %v869, 0
        %v881 = vsel %vm661, %v870, 0
        %883 = vmatprep.subr.bf16.mxu0 0
        %884 = vmatpush1.bf16.msra.mxu0 0
        %885 = vmatprep.subr.bf16.mxu0 0
        %886 = vmatpush1.bf16.msra.mxu0 0
        %887 = vmatprep.subr.bf16.mxu0 0
        %888 = vmatpush1.bf16.msra.mxu0 0
        %889 = vmatprep.subr.bf16.mxu0 0
        %890 = vmatpush1.bf16.msra.mxu0 0
        %891 = vmatprep.subr.bf16.mxu0 0
        %892 = vmatpush1.bf16.msra.mxu0 0
        %893 = vmatprep.subr.bf16.mxu0 0
        %894 = vmatpush1.bf16.msra.mxu0 0
        %895 = vmatprep.subr.bf16.mxu0 0
        %896 = vmatpush1.bf16.msra.mxu0 0
        %897 = vmatprep.subr.bf16.mxu0 %v878
        %898 = vmatpush1.bf16.msra.mxu0 %v875
        %899 = vmatprep.subr.bf16.mxu0 0
        %900 = vmatpush2.bf16.msra.mxu0 0
        %901 = vmatprep.subr.bf16.mxu0 0
        %902 = vmatpush2.bf16.msra.mxu0 0
        %903 = vmatprep.subr.bf16.mxu0 0
        %904 = vmatpush2.bf16.msra.mxu0 0
        %905 = vmatprep.subr.bf16.mxu0 0
        %906 = vmatpush2.bf16.msra.mxu0 0
        %907 = vmatprep.subr.bf16.mxu0 0
        %908 = vmatpush2.bf16.msra.mxu0 0
        %909 = vmatprep.subr.bf16.mxu0 0
        %910 = vmatpush2.bf16.msra.mxu0 0
        %911 = vmatprep.subr.bf16.mxu0 0
        %912 = vmatpush2.bf16.msra.mxu0 0
        %913 = vmatprep.subr.bf16.mxu0 0
        %914 = vmatpush2.bf16.msra.mxu0 0
        %915 = vmatprep.mubr.bf16.mxu0 0
        %916 = vmatmul.mubr.bf16.gmra.mxu0 %v872
        %v917 = vpop.f32.mrf.mxu0
        %v918 = vadd.f32 0.0, %v917
        %v919 = vpop.f32.mrf.mxu0
        %v920 = vadd.f32 0.0, %v919
        %v921 = vpop.f32.mrf.mxu0
        %v922 = vpop.f32.mrf.mxu0
        %923 = vdwg.mxu0
        %924 = vmatprep.subr.bf16.mxu0 0
        %925 = vmatpush1.bf16.msra.mxu0 0
        %926 = vmatprep.subr.bf16.mxu0 0
        %927 = vmatpush1.bf16.msra.mxu0 0
        %928 = vmatprep.subr.bf16.mxu0 0
        %929 = vmatpush1.bf16.msra.mxu0 0
        %930 = vmatprep.subr.bf16.mxu0 0
        %931 = vmatpush1.bf16.msra.mxu0 0
        %932 = vmatprep.subr.bf16.mxu0 0
        %933 = vmatpush1.bf16.msra.mxu0 0
        %934 = vmatprep.subr.bf16.mxu0 0
        %935 = vmatpush1.bf16.msra.mxu0 0
        %936 = vmatprep.subr.bf16.mxu0 0
        %937 = vmatpush1.bf16.msra.mxu0 0
        %938 = vmatprep.subr.bf16.mxu0 0
        %939 = vmatpush1.bf16.msra.mxu0 %v881
        %940 = vmatprep.subr.bf16.mxu0 0
        %941 = vmatpush2.bf16.msra.mxu0 0
        %942 = vmatprep.subr.bf16.mxu0 0
        %943 = vmatpush2.bf16.msra.mxu0 0
        %944 = vmatprep.subr.bf16.mxu0 0
        %945 = vmatpush2.bf16.msra.mxu0 0
        %946 = vmatprep.subr.bf16.mxu0 0
        %947 = vmatpush2.bf16.msra.mxu0 0
        %948 = vmatprep.subr.bf16.mxu0 0
        %949 = vmatpush2.bf16.msra.mxu0 0
        %950 = vmatprep.subr.bf16.mxu0 0
        %951 = vmatpush2.bf16.msra.mxu0 0
        %952 = vmatprep.subr.bf16.mxu0 0
        %953 = vmatpush2.bf16.msra.mxu0 0
        %954 = vmatprep.subr.bf16.mxu0 0
        %955 = vmatpush2.bf16.msra.mxu0 0
        %956 = vmatprep.mubr.bf16.mxu0 0
        %957 = vmatmul.mubr.bf16.gmra.mxu0 %v872
        %v958 = vpop.f32.mrf.mxu0
        %v959 = vadd.f32 0.0, %v958
        %v960 = vpop.f32.mrf.mxu0
        %v961 = vpop.f32.mrf.mxu0
        %v962 = vpop.f32.mrf.mxu0
        %963 = vdwg.mxu0
        %v964 = vadd.f32 %v811, %v918
        %v965 = vadd.f32 %v813, %v920
        %v966 = vadd.f32 %v852, %v959
        %s967 = scalar_lea.vmem %s3, 12
        %v968 = vld [vmem:[%s967] sm:$0xf]
        %969 = vrot.lane.b32.xlu0 %v641, 1
        %v970 = vpop.permute.xlu0 %969
        %971 = vrot.lane.b32.xlu0 %v642, 1
        %v972 = vpop.permute.xlu0 %971
        %973 = vrot.lane.b32.xlu0 %v643, 1
        %v974 = vpop.permute.xlu0 %973
        %975 = vrot.lane.b32.xlu0 %v644, 1
        %v976 = vpop.permute.xlu0 %975
        %vm977 = vcmask 7168
        %v978 = vsel %vm977, %v970, %v972
        %v979 = vsel %vm977, %v972, %v974
        %v980 = vsel %vm977, %v974, %v976
        %v982 = vsel %vm657, %v968, 0
        %v985 = vsel %vm661, %v978, 0
        %v988 = vsel %vm661, %v979, 0
        %v991 = vsel %vm661, %v980, 0
        %993 = vmatprep.subr.bf16.mxu0 0
        %994 = vmatpush1.bf16.msra.mxu0 0
        %995 = vmatprep.subr.bf16.mxu0 0
        %996 = vmatpush1.bf16.msra.mxu0 0
        %997 = vmatprep.subr.bf16.mxu0 0
        %998 = vmatpush1.bf16.msra.mxu0 0
        %999 = vmatprep.subr.bf16.mxu0 0
        %1000 = vmatpush1.bf16.msra.mxu0 0
        %1001 = vmatprep.subr.bf16.mxu0 0
        %1002 = vmatpush1.bf16.msra.mxu0 0
        %1003 = vmatprep.subr.bf16.mxu0 0
        %1004 = vmatpush1.bf16.msra.mxu0 0
        %1005 = vmatprep.subr.bf16.mxu0 0
        %1006 = vmatpush1.bf16.msra.mxu0 0
        %1007 = vmatprep.subr.bf16.mxu0 %v988
        %1008 = vmatpush1.bf16.msra.mxu0 %v985
        %1009 = vmatprep.subr.bf16.mxu0 0
        %1010 = vmatpush2.bf16.msra.mxu0 0
        %1011 = vmatprep.subr.bf16.mxu0 0
        %1012 = vmatpush2.bf16.msra.mxu0 0
        %1013 = vmatprep.subr.bf16.mxu0 0
        %1014 = vmatpush2.bf16.msra.mxu0 0
        %1015 = vmatprep.subr.bf16.mxu0 0
        %1016 = vmatpush2.bf16.msra.mxu0 0
        %1017 = vmatprep.subr.bf16.mxu0 0
        %1018 = vmatpush2.bf16.msra.mxu0 0
        %1019 = vmatprep.subr.bf16.mxu0 0
        %1020 = vmatpush2.bf16.msra.mxu0 0
        %1021 = vmatprep.subr.bf16.mxu0 0
        %1022 = vmatpush2.bf16.msra.mxu0 0
        %1023 = vmatprep.subr.bf16.mxu0 0
        %1024 = vmatpush2.bf16.msra.mxu0 0
        %1025 = vmatprep.mubr.bf16.mxu0 0
        %1026 = vmatmul.mubr.bf16.gmra.mxu0 %v982
        %v1027 = vpop.f32.mrf.mxu0
        %v1028 = vadd.f32 0.0, %v1027
        %v1029 = vpop.f32.mrf.mxu0
        %v1030 = vadd.f32 0.0, %v1029
        %v1031 = vpop.f32.mrf.mxu0
        %v1032 = vpop.f32.mrf.mxu0
        %1033 = vdwg.mxu0
        %1034 = vmatprep.subr.bf16.mxu0 0
        %1035 = vmatpush1.bf16.msra.mxu0 0
        %1036 = vmatprep.subr.bf16.mxu0 0
        %1037 = vmatpush1.bf16.msra.mxu0 0
        %1038 = vmatprep.subr.bf16.mxu0 0
        %1039 = vmatpush1.bf16.msra.mxu0 0
        %1040 = vmatprep.subr.bf16.mxu0 0
        %1041 = vmatpush1.bf16.msra.mxu0 0
        %1042 = vmatprep.subr.bf16.mxu0 0
        %1043 = vmatpush1.bf16.msra.mxu0 0
        %1044 = vmatprep.subr.bf16.mxu0 0
        %1045 = vmatpush1.bf16.msra.mxu0 0
        %1046 = vmatprep.subr.bf16.mxu0 0
        %1047 = vmatpush1.bf16.msra.mxu0 0
        %1048 = vmatprep.subr.bf16.mxu0 0
        %1049 = vmatpush1.bf16.msra.mxu0 %v991
        %1050 = vmatprep.subr.bf16.mxu0 0
        %1051 = vmatpush2.bf16.msra.mxu0 0
        %1052 = vmatprep.subr.bf16.mxu0 0
        %1053 = vmatpush2.bf16.msra.mxu0 0
        %1054 = vmatprep.subr.bf16.mxu0 0
        %1055 = vmatpush2.bf16.msra.mxu0 0
        %1056 = vmatprep.subr.bf16.mxu0 0
        %1057 = vmatpush2.bf16.msra.mxu0 0
        %1058 = vmatprep.subr.bf16.mxu0 0
        %1059 = vmatpush2.bf16.msra.mxu0 0
        %1060 = vmatprep.subr.bf16.mxu0 0
        %1061 = vmatpush2.bf16.msra.mxu0 0
        %1062 = vmatprep.subr.bf16.mxu0 0
        %1063 = vmatpush2.bf16.msra.mxu0 0
        %1064 = vmatprep.subr.bf16.mxu0 0
        %1065 = vmatpush2.bf16.msra.mxu0 0
        %1066 = vmatprep.mubr.bf16.mxu0 0
        %1067 = vmatmul.mubr.bf16.gmra.mxu0 %v982
        %v1068 = vpop.f32.mrf.mxu0
        %v1069 = vadd.f32 0.0, %v1068
        %v1070 = vpop.f32.mrf.mxu0
        %v1071 = vpop.f32.mrf.mxu0
        %v1072 = vpop.f32.mrf.mxu0
        %1073 = vdwg.mxu0
        %v1074 = vadd.f32 %v964, %v1028
        %v1075 = vadd.f32 %v965, %v1030
        %v1076 = vadd.f32 %v966, %v1069
        %v1077 = vld [vmem:[#allocation2 + $0x4] sm:$0x33]
        %v1078 = vld [vmem:[#allocation2 + $0xc] sm:$0x3]
        %s1079 = scalar_lea.vmem %s3, 16
        %v1080 = vld [vmem:[%s1079] sm:$0xf]
        %v1083 = vunpack.c.l.b16 %v1077
        %v1084 = vunpack.c.h.b16 %v1077
        %v1085 = vunpack.c.l.b16 %v1078
        %v1086 = vpack.c.b16 %v1083, %v1083
        %v1087 = vpack.c.b16 %v1084, %v1084
        %v1088 = vpack.c.b16 %v1085, %v1085
        %v1090 = vsel %vm657, %v1080, 0
        %v1093 = vsel %vm661, %v1086, 0
        %v1096 = vsel %vm661, %v1087, 0
        %v1099 = vsel %vm661, %v1088, 0
        %1101 = vmatprep.subr.bf16.mxu0 0
        %1102 = vmatpush1.bf16.msra.mxu0 0
        %1103 = vmatprep.subr.bf16.mxu0 0
        %1104 = vmatpush1.bf16.msra.mxu0 0
        %1105 = vmatprep.subr.bf16.mxu0 0
        %1106 = vmatpush1.bf16.msra.mxu0 0
        %1107 = vmatprep.subr.bf16.mxu0 0
        %1108 = vmatpush1.bf16.msra.mxu0 0
        %1109 = vmatprep.subr.bf16.mxu0 0
        %1110 = vmatpush1.bf16.msra.mxu0 0
        %1111 = vmatprep.subr.bf16.mxu0 0
        %1112 = vmatpush1.bf16.msra.mxu0 0
        %1113 = vmatprep.subr.bf16.mxu0 0
        %1114 = vmatpush1.bf16.msra.mxu0 0
        %1115 = vmatprep.subr.bf16.mxu0 %v1096
        %1116 = vmatpush1.bf16.msra.mxu0 %v1093
        %1117 = vmatprep.subr.bf16.mxu0 0
        %1118 = vmatpush2.bf16.msra.mxu0 0
        %1119 = vmatprep.subr.bf16.mxu0 0
        %1120 = vmatpush2.bf16.msra.mxu0 0
        %1121 = vmatprep.subr.bf16.mxu0 0
        %1122 = vmatpush2.bf16.msra.mxu0 0
        %1123 = vmatprep.subr.bf16.mxu0 0
        %1124 = vmatpush2.bf16.msra.mxu0 0
        %1125 = vmatprep.subr.bf16.mxu0 0
        %1126 = vmatpush2.bf16.msra.mxu0 0
        %1127 = vmatprep.subr.bf16.mxu0 0
        %1128 = vmatpush2.bf16.msra.mxu0 0
        %1129 = vmatprep.subr.bf16.mxu0 0
        %1130 = vmatpush2.bf16.msra.mxu0 0
        %1131 = vmatprep.subr.bf16.mxu0 0
        %1132 = vmatpush2.bf16.msra.mxu0 0
        %1133 = vmatprep.mubr.bf16.mxu0 0
        %1134 = vmatmul.mubr.bf16.gmra.mxu0 %v1090
        %v1135 = vpop.f32.mrf.mxu0
        %v1136 = vadd.f32 0.0, %v1135
        %v1137 = vpop.f32.mrf.mxu0
        %v1138 = vadd.f32 0.0, %v1137
        %v1139 = vpop.f32.mrf.mxu0
        %v1140 = vpop.f32.mrf.mxu0
        %1141 = vdwg.mxu0
        %1142 = vmatprep.subr.bf16.mxu0 0
        %1143 = vmatpush1.bf16.msra.mxu0 0
        %1144 = vmatprep.subr.bf16.mxu0 0
        %1145 = vmatpush1.bf16.msra.mxu0 0
        %1146 = vmatprep.subr.bf16.mxu0 0
        %1147 = vmatpush1.bf16.msra.mxu0 0
        %1148 = vmatprep.subr.bf16.mxu0 0
        %1149 = vmatpush1.bf16.msra.mxu0 0
        %1150 = vmatprep.subr.bf16.mxu0 0
        %1151 = vmatpush1.bf16.msra.mxu0 0
        %1152 = vmatprep.subr.bf16.mxu0 0
        %1153 = vmatpush1.bf16.msra.mxu0 0
        %1154 = vmatprep.subr.bf16.mxu0 0
        %1155 = vmatpush1.bf16.msra.mxu0 0
        %1156 = vmatprep.subr.bf16.mxu0 0
        %1157 = vmatpush1.bf16.msra.mxu0 %v1099
        %1158 = vmatprep.subr.bf16.mxu0 0
        %1159 = vmatpush2.bf16.msra.mxu0 0
        %1160 = vmatprep.subr.bf16.mxu0 0
        %1161 = vmatpush2.bf16.msra.mxu0 0
        %1162 = vmatprep.subr.bf16.mxu0 0
        %1163 = vmatpush2.bf16.msra.mxu0 0
        %1164 = vmatprep.subr.bf16.mxu0 0
        %1165 = vmatpush2.bf16.msra.mxu0 0
        %1166 = vmatprep.subr.bf16.mxu0 0
        %1167 = vmatpush2.bf16.msra.mxu0 0
        %1168 = vmatprep.subr.bf16.mxu0 0
        %1169 = vmatpush2.bf16.msra.mxu0 0
        %1170 = vmatprep.subr.bf16.mxu0 0
        %1171 = vmatpush2.bf16.msra.mxu0 0
        %1172 = vmatprep.subr.bf16.mxu0 0
        %1173 = vmatpush2.bf16.msra.mxu0 0
        %1174 = vmatprep.mubr.bf16.mxu0 0
        %1175 = vmatmul.mubr.bf16.gmra.mxu0 %v1090
        %v1176 = vpop.f32.mrf.mxu0
        %v1177 = vadd.f32 0.0, %v1176
        %v1178 = vpop.f32.mrf.mxu0
        %v1179 = vpop.f32.mrf.mxu0
        %v1180 = vpop.f32.mrf.mxu0
        %1181 = vdwg.mxu0
        %v1182 = vadd.f32 %v1074, %v1136
        %v1183 = vadd.f32 %v1075, %v1138
        %v1184 = vadd.f32 %v1076, %v1177
        %s1185 = scalar_lea.vmem %s3, 20
        %v1186 = vld [vmem:[%s1185] sm:$0xf]
        %1187 = vrot.lane.b32.xlu0 %v1086, 127
        %v1188 = vpop.permute.xlu0 %1187
        %1189 = vrot.lane.b32.xlu0 %v1087, 127
        %v1190 = vpop.permute.xlu0 %1189
        %1191 = vrot.lane.b32.xlu0 %v1088, 127
        %v1192 = vpop.permute.xlu0 %1191
        %vm1193 = vcmask 1039360
        %v1194 = vsel %vm1193, %v1188, %v1190
        %v1195 = vsel %vm1193, %v1190, %v1192
        %v1197 = vsel %vm657, %v1186, 0
        %v1200 = vsel %vm661, %v1194, 0
        %v1203 = vsel %vm661, %v1195, 0
        %v1206 = vsel %vm661, %v1192, 0
        %1208 = vmatprep.subr.bf16.mxu0 0
        %1209 = vmatpush1.bf16.msra.mxu0 0
        %1210 = vmatprep.subr.bf16.mxu0 0
        %1211 = vmatpush1.bf16.msra.mxu0 0
        %1212 = vmatprep.subr.bf16.mxu0 0
        %1213 = vmatpush1.bf16.msra.mxu0 0
        %1214 = vmatprep.subr.bf16.mxu0 0
        %1215 = vmatpush1.bf16.msra.mxu0 0
        %1216 = vmatprep.subr.bf16.mxu0 0
        %1217 = vmatpush1.bf16.msra.mxu0 0
        %1218 = vmatprep.subr.bf16.mxu0 0
        %1219 = vmatpush1.bf16.msra.mxu0 0
        %1220 = vmatprep.subr.bf16.mxu0 0
        %1221 = vmatpush1.bf16.msra.mxu0 0
        %1222 = vmatprep.subr.bf16.mxu0 %v1203
        %1223 = vmatpush1.bf16.msra.mxu0 %v1200
        %1224 = vmatprep.subr.bf16.mxu0 0
        %1225 = vmatpush2.bf16.msra.mxu0 0
        %1226 = vmatprep.subr.bf16.mxu0 0
        %1227 = vmatpush2.bf16.msra.mxu0 0
        %1228 = vmatprep.subr.bf16.mxu0 0
        %1229 = vmatpush2.bf16.msra.mxu0 0
        %1230 = vmatprep.subr.bf16.mxu0 0
        %1231 = vmatpush2.bf16.msra.mxu0 0
        %1232 = vmatprep.subr.bf16.mxu0 0
        %1233 = vmatpush2.bf16.msra.mxu0 0
        %1234 = vmatprep.subr.bf16.mxu0 0
        %1235 = vmatpush2.bf16.msra.mxu0 0
        %1236 = vmatprep.subr.bf16.mxu0 0
        %1237 = vmatpush2.bf16.msra.mxu0 0
        %1238 = vmatprep.subr.bf16.mxu0 0
        %1239 = vmatpush2.bf16.msra.mxu0 0
        %1240 = vmatprep.mubr.bf16.mxu0 0
        %1241 = vmatmul.mubr.bf16.gmra.mxu0 %v1197
        %v1242 = vpop.f32.mrf.mxu0
        %v1243 = vadd.f32 0.0, %v1242
        %v1244 = vpop.f32.mrf.mxu0
        %v1245 = vadd.f32 0.0, %v1244
        %v1246 = vpop.f32.mrf.mxu0
        %v1247 = vpop.f32.mrf.mxu0
        %1248 = vdwg.mxu0
        %1249 = vmatprep.subr.bf16.mxu0 0
        %1250 = vmatpush1.bf16.msra.mxu0 0
        %1251 = vmatprep.subr.bf16.mxu0 0
        %1252 = vmatpush1.bf16.msra.mxu0 0
        %1253 = vmatprep.subr.bf16.mxu0 0
        %1254 = vmatpush1.bf16.msra.mxu0 0
        %1255 = vmatprep.subr.bf16.mxu0 0
        %1256 = vmatpush1.bf16.msra.mxu0 0
        %1257 = vmatprep.subr.bf16.mxu0 0
        %1258 = vmatpush1.bf16.msra.mxu0 0
        %1259 = vmatprep.subr.bf16.mxu0 0
        %1260 = vmatpush1.bf16.msra.mxu0 0
        %1261 = vmatprep.subr.bf16.mxu0 0
        %1262 = vmatpush1.bf16.msra.mxu0 0
        %1263 = vmatprep.subr.bf16.mxu0 0
        %1264 = vmatpush1.bf16.msra.mxu0 %v1206
        %1265 = vmatprep.subr.bf16.mxu0 0
        %1266 = vmatpush2.bf16.msra.mxu0 0
        %1267 = vmatprep.subr.bf16.mxu0 0
        %1268 = vmatpush2.bf16.msra.mxu0 0
        %1269 = vmatprep.subr.bf16.mxu0 0
        %1270 = vmatpush2.bf16.msra.mxu0 0
        %1271 = vmatprep.subr.bf16.mxu0 0
        %1272 = vmatpush2.bf16.msra.mxu0 0
        %1273 = vmatprep.subr.bf16.mxu0 0
        %1274 = vmatpush2.bf16.msra.mxu0 0
        %1275 = vmatprep.subr.bf16.mxu0 0
        %1276 = vmatpush2.bf16.msra.mxu0 0
        %1277 = vmatprep.subr.bf16.mxu0 0
        %1278 = vmatpush2.bf16.msra.mxu0 0
        %1279 = vmatprep.subr.bf16.mxu0 0
        %1280 = vmatpush2.bf16.msra.mxu0 0
        %1281 = vmatprep.mubr.bf16.mxu0 0
        %1282 = vmatmul.mubr.bf16.gmra.mxu0 %v1197
        %v1283 = vpop.f32.mrf.mxu0
        %v1284 = vadd.f32 0.0, %v1283
        %v1285 = vpop.f32.mrf.mxu0
        %v1286 = vpop.f32.mrf.mxu0
        %v1287 = vpop.f32.mrf.mxu0
        %1288 = vdwg.mxu0
        %v1289 = vadd.f32 %v1182, %v1243
        %v1290 = vadd.f32 %v1183, %v1245
        %v1291 = vadd.f32 %v1184, %v1284
        %s1292 = scalar_lea.vmem %s3, 24
        %v1293 = vld [vmem:[%s1292] sm:$0xf]
        %1294 = vrot.lane.b32.xlu0 %v1086, 111
        %v1295 = vpop.permute.xlu0 %1294
        %1296 = vrot.lane.b32.xlu0 %v1087, 111
        %v1297 = vpop.permute.xlu0 %1296
        %1298 = vrot.lane.b32.xlu0 %v1088, 111
        %v1299 = vpop.permute.xlu0 %1298
        %vm1300 = vcmask 908288
        %v1301 = vsel %vm1300, %v1295, %v1297
        %v1302 = vsel %vm1300, %v1297, %v1299
        %v1304 = vsel %vm657, %v1293, 0
        %v1307 = vsel %vm661, %v1301, 0
        %v1310 = vsel %vm661, %v1302, 0
        %v1313 = vsel %vm661, %v1299, 0
        %1315 = vmatprep.subr.bf16.mxu0 0
        %1316 = vmatpush1.bf16.msra.mxu0 0
        %1317 = vmatprep.subr.bf16.mxu0 0
        %1318 = vmatpush1.bf16.msra.mxu0 0
        %1319 = vmatprep.subr.bf16.mxu0 0
        %1320 = vmatpush1.bf16.msra.mxu0 0
        %1321 = vmatprep.subr.bf16.mxu0 0
        %1322 = vmatpush1.bf16.msra.mxu0 0
        %1323 = vmatprep.subr.bf16.mxu0 0
        %1324 = vmatpush1.bf16.msra.mxu0 0
        %1325 = vmatprep.subr.bf16.mxu0 0
        %1326 = vmatpush1.bf16.msra.mxu0 0
        %1327 = vmatprep.subr.bf16.mxu0 0
        %1328 = vmatpush1.bf16.msra.mxu0 0
        %1329 = vmatprep.subr.bf16.mxu0 %v1310
        %1330 = vmatpush1.bf16.msra.mxu0 %v1307
        %1331 = vmatprep.subr.bf16.mxu0 0
        %1332 = vmatpush2.bf16.msra.mxu0 0
        %1333 = vmatprep.subr.bf16.mxu0 0
        %1334 = vmatpush2.bf16.msra.mxu0 0
        %1335 = vmatprep.subr.bf16.mxu0 0
        %1336 = vmatpush2.bf16.msra.mxu0 0
        %1337 = vmatprep.subr.bf16.mxu0 0
        %1338 = vmatpush2.bf16.msra.mxu0 0
        %1339 = vmatprep.subr.bf16.mxu0 0
        %1340 = vmatpush2.bf16.msra.mxu0 0
        %1341 = vmatprep.subr.bf16.mxu0 0
        %1342 = vmatpush2.bf16.msra.mxu0 0
        %1343 = vmatprep.subr.bf16.mxu0 0
        %1344 = vmatpush2.bf16.msra.mxu0 0
        %1345 = vmatprep.subr.bf16.mxu0 0
        %1346 = vmatpush2.bf16.msra.mxu0 0
        %1347 = vmatprep.mubr.bf16.mxu0 0
        %1348 = vmatmul.mubr.bf16.gmra.mxu0 %v1304
        %v1349 = vpop.f32.mrf.mxu0
        %v1350 = vadd.f32 0.0, %v1349
        %v1351 = vpop.f32.mrf.mxu0
        %v1352 = vadd.f32 0.0, %v1351
        %v1353 = vpop.f32.mrf.mxu0
        %v1354 = vpop.f32.mrf.mxu0
        %1355 = vdwg.mxu0
        %1356 = vmatprep.subr.bf16.mxu0 0
        %1357 = vmatpush1.bf16.msra.mxu0 0
        %1358 = vmatprep.subr.bf16.mxu0 0
        %1359 = vmatpush1.bf16.msra.mxu0 0
        %1360 = vmatprep.subr.bf16.mxu0 0
        %1361 = vmatpush1.bf16.msra.mxu0 0
        %1362 = vmatprep.subr.bf16.mxu0 0
        %1363 = vmatpush1.bf16.msra.mxu0 0
        %1364 = vmatprep.subr.bf16.mxu0 0
        %1365 = vmatpush1.bf16.msra.mxu0 0
        %1366 = vmatprep.subr.bf16.mxu0 0
        %1367 = vmatpush1.bf16.msra.mxu0 0
        %1368 = vmatprep.subr.bf16.mxu0 0
        %1369 = vmatpush1.bf16.msra.mxu0 0
        %1370 = vmatprep.subr.bf16.mxu0 0
        %1371 = vmatpush1.bf16.msra.mxu0 %v1313
        %1372 = vmatprep.subr.bf16.mxu0 0
        %1373 = vmatpush2.bf16.msra.mxu0 0
        %1374 = vmatprep.subr.bf16.mxu0 0
        %1375 = vmatpush2.bf16.msra.mxu0 0
        %1376 = vmatprep.subr.bf16.mxu0 0
        %1377 = vmatpush2.bf16.msra.mxu0 0
        %1378 = vmatprep.subr.bf16.mxu0 0
        %1379 = vmatpush2.bf16.msra.mxu0 0
        %1380 = vmatprep.subr.bf16.mxu0 0
        %1381 = vmatpush2.bf16.msra.mxu0 0
        %1382 = vmatprep.subr.bf16.mxu0 0
        %1383 = vmatpush2.bf16.msra.mxu0 0
        %1384 = vmatprep.subr.bf16.mxu0 0
        %1385 = vmatpush2.bf16.msra.mxu0 0
        %1386 = vmatprep.subr.bf16.mxu0 0
        %1387 = vmatpush2.bf16.msra.mxu0 0
        %1388 = vmatprep.mubr.bf16.mxu0 0
        %1389 = vmatmul.mubr.bf16.gmra.mxu0 %v1304
        %v1390 = vpop.f32.mrf.mxu0
        %v1391 = vadd.f32 0.0, %v1390
        %v1392 = vpop.f32.mrf.mxu0
        %v1393 = vpop.f32.mrf.mxu0
        %v1394 = vpop.f32.mrf.mxu0
        %1395 = vdwg.mxu0
        %v1396 = vadd.f32 %v1289, %v1350
        %v1397 = vadd.f32 %v1290, %v1352
        %v1398 = vadd.f32 %v1291, %v1391
        %s1399 = scalar_lea.vmem %s3, 28
        %v1400 = vld [vmem:[%s1399] sm:$0xf]
        %1401 = vrot.lane.b32.xlu0 %v1086, 110
        %v1402 = vpop.permute.xlu0 %1401
        %1403 = vrot.lane.b32.xlu0 %v1087, 110
        %v1404 = vpop.permute.xlu0 %1403
        %1405 = vrot.lane.b32.xlu0 %v1088, 110
        %v1406 = vpop.permute.xlu0 %1405
        %vm1407 = vcmask 900096
        %v1408 = vsel %vm1407, %v1402, %v1404
        %v1409 = vsel %vm1407, %v1404, %v1406
        %v1411 = vsel %vm657, %v1400, 0
        %v1414 = vsel %vm661, %v1408, 0
        %v1417 = vsel %vm661, %v1409, 0
        %v1420 = vsel %vm661, %v1406, 0
        %1422 = vmatprep.subr.bf16.mxu0 0
        %1423 = vmatpush1.bf16.msra.mxu0 0
        %1424 = vmatprep.subr.bf16.mxu0 0
        %1425 = vmatpush1.bf16.msra.mxu0 0
        %1426 = vmatprep.subr.bf16.mxu0 0
        %1427 = vmatpush1.bf16.msra.mxu0 0
        %1428 = vmatprep.subr.bf16.mxu0 0
        %1429 = vmatpush1.bf16.msra.mxu0 0
        %1430 = vmatprep.subr.bf16.mxu0 0
        %1431 = vmatpush1.bf16.msra.mxu0 0
        %1432 = vmatprep.subr.bf16.mxu0 0
        %1433 = vmatpush1.bf16.msra.mxu0 0
        %1434 = vmatprep.subr.bf16.mxu0 0
        %1435 = vmatpush1.bf16.msra.mxu0 0
        %1436 = vmatprep.subr.bf16.mxu0 %v1417
        %1437 = vmatpush1.bf16.msra.mxu0 %v1414
        %1438 = vmatprep.subr.bf16.mxu0 0
        %1439 = vmatpush2.bf16.msra.mxu0 0
        %1440 = vmatprep.subr.bf16.mxu0 0
        %1441 = vmatpush2.bf16.msra.mxu0 0
        %1442 = vmatprep.subr.bf16.mxu0 0
        %1443 = vmatpush2.bf16.msra.mxu0 0
        %1444 = vmatprep.subr.bf16.mxu0 0
        %1445 = vmatpush2.bf16.msra.mxu0 0
        %1446 = vmatprep.subr.bf16.mxu0 0
        %1447 = vmatpush2.bf16.msra.mxu0 0
        %1448 = vmatprep.subr.bf16.mxu0 0
        %1449 = vmatpush2.bf16.msra.mxu0 0
        %1450 = vmatprep.subr.bf16.mxu0 0
        %1451 = vmatpush2.bf16.msra.mxu0 0
        %1452 = vmatprep.subr.bf16.mxu0 0
        %1453 = vmatpush2.bf16.msra.mxu0 0
        %1454 = vmatprep.mubr.bf16.mxu0 0
        %1455 = vmatmul.mubr.bf16.gmra.mxu0 %v1411
        %v1456 = vpop.f32.mrf.mxu0
        %v1457 = vadd.f32 0.0, %v1456
        %v1458 = vpop.f32.mrf.mxu0
        %v1459 = vadd.f32 0.0, %v1458
        %v1460 = vpop.f32.mrf.mxu0
        %v1461 = vpop.f32.mrf.mxu0
        %1462 = vdwg.mxu0
        %1463 = vmatprep.subr.bf16.mxu0 0
        %1464 = vmatpush1.bf16.msra.mxu0 0
        %1465 = vmatprep.subr.bf16.mxu0 0
        %1466 = vmatpush1.bf16.msra.mxu0 0
        %1467 = vmatprep.subr.bf16.mxu0 0
        %1468 = vmatpush1.bf16.msra.mxu0 0
        %1469 = vmatprep.subr.bf16.mxu0 0
        %1470 = vmatpush1.bf16.msra.mxu0 0
        %1471 = vmatprep.subr.bf16.mxu0 0
        %1472 = vmatpush1.bf16.msra.mxu0 0
        %1473 = vmatprep.subr.bf16.mxu0 0
        %1474 = vmatpush1.bf16.msra.mxu0 0
        %1475 = vmatprep.subr.bf16.mxu0 0
        %1476 = vmatpush1.bf16.msra.mxu0 0
        %1477 = vmatprep.subr.bf16.mxu0 0
        %1478 = vmatpush1.bf16.msra.mxu0 %v1420
        %1479 = vmatprep.subr.bf16.mxu0 0
        %1480 = vmatpush2.bf16.msra.mxu0 0
        %1481 = vmatprep.subr.bf16.mxu0 0
        %1482 = vmatpush2.bf16.msra.mxu0 0
        %1483 = vmatprep.subr.bf16.mxu0 0
        %1484 = vmatpush2.bf16.msra.mxu0 0
        %1485 = vmatprep.subr.bf16.mxu0 0
        %1486 = vmatpush2.bf16.msra.mxu0 0
        %1487 = vmatprep.subr.bf16.mxu0 0
        %1488 = vmatpush2.bf16.msra.mxu0 0
        %1489 = vmatprep.subr.bf16.mxu0 0
        %1490 = vmatpush2.bf16.msra.mxu0 0
        %1491 = vmatprep.subr.bf16.mxu0 0
        %1492 = vmatpush2.bf16.msra.mxu0 0
        %1493 = vmatprep.subr.bf16.mxu0 0
        %1494 = vmatpush2.bf16.msra.mxu0 0
        %1495 = vmatprep.mubr.bf16.mxu0 0
        %1496 = vmatmul.mubr.bf16.gmra.mxu0 %v1411
        %v1497 = vpop.f32.mrf.mxu0
        %v1498 = vadd.f32 0.0, %v1497
        %v1499 = vpop.f32.mrf.mxu0
        %v1500 = vpop.f32.mrf.mxu0
        %v1501 = vpop.f32.mrf.mxu0
        %1502 = vdwg.mxu0
        %v1503 = vadd.f32 %v1396, %v1457
        %v1504 = vadd.f32 %v1397, %v1459
        %v1505 = vadd.f32 %v1398, %v1498
        %s1506 = scalar_lea.vmem %s3, 32
        %v1507 = vld [vmem:[%s1506] sm:$0xf]
        %1508 = vrot.lane.b32.xlu0 %v1086, 109
        %v1509 = vpop.permute.xlu0 %1508
        %1510 = vrot.lane.b32.xlu0 %v1087, 109
        %v1511 = vpop.permute.xlu0 %1510
        %1512 = vrot.lane.b32.xlu0 %v1088, 109
        %v1513 = vpop.permute.xlu0 %1512
        %vm1514 = vcmask 891904
        %v1515 = vsel %vm1514, %v1509, %v1511
        %v1516 = vsel %vm1514, %v1511, %v1513
        %v1518 = vsel %vm657, %v1507, 0
        %v1521 = vsel %vm661, %v1515, 0
        %v1524 = vsel %vm661, %v1516, 0
        %v1527 = vsel %vm661, %v1513, 0
        %1529 = vmatprep.subr.bf16.mxu0 0
        %1530 = vmatpush1.bf16.msra.mxu0 0
        %1531 = vmatprep.subr.bf16.mxu0 0
        %1532 = vmatpush1.bf16.msra.mxu0 0
        %1533 = vmatprep.subr.bf16.mxu0 0
        %1534 = vmatpush1.bf16.msra.mxu0 0
        %1535 = vmatprep.subr.bf16.mxu0 0
        %1536 = vmatpush1.bf16.msra.mxu0 0
        %1537 = vmatprep.subr.bf16.mxu0 0
        %1538 = vmatpush1.bf16.msra.mxu0 0
        %1539 = vmatprep.subr.bf16.mxu0 0
        %1540 = vmatpush1.bf16.msra.mxu0 0
        %1541 = vmatprep.subr.bf16.mxu0 0
        %1542 = vmatpush1.bf16.msra.mxu0 0
        %1543 = vmatprep.subr.bf16.mxu0 %v1524
        %1544 = vmatpush1.bf16.msra.mxu0 %v1521
        %1545 = vmatprep.subr.bf16.mxu0 0
        %1546 = vmatpush2.bf16.msra.mxu0 0
        %1547 = vmatprep.subr.bf16.mxu0 0
        %1548 = vmatpush2.bf16.msra.mxu0 0
        %1549 = vmatprep.subr.bf16.mxu0 0
        %1550 = vmatpush2.bf16.msra.mxu0 0
        %1551 = vmatprep.subr.bf16.mxu0 0
        %1552 = vmatpush2.bf16.msra.mxu0 0
        %1553 = vmatprep.subr.bf16.mxu0 0
        %1554 = vmatpush2.bf16.msra.mxu0 0
        %1555 = vmatprep.subr.bf16.mxu0 0
        %1556 = vmatpush2.bf16.msra.mxu0 0
        %1557 = vmatprep.subr.bf16.mxu0 0
        %1558 = vmatpush2.bf16.msra.mxu0 0
        %1559 = vmatprep.subr.bf16.mxu0 0
        %1560 = vmatpush2.bf16.msra.mxu0 0
        %1561 = vmatprep.mubr.bf16.mxu0 0
        %1562 = vmatmul.mubr.bf16.gmra.mxu0 %v1518
        %v1563 = vpop.f32.mrf.mxu0
        %v1564 = vadd.f32 0.0, %v1563
        %v1565 = vpop.f32.mrf.mxu0
        %v1566 = vadd.f32 0.0, %v1565
        %v1567 = vpop.f32.mrf.mxu0
        %v1568 = vpop.f32.mrf.mxu0
        %1569 = vdwg.mxu0
        %1570 = vmatprep.subr.bf16.mxu0 0
        %1571 = vmatpush1.bf16.msra.mxu0 0
        %1572 = vmatprep.subr.bf16.mxu0 0
        %1573 = vmatpush1.bf16.msra.mxu0 0
        %1574 = vmatprep.subr.bf16.mxu0 0
        %1575 = vmatpush1.bf16.msra.mxu0 0
        %1576 = vmatprep.subr.bf16.mxu0 0
        %1577 = vmatpush1.bf16.msra.mxu0 0
        %1578 = vmatprep.subr.bf16.mxu0 0
        %1579 = vmatpush1.bf16.msra.mxu0 0
        %1580 = vmatprep.subr.bf16.mxu0 0
        %1581 = vmatpush1.bf16.msra.mxu0 0
        %1582 = vmatprep.subr.bf16.mxu0 0
        %1583 = vmatpush1.bf16.msra.mxu0 0
        %1584 = vmatprep.subr.bf16.mxu0 0
        %1585 = vmatpush1.bf16.msra.mxu0 %v1527
        %1586 = vmatprep.subr.bf16.mxu0 0
        %1587 = vmatpush2.bf16.msra.mxu0 0
        %1588 = vmatprep.subr.bf16.mxu0 0
        %1589 = vmatpush2.bf16.msra.mxu0 0
        %1590 = vmatprep.subr.bf16.mxu0 0
        %1591 = vmatpush2.bf16.msra.mxu0 0
        %1592 = vmatprep.subr.bf16.mxu0 0
        %1593 = vmatpush2.bf16.msra.mxu0 0
        %1594 = vmatprep.subr.bf16.mxu0 0
        %1595 = vmatpush2.bf16.msra.mxu0 0
        %1596 = vmatprep.subr.bf16.mxu0 0
        %1597 = vmatpush2.bf16.msra.mxu0 0
        %1598 = vmatprep.subr.bf16.mxu0 0
        %1599 = vmatpush2.bf16.msra.mxu0 0
        %1600 = vmatprep.subr.bf16.mxu0 0
        %1601 = vmatpush2.bf16.msra.mxu0 0
        %1602 = vmatprep.mubr.bf16.mxu0 0
        %1603 = vmatmul.mubr.bf16.gmra.mxu0 %v1518
        %v1604 = vpop.f32.mrf.mxu0
        %v1605 = vadd.f32 0.0, %v1604
        %v1606 = vpop.f32.mrf.mxu0
        %v1607 = vpop.f32.mrf.mxu0
        %v1608 = vpop.f32.mrf.mxu0
        %1609 = vdwg.mxu0
        %v1610 = vadd.f32 %v1503, %v1564
        %v1611 = vadd.f32 %v1504, %v1566
        %v1612 = vadd.f32 %v1505, %v1605
        %v1613 = vld [vmem:[%s4] sm:$0xff]
        %1615 = vset.pattern.permute.xlu0 0
        %1616 = vperm.xlu0 %1615, %v1613
        %v1617 = vpop.permute.xlu0 %1616
        %v1619 = vmul.f32 %v1610, %v1617
        %v1620 = vmul.f32 %v1611, %v1617
        %v1621 = vmul.f32 %v1612, %v1617
        %v1622 = vld [vmem:[%s5] sm:$0xff]
        %1624 = vset.pattern.permute.xlu0 0
        %1625 = vperm.xlu0 %1624, %v1622
        %v1626 = vpop.permute.xlu0 %1625
        %v1628 = vadd.f32 %v1619, %v1626
        %v1629 = vadd.f32 %v1620, %v1626
        %v1630 = vadd.f32 %v1621, %v1626
        %v1631 = vmax.f32 %v1628, 0.0
        %v1632 = vmax.f32 %v1629, 0.0
        %v1633 = vmax.f32 %v1630, 0.0
        %v1634 = vsel %vm607, 1, 0
        %v1635 = vlaneseq
        %v1636 = vshrl.u32 %v1635, 7
        %v1637 = vsub.s32 0, %v1636
        %v1638 = vrot.slane %v1634, %v1637
        %v1639 = vlaneseq
        %v1640 = vshrl.u32 %v1639, 7
        %v1641 = vsub.s32 1, %v1640
        %v1642 = vrot.slane %v1634, %v1641
        %v1643 = vlaneseq
        %v1644 = vshrl.u32 %v1643, 7
        %v1645 = vsub.s32 2, %v1644
        %v1646 = vrot.slane %v1634, %v1645
        %vm1647 = vcmp.eq.s32.totalorder %v1638, 1
        %vm1648 = vcmp.eq.s32.totalorder %v1642, 1
        %vm1649 = vcmp.eq.s32.totalorder %v1646, 1
        %v1650 = vsel %vm1647, %v1631, 0.0
        %v1651 = vsel %vm1648, %v1632, 0.0
        %v1652 = vsel %vm1649, %v1633, 0.0
        %v1653 = vpack.c.bf16 %v1650, %v1650
        %v1654 = vpack.c.bf16 %v1651, %v1651
        %v1655 = vpack.c.bf16 %v1652, %v1652
        %v1656 = vld [vmem:[%s538] sm:$0x3f]
        %v1658 = vcombine.high %v1656, %v1656
        %v1660 = vunpack.c.l.s4 1983009808
        %v1661 = vunpack.c.0.s8 %v1660
        %v1662 = vlaneseq
        %v1663 = vshrl.u32 %v1662, 7
        %v1664 = vsub.s32 %v1661, %v1663
        %v1665 = vrot.slane %v1656, %v1664
        %v1667 = vunpack.c.l.s4 1983009808
        %v1668 = vunpack.c.0.s8 %v1667
        %v1669 = vlaneseq
        %v1670 = vshrl.u32 %v1669, 7
        %v1671 = vsub.s32 %v1668, %v1670
        %v1672 = vrot.slane %v1658, %v1671
        %1675 = vst [vmem:[#allocation2 + $0x4] sm:$0x33] %v1665
        %1676 = vst.msk [vmem:[#allocation2 + $0xc] sm:$0x3] %vm628, %v1672
        %v1677 = vld [vmem:[#allocation2] sm:$0x33]
        %v1678 = vld [vmem:[#allocation2 + $0x8] sm:$0x33]
        %v1679 = vld [vmem:[%s3] sm:$0xf]
        %v1680 = vld [vmem:[%s633] sm:$0xf]
        %v1683 = vunpack.c.l.b16 %v1677
        %v1684 = vunpack.c.h.b16 %v1677
        %v1685 = vunpack.c.l.b16 %v1678
        %v1686 = vunpack.c.h.b16 %v1678
        %v1687 = vpack.c.b16 %v1683, %v1683
        %v1688 = vpack.c.b16 %v1684, %v1684
        %v1689 = vpack.c.b16 %v1685, %v1685
        %v1690 = vpack.c.b16 %v1686, %v1686
        %1691 = vrot.lane.b32.xlu0 %v1687, 18
        %v1692 = vpop.permute.xlu0 %1691
        %1693 = vrot.lane.b32.xlu0 %v1688, 18
        %v1694 = vpop.permute.xlu0 %1693
        %1695 = vrot.lane.b32.xlu0 %v1689, 18
        %v1696 = vpop.permute.xlu0 %1695
        %1697 = vrot.lane.b32.xlu0 %v1690, 18
        %v1698 = vpop.permute.xlu0 %1697
        %v1699 = vsel %vm653, %v1692, %v1694
        %v1700 = vsel %vm653, %v1694, %v1696
        %v1701 = vsel %vm653, %v1696, %v1698
        %v1703 = vsel %vm657, %v1680, 0
        %v1706 = vsel %vm661, %v1699, 0
        %v1709 = vsel %vm661, %v1700, 0
        %v1712 = vsel %vm661, %v1701, 0
        %1714 = vmatprep.subr.bf16.mxu0 0
        %1715 = vmatpush1.bf16.msra.mxu0 0
        %1716 = vmatprep.subr.bf16.mxu0 0
        %1717 = vmatpush1.bf16.msra.mxu0 0
        %1718 = vmatprep.subr.bf16.mxu0 0
        %1719 = vmatpush1.bf16.msra.mxu0 0
        %1720 = vmatprep.subr.bf16.mxu0 0
        %1721 = vmatpush1.bf16.msra.mxu0 0
        %1722 = vmatprep.subr.bf16.mxu0 0
        %1723 = vmatpush1.bf16.msra.mxu0 0
        %1724 = vmatprep.subr.bf16.mxu0 0
        %1725 = vmatpush1.bf16.msra.mxu0 0
        %1726 = vmatprep.subr.bf16.mxu0 0
        %1727 = vmatpush1.bf16.msra.mxu0 0
        %1728 = vmatprep.subr.bf16.mxu0 %v1709
        %1729 = vmatpush1.bf16.msra.mxu0 %v1706
        %1730 = vmatprep.subr.bf16.mxu0 0
        %1731 = vmatpush2.bf16.msra.mxu0 0
        %1732 = vmatprep.subr.bf16.mxu0 0
        %1733 = vmatpush2.bf16.msra.mxu0 0
        %1734 = vmatprep.subr.bf16.mxu0 0
        %1735 = vmatpush2.bf16.msra.mxu0 0
        %1736 = vmatprep.subr.bf16.mxu0 0
        %1737 = vmatpush2.bf16.msra.mxu0 0
        %1738 = vmatprep.subr.bf16.mxu0 0
        %1739 = vmatpush2.bf16.msra.mxu0 0
        %1740 = vmatprep.subr.bf16.mxu0 0
        %1741 = vmatpush2.bf16.msra.mxu0 0
        %1742 = vmatprep.subr.bf16.mxu0 0
        %1743 = vmatpush2.bf16.msra.mxu0 0
        %1744 = vmatprep.subr.bf16.mxu0 0
        %1745 = vmatpush2.bf16.msra.mxu0 0
        %1746 = vmatprep.mubr.bf16.mxu0 0
        %1747 = vmatmul.mubr.bf16.gmra.mxu0 %v1703
        %v1748 = vpop.f32.mrf.mxu0
        %v1749 = vadd.f32 0.0, %v1748
        %v1750 = vpop.f32.mrf.mxu0
        %v1751 = vadd.f32 0.0, %v1750
        %v1752 = vpop.f32.mrf.mxu0
        %v1753 = vpop.f32.mrf.mxu0
        %1754 = vdwg.mxu0
        %1755 = vmatprep.subr.bf16.mxu0 0
        %1756 = vmatpush1.bf16.msra.mxu0 0
        %1757 = vmatprep.subr.bf16.mxu0 0
        %1758 = vmatpush1.bf16.msra.mxu0 0
        %1759 = vmatprep.subr.bf16.mxu0 0
        %1760 = vmatpush1.bf16.msra.mxu0 0
        %1761 = vmatprep.subr.bf16.mxu0 0
        %1762 = vmatpush1.bf16.msra.mxu0 0
        %1763 = vmatprep.subr.bf16.mxu0 0
        %1764 = vmatpush1.bf16.msra.mxu0 0
        %1765 = vmatprep.subr.bf16.mxu0 0
        %1766 = vmatpush1.bf16.msra.mxu0 0
        %1767 = vmatprep.subr.bf16.mxu0 0
        %1768 = vmatpush1.bf16.msra.mxu0 0
        %1769 = vmatprep.subr.bf16.mxu0 0
        %1770 = vmatpush1.bf16.msra.mxu0 %v1712
        %1771 = vmatprep.subr.bf16.mxu0 0
        %1772 = vmatpush2.bf16.msra.mxu0 0
        %1773 = vmatprep.subr.bf16.mxu0 0
        %1774 = vmatpush2.bf16.msra.mxu0 0
        %1775 = vmatprep.subr.bf16.mxu0 0
        %1776 = vmatpush2.bf16.msra.mxu0 0
        %1777 = vmatprep.subr.bf16.mxu0 0
        %1778 = vmatpush2.bf16.msra.mxu0 0
        %1779 = vmatprep.subr.bf16.mxu0 0
        %1780 = vmatpush2.bf16.msra.mxu0 0
        %1781 = vmatprep.subr.bf16.mxu0 0
        %1782 = vmatpush2.bf16.msra.mxu0 0
        %1783 = vmatprep.subr.bf16.mxu0 0
        %1784 = vmatpush2.bf16.msra.mxu0 0
        %1785 = vmatprep.subr.bf16.mxu0 0
        %1786 = vmatpush2.bf16.msra.mxu0 0
        %1787 = vmatprep.mubr.bf16.mxu0 0
        %1788 = vmatmul.mubr.bf16.gmra.mxu0 %v1703
        %v1789 = vpop.f32.mrf.mxu0
        %v1790 = vadd.f32 0.0, %v1789
        %v1791 = vpop.f32.mrf.mxu0
        %v1792 = vpop.f32.mrf.mxu0
        %v1793 = vpop.f32.mrf.mxu0
        %1794 = vdwg.mxu0
        %1795 = vrot.lane.b32.xlu0 %v1687, 19
        %v1796 = vpop.permute.xlu0 %1795
        %1797 = vrot.lane.b32.xlu0 %v1688, 19
        %v1798 = vpop.permute.xlu0 %1797
        %1799 = vrot.lane.b32.xlu0 %v1689, 19
        %v1800 = vpop.permute.xlu0 %1799
        %1801 = vrot.lane.b32.xlu0 %v1690, 19
        %v1802 = vpop.permute.xlu0 %1801
        %v1803 = vsel %vm760, %v1796, %v1798
        %v1804 = vsel %vm760, %v1798, %v1800
        %v1805 = vsel %vm760, %v1800, %v1802
        %v1807 = vsel %vm657, %v1679, 0
        %v1810 = vsel %vm661, %v1803, 0
        %v1813 = vsel %vm661, %v1804, 0
        %v1816 = vsel %vm661, %v1805, 0
        %1818 = vmatprep.subr.bf16.mxu0 0
        %1819 = vmatpush1.bf16.msra.mxu0 0
        %1820 = vmatprep.subr.bf16.mxu0 0
        %1821 = vmatpush1.bf16.msra.mxu0 0
        %1822 = vmatprep.subr.bf16.mxu0 0
        %1823 = vmatpush1.bf16.msra.mxu0 0
        %1824 = vmatprep.subr.bf16.mxu0 0
        %1825 = vmatpush1.bf16.msra.mxu0 0
        %1826 = vmatprep.subr.bf16.mxu0 0
        %1827 = vmatpush1.bf16.msra.mxu0 0
        %1828 = vmatprep.subr.bf16.mxu0 0
        %1829 = vmatpush1.bf16.msra.mxu0 0
        %1830 = vmatprep.subr.bf16.mxu0 0
        %1831 = vmatpush1.bf16.msra.mxu0 0
        %1832 = vmatprep.subr.bf16.mxu0 %v1813
        %1833 = vmatpush1.bf16.msra.mxu0 %v1810
        %1834 = vmatprep.subr.bf16.mxu0 0
        %1835 = vmatpush2.bf16.msra.mxu0 0
        %1836 = vmatprep.subr.bf16.mxu0 0
        %1837 = vmatpush2.bf16.msra.mxu0 0
        %1838 = vmatprep.subr.bf16.mxu0 0
        %1839 = vmatpush2.bf16.msra.mxu0 0
        %1840 = vmatprep.subr.bf16.mxu0 0
        %1841 = vmatpush2.bf16.msra.mxu0 0
        %1842 = vmatprep.subr.bf16.mxu0 0
        %1843 = vmatpush2.bf16.msra.mxu0 0
        %1844 = vmatprep.subr.bf16.mxu0 0
        %1845 = vmatpush2.bf16.msra.mxu0 0
        %1846 = vmatprep.subr.bf16.mxu0 0
        %1847 = vmatpush2.bf16.msra.mxu0 0
        %1848 = vmatprep.subr.bf16.mxu0 0
        %1849 = vmatpush2.bf16.msra.mxu0 0
        %1850 = vmatprep.mubr.bf16.mxu0 0
        %1851 = vmatmul.mubr.bf16.gmra.mxu0 %v1807
        %v1852 = vpop.f32.mrf.mxu0
        %v1853 = vadd.f32 %v1749, %v1852
        %v1854 = vpop.f32.mrf.mxu0
        %v1855 = vadd.f32 %v1751, %v1854
        %v1856 = vpop.f32.mrf.mxu0
        %v1857 = vpop.f32.mrf.mxu0
        %1858 = vdwg.mxu0
        %1859 = vmatprep.subr.bf16.mxu0 0
        %1860 = vmatpush1.bf16.msra.mxu0 0
        %1861 = vmatprep.subr.bf16.mxu0 0
        %1862 = vmatpush1.bf16.msra.mxu0 0
        %1863 = vmatprep.subr.bf16.mxu0 0
        %1864 = vmatpush1.bf16.msra.mxu0 0
        %1865 = vmatprep.subr.bf16.mxu0 0
        %1866 = vmatpush1.bf16.msra.mxu0 0
        %1867 = vmatprep.subr.bf16.mxu0 0
        %1868 = vmatpush1.bf16.msra.mxu0 0
        %1869 = vmatprep.subr.bf16.mxu0 0
        %1870 = vmatpush1.bf16.msra.mxu0 0
        %1871 = vmatprep.subr.bf16.mxu0 0
        %1872 = vmatpush1.bf16.msra.mxu0 0
        %1873 = vmatprep.subr.bf16.mxu0 0
        %1874 = vmatpush1.bf16.msra.mxu0 %v1816
        %1875 = vmatprep.subr.bf16.mxu0 0
        %1876 = vmatpush2.bf16.msra.mxu0 0
        %1877 = vmatprep.subr.bf16.mxu0 0
        %1878 = vmatpush2.bf16.msra.mxu0 0
        %1879 = vmatprep.subr.bf16.mxu0 0
        %1880 = vmatpush2.bf16.msra.mxu0 0
        %1881 = vmatprep.subr.bf16.mxu0 0
        %1882 = vmatpush2.bf16.msra.mxu0 0
        %1883 = vmatprep.subr.bf16.mxu0 0
        %1884 = vmatpush2.bf16.msra.mxu0 0
        %1885 = vmatprep.subr.bf16.mxu0 0
        %1886 = vmatpush2.bf16.msra.mxu0 0
        %1887 = vmatprep.subr.bf16.mxu0 0
        %1888 = vmatpush2.bf16.msra.mxu0 0
        %1889 = vmatprep.subr.bf16.mxu0 0
        %1890 = vmatpush2.bf16.msra.mxu0 0
        %1891 = vmatprep.mubr.bf16.mxu0 0
        %1892 = vmatmul.mubr.bf16.gmra.mxu0 %v1807
        %v1893 = vpop.f32.mrf.mxu0
        %v1894 = vadd.f32 %v1790, %v1893
        %v1895 = vpop.f32.mrf.mxu0
        %v1896 = vpop.f32.mrf.mxu0
        %v1897 = vpop.f32.mrf.mxu0
        %1898 = vdwg.mxu0
        %v1899 = vld [vmem:[%s857] sm:$0xf]
        %1900 = vrot.lane.b32.xlu0 %v1687, 17
        %v1901 = vpop.permute.xlu0 %1900
        %1902 = vrot.lane.b32.xlu0 %v1688, 17
        %v1903 = vpop.permute.xlu0 %1902
        %1904 = vrot.lane.b32.xlu0 %v1689, 17
        %v1905 = vpop.permute.xlu0 %1904
        %1906 = vrot.lane.b32.xlu0 %v1690, 17
        %v1907 = vpop.permute.xlu0 %1906
        %v1908 = vsel %vm867, %v1901, %v1903
        %v1909 = vsel %vm867, %v1903, %v1905
        %v1910 = vsel %vm867, %v1905, %v1907
        %v1912 = vsel %vm657, %v1899, 0
        %v1915 = vsel %vm661, %v1908, 0
        %v1918 = vsel %vm661, %v1909, 0
        %v1921 = vsel %vm661, %v1910, 0
        %1923 = vmatprep.subr.bf16.mxu0 0
        %1924 = vmatpush1.bf16.msra.mxu0 0
        %1925 = vmatprep.subr.bf16.mxu0 0
        %1926 = vmatpush1.bf16.msra.mxu0 0
        %1927 = vmatprep.subr.bf16.mxu0 0
        %1928 = vmatpush1.bf16.msra.mxu0 0
        %1929 = vmatprep.subr.bf16.mxu0 0
        %1930 = vmatpush1.bf16.msra.mxu0 0
        %1931 = vmatprep.subr.bf16.mxu0 0
        %1932 = vmatpush1.bf16.msra.mxu0 0
        %1933 = vmatprep.subr.bf16.mxu0 0
        %1934 = vmatpush1.bf16.msra.mxu0 0
        %1935 = vmatprep.subr.bf16.mxu0 0
        %1936 = vmatpush1.bf16.msra.mxu0 0
        %1937 = vmatprep.subr.bf16.mxu0 %v1918
        %1938 = vmatpush1.bf16.msra.mxu0 %v1915
        %1939 = vmatprep.subr.bf16.mxu0 0
        %1940 = vmatpush2.bf16.msra.mxu0 0
        %1941 = vmatprep.subr.bf16.mxu0 0
        %1942 = vmatpush2.bf16.msra.mxu0 0
        %1943 = vmatprep.subr.bf16.mxu0 0
        %1944 = vmatpush2.bf16.msra.mxu0 0
        %1945 = vmatprep.subr.bf16.mxu0 0
        %1946 = vmatpush2.bf16.msra.mxu0 0
        %1947 = vmatprep.subr.bf16.mxu0 0
        %1948 = vmatpush2.bf16.msra.mxu0 0
        %1949 = vmatprep.subr.bf16.mxu0 0
        %1950 = vmatpush2.bf16.msra.mxu0 0
        %1951 = vmatprep.subr.bf16.mxu0 0
        %1952 = vmatpush2.bf16.msra.mxu0 0
        %1953 = vmatprep.subr.bf16.mxu0 0
        %1954 = vmatpush2.bf16.msra.mxu0 0
        %1955 = vmatprep.mubr.bf16.mxu0 0
        %1956 = vmatmul.mubr.bf16.gmra.mxu0 %v1912
        %v1957 = vpop.f32.mrf.mxu0
        %v1958 = vadd.f32 0.0, %v1957
        %v1959 = vpop.f32.mrf.mxu0
        %v1960 = vadd.f32 0.0, %v1959
        %v1961 = vpop.f32.mrf.mxu0
        %v1962 = vpop.f32.mrf.mxu0
        %1963 = vdwg.mxu0
        %1964 = vmatprep.subr.bf16.mxu0 0
        %1965 = vmatpush1.bf16.msra.mxu0 0
        %1966 = vmatprep.subr.bf16.mxu0 0
        %1967 = vmatpush1.bf16.msra.mxu0 0
        %1968 = vmatprep.subr.bf16.mxu0 0
        %1969 = vmatpush1.bf16.msra.mxu0 0
        %1970 = vmatprep.subr.bf16.mxu0 0
        %1971 = vmatpush1.bf16.msra.mxu0 0
        %1972 = vmatprep.subr.bf16.mxu0 0
        %1973 = vmatpush1.bf16.msra.mxu0 0
        %1974 = vmatprep.subr.bf16.mxu0 0
        %1975 = vmatpush1.bf16.msra.mxu0 0
        %1976 = vmatprep.subr.bf16.mxu0 0
        %1977 = vmatpush1.bf16.msra.mxu0 0
        %1978 = vmatprep.subr.bf16.mxu0 0
        %1979 = vmatpush1.bf16.msra.mxu0 %v1921
        %1980 = vmatprep.subr.bf16.mxu0 0
        %1981 = vmatpush2.bf16.msra.mxu0 0
        %1982 = vmatprep.subr.bf16.mxu0 0
        %1983 = vmatpush2.bf16.msra.mxu0 0
        %1984 = vmatprep.subr.bf16.mxu0 0
        %1985 = vmatpush2.bf16.msra.mxu0 0
        %1986 = vmatprep.subr.bf16.mxu0 0
        %1987 = vmatpush2.bf16.msra.mxu0 0
        %1988 = vmatprep.subr.bf16.mxu0 0
        %1989 = vmatpush2.bf16.msra.mxu0 0
        %1990 = vmatprep.subr.bf16.mxu0 0
        %1991 = vmatpush2.bf16.msra.mxu0 0
        %1992 = vmatprep.subr.bf16.mxu0 0
        %1993 = vmatpush2.bf16.msra.mxu0 0
        %1994 = vmatprep.subr.bf16.mxu0 0
        %1995 = vmatpush2.bf16.msra.mxu0 0
        %1996 = vmatprep.mubr.bf16.mxu0 0
        %1997 = vmatmul.mubr.bf16.gmra.mxu0 %v1912
        %v1998 = vpop.f32.mrf.mxu0
        %v1999 = vadd.f32 0.0, %v1998
        %v2000 = vpop.f32.mrf.mxu0
        %v2001 = vpop.f32.mrf.mxu0
        %v2002 = vpop.f32.mrf.mxu0
        %2003 = vdwg.mxu0
        %v2004 = vadd.f32 %v1853, %v1958
        %v2005 = vadd.f32 %v1855, %v1960
        %v2006 = vadd.f32 %v1894, %v1999
        %v2007 = vld [vmem:[%s967] sm:$0xf]
        %2008 = vrot.lane.b32.xlu0 %v1687, 1
        %v2009 = vpop.permute.xlu0 %2008
        %2010 = vrot.lane.b32.xlu0 %v1688, 1
        %v2011 = vpop.permute.xlu0 %2010
        %2012 = vrot.lane.b32.xlu0 %v1689, 1
        %v2013 = vpop.permute.xlu0 %2012
        %2014 = vrot.lane.b32.xlu0 %v1690, 1
        %v2015 = vpop.permute.xlu0 %2014
        %v2016 = vsel %vm977, %v2009, %v2011
        %v2017 = vsel %vm977, %v2011, %v2013
        %v2018 = vsel %vm977, %v2013, %v2015
        %v2020 = vsel %vm657, %v2007, 0
        %v2023 = vsel %vm661, %v2016, 0
        %v2026 = vsel %vm661, %v2017, 0
        %v2029 = vsel %vm661, %v2018, 0
        %2031 = vmatprep.subr.bf16.mxu0 0
        %2032 = vmatpush1.bf16.msra.mxu0 0
        %2033 = vmatprep.subr.bf16.mxu0 0
        %2034 = vmatpush1.bf16.msra.mxu0 0
        %2035 = vmatprep.subr.bf16.mxu0 0
        %2036 = vmatpush1.bf16.msra.mxu0 0
        %2037 = vmatprep.subr.bf16.mxu0 0
        %2038 = vmatpush1.bf16.msra.mxu0 0
        %2039 = vmatprep.subr.bf16.mxu0 0
        %2040 = vmatpush1.bf16.msra.mxu0 0
        %2041 = vmatprep.subr.bf16.mxu0 0
        %2042 = vmatpush1.bf16.msra.mxu0 0
        %2043 = vmatprep.subr.bf16.mxu0 0
        %2044 = vmatpush1.bf16.msra.mxu0 0
        %2045 = vmatprep.subr.bf16.mxu0 %v2026
        %2046 = vmatpush1.bf16.msra.mxu0 %v2023
        %2047 = vmatprep.subr.bf16.mxu0 0
        %2048 = vmatpush2.bf16.msra.mxu0 0
        %2049 = vmatprep.subr.bf16.mxu0 0
        %2050 = vmatpush2.bf16.msra.mxu0 0
        %2051 = vmatprep.subr.bf16.mxu0 0
        %2052 = vmatpush2.bf16.msra.mxu0 0
        %2053 = vmatprep.subr.bf16.mxu0 0
        %2054 = vmatpush2.bf16.msra.mxu0 0
        %2055 = vmatprep.subr.bf16.mxu0 0
        %2056 = vmatpush2.bf16.msra.mxu0 0
        %2057 = vmatprep.subr.bf16.mxu0 0
        %2058 = vmatpush2.bf16.msra.mxu0 0
        %2059 = vmatprep.subr.bf16.mxu0 0
        %2060 = vmatpush2.bf16.msra.mxu0 0
        %2061 = vmatprep.subr.bf16.mxu0 0
        %2062 = vmatpush2.bf16.msra.mxu0 0
        %2063 = vmatprep.mubr.bf16.mxu0 0
        %2064 = vmatmul.mubr.bf16.gmra.mxu0 %v2020
        %v2065 = vpop.f32.mrf.mxu0
        %v2066 = vadd.f32 0.0, %v2065
        %v2067 = vpop.f32.mrf.mxu0
        %v2068 = vadd.f32 0.0, %v2067
        %v2069 = vpop.f32.mrf.mxu0
        %v2070 = vpop.f32.mrf.mxu0
        %2071 = vdwg.mxu0
        %2072 = vmatprep.subr.bf16.mxu0 0
        %2073 = vmatpush1.bf16.msra.mxu0 0
        %2074 = vmatprep.subr.bf16.mxu0 0
        %2075 = vmatpush1.bf16.msra.mxu0 0
        %2076 = vmatprep.subr.bf16.mxu0 0
        %2077 = vmatpush1.bf16.msra.mxu0 0
        %2078 = vmatprep.subr.bf16.mxu0 0
        %2079 = vmatpush1.bf16.msra.mxu0 0
        %2080 = vmatprep.subr.bf16.mxu0 0
        %2081 = vmatpush1.bf16.msra.mxu0 0
        %2082 = vmatprep.subr.bf16.mxu0 0
        %2083 = vmatpush1.bf16.msra.mxu0 0
        %2084 = vmatprep.subr.bf16.mxu0 0
        %2085 = vmatpush1.bf16.msra.mxu0 0
        %2086 = vmatprep.subr.bf16.mxu0 0
        %2087 = vmatpush1.bf16.msra.mxu0 %v2029
        %2088 = vmatprep.subr.bf16.mxu0 0
        %2089 = vmatpush2.bf16.msra.mxu0 0
        %2090 = vmatprep.subr.bf16.mxu0 0
        %2091 = vmatpush2.bf16.msra.mxu0 0
        %2092 = vmatprep.subr.bf16.mxu0 0
        %2093 = vmatpush2.bf16.msra.mxu0 0
        %2094 = vmatprep.subr.bf16.mxu0 0
        %2095 = vmatpush2.bf16.msra.mxu0 0
        %2096 = vmatprep.subr.bf16.mxu0 0
        %2097 = vmatpush2.bf16.msra.mxu0 0
        %2098 = vmatprep.subr.bf16.mxu0 0
        %2099 = vmatpush2.bf16.msra.mxu0 0
        %2100 = vmatprep.subr.bf16.mxu0 0
        %2101 = vmatpush2.bf16.msra.mxu0 0
        %2102 = vmatprep.subr.bf16.mxu0 0
        %2103 = vmatpush2.bf16.msra.mxu0 0
        %2104 = vmatprep.mubr.bf16.mxu0 0
        %2105 = vmatmul.mubr.bf16.gmra.mxu0 %v2020
        %v2106 = vpop.f32.mrf.mxu0
        %v2107 = vadd.f32 0.0, %v2106
        %v2108 = vpop.f32.mrf.mxu0
        %v2109 = vpop.f32.mrf.mxu0
        %v2110 = vpop.f32.mrf.mxu0
        %2111 = vdwg.mxu0
        %v2112 = vadd.f32 %v2004, %v2066
        %v2113 = vadd.f32 %v2005, %v2068
        %v2114 = vadd.f32 %v2006, %v2107
        %v2115 = vld [vmem:[#allocation2 + $0x4] sm:$0x33]
        %v2116 = vld [vmem:[#allocation2 + $0xc] sm:$0x3]
        %v2117 = vld [vmem:[%s1079] sm:$0xf]
        %v2120 = vunpack.c.l.b16 %v2115
        %v2121 = vunpack.c.h.b16 %v2115
        %v2122 = vunpack.c.l.b16 %v2116
        %v2123 = vpack.c.b16 %v2120, %v2120
        %v2124 = vpack.c.b16 %v2121, %v2121
        %v2125 = vpack.c.b16 %v2122, %v2122
        %v2127 = vsel %vm657, %v2117, 0
        %v2130 = vsel %vm661, %v2123, 0
        %v2133 = vsel %vm661, %v2124, 0
        %v2136 = vsel %vm661, %v2125, 0
        %2138 = vmatprep.subr.bf16.mxu0 0
        %2139 = vmatpush1.bf16.msra.mxu0 0
        %2140 = vmatprep.subr.bf16.mxu0 0
        %2141 = vmatpush1.bf16.msra.mxu0 0
        %2142 = vmatprep.subr.bf16.mxu0 0
        %2143 = vmatpush1.bf16.msra.mxu0 0
        %2144 = vmatprep.subr.bf16.mxu0 0
        %2145 = vmatpush1.bf16.msra.mxu0 0
        %2146 = vmatprep.subr.bf16.mxu0 0
        %2147 = vmatpush1.bf16.msra.mxu0 0
        %2148 = vmatprep.subr.bf16.mxu0 0
        %2149 = vmatpush1.bf16.msra.mxu0 0
        %2150 = vmatprep.subr.bf16.mxu0 0
        %2151 = vmatpush1.bf16.msra.mxu0 0
        %2152 = vmatprep.subr.bf16.mxu0 %v2133
        %2153 = vmatpush1.bf16.msra.mxu0 %v2130
        %2154 = vmatprep.subr.bf16.mxu0 0
        %2155 = vmatpush2.bf16.msra.mxu0 0
        %2156 = vmatprep.subr.bf16.mxu0 0
        %2157 = vmatpush2.bf16.msra.mxu0 0
        %2158 = vmatprep.subr.bf16.mxu0 0
        %2159 = vmatpush2.bf16.msra.mxu0 0
        %2160 = vmatprep.subr.bf16.mxu0 0
        %2161 = vmatpush2.bf16.msra.mxu0 0
        %2162 = vmatprep.subr.bf16.mxu0 0
        %2163 = vmatpush2.bf16.msra.mxu0 0
        %2164 = vmatprep.subr.bf16.mxu0 0
        %2165 = vmatpush2.bf16.msra.mxu0 0
        %2166 = vmatprep.subr.bf16.mxu0 0
        %2167 = vmatpush2.bf16.msra.mxu0 0
        %2168 = vmatprep.subr.bf16.mxu0 0
        %2169 = vmatpush2.bf16.msra.mxu0 0
        %2170 = vmatprep.mubr.bf16.mxu0 0
        %2171 = vmatmul.mubr.bf16.gmra.mxu0 %v2127
        %v2172 = vpop.f32.mrf.mxu0
        %v2173 = vadd.f32 0.0, %v2172
        %v2174 = vpop.f32.mrf.mxu0
        %v2175 = vadd.f32 0.0, %v2174
        %v2176 = vpop.f32.mrf.mxu0
        %v2177 = vpop.f32.mrf.mxu0
        %2178 = vdwg.mxu0
        %2179 = vmatprep.subr.bf16.mxu0 0
        %2180 = vmatpush1.bf16.msra.mxu0 0
        %2181 = vmatprep.subr.bf16.mxu0 0
        %2182 = vmatpush1.bf16.msra.mxu0 0
        %2183 = vmatprep.subr.bf16.mxu0 0
        %2184 = vmatpush1.bf16.msra.mxu0 0
        %2185 = vmatprep.subr.bf16.mxu0 0
        %2186 = vmatpush1.bf16.msra.mxu0 0
        %2187 = vmatprep.subr.bf16.mxu0 0
        %2188 = vmatpush1.bf16.msra.mxu0 0
        %2189 = vmatprep.subr.bf16.mxu0 0
        %2190 = vmatpush1.bf16.msra.mxu0 0
        %2191 = vmatprep.subr.bf16.mxu0 0
        %2192 = vmatpush1.bf16.msra.mxu0 0
        %2193 = vmatprep.subr.bf16.mxu0 0
        %2194 = vmatpush1.bf16.msra.mxu0 %v2136
        %2195 = vmatprep.subr.bf16.mxu0 0
        %2196 = vmatpush2.bf16.msra.mxu0 0
        %2197 = vmatprep.subr.bf16.mxu0 0
        %2198 = vmatpush2.bf16.msra.mxu0 0
        %2199 = vmatprep.subr.bf16.mxu0 0
        %2200 = vmatpush2.bf16.msra.mxu0 0
        %2201 = vmatprep.subr.bf16.mxu0 0
        %2202 = vmatpush2.bf16.msra.mxu0 0
        %2203 = vmatprep.subr.bf16.mxu0 0
        %2204 = vmatpush2.bf16.msra.mxu0 0
        %2205 = vmatprep.subr.bf16.mxu0 0
        %2206 = vmatpush2.bf16.msra.mxu0 0
        %2207 = vmatprep.subr.bf16.mxu0 0
        %2208 = vmatpush2.bf16.msra.mxu0 0
        %2209 = vmatprep.subr.bf16.mxu0 0
        %2210 = vmatpush2.bf16.msra.mxu0 0
        %2211 = vmatprep.mubr.bf16.mxu0 0
        %2212 = vmatmul.mubr.bf16.gmra.mxu0 %v2127
        %v2213 = vpop.f32.mrf.mxu0
        %v2214 = vadd.f32 0.0, %v2213
        %v2215 = vpop.f32.mrf.mxu0
        %v2216 = vpop.f32.mrf.mxu0
        %v2217 = vpop.f32.mrf.mxu0
        %2218 = vdwg.mxu0
        %v2219 = vadd.f32 %v2112, %v2173
        %v2220 = vadd.f32 %v2113, %v2175
        %v2221 = vadd.f32 %v2114, %v2214
        %v2222 = vld [vmem:[%s1185] sm:$0xf]
        %2223 = vrot.lane.b32.xlu0 %v2123, 127
        %v2224 = vpop.permute.xlu0 %2223
        %2225 = vrot.lane.b32.xlu0 %v2124, 127
        %v2226 = vpop.permute.xlu0 %2225
        %2227 = vrot.lane.b32.xlu0 %v2125, 127
        %v2228 = vpop.permute.xlu0 %2227
        %v2229 = vsel %vm1193, %v2224, %v2226
        %v2230 = vsel %vm1193, %v2226, %v2228
        %v2232 = vsel %vm657, %v2222, 0
        %v2235 = vsel %vm661, %v2229, 0
        %v2238 = vsel %vm661, %v2230, 0
        %v2241 = vsel %vm661, %v2228, 0
        %2243 = vmatprep.subr.bf16.mxu0 0
        %2244 = vmatpush1.bf16.msra.mxu0 0
        %2245 = vmatprep.subr.bf16.mxu0 0
        %2246 = vmatpush1.bf16.msra.mxu0 0
        %2247 = vmatprep.subr.bf16.mxu0 0
        %2248 = vmatpush1.bf16.msra.mxu0 0
        %2249 = vmatprep.subr.bf16.mxu0 0
        %2250 = vmatpush1.bf16.msra.mxu0 0
        %2251 = vmatprep.subr.bf16.mxu0 0
        %2252 = vmatpush1.bf16.msra.mxu0 0
        %2253 = vmatprep.subr.bf16.mxu0 0
        %2254 = vmatpush1.bf16.msra.mxu0 0
        %2255 = vmatprep.subr.bf16.mxu0 0
        %2256 = vmatpush1.bf16.msra.mxu0 0
        %2257 = vmatprep.subr.bf16.mxu0 %v2238
        %2258 = vmatpush1.bf16.msra.mxu0 %v2235
        %2259 = vmatprep.subr.bf16.mxu0 0
        %2260 = vmatpush2.bf16.msra.mxu0 0
        %2261 = vmatprep.subr.bf16.mxu0 0
        %2262 = vmatpush2.bf16.msra.mxu0 0
        %2263 = vmatprep.subr.bf16.mxu0 0
        %2264 = vmatpush2.bf16.msra.mxu0 0
        %2265 = vmatprep.subr.bf16.mxu0 0
        %2266 = vmatpush2.bf16.msra.mxu0 0
        %2267 = vmatprep.subr.bf16.mxu0 0
        %2268 = vmatpush2.bf16.msra.mxu0 0
        %2269 = vmatprep.subr.bf16.mxu0 0
        %2270 = vmatpush2.bf16.msra.mxu0 0
        %2271 = vmatprep.subr.bf16.mxu0 0
        %2272 = vmatpush2.bf16.msra.mxu0 0
        %2273 = vmatprep.subr.bf16.mxu0 0
        %2274 = vmatpush2.bf16.msra.mxu0 0
        %2275 = vmatprep.mubr.bf16.mxu0 0
        %2276 = vmatmul.mubr.bf16.gmra.mxu0 %v2232
        %v2277 = vpop.f32.mrf.mxu0
        %v2278 = vadd.f32 0.0, %v2277
        %v2279 = vpop.f32.mrf.mxu0
        %v2280 = vadd.f32 0.0, %v2279
        %v2281 = vpop.f32.mrf.mxu0
        %v2282 = vpop.f32.mrf.mxu0
        %2283 = vdwg.mxu0
        %2284 = vmatprep.subr.bf16.mxu0 0
        %2285 = vmatpush1.bf16.msra.mxu0 0
        %2286 = vmatprep.subr.bf16.mxu0 0
        %2287 = vmatpush1.bf16.msra.mxu0 0
        %2288 = vmatprep.subr.bf16.mxu0 0
        %2289 = vmatpush1.bf16.msra.mxu0 0
        %2290 = vmatprep.subr.bf16.mxu0 0
        %2291 = vmatpush1.bf16.msra.mxu0 0
        %2292 = vmatprep.subr.bf16.mxu0 0
        %2293 = vmatpush1.bf16.msra.mxu0 0
        %2294 = vmatprep.subr.bf16.mxu0 0
        %2295 = vmatpush1.bf16.msra.mxu0 0
        %2296 = vmatprep.subr.bf16.mxu0 0
        %2297 = vmatpush1.bf16.msra.mxu0 0
        %2298 = vmatprep.subr.bf16.mxu0 0
        %2299 = vmatpush1.bf16.msra.mxu0 %v2241
        %2300 = vmatprep.subr.bf16.mxu0 0
        %2301 = vmatpush2.bf16.msra.mxu0 0
        %2302 = vmatprep.subr.bf16.mxu0 0
        %2303 = vmatpush2.bf16.msra.mxu0 0
        %2304 = vmatprep.subr.bf16.mxu0 0
        %2305 = vmatpush2.bf16.msra.mxu0 0
        %2306 = vmatprep.subr.bf16.mxu0 0
        %2307 = vmatpush2.bf16.msra.mxu0 0
        %2308 = vmatprep.subr.bf16.mxu0 0
        %2309 = vmatpush2.bf16.msra.mxu0 0
        %2310 = vmatprep.subr.bf16.mxu0 0
        %2311 = vmatpush2.bf16.msra.mxu0 0
        %2312 = vmatprep.subr.bf16.mxu0 0
        %2313 = vmatpush2.bf16.msra.mxu0 0
        %2314 = vmatprep.subr.bf16.mxu0 0
        %2315 = vmatpush2.bf16.msra.mxu0 0
        %2316 = vmatprep.mubr.bf16.mxu0 0
        %2317 = vmatmul.mubr.bf16.gmra.mxu0 %v2232
        %v2318 = vpop.f32.mrf.mxu0
        %v2319 = vadd.f32 0.0, %v2318
        %v2320 = vpop.f32.mrf.mxu0
        %v2321 = vpop.f32.mrf.mxu0
        %v2322 = vpop.f32.mrf.mxu0
        %2323 = vdwg.mxu0
        %v2324 = vadd.f32 %v2219, %v2278
        %v2325 = vadd.f32 %v2220, %v2280
        %v2326 = vadd.f32 %v2221, %v2319
        %v2327 = vld [vmem:[%s1292] sm:$0xf]
        %2328 = vrot.lane.b32.xlu0 %v2123, 111
        %v2329 = vpop.permute.xlu0 %2328
        %2330 = vrot.lane.b32.xlu0 %v2124, 111
        %v2331 = vpop.permute.xlu0 %2330
        %2332 = vrot.lane.b32.xlu0 %v2125, 111
        %v2333 = vpop.permute.xlu0 %2332
        %v2334 = vsel %vm1300, %v2329, %v2331
        %v2335 = vsel %vm1300, %v2331, %v2333
        %v2337 = vsel %vm657, %v2327, 0
        %v2340 = vsel %vm661, %v2334, 0
        %v2343 = vsel %vm661, %v2335, 0
        %v2346 = vsel %vm661, %v2333, 0
        %2348 = vmatprep.subr.bf16.mxu0 0
        %2349 = vmatpush1.bf16.msra.mxu0 0
        %2350 = vmatprep.subr.bf16.mxu0 0
        %2351 = vmatpush1.bf16.msra.mxu0 0
        %2352 = vmatprep.subr.bf16.mxu0 0
        %2353 = vmatpush1.bf16.msra.mxu0 0
        %2354 = vmatprep.subr.bf16.mxu0 0
        %2355 = vmatpush1.bf16.msra.mxu0 0
        %2356 = vmatprep.subr.bf16.mxu0 0
        %2357 = vmatpush1.bf16.msra.mxu0 0
        %2358 = vmatprep.subr.bf16.mxu0 0
        %2359 = vmatpush1.bf16.msra.mxu0 0
        %2360 = vmatprep.subr.bf16.mxu0 0
        %2361 = vmatpush1.bf16.msra.mxu0 0
        %2362 = vmatprep.subr.bf16.mxu0 %v2343
        %2363 = vmatpush1.bf16.msra.mxu0 %v2340
        %2364 = vmatprep.subr.bf16.mxu0 0
        %2365 = vmatpush2.bf16.msra.mxu0 0
        %2366 = vmatprep.subr.bf16.mxu0 0
        %2367 = vmatpush2.bf16.msra.mxu0 0
        %2368 = vmatprep.subr.bf16.mxu0 0
        %2369 = vmatpush2.bf16.msra.mxu0 0
        %2370 = vmatprep.subr.bf16.mxu0 0
        %2371 = vmatpush2.bf16.msra.mxu0 0
        %2372 = vmatprep.subr.bf16.mxu0 0
        %2373 = vmatpush2.bf16.msra.mxu0 0
        %2374 = vmatprep.subr.bf16.mxu0 0
        %2375 = vmatpush2.bf16.msra.mxu0 0
        %2376 = vmatprep.subr.bf16.mxu0 0
        %2377 = vmatpush2.bf16.msra.mxu0 0
        %2378 = vmatprep.subr.bf16.mxu0 0
        %2379 = vmatpush2.bf16.msra.mxu0 0
        %2380 = vmatprep.mubr.bf16.mxu0 0
        %2381 = vmatmul.mubr.bf16.gmra.mxu0 %v2337
        %v2382 = vpop.f32.mrf.mxu0
        %v2383 = vadd.f32 0.0, %v2382
        %v2384 = vpop.f32.mrf.mxu0
        %v2385 = vadd.f32 0.0, %v2384
        %v2386 = vpop.f32.mrf.mxu0
        %v2387 = vpop.f32.mrf.mxu0
        %2388 = vdwg.mxu0
        %2389 = vmatprep.subr.bf16.mxu0 0
        %2390 = vmatpush1.bf16.msra.mxu0 0
        %2391 = vmatprep.subr.bf16.mxu0 0
        %2392 = vmatpush1.bf16.msra.mxu0 0
        %2393 = vmatprep.subr.bf16.mxu0 0
        %2394 = vmatpush1.bf16.msra.mxu0 0
        %2395 = vmatprep.subr.bf16.mxu0 0
        %2396 = vmatpush1.bf16.msra.mxu0 0
        %2397 = vmatprep.subr.bf16.mxu0 0
        %2398 = vmatpush1.bf16.msra.mxu0 0
        %2399 = vmatprep.subr.bf16.mxu0 0
        %2400 = vmatpush1.bf16.msra.mxu0 0
        %2401 = vmatprep.subr.bf16.mxu0 0
        %2402 = vmatpush1.bf16.msra.mxu0 0
        %2403 = vmatprep.subr.bf16.mxu0 0
        %2404 = vmatpush1.bf16.msra.mxu0 %v2346
        %2405 = vmatprep.subr.bf16.mxu0 0
        %2406 = vmatpush2.bf16.msra.mxu0 0
        %2407 = vmatprep.subr.bf16.mxu0 0
        %2408 = vmatpush2.bf16.msra.mxu0 0
        %2409 = vmatprep.subr.bf16.mxu0 0
        %2410 = vmatpush2.bf16.msra.mxu0 0
        %2411 = vmatprep.subr.bf16.mxu0 0
        %2412 = vmatpush2.bf16.msra.mxu0 0
        %2413 = vmatprep.subr.bf16.mxu0 0
        %2414 = vmatpush2.bf16.msra.mxu0 0
        %2415 = vmatprep.subr.bf16.mxu0 0
        %2416 = vmatpush2.bf16.msra.mxu0 0
        %2417 = vmatprep.subr.bf16.mxu0 0
        %2418 = vmatpush2.bf16.msra.mxu0 0
        %2419 = vmatprep.subr.bf16.mxu0 0
        %2420 = vmatpush2.bf16.msra.mxu0 0
        %2421 = vmatprep.mubr.bf16.mxu0 0
        %2422 = vmatmul.mubr.bf16.gmra.mxu0 %v2337
        %v2423 = vpop.f32.mrf.mxu0
        %v2424 = vadd.f32 0.0, %v2423
        %v2425 = vpop.f32.mrf.mxu0
        %v2426 = vpop.f32.mrf.mxu0
        %v2427 = vpop.f32.mrf.mxu0
        %2428 = vdwg.mxu0
        %v2429 = vadd.f32 %v2324, %v2383
        %v2430 = vadd.f32 %v2325, %v2385
        %v2431 = vadd.f32 %v2326, %v2424
        %v2432 = vld [vmem:[%s1399] sm:$0xf]
        %2433 = vrot.lane.b32.xlu0 %v2123, 110
        %v2434 = vpop.permute.xlu0 %2433
        %2435 = vrot.lane.b32.xlu0 %v2124, 110
        %v2436 = vpop.permute.xlu0 %2435
        %2437 = vrot.lane.b32.xlu0 %v2125, 110
        %v2438 = vpop.permute.xlu0 %2437
        %v2439 = vsel %vm1407, %v2434, %v2436
        %v2440 = vsel %vm1407, %v2436, %v2438
        %v2442 = vsel %vm657, %v2432, 0
        %v2445 = vsel %vm661, %v2439, 0
        %v2448 = vsel %vm661, %v2440, 0
        %v2451 = vsel %vm661, %v2438, 0
        %2453 = vmatprep.subr.bf16.mxu0 0
        %2454 = vmatpush1.bf16.msra.mxu0 0
        %2455 = vmatprep.subr.bf16.mxu0 0
        %2456 = vmatpush1.bf16.msra.mxu0 0
        %2457 = vmatprep.subr.bf16.mxu0 0
        %2458 = vmatpush1.bf16.msra.mxu0 0
        %2459 = vmatprep.subr.bf16.mxu0 0
        %2460 = vmatpush1.bf16.msra.mxu0 0
        %2461 = vmatprep.subr.bf16.mxu0 0
        %2462 = vmatpush1.bf16.msra.mxu0 0
        %2463 = vmatprep.subr.bf16.mxu0 0
        %2464 = vmatpush1.bf16.msra.mxu0 0
        %2465 = vmatprep.subr.bf16.mxu0 0
        %2466 = vmatpush1.bf16.msra.mxu0 0
        %2467 = vmatprep.subr.bf16.mxu0 %v2448
        %2468 = vmatpush1.bf16.msra.mxu0 %v2445
        %2469 = vmatprep.subr.bf16.mxu0 0
        %2470 = vmatpush2.bf16.msra.mxu0 0
        %2471 = vmatprep.subr.bf16.mxu0 0
        %2472 = vmatpush2.bf16.msra.mxu0 0
        %2473 = vmatprep.subr.bf16.mxu0 0
        %2474 = vmatpush2.bf16.msra.mxu0 0
        %2475 = vmatprep.subr.bf16.mxu0 0
        %2476 = vmatpush2.bf16.msra.mxu0 0
        %2477 = vmatprep.subr.bf16.mxu0 0
        %2478 = vmatpush2.bf16.msra.mxu0 0
        %2479 = vmatprep.subr.bf16.mxu0 0
        %2480 = vmatpush2.bf16.msra.mxu0 0
        %2481 = vmatprep.subr.bf16.mxu0 0
        %2482 = vmatpush2.bf16.msra.mxu0 0
        %2483 = vmatprep.subr.bf16.mxu0 0
        %2484 = vmatpush2.bf16.msra.mxu0 0
        %2485 = vmatprep.mubr.bf16.mxu0 0
        %2486 = vmatmul.mubr.bf16.gmra.mxu0 %v2442
        %v2487 = vpop.f32.mrf.mxu0
        %v2488 = vadd.f32 0.0, %v2487
        %v2489 = vpop.f32.mrf.mxu0
        %v2490 = vadd.f32 0.0, %v2489
        %v2491 = vpop.f32.mrf.mxu0
        %v2492 = vpop.f32.mrf.mxu0
        %2493 = vdwg.mxu0
        %2494 = vmatprep.subr.bf16.mxu0 0
        %2495 = vmatpush1.bf16.msra.mxu0 0
        %2496 = vmatprep.subr.bf16.mxu0 0
        %2497 = vmatpush1.bf16.msra.mxu0 0
        %2498 = vmatprep.subr.bf16.mxu0 0
        %2499 = vmatpush1.bf16.msra.mxu0 0
        %2500 = vmatprep.subr.bf16.mxu0 0
        %2501 = vmatpush1.bf16.msra.mxu0 0
        %2502 = vmatprep.subr.bf16.mxu0 0
        %2503 = vmatpush1.bf16.msra.mxu0 0
        %2504 = vmatprep.subr.bf16.mxu0 0
        %2505 = vmatpush1.bf16.msra.mxu0 0
        %2506 = vmatprep.subr.bf16.mxu0 0
        %2507 = vmatpush1.bf16.msra.mxu0 0
        %2508 = vmatprep.subr.bf16.mxu0 0
        %2509 = vmatpush1.bf16.msra.mxu0 %v2451
        %2510 = vmatprep.subr.bf16.mxu0 0
        %2511 = vmatpush2.bf16.msra.mxu0 0
        %2512 = vmatprep.subr.bf16.mxu0 0
        %2513 = vmatpush2.bf16.msra.mxu0 0
        %2514 = vmatprep.subr.bf16.mxu0 0
        %2515 = vmatpush2.bf16.msra.mxu0 0
        %2516 = vmatprep.subr.bf16.mxu0 0
        %2517 = vmatpush2.bf16.msra.mxu0 0
        %2518 = vmatprep.subr.bf16.mxu0 0
        %2519 = vmatpush2.bf16.msra.mxu0 0
        %2520 = vmatprep.subr.bf16.mxu0 0
        %2521 = vmatpush2.bf16.msra.mxu0 0
        %2522 = vmatprep.subr.bf16.mxu0 0
        %2523 = vmatpush2.bf16.msra.mxu0 0
        %2524 = vmatprep.subr.bf16.mxu0 0
        %2525 = vmatpush2.bf16.msra.mxu0 0
        %2526 = vmatprep.mubr.bf16.mxu0 0
        %2527 = vmatmul.mubr.bf16.gmra.mxu0 %v2442
        %v2528 = vpop.f32.mrf.mxu0
        %v2529 = vadd.f32 0.0, %v2528
        %v2530 = vpop.f32.mrf.mxu0
        %v2531 = vpop.f32.mrf.mxu0
        %v2532 = vpop.f32.mrf.mxu0
        %2533 = vdwg.mxu0
        %v2534 = vadd.f32 %v2429, %v2488
        %v2535 = vadd.f32 %v2430, %v2490
        %v2536 = vadd.f32 %v2431, %v2529
        %v2537 = vld [vmem:[%s1506] sm:$0xf]
        %2538 = vrot.lane.b32.xlu0 %v2123, 109
        %v2539 = vpop.permute.xlu0 %2538
        %2540 = vrot.lane.b32.xlu0 %v2124, 109
        %v2541 = vpop.permute.xlu0 %2540
        %2542 = vrot.lane.b32.xlu0 %v2125, 109
        %v2543 = vpop.permute.xlu0 %2542
        %v2544 = vsel %vm1514, %v2539, %v2541
        %v2545 = vsel %vm1514, %v2541, %v2543
        %v2547 = vsel %vm657, %v2537, 0
        %v2550 = vsel %vm661, %v2544, 0
        %v2553 = vsel %vm661, %v2545, 0
        %v2556 = vsel %vm661, %v2543, 0
        %2558 = vmatprep.subr.bf16.mxu0 0
        %2559 = vmatpush1.bf16.msra.mxu0 0
        %2560 = vmatprep.subr.bf16.mxu0 0
        %2561 = vmatpush1.bf16.msra.mxu0 0
        %2562 = vmatprep.subr.bf16.mxu0 0
        %2563 = vmatpush1.bf16.msra.mxu0 0
        %2564 = vmatprep.subr.bf16.mxu0 0
        %2565 = vmatpush1.bf16.msra.mxu0 0
        %2566 = vmatprep.subr.bf16.mxu0 0
        %2567 = vmatpush1.bf16.msra.mxu0 0
        %2568 = vmatprep.subr.bf16.mxu0 0
        %2569 = vmatpush1.bf16.msra.mxu0 0
        %2570 = vmatprep.subr.bf16.mxu0 0
        %2571 = vmatpush1.bf16.msra.mxu0 0
        %2572 = vmatprep.subr.bf16.mxu0 %v2553
        %2573 = vmatpush1.bf16.msra.mxu0 %v2550
        %2574 = vmatprep.subr.bf16.mxu0 0
        %2575 = vmatpush2.bf16.msra.mxu0 0
        %2576 = vmatprep.subr.bf16.mxu0 0
        %2577 = vmatpush2.bf16.msra.mxu0 0
        %2578 = vmatprep.subr.bf16.mxu0 0
        %2579 = vmatpush2.bf16.msra.mxu0 0
        %2580 = vmatprep.subr.bf16.mxu0 0
        %2581 = vmatpush2.bf16.msra.mxu0 0
        %2582 = vmatprep.subr.bf16.mxu0 0
        %2583 = vmatpush2.bf16.msra.mxu0 0
        %2584 = vmatprep.subr.bf16.mxu0 0
        %2585 = vmatpush2.bf16.msra.mxu0 0
        %2586 = vmatprep.subr.bf16.mxu0 0
        %2587 = vmatpush2.bf16.msra.mxu0 0
        %2588 = vmatprep.subr.bf16.mxu0 0
        %2589 = vmatpush2.bf16.msra.mxu0 0
        %2590 = vmatprep.mubr.bf16.mxu0 0
        %2591 = vmatmul.mubr.bf16.gmra.mxu0 %v2547
        %v2592 = vpop.f32.mrf.mxu0
        %v2593 = vadd.f32 0.0, %v2592
        %v2594 = vpop.f32.mrf.mxu0
        %v2595 = vadd.f32 0.0, %v2594
        %v2596 = vpop.f32.mrf.mxu0
        %v2597 = vpop.f32.mrf.mxu0
        %2598 = vdwg.mxu0
        %2599 = vmatprep.subr.bf16.mxu0 0
        %2600 = vmatpush1.bf16.msra.mxu0 0
        %2601 = vmatprep.subr.bf16.mxu0 0
        %2602 = vmatpush1.bf16.msra.mxu0 0
        %2603 = vmatprep.subr.bf16.mxu0 0
        %2604 = vmatpush1.bf16.msra.mxu0 0
        %2605 = vmatprep.subr.bf16.mxu0 0
        %2606 = vmatpush1.bf16.msra.mxu0 0
        %2607 = vmatprep.subr.bf16.mxu0 0
        %2608 = vmatpush1.bf16.msra.mxu0 0
        %2609 = vmatprep.subr.bf16.mxu0 0
        %2610 = vmatpush1.bf16.msra.mxu0 0
        %2611 = vmatprep.subr.bf16.mxu0 0
        %2612 = vmatpush1.bf16.msra.mxu0 0
        %2613 = vmatprep.subr.bf16.mxu0 0
        %2614 = vmatpush1.bf16.msra.mxu0 %v2556
        %2615 = vmatprep.subr.bf16.mxu0 0
        %2616 = vmatpush2.bf16.msra.mxu0 0
        %2617 = vmatprep.subr.bf16.mxu0 0
        %2618 = vmatpush2.bf16.msra.mxu0 0
        %2619 = vmatprep.subr.bf16.mxu0 0
        %2620 = vmatpush2.bf16.msra.mxu0 0
        %2621 = vmatprep.subr.bf16.mxu0 0
        %2622 = vmatpush2.bf16.msra.mxu0 0
        %2623 = vmatprep.subr.bf16.mxu0 0
        %2624 = vmatpush2.bf16.msra.mxu0 0
        %2625 = vmatprep.subr.bf16.mxu0 0
        %2626 = vmatpush2.bf16.msra.mxu0 0
        %2627 = vmatprep.subr.bf16.mxu0 0
        %2628 = vmatpush2.bf16.msra.mxu0 0
        %2629 = vmatprep.subr.bf16.mxu0 0
        %2630 = vmatpush2.bf16.msra.mxu0 0
        %2631 = vmatprep.mubr.bf16.mxu0 0
        %2632 = vmatmul.mubr.bf16.gmra.mxu0 %v2547
        %v2633 = vpop.f32.mrf.mxu0
        %v2634 = vadd.f32 0.0, %v2633
        %v2635 = vpop.f32.mrf.mxu0
        %v2636 = vpop.f32.mrf.mxu0
        %v2637 = vpop.f32.mrf.mxu0
        %2638 = vdwg.mxu0
        %v2639 = vadd.f32 %v2534, %v2593
        %v2640 = vadd.f32 %v2535, %v2595
        %v2641 = vadd.f32 %v2536, %v2634
        %v2642 = vld [vmem:[%s4] sm:$0xff]
        %2644 = vset.pattern.permute.xlu0 0
        %2645 = vperm.xlu0 %2644, %v2642
        %v2646 = vpop.permute.xlu0 %2645
        %v2648 = vmul.f32 %v2639, %v2646
        %v2649 = vmul.f32 %v2640, %v2646
        %v2650 = vmul.f32 %v2641, %v2646
        %v2651 = vld [vmem:[%s5] sm:$0xff]
        %2653 = vset.pattern.permute.xlu0 0
        %2654 = vperm.xlu0 %2653, %v2651
        %v2655 = vpop.permute.xlu0 %2654
        %v2657 = vadd.f32 %v2648, %v2655
        %v2658 = vadd.f32 %v2649, %v2655
        %v2659 = vadd.f32 %v2650, %v2655
        %v2660 = vmax.f32 %v2657, 0.0
        %v2661 = vmax.f32 %v2658, 0.0
        %v2662 = vmax.f32 %v2659, 0.0
        %v2663 = vsel %vm1647, %v2660, 0.0
        %v2664 = vsel %vm1648, %v2661, 0.0
        %v2665 = vsel %vm1649, %v2662, 0.0
        %v2666 = vpack.c.bf16 %v2663, %v2663
        %v2667 = vpack.c.bf16 %v2664, %v2664
        %v2668 = vpack.c.bf16 %v2665, %v2665
        %v2672 = vunpack.c.l.b16 %v2666
        %v2673 = vunpack.c.l.b16 %v2667
        %v2674 = vunpack.c.l.b16 %v2668
        %v2675 = vpack.c.b16 %v2673, %v2672
        %v2676 = vpack.c.b16 %v2674, %v2674
        %2679 = vst [vmem:[#allocation2 + $0x4] sm:$0xff] %v2675
        %vm2680 = vcmask 551936
        %2681 = vst.msk [vmem:[#allocation2 + $0xc] sm:$0xf] %vm2680, %v2676
        %v2685 = vunpack.c.l.b16 %v1653
        %v2686 = vunpack.c.l.b16 %v1654
        %v2687 = vunpack.c.l.b16 %v1655
        %v2688 = vpack.c.b16 %v2686, %v2685
        %v2689 = vpack.c.b16 %v2687, %v2687
        %2692 = vst [vmem:[#allocation2 + $0x14] sm:$0xff] %v2688
        %2693 = vst.msk [vmem:[#allocation2 + $0x1c] sm:$0xf] %vm2680, %v2689
        %v2694 = vld [vmem:[#allocation2] sm:$0xff]
        %v2695 = vld [vmem:[#allocation2 + $0x8] sm:$0xff]
        %v2696 = vld [vmem:[#allocation2 + $0x10] sm:$0xff]
        %v2697 = vld [vmem:[#allocation2 + $0x18] sm:$0xff]
        %v2698 = vld [vmem:[%s6] sm:$0xf]
        %v2699 = vld [vmem:[%s6 + $0x4] sm:$0xf]
        %s2700 = scalar_lea.vmem %s6, 8
        %v2701 = vld [vmem:[%s2700] sm:$0xf]
        %v2702 = vld [vmem:[%s2700 + $0x4] sm:$0xf]
        %v2705 = vunpack.c.l.b16 %v2701
        %v2706 = vunpack.c.l.b16 %v2702
        %v2707 = vpack.c.b16 %v2706, %v2705
        %v2712 = vunpack.c.l.b16 %v2694
        %v2713 = vunpack.c.h.b16 %v2694
        %v2714 = vunpack.c.l.b16 %v2695
        %v2715 = vunpack.c.h.b16 %v2695
        %v2716 = vunpack.c.l.b16 %v2696
        %v2717 = vunpack.c.h.b16 %v2696
        %v2718 = vunpack.c.l.b16 %v2697
        %v2719 = vunpack.c.h.b16 %v2697
        %v2720 = vpack.c.b16 %v2716, %v2712
        %v2721 = vpack.c.b16 %v2717, %v2713
        %v2722 = vpack.c.b16 %v2718, %v2714
        %v2723 = vpack.c.b16 %v2719, %v2715
        %2724 = vrot.lane.b32.xlu0 %v2720, 18
        %v2725 = vpop.permute.xlu0 %2724
        %2726 = vrot.lane.b32.xlu0 %v2721, 18
        %v2727 = vpop.permute.xlu0 %2726
        %2728 = vrot.lane.b32.xlu0 %v2722, 18
        %v2729 = vpop.permute.xlu0 %2728
        %2730 = vrot.lane.b32.xlu0 %v2723, 18
        %v2731 = vpop.permute.xlu0 %2730
        %v2732 = vsel %vm653, %v2725, %v2727
        %v2733 = vsel %vm653, %v2727, %v2729
        %v2734 = vsel %vm653, %v2729, %v2731
        %vm2738 = vcmask 130048
        %v2740 = vsel %vm2738, %v2707, 0
        %2742 = vmatprep.subr.bf16.mxu0 0
        %2743 = vmatpush1.bf16.msra.mxu0 0
        %2744 = vmatprep.subr.bf16.mxu0 0
        %2745 = vmatpush1.bf16.msra.mxu0 0
        %2746 = vmatprep.subr.bf16.mxu0 0
        %2747 = vmatpush1.bf16.msra.mxu0 0
        %2748 = vmatprep.subr.bf16.mxu0 0
        %2749 = vmatpush1.bf16.msra.mxu0 0
        %2750 = vmatprep.subr.bf16.mxu0 0
        %2751 = vmatpush1.bf16.msra.mxu0 0
        %2752 = vmatprep.subr.bf16.mxu0 0
        %2753 = vmatpush1.bf16.msra.mxu0 0
        %2754 = vmatprep.subr.bf16.mxu0 0
        %2755 = vmatpush1.bf16.msra.mxu0 0
        %2756 = vmatprep.subr.bf16.mxu0 %v2733
        %2757 = vmatpush1.bf16.msra.mxu0 %v2732
        %2758 = vmatprep.subr.bf16.mxu0 0
        %2759 = vmatpush2.bf16.msra.mxu0 0
        %2760 = vmatprep.subr.bf16.mxu0 0
        %2761 = vmatpush2.bf16.msra.mxu0 0
        %2762 = vmatprep.subr.bf16.mxu0 0
        %2763 = vmatpush2.bf16.msra.mxu0 0
        %2764 = vmatprep.subr.bf16.mxu0 0
        %2765 = vmatpush2.bf16.msra.mxu0 0
        %2766 = vmatprep.subr.bf16.mxu0 0
        %2767 = vmatpush2.bf16.msra.mxu0 0
        %2768 = vmatprep.subr.bf16.mxu0 0
        %2769 = vmatpush2.bf16.msra.mxu0 0
        %2770 = vmatprep.subr.bf16.mxu0 0
        %2771 = vmatpush2.bf16.msra.mxu0 0
        %2772 = vmatprep.subr.bf16.mxu0 0
        %2773 = vmatpush2.bf16.msra.mxu0 0
        %2774 = vmatprep.mubr.bf16.mxu0 0
        %2775 = vmatmul.mubr.bf16.gmra.mxu0 %v2740
        %v2776 = vpop.f32.mrf.mxu0
        %v2777 = vadd.f32 0.0, %v2776
        %v2778 = vpop.f32.mrf.mxu0
        %v2779 = vadd.f32 0.0, %v2778
        %v2780 = vpop.f32.mrf.mxu0
        %v2781 = vadd.f32 0.0, %v2780
        %v2782 = vpop.f32.mrf.mxu0
        %v2783 = vadd.f32 0.0, %v2782
        %2784 = vdwg.mxu0
        %2785 = vmatprep.subr.bf16.mxu0 0
        %2786 = vmatpush1.bf16.msra.mxu0 0
        %2787 = vmatprep.subr.bf16.mxu0 0
        %2788 = vmatpush1.bf16.msra.mxu0 0
        %2789 = vmatprep.subr.bf16.mxu0 0
        %2790 = vmatpush1.bf16.msra.mxu0 0
        %2791 = vmatprep.subr.bf16.mxu0 0
        %2792 = vmatpush1.bf16.msra.mxu0 0
        %2793 = vmatprep.subr.bf16.mxu0 0
        %2794 = vmatpush1.bf16.msra.mxu0 0
        %2795 = vmatprep.subr.bf16.mxu0 0
        %2796 = vmatpush1.bf16.msra.mxu0 0
        %2797 = vmatprep.subr.bf16.mxu0 0
        %2798 = vmatpush1.bf16.msra.mxu0 0
        %2799 = vmatprep.subr.bf16.mxu0 0
        %2800 = vmatpush1.bf16.msra.mxu0 %v2734
        %2801 = vmatprep.subr.bf16.mxu0 0
        %2802 = vmatpush2.bf16.msra.mxu0 0
        %2803 = vmatprep.subr.bf16.mxu0 0
        %2804 = vmatpush2.bf16.msra.mxu0 0
        %2805 = vmatprep.subr.bf16.mxu0 0
        %2806 = vmatpush2.bf16.msra.mxu0 0
        %2807 = vmatprep.subr.bf16.mxu0 0
        %2808 = vmatpush2.bf16.msra.mxu0 0
        %2809 = vmatprep.subr.bf16.mxu0 0
        %2810 = vmatpush2.bf16.msra.mxu0 0
        %2811 = vmatprep.subr.bf16.mxu0 0
        %2812 = vmatpush2.bf16.msra.mxu0 0
        %2813 = vmatprep.subr.bf16.mxu0 0
        %2814 = vmatpush2.bf16.msra.mxu0 0
        %2815 = vmatprep.subr.bf16.mxu0 0
        %2816 = vmatpush2.bf16.msra.mxu0 0
        %2817 = vmatprep.mubr.bf16.mxu0 0
        %2818 = vmatmul.mubr.bf16.gmra.mxu0 %v2740
        %v2819 = vpop.f32.mrf.mxu0
        %v2820 = vadd.f32 0.0, %v2819
        %v2821 = vpop.f32.mrf.mxu0
        %v2822 = vpop.f32.mrf.mxu0
        %v2823 = vadd.f32 0.0, %v2822
        %v2824 = vpop.f32.mrf.mxu0
        %2825 = vdwg.mxu0
        %v2828 = vunpack.c.l.b16 %v2698
        %v2829 = vunpack.c.l.b16 %v2699
        %v2830 = vpack.c.b16 %v2829, %v2828
        %2831 = vrot.lane.b32.xlu0 %v2720, 19
        %v2832 = vpop.permute.xlu0 %2831
        %2833 = vrot.lane.b32.xlu0 %v2721, 19
        %v2834 = vpop.permute.xlu0 %2833
        %2835 = vrot.lane.b32.xlu0 %v2722, 19
        %v2836 = vpop.permute.xlu0 %2835
        %2837 = vrot.lane.b32.xlu0 %v2723, 19
        %v2838 = vpop.permute.xlu0 %2837
        %v2839 = vsel %vm760, %v2832, %v2834
        %v2840 = vsel %vm760, %v2834, %v2836
        %v2841 = vsel %vm760, %v2836, %v2838
        %v2846 = vsel %vm2738, %v2830, 0
        %2848 = vmatprep.subr.bf16.mxu0 0
        %2849 = vmatpush1.bf16.msra.mxu0 0
        %2850 = vmatprep.subr.bf16.mxu0 0
        %2851 = vmatpush1.bf16.msra.mxu0 0
        %2852 = vmatprep.subr.bf16.mxu0 0
        %2853 = vmatpush1.bf16.msra.mxu0 0
        %2854 = vmatprep.subr.bf16.mxu0 0
        %2855 = vmatpush1.bf16.msra.mxu0 0
        %2856 = vmatprep.subr.bf16.mxu0 0
        %2857 = vmatpush1.bf16.msra.mxu0 0
        %2858 = vmatprep.subr.bf16.mxu0 0
        %2859 = vmatpush1.bf16.msra.mxu0 0
        %2860 = vmatprep.subr.bf16.mxu0 0
        %2861 = vmatpush1.bf16.msra.mxu0 0
        %2862 = vmatprep.subr.bf16.mxu0 %v2840
        %2863 = vmatpush1.bf16.msra.mxu0 %v2839
        %2864 = vmatprep.subr.bf16.mxu0 0
        %2865 = vmatpush2.bf16.msra.mxu0 0
        %2866 = vmatprep.subr.bf16.mxu0 0
        %2867 = vmatpush2.bf16.msra.mxu0 0
        %2868 = vmatprep.subr.bf16.mxu0 0
        %2869 = vmatpush2.bf16.msra.mxu0 0
        %2870 = vmatprep.subr.bf16.mxu0 0
        %2871 = vmatpush2.bf16.msra.mxu0 0
        %2872 = vmatprep.subr.bf16.mxu0 0
        %2873 = vmatpush2.bf16.msra.mxu0 0
        %2874 = vmatprep.subr.bf16.mxu0 0
        %2875 = vmatpush2.bf16.msra.mxu0 0
        %2876 = vmatprep.subr.bf16.mxu0 0
        %2877 = vmatpush2.bf16.msra.mxu0 0
        %2878 = vmatprep.subr.bf16.mxu0 0
        %2879 = vmatpush2.bf16.msra.mxu0 0
        %2880 = vmatprep.mubr.bf16.mxu0 0
        %2881 = vmatmul.mubr.bf16.gmra.mxu0 %v2846
        %v2882 = vpop.f32.mrf.mxu0
        %v2883 = vadd.f32 %v2777, %v2882
        %v2884 = vpop.f32.mrf.mxu0
        %v2885 = vadd.f32 %v2779, %v2884
        %v2886 = vpop.f32.mrf.mxu0
        %v2887 = vadd.f32 %v2781, %v2886
        %v2888 = vpop.f32.mrf.mxu0
        %v2889 = vadd.f32 %v2783, %v2888
        %2890 = vdwg.mxu0
        %2891 = vmatprep.subr.bf16.mxu0 0
        %2892 = vmatpush1.bf16.msra.mxu0 0
        %2893 = vmatprep.subr.bf16.mxu0 0
        %2894 = vmatpush1.bf16.msra.mxu0 0
        %2895 = vmatprep.subr.bf16.mxu0 0
        %2896 = vmatpush1.bf16.msra.mxu0 0
        %2897 = vmatprep.subr.bf16.mxu0 0
        %2898 = vmatpush1.bf16.msra.mxu0 0
        %2899 = vmatprep.subr.bf16.mxu0 0
        %2900 = vmatpush1.bf16.msra.mxu0 0
        %2901 = vmatprep.subr.bf16.mxu0 0
        %2902 = vmatpush1.bf16.msra.mxu0 0
        %2903 = vmatprep.subr.bf16.mxu0 0
        %2904 = vmatpush1.bf16.msra.mxu0 0
        %2905 = vmatprep.subr.bf16.mxu0 0
        %2906 = vmatpush1.bf16.msra.mxu0 %v2841
        %2907 = vmatprep.subr.bf16.mxu0 0
        %2908 = vmatpush2.bf16.msra.mxu0 0
        %2909 = vmatprep.subr.bf16.mxu0 0
        %2910 = vmatpush2.bf16.msra.mxu0 0
        %2911 = vmatprep.subr.bf16.mxu0 0
        %2912 = vmatpush2.bf16.msra.mxu0 0
        %2913 = vmatprep.subr.bf16.mxu0 0
        %2914 = vmatpush2.bf16.msra.mxu0 0
        %2915 = vmatprep.subr.bf16.mxu0 0
        %2916 = vmatpush2.bf16.msra.mxu0 0
        %2917 = vmatprep.subr.bf16.mxu0 0
        %2918 = vmatpush2.bf16.msra.mxu0 0
        %2919 = vmatprep.subr.bf16.mxu0 0
        %2920 = vmatpush2.bf16.msra.mxu0 0
        %2921 = vmatprep.subr.bf16.mxu0 0
        %2922 = vmatpush2.bf16.msra.mxu0 0
        %2923 = vmatprep.mubr.bf16.mxu0 0
        %2924 = vmatmul.mubr.bf16.gmra.mxu0 %v2846
        %v2925 = vpop.f32.mrf.mxu0
        %v2926 = vadd.f32 %v2820, %v2925
        %v2927 = vpop.f32.mrf.mxu0
        %v2928 = vpop.f32.mrf.mxu0
        %v2929 = vadd.f32 %v2823, %v2928
        %v2930 = vpop.f32.mrf.mxu0
        %2931 = vdwg.mxu0
        %s2932 = scalar_lea.vmem %s6, 16
        %v2933 = vld [vmem:[%s2932] sm:$0xf]
        %v2934 = vld [vmem:[%s2932 + $0x4] sm:$0xf]
        %v2937 = vunpack.c.l.b16 %v2933
        %v2938 = vunpack.c.l.b16 %v2934
        %v2939 = vpack.c.b16 %v2938, %v2937
        %2940 = vrot.lane.b32.xlu0 %v2720, 17
        %v2941 = vpop.permute.xlu0 %2940
        %2942 = vrot.lane.b32.xlu0 %v2721, 17
        %v2943 = vpop.permute.xlu0 %2942
        %2944 = vrot.lane.b32.xlu0 %v2722, 17
        %v2945 = vpop.permute.xlu0 %2944
        %2946 = vrot.lane.b32.xlu0 %v2723, 17
        %v2947 = vpop.permute.xlu0 %2946
        %v2948 = vsel %vm867, %v2941, %v2943
        %v2949 = vsel %vm867, %v2943, %v2945
        %v2950 = vsel %vm867, %v2945, %v2947
        %v2955 = vsel %vm2738, %v2939, 0
        %2957 = vmatprep.subr.bf16.mxu0 0
        %2958 = vmatpush1.bf16.msra.mxu0 0
        %2959 = vmatprep.subr.bf16.mxu0 0
        %2960 = vmatpush1.bf16.msra.mxu0 0
        %2961 = vmatprep.subr.bf16.mxu0 0
        %2962 = vmatpush1.bf16.msra.mxu0 0
        %2963 = vmatprep.subr.bf16.mxu0 0
        %2964 = vmatpush1.bf16.msra.mxu0 0
        %2965 = vmatprep.subr.bf16.mxu0 0
        %2966 = vmatpush1.bf16.msra.mxu0 0
        %2967 = vmatprep.subr.bf16.mxu0 0
        %2968 = vmatpush1.bf16.msra.mxu0 0
        %2969 = vmatprep.subr.bf16.mxu0 0
        %2970 = vmatpush1.bf16.msra.mxu0 0
        %2971 = vmatprep.subr.bf16.mxu0 %v2949
        %2972 = vmatpush1.bf16.msra.mxu0 %v2948
        %2973 = vmatprep.subr.bf16.mxu0 0
        %2974 = vmatpush2.bf16.msra.mxu0 0
        %2975 = vmatprep.subr.bf16.mxu0 0
        %2976 = vmatpush2.bf16.msra.mxu0 0
        %2977 = vmatprep.subr.bf16.mxu0 0
        %2978 = vmatpush2.bf16.msra.mxu0 0
        %2979 = vmatprep.subr.bf16.mxu0 0
        %2980 = vmatpush2.bf16.msra.mxu0 0
        %2981 = vmatprep.subr.bf16.mxu0 0
        %2982 = vmatpush2.bf16.msra.mxu0 0
        %2983 = vmatprep.subr.bf16.mxu0 0
        %2984 = vmatpush2.bf16.msra.mxu0 0
        %2985 = vmatprep.subr.bf16.mxu0 0
        %2986 = vmatpush2.bf16.msra.mxu0 0
        %2987 = vmatprep.subr.bf16.mxu0 0
        %2988 = vmatpush2.bf16.msra.mxu0 0
        %2989 = vmatprep.mubr.bf16.mxu0 0
        %2990 = vmatmul.mubr.bf16.gmra.mxu0 %v2955
        %v2991 = vpop.f32.mrf.mxu0
        %v2992 = vadd.f32 0.0, %v2991
        %v2993 = vpop.f32.mrf.mxu0
        %v2994 = vadd.f32 0.0, %v2993
        %v2995 = vpop.f32.mrf.mxu0
        %v2996 = vadd.f32 0.0, %v2995
        %v2997 = vpop.f32.mrf.mxu0
        %v2998 = vadd.f32 0.0, %v2997
        %2999 = vdwg.mxu0
        %3000 = vmatprep.subr.bf16.mxu0 0
        %3001 = vmatpush1.bf16.msra.mxu0 0
        %3002 = vmatprep.subr.bf16.mxu0 0
        %3003 = vmatpush1.bf16.msra.mxu0 0
        %3004 = vmatprep.subr.bf16.mxu0 0
        %3005 = vmatpush1.bf16.msra.mxu0 0
        %3006 = vmatprep.subr.bf16.mxu0 0
        %3007 = vmatpush1.bf16.msra.mxu0 0
        %3008 = vmatprep.subr.bf16.mxu0 0
        %3009 = vmatpush1.bf16.msra.mxu0 0
        %3010 = vmatprep.subr.bf16.mxu0 0
        %3011 = vmatpush1.bf16.msra.mxu0 0
        %3012 = vmatprep.subr.bf16.mxu0 0
        %3013 = vmatpush1.bf16.msra.mxu0 0
        %3014 = vmatprep.subr.bf16.mxu0 0
        %3015 = vmatpush1.bf16.msra.mxu0 %v2950
        %3016 = vmatprep.subr.bf16.mxu0 0
        %3017 = vmatpush2.bf16.msra.mxu0 0
        %3018 = vmatprep.subr.bf16.mxu0 0
        %3019 = vmatpush2.bf16.msra.mxu0 0
        %3020 = vmatprep.subr.bf16.mxu0 0
        %3021 = vmatpush2.bf16.msra.mxu0 0
        %3022 = vmatprep.subr.bf16.mxu0 0
        %3023 = vmatpush2.bf16.msra.mxu0 0
        %3024 = vmatprep.subr.bf16.mxu0 0
        %3025 = vmatpush2.bf16.msra.mxu0 0
        %3026 = vmatprep.subr.bf16.mxu0 0
        %3027 = vmatpush2.bf16.msra.mxu0 0
        %3028 = vmatprep.subr.bf16.mxu0 0
        %3029 = vmatpush2.bf16.msra.mxu0 0
        %3030 = vmatprep.subr.bf16.mxu0 0
        %3031 = vmatpush2.bf16.msra.mxu0 0
        %3032 = vmatprep.mubr.bf16.mxu0 0
        %3033 = vmatmul.mubr.bf16.gmra.mxu0 %v2955
        %v3034 = vpop.f32.mrf.mxu0
        %v3035 = vadd.f32 0.0, %v3034
        %v3036 = vpop.f32.mrf.mxu0
        %v3037 = vpop.f32.mrf.mxu0
        %v3038 = vadd.f32 0.0, %v3037
        %v3039 = vpop.f32.mrf.mxu0
        %3040 = vdwg.mxu0
        %v3041 = vadd.f32 %v2883, %v2992
        %v3042 = vadd.f32 %v2885, %v2994
        %v3043 = vadd.f32 %v2926, %v3035
        %v3044 = vadd.f32 %v2887, %v2996
        %v3045 = vadd.f32 %v2889, %v2998
        %v3046 = vadd.f32 %v2929, %v3038
        %s3047 = scalar_lea.vmem %s6, 24
        %v3048 = vld [vmem:[%s3047] sm:$0xf]
        %v3049 = vld [vmem:[%s3047 + $0x4] sm:$0xf]
        %v3052 = vunpack.c.l.b16 %v3048
        %v3053 = vunpack.c.l.b16 %v3049
        %v3054 = vpack.c.b16 %v3053, %v3052
        %3055 = vrot.lane.b32.xlu0 %v2720, 1
        %v3056 = vpop.permute.xlu0 %3055
        %3057 = vrot.lane.b32.xlu0 %v2721, 1
        %v3058 = vpop.permute.xlu0 %3057
        %3059 = vrot.lane.b32.xlu0 %v2722, 1
        %v3060 = vpop.permute.xlu0 %3059
        %3061 = vrot.lane.b32.xlu0 %v2723, 1
        %v3062 = vpop.permute.xlu0 %3061
        %v3063 = vsel %vm977, %v3056, %v3058
        %v3064 = vsel %vm977, %v3058, %v3060
        %v3065 = vsel %vm977, %v3060, %v3062
        %v3070 = vsel %vm2738, %v3054, 0
        %3072 = vmatprep.subr.bf16.mxu0 0
        %3073 = vmatpush1.bf16.msra.mxu0 0
        %3074 = vmatprep.subr.bf16.mxu0 0
        %3075 = vmatpush1.bf16.msra.mxu0 0
        %3076 = vmatprep.subr.bf16.mxu0 0
        %3077 = vmatpush1.bf16.msra.mxu0 0
        %3078 = vmatprep.subr.bf16.mxu0 0
        %3079 = vmatpush1.bf16.msra.mxu0 0
        %3080 = vmatprep.subr.bf16.mxu0 0
        %3081 = vmatpush1.bf16.msra.mxu0 0
        %3082 = vmatprep.subr.bf16.mxu0 0
        %3083 = vmatpush1.bf16.msra.mxu0 0
        %3084 = vmatprep.subr.bf16.mxu0 0
        %3085 = vmatpush1.bf16.msra.mxu0 0
        %3086 = vmatprep.subr.bf16.mxu0 %v3064
        %3087 = vmatpush1.bf16.msra.mxu0 %v3063
        %3088 = vmatprep.subr.bf16.mxu0 0
        %3089 = vmatpush2.bf16.msra.mxu0 0
        %3090 = vmatprep.subr.bf16.mxu0 0
        %3091 = vmatpush2.bf16.msra.mxu0 0
        %3092 = vmatprep.subr.bf16.mxu0 0
        %3093 = vmatpush2.bf16.msra.mxu0 0
        %3094 = vmatprep.subr.bf16.mxu0 0
        %3095 = vmatpush2.bf16.msra.mxu0 0
        %3096 = vmatprep.subr.bf16.mxu0 0
        %3097 = vmatpush2.bf16.msra.mxu0 0
        %3098 = vmatprep.subr.bf16.mxu0 0
        %3099 = vmatpush2.bf16.msra.mxu0 0
        %3100 = vmatprep.subr.bf16.mxu0 0
        %3101 = vmatpush2.bf16.msra.mxu0 0
        %3102 = vmatprep.subr.bf16.mxu0 0
        %3103 = vmatpush2.bf16.msra.mxu0 0
        %3104 = vmatprep.mubr.bf16.mxu0 0
        %3105 = vmatmul.mubr.bf16.gmra.mxu0 %v3070
        %v3106 = vpop.f32.mrf.mxu0
        %v3107 = vadd.f32 0.0, %v3106
        %v3108 = vpop.f32.mrf.mxu0
        %v3109 = vadd.f32 0.0, %v3108
        %v3110 = vpop.f32.mrf.mxu0
        %v3111 = vadd.f32 0.0, %v3110
        %v3112 = vpop.f32.mrf.mxu0
        %v3113 = vadd.f32 0.0, %v3112
        %3114 = vdwg.mxu0
        %3115 = vmatprep.subr.bf16.mxu0 0
        %3116 = vmatpush1.bf16.msra.mxu0 0
        %3117 = vmatprep.subr.bf16.mxu0 0
        %3118 = vmatpush1.bf16.msra.mxu0 0
        %3119 = vmatprep.subr.bf16.mxu0 0
        %3120 = vmatpush1.bf16.msra.mxu0 0
        %3121 = vmatprep.subr.bf16.mxu0 0
        %3122 = vmatpush1.bf16.msra.mxu0 0
        %3123 = vmatprep.subr.bf16.mxu0 0
        %3124 = vmatpush1.bf16.msra.mxu0 0
        %3125 = vmatprep.subr.bf16.mxu0 0
        %3126 = vmatpush1.bf16.msra.mxu0 0
        %3127 = vmatprep.subr.bf16.mxu0 0
        %3128 = vmatpush1.bf16.msra.mxu0 0
        %3129 = vmatprep.subr.bf16.mxu0 0
        %3130 = vmatpush1.bf16.msra.mxu0 %v3065
        %3131 = vmatprep.subr.bf16.mxu0 0
        %3132 = vmatpush2.bf16.msra.mxu0 0
        %3133 = vmatprep.subr.bf16.mxu0 0
        %3134 = vmatpush2.bf16.msra.mxu0 0
        %3135 = vmatprep.subr.bf16.mxu0 0
        %3136 = vmatpush2.bf16.msra.mxu0 0
        %3137 = vmatprep.subr.bf16.mxu0 0
        %3138 = vmatpush2.bf16.msra.mxu0 0
        %3139 = vmatprep.subr.bf16.mxu0 0
        %3140 = vmatpush2.bf16.msra.mxu0 0
        %3141 = vmatprep.subr.bf16.mxu0 0
        %3142 = vmatpush2.bf16.msra.mxu0 0
        %3143 = vmatprep.subr.bf16.mxu0 0
        %3144 = vmatpush2.bf16.msra.mxu0 0
        %3145 = vmatprep.subr.bf16.mxu0 0
        %3146 = vmatpush2.bf16.msra.mxu0 0
        %3147 = vmatprep.mubr.bf16.mxu0 0
        %3148 = vmatmul.mubr.bf16.gmra.mxu0 %v3070
        %v3149 = vpop.f32.mrf.mxu0
        %v3150 = vadd.f32 0.0, %v3149
        %v3151 = vpop.f32.mrf.mxu0
        %v3152 = vpop.f32.mrf.mxu0
        %v3153 = vadd.f32 0.0, %v3152
        %v3154 = vpop.f32.mrf.mxu0
        %3155 = vdwg.mxu0
        %v3156 = vadd.f32 %v3041, %v3107
        %v3157 = vadd.f32 %v3042, %v3109
        %v3158 = vadd.f32 %v3043, %v3150
        %v3159 = vadd.f32 %v3044, %v3111
        %v3160 = vadd.f32 %v3045, %v3113
        %v3161 = vadd.f32 %v3046, %v3153
        %v3162 = vld [vmem:[#allocation2 + $0x4] sm:$0xff]
        %v3163 = vld [vmem:[#allocation2 + $0xc] sm:$0xf]
        %v3164 = vld [vmem:[#allocation2 + $0x14] sm:$0xff]
        %v3165 = vld [vmem:[#allocation2 + $0x1c] sm:$0xf]
        %s3166 = scalar_lea.vmem %s6, 32
        %v3167 = vld [vmem:[%s3166] sm:$0xf]
        %v3168 = vld [vmem:[%s3166 + $0x4] sm:$0xf]
        %v3171 = vunpack.c.l.b16 %v3167
        %v3172 = vunpack.c.l.b16 %v3168
        %v3173 = vpack.c.b16 %v3172, %v3171
        %v3178 = vunpack.c.l.b16 %v3162
        %v3179 = vunpack.c.h.b16 %v3162
        %v3180 = vunpack.c.l.b16 %v3163
        %v3181 = vunpack.c.l.b16 %v3164
        %v3182 = vunpack.c.h.b16 %v3164
        %v3183 = vunpack.c.l.b16 %v3165
        %v3184 = vpack.c.b16 %v3181, %v3178
        %v3185 = vpack.c.b16 %v3182, %v3179
        %v3186 = vpack.c.b16 %v3183, %v3180
        %v3191 = vsel %vm2738, %v3173, 0
        %3193 = vmatprep.subr.bf16.mxu0 0
        %3194 = vmatpush1.bf16.msra.mxu0 0
        %3195 = vmatprep.subr.bf16.mxu0 0
        %3196 = vmatpush1.bf16.msra.mxu0 0
        %3197 = vmatprep.subr.bf16.mxu0 0
        %3198 = vmatpush1.bf16.msra.mxu0 0
        %3199 = vmatprep.subr.bf16.mxu0 0
        %3200 = vmatpush1.bf16.msra.mxu0 0
        %3201 = vmatprep.subr.bf16.mxu0 0
        %3202 = vmatpush1.bf16.msra.mxu0 0
        %3203 = vmatprep.subr.bf16.mxu0 0
        %3204 = vmatpush1.bf16.msra.mxu0 0
        %3205 = vmatprep.subr.bf16.mxu0 0
        %3206 = vmatpush1.bf16.msra.mxu0 0
        %3207 = vmatprep.subr.bf16.mxu0 %v3185
        %3208 = vmatpush1.bf16.msra.mxu0 %v3184
        %3209 = vmatprep.subr.bf16.mxu0 0
        %3210 = vmatpush2.bf16.msra.mxu0 0
        %3211 = vmatprep.subr.bf16.mxu0 0
        %3212 = vmatpush2.bf16.msra.mxu0 0
        %3213 = vmatprep.subr.bf16.mxu0 0
        %3214 = vmatpush2.bf16.msra.mxu0 0
        %3215 = vmatprep.subr.bf16.mxu0 0
        %3216 = vmatpush2.bf16.msra.mxu0 0
        %3217 = vmatprep.subr.bf16.mxu0 0
        %3218 = vmatpush2.bf16.msra.mxu0 0
        %3219 = vmatprep.subr.bf16.mxu0 0
        %3220 = vmatpush2.bf16.msra.mxu0 0
        %3221 = vmatprep.subr.bf16.mxu0 0
        %3222 = vmatpush2.bf16.msra.mxu0 0
        %3223 = vmatprep.subr.bf16.mxu0 0
        %3224 = vmatpush2.bf16.msra.mxu0 0
        %3225 = vmatprep.mubr.bf16.mxu0 0
        %3226 = vmatmul.mubr.bf16.gmra.mxu0 %v3191
        %v3227 = vpop.f32.mrf.mxu0
        %v3228 = vadd.f32 0.0, %v3227
        %v3229 = vpop.f32.mrf.mxu0
        %v3230 = vadd.f32 0.0, %v3229
        %v3231 = vpop.f32.mrf.mxu0
        %v3232 = vadd.f32 0.0, %v3231
        %v3233 = vpop.f32.mrf.mxu0
        %v3234 = vadd.f32 0.0, %v3233
        %3235 = vdwg.mxu0
        %3236 = vmatprep.subr.bf16.mxu0 0
        %3237 = vmatpush1.bf16.msra.mxu0 0
        %3238 = vmatprep.subr.bf16.mxu0 0
        %3239 = vmatpush1.bf16.msra.mxu0 0
        %3240 = vmatprep.subr.bf16.mxu0 0
        %3241 = vmatpush1.bf16.msra.mxu0 0
        %3242 = vmatprep.subr.bf16.mxu0 0
        %3243 = vmatpush1.bf16.msra.mxu0 0
        %3244 = vmatprep.subr.bf16.mxu0 0
        %3245 = vmatpush1.bf16.msra.mxu0 0
        %3246 = vmatprep.subr.bf16.mxu0 0
        %3247 = vmatpush1.bf16.msra.mxu0 0
        %3248 = vmatprep.subr.bf16.mxu0 0
        %3249 = vmatpush1.bf16.msra.mxu0 0
        %3250 = vmatprep.subr.bf16.mxu0 0
        %3251 = vmatpush1.bf16.msra.mxu0 %v3186
        %3252 = vmatprep.subr.bf16.mxu0 0
        %3253 = vmatpush2.bf16.msra.mxu0 0
        %3254 = vmatprep.subr.bf16.mxu0 0
        %3255 = vmatpush2.bf16.msra.mxu0 0
        %3256 = vmatprep.subr.bf16.mxu0 0
        %3257 = vmatpush2.bf16.msra.mxu0 0
        %3258 = vmatprep.subr.bf16.mxu0 0
        %3259 = vmatpush2.bf16.msra.mxu0 0
        %3260 = vmatprep.subr.bf16.mxu0 0
        %3261 = vmatpush2.bf16.msra.mxu0 0
        %3262 = vmatprep.subr.bf16.mxu0 0
        %3263 = vmatpush2.bf16.msra.mxu0 0
        %3264 = vmatprep.subr.bf16.mxu0 0
        %3265 = vmatpush2.bf16.msra.mxu0 0
        %3266 = vmatprep.subr.bf16.mxu0 0
        %3267 = vmatpush2.bf16.msra.mxu0 0
        %3268 = vmatprep.mubr.bf16.mxu0 0
        %3269 = vmatmul.mubr.bf16.gmra.mxu0 %v3191
        %v3270 = vpop.f32.mrf.mxu0
        %v3271 = vadd.f32 0.0, %v3270
        %v3272 = vpop.f32.mrf.mxu0
        %v3273 = vpop.f32.mrf.mxu0
        %v3274 = vadd.f32 0.0, %v3273
        %v3275 = vpop.f32.mrf.mxu0
        %3276 = vdwg.mxu0
        %v3277 = vadd.f32 %v3156, %v3228
        %v3278 = vadd.f32 %v3157, %v3230
        %v3279 = vadd.f32 %v3158, %v3271
        %v3280 = vadd.f32 %v3159, %v3232
        %v3281 = vadd.f32 %v3160, %v3234
        %v3282 = vadd.f32 %v3161, %v3274
        %s3283 = scalar_lea.vmem %s6, 40
        %v3284 = vld [vmem:[%s3283] sm:$0xf]
        %v3285 = vld [vmem:[%s3283 + $0x4] sm:$0xf]
        %v3288 = vunpack.c.l.b16 %v3284
        %v3289 = vunpack.c.l.b16 %v3285
        %v3290 = vpack.c.b16 %v3289, %v3288
        %3291 = vrot.lane.b32.xlu0 %v3184, 127
        %v3292 = vpop.permute.xlu0 %3291
        %3293 = vrot.lane.b32.xlu0 %v3185, 127
        %v3294 = vpop.permute.xlu0 %3293
        %3295 = vrot.lane.b32.xlu0 %v3186, 127
        %v3296 = vpop.permute.xlu0 %3295
        %v3297 = vsel %vm1193, %v3292, %v3294
        %v3298 = vsel %vm1193, %v3294, %v3296
        %v3303 = vsel %vm2738, %v3290, 0
        %3305 = vmatprep.subr.bf16.mxu0 0
        %3306 = vmatpush1.bf16.msra.mxu0 0
        %3307 = vmatprep.subr.bf16.mxu0 0
        %3308 = vmatpush1.bf16.msra.mxu0 0
        %3309 = vmatprep.subr.bf16.mxu0 0
        %3310 = vmatpush1.bf16.msra.mxu0 0
        %3311 = vmatprep.subr.bf16.mxu0 0
        %3312 = vmatpush1.bf16.msra.mxu0 0
        %3313 = vmatprep.subr.bf16.mxu0 0
        %3314 = vmatpush1.bf16.msra.mxu0 0
        %3315 = vmatprep.subr.bf16.mxu0 0
        %3316 = vmatpush1.bf16.msra.mxu0 0
        %3317 = vmatprep.subr.bf16.mxu0 0
        %3318 = vmatpush1.bf16.msra.mxu0 0
        %3319 = vmatprep.subr.bf16.mxu0 %v3298
        %3320 = vmatpush1.bf16.msra.mxu0 %v3297
        %3321 = vmatprep.subr.bf16.mxu0 0
        %3322 = vmatpush2.bf16.msra.mxu0 0
        %3323 = vmatprep.subr.bf16.mxu0 0
        %3324 = vmatpush2.bf16.msra.mxu0 0
        %3325 = vmatprep.subr.bf16.mxu0 0
        %3326 = vmatpush2.bf16.msra.mxu0 0
        %3327 = vmatprep.subr.bf16.mxu0 0
        %3328 = vmatpush2.bf16.msra.mxu0 0
        %3329 = vmatprep.subr.bf16.mxu0 0
        %3330 = vmatpush2.bf16.msra.mxu0 0
        %3331 = vmatprep.subr.bf16.mxu0 0
        %3332 = vmatpush2.bf16.msra.mxu0 0
        %3333 = vmatprep.subr.bf16.mxu0 0
        %3334 = vmatpush2.bf16.msra.mxu0 0
        %3335 = vmatprep.subr.bf16.mxu0 0
        %3336 = vmatpush2.bf16.msra.mxu0 0
        %3337 = vmatprep.mubr.bf16.mxu0 0
        %3338 = vmatmul.mubr.bf16.gmra.mxu0 %v3303
        %v3339 = vpop.f32.mrf.mxu0
        %v3340 = vadd.f32 0.0, %v3339
        %v3341 = vpop.f32.mrf.mxu0
        %v3342 = vadd.f32 0.0, %v3341
        %v3343 = vpop.f32.mrf.mxu0
        %v3344 = vadd.f32 0.0, %v3343
        %v3345 = vpop.f32.mrf.mxu0
        %v3346 = vadd.f32 0.0, %v3345
        %3347 = vdwg.mxu0
        %3348 = vmatprep.subr.bf16.mxu0 0
        %3349 = vmatpush1.bf16.msra.mxu0 0
        %3350 = vmatprep.subr.bf16.mxu0 0
        %3351 = vmatpush1.bf16.msra.mxu0 0
        %3352 = vmatprep.subr.bf16.mxu0 0
        %3353 = vmatpush1.bf16.msra.mxu0 0
        %3354 = vmatprep.subr.bf16.mxu0 0
        %3355 = vmatpush1.bf16.msra.mxu0 0
        %3356 = vmatprep.subr.bf16.mxu0 0
        %3357 = vmatpush1.bf16.msra.mxu0 0
        %3358 = vmatprep.subr.bf16.mxu0 0
        %3359 = vmatpush1.bf16.msra.mxu0 0
        %3360 = vmatprep.subr.bf16.mxu0 0
        %3361 = vmatpush1.bf16.msra.mxu0 0
        %3362 = vmatprep.subr.bf16.mxu0 0
        %3363 = vmatpush1.bf16.msra.mxu0 %v3296
        %3364 = vmatprep.subr.bf16.mxu0 0
        %3365 = vmatpush2.bf16.msra.mxu0 0
        %3366 = vmatprep.subr.bf16.mxu0 0
        %3367 = vmatpush2.bf16.msra.mxu0 0
        %3368 = vmatprep.subr.bf16.mxu0 0
        %3369 = vmatpush2.bf16.msra.mxu0 0
        %3370 = vmatprep.subr.bf16.mxu0 0
        %3371 = vmatpush2.bf16.msra.mxu0 0
        %3372 = vmatprep.subr.bf16.mxu0 0
        %3373 = vmatpush2.bf16.msra.mxu0 0
        %3374 = vmatprep.subr.bf16.mxu0 0
        %3375 = vmatpush2.bf16.msra.mxu0 0
        %3376 = vmatprep.subr.bf16.mxu0 0
        %3377 = vmatpush2.bf16.msra.mxu0 0
        %3378 = vmatprep.subr.bf16.mxu0 0
        %3379 = vmatpush2.bf16.msra.mxu0 0
        %3380 = vmatprep.mubr.bf16.mxu0 0
        %3381 = vmatmul.mubr.bf16.gmra.mxu0 %v3303
        %v3382 = vpop.f32.mrf.mxu0
        %v3383 = vadd.f32 0.0, %v3382
        %v3384 = vpop.f32.mrf.mxu0
        %v3385 = vpop.f32.mrf.mxu0
        %v3386 = vadd.f32 0.0, %v3385
        %v3387 = vpop.f32.mrf.mxu0
        %3388 = vdwg.mxu0
        %v3389 = vadd.f32 %v3277, %v3340
        %v3390 = vadd.f32 %v3278, %v3342
        %v3391 = vadd.f32 %v3279, %v3383
        %v3392 = vadd.f32 %v3280, %v3344
        %v3393 = vadd.f32 %v3281, %v3346
        %v3394 = vadd.f32 %v3282, %v3386
        %s3395 = scalar_lea.vmem %s6, 48
        %v3396 = vld [vmem:[%s3395] sm:$0xf]
        %v3397 = vld [vmem:[%s3395 + $0x4] sm:$0xf]
        %v3400 = vunpack.c.l.b16 %v3396
        %v3401 = vunpack.c.l.b16 %v3397
        %v3402 = vpack.c.b16 %v3401, %v3400
        %3403 = vrot.lane.b32.xlu0 %v3184, 111
        %v3404 = vpop.permute.xlu0 %3403
        %3405 = vrot.lane.b32.xlu0 %v3185, 111
        %v3406 = vpop.permute.xlu0 %3405
        %3407 = vrot.lane.b32.xlu0 %v3186, 111
        %v3408 = vpop.permute.xlu0 %3407
        %v3409 = vsel %vm1300, %v3404, %v3406
        %v3410 = vsel %vm1300, %v3406, %v3408
        %v3415 = vsel %vm2738, %v3402, 0
        %3417 = vmatprep.subr.bf16.mxu0 0
        %3418 = vmatpush1.bf16.msra.mxu0 0
        %3419 = vmatprep.subr.bf16.mxu0 0
        %3420 = vmatpush1.bf16.msra.mxu0 0
        %3421 = vmatprep.subr.bf16.mxu0 0
        %3422 = vmatpush1.bf16.msra.mxu0 0
        %3423 = vmatprep.subr.bf16.mxu0 0
        %3424 = vmatpush1.bf16.msra.mxu0 0
        %3425 = vmatprep.subr.bf16.mxu0 0
        %3426 = vmatpush1.bf16.msra.mxu0 0
        %3427 = vmatprep.subr.bf16.mxu0 0
        %3428 = vmatpush1.bf16.msra.mxu0 0
        %3429 = vmatprep.subr.bf16.mxu0 0
        %3430 = vmatpush1.bf16.msra.mxu0 0
        %3431 = vmatprep.subr.bf16.mxu0 %v3410
        %3432 = vmatpush1.bf16.msra.mxu0 %v3409
        %3433 = vmatprep.subr.bf16.mxu0 0
        %3434 = vmatpush2.bf16.msra.mxu0 0
        %3435 = vmatprep.subr.bf16.mxu0 0
        %3436 = vmatpush2.bf16.msra.mxu0 0
        %3437 = vmatprep.subr.bf16.mxu0 0
        %3438 = vmatpush2.bf16.msra.mxu0 0
        %3439 = vmatprep.subr.bf16.mxu0 0
        %3440 = vmatpush2.bf16.msra.mxu0 0
        %3441 = vmatprep.subr.bf16.mxu0 0
        %3442 = vmatpush2.bf16.msra.mxu0 0
        %3443 = vmatprep.subr.bf16.mxu0 0
        %3444 = vmatpush2.bf16.msra.mxu0 0
        %3445 = vmatprep.subr.bf16.mxu0 0
        %3446 = vmatpush2.bf16.msra.mxu0 0
        %3447 = vmatprep.subr.bf16.mxu0 0
        %3448 = vmatpush2.bf16.msra.mxu0 0
        %3449 = vmatprep.mubr.bf16.mxu0 0
        %3450 = vmatmul.mubr.bf16.gmra.mxu0 %v3415
        %v3451 = vpop.f32.mrf.mxu0
        %v3452 = vadd.f32 0.0, %v3451
        %v3453 = vpop.f32.mrf.mxu0
        %v3454 = vadd.f32 0.0, %v3453
        %v3455 = vpop.f32.mrf.mxu0
        %v3456 = vadd.f32 0.0, %v3455
        %v3457 = vpop.f32.mrf.mxu0
        %v3458 = vadd.f32 0.0, %v3457
        %3459 = vdwg.mxu0
        %3460 = vmatprep.subr.bf16.mxu0 0
        %3461 = vmatpush1.bf16.msra.mxu0 0
        %3462 = vmatprep.subr.bf16.mxu0 0
        %3463 = vmatpush1.bf16.msra.mxu0 0
        %3464 = vmatprep.subr.bf16.mxu0 0
        %3465 = vmatpush1.bf16.msra.mxu0 0
        %3466 = vmatprep.subr.bf16.mxu0 0
        %3467 = vmatpush1.bf16.msra.mxu0 0
        %3468 = vmatprep.subr.bf16.mxu0 0
        %3469 = vmatpush1.bf16.msra.mxu0 0
        %3470 = vmatprep.subr.bf16.mxu0 0
        %3471 = vmatpush1.bf16.msra.mxu0 0
        %3472 = vmatprep.subr.bf16.mxu0 0
        %3473 = vmatpush1.bf16.msra.mxu0 0
        %3474 = vmatprep.subr.bf16.mxu0 0
        %3475 = vmatpush1.bf16.msra.mxu0 %v3408
        %3476 = vmatprep.subr.bf16.mxu0 0
        %3477 = vmatpush2.bf16.msra.mxu0 0
        %3478 = vmatprep.subr.bf16.mxu0 0
        %3479 = vmatpush2.bf16.msra.mxu0 0
        %3480 = vmatprep.subr.bf16.mxu0 0
        %3481 = vmatpush2.bf16.msra.mxu0 0
        %3482 = vmatprep.subr.bf16.mxu0 0
        %3483 = vmatpush2.bf16.msra.mxu0 0
        %3484 = vmatprep.subr.bf16.mxu0 0
        %3485 = vmatpush2.bf16.msra.mxu0 0
        %3486 = vmatprep.subr.bf16.mxu0 0
        %3487 = vmatpush2.bf16.msra.mxu0 0
        %3488 = vmatprep.subr.bf16.mxu0 0
        %3489 = vmatpush2.bf16.msra.mxu0 0
        %3490 = vmatprep.subr.bf16.mxu0 0
        %3491 = vmatpush2.bf16.msra.mxu0 0
        %3492 = vmatprep.mubr.bf16.mxu0 0
        %3493 = vmatmul.mubr.bf16.gmra.mxu0 %v3415
        %v3494 = vpop.f32.mrf.mxu0
        %v3495 = vadd.f32 0.0, %v3494
        %v3496 = vpop.f32.mrf.mxu0
        %v3497 = vpop.f32.mrf.mxu0
        %v3498 = vadd.f32 0.0, %v3497
        %v3499 = vpop.f32.mrf.mxu0
        %3500 = vdwg.mxu0
        %v3501 = vadd.f32 %v3389, %v3452
        %v3502 = vadd.f32 %v3390, %v3454
        %v3503 = vadd.f32 %v3391, %v3495
        %v3504 = vadd.f32 %v3392, %v3456
        %v3505 = vadd.f32 %v3393, %v3458
        %v3506 = vadd.f32 %v3394, %v3498
        %s3507 = scalar_lea.vmem %s6, 56
        %v3508 = vld [vmem:[%s3507] sm:$0xf]
        %v3509 = vld [vmem:[%s3507 + $0x4] sm:$0xf]
        %v3512 = vunpack.c.l.b16 %v3508
        %v3513 = vunpack.c.l.b16 %v3509
        %v3514 = vpack.c.b16 %v3513, %v3512
        %3515 = vrot.lane.b32.xlu0 %v3184, 110
        %v3516 = vpop.permute.xlu0 %3515
        %3517 = vrot.lane.b32.xlu0 %v3185, 110
        %v3518 = vpop.permute.xlu0 %3517
        %3519 = vrot.lane.b32.xlu0 %v3186, 110
        %v3520 = vpop.permute.xlu0 %3519
        %v3521 = vsel %vm1407, %v3516, %v3518
        %v3522 = vsel %vm1407, %v3518, %v3520
        %v3527 = vsel %vm2738, %v3514, 0
        %3529 = vmatprep.subr.bf16.mxu0 0
        %3530 = vmatpush1.bf16.msra.mxu0 0
        %3531 = vmatprep.subr.bf16.mxu0 0
        %3532 = vmatpush1.bf16.msra.mxu0 0
        %3533 = vmatprep.subr.bf16.mxu0 0
        %3534 = vmatpush1.bf16.msra.mxu0 0
        %3535 = vmatprep.subr.bf16.mxu0 0
        %3536 = vmatpush1.bf16.msra.mxu0 0
        %3537 = vmatprep.subr.bf16.mxu0 0
        %3538 = vmatpush1.bf16.msra.mxu0 0
        %3539 = vmatprep.subr.bf16.mxu0 0
        %3540 = vmatpush1.bf16.msra.mxu0 0
        %3541 = vmatprep.subr.bf16.mxu0 0
        %3542 = vmatpush1.bf16.msra.mxu0 0
        %3543 = vmatprep.subr.bf16.mxu0 %v3522
        %3544 = vmatpush1.bf16.msra.mxu0 %v3521
        %3545 = vmatprep.subr.bf16.mxu0 0
        %3546 = vmatpush2.bf16.msra.mxu0 0
        %3547 = vmatprep.subr.bf16.mxu0 0
        %3548 = vmatpush2.bf16.msra.mxu0 0
        %3549 = vmatprep.subr.bf16.mxu0 0
        %3550 = vmatpush2.bf16.msra.mxu0 0
        %3551 = vmatprep.subr.bf16.mxu0 0
        %3552 = vmatpush2.bf16.msra.mxu0 0
        %3553 = vmatprep.subr.bf16.mxu0 0
        %3554 = vmatpush2.bf16.msra.mxu0 0
        %3555 = vmatprep.subr.bf16.mxu0 0
        %3556 = vmatpush2.bf16.msra.mxu0 0
        %3557 = vmatprep.subr.bf16.mxu0 0
        %3558 = vmatpush2.bf16.msra.mxu0 0
        %3559 = vmatprep.subr.bf16.mxu0 0
        %3560 = vmatpush2.bf16.msra.mxu0 0
        %3561 = vmatprep.mubr.bf16.mxu0 0
        %3562 = vmatmul.mubr.bf16.gmra.mxu0 %v3527
        %v3563 = vpop.f32.mrf.mxu0
        %v3564 = vadd.f32 0.0, %v3563
        %v3565 = vpop.f32.mrf.mxu0
        %v3566 = vadd.f32 0.0, %v3565
        %v3567 = vpop.f32.mrf.mxu0
        %v3568 = vadd.f32 0.0, %v3567
        %v3569 = vpop.f32.mrf.mxu0
        %v3570 = vadd.f32 0.0, %v3569
        %3571 = vdwg.mxu0
        %3572 = vmatprep.subr.bf16.mxu0 0
        %3573 = vmatpush1.bf16.msra.mxu0 0
        %3574 = vmatprep.subr.bf16.mxu0 0
        %3575 = vmatpush1.bf16.msra.mxu0 0
        %3576 = vmatprep.subr.bf16.mxu0 0
        %3577 = vmatpush1.bf16.msra.mxu0 0
        %3578 = vmatprep.subr.bf16.mxu0 0
        %3579 = vmatpush1.bf16.msra.mxu0 0
        %3580 = vmatprep.subr.bf16.mxu0 0
        %3581 = vmatpush1.bf16.msra.mxu0 0
        %3582 = vmatprep.subr.bf16.mxu0 0
        %3583 = vmatpush1.bf16.msra.mxu0 0
        %3584 = vmatprep.subr.bf16.mxu0 0
        %3585 = vmatpush1.bf16.msra.mxu0 0
        %3586 = vmatprep.subr.bf16.mxu0 0
        %3587 = vmatpush1.bf16.msra.mxu0 %v3520
        %3588 = vmatprep.subr.bf16.mxu0 0
        %3589 = vmatpush2.bf16.msra.mxu0 0
        %3590 = vmatprep.subr.bf16.mxu0 0
        %3591 = vmatpush2.bf16.msra.mxu0 0
        %3592 = vmatprep.subr.bf16.mxu0 0
        %3593 = vmatpush2.bf16.msra.mxu0 0
        %3594 = vmatprep.subr.bf16.mxu0 0
        %3595 = vmatpush2.bf16.msra.mxu0 0
        %3596 = vmatprep.subr.bf16.mxu0 0
        %3597 = vmatpush2.bf16.msra.mxu0 0
        %3598 = vmatprep.subr.bf16.mxu0 0
        %3599 = vmatpush2.bf16.msra.mxu0 0
        %3600 = vmatprep.subr.bf16.mxu0 0
        %3601 = vmatpush2.bf16.msra.mxu0 0
        %3602 = vmatprep.subr.bf16.mxu0 0
        %3603 = vmatpush2.bf16.msra.mxu0 0
        %3604 = vmatprep.mubr.bf16.mxu0 0
        %3605 = vmatmul.mubr.bf16.gmra.mxu0 %v3527
        %v3606 = vpop.f32.mrf.mxu0
        %v3607 = vadd.f32 0.0, %v3606
        %v3608 = vpop.f32.mrf.mxu0
        %v3609 = vpop.f32.mrf.mxu0
        %v3610 = vadd.f32 0.0, %v3609
        %v3611 = vpop.f32.mrf.mxu0
        %3612 = vdwg.mxu0
        %v3613 = vadd.f32 %v3501, %v3564
        %v3614 = vadd.f32 %v3502, %v3566
        %v3615 = vadd.f32 %v3503, %v3607
        %v3616 = vadd.f32 %v3504, %v3568
        %v3617 = vadd.f32 %v3505, %v3570
        %v3618 = vadd.f32 %v3506, %v3610
        %s3619 = scalar_lea.vmem %s6, 64
        %v3620 = vld [vmem:[%s3619] sm:$0xf]
        %v3621 = vld [vmem:[%s3619 + $0x4] sm:$0xf]
        %v3624 = vunpack.c.l.b16 %v3620
        %v3625 = vunpack.c.l.b16 %v3621
        %v3626 = vpack.c.b16 %v3625, %v3624
        %3627 = vrot.lane.b32.xlu0 %v3184, 109
        %v3628 = vpop.permute.xlu0 %3627
        %3629 = vrot.lane.b32.xlu0 %v3185, 109
        %v3630 = vpop.permute.xlu0 %3629
        %3631 = vrot.lane.b32.xlu0 %v3186, 109
        %v3632 = vpop.permute.xlu0 %3631
        %v3633 = vsel %vm1514, %v3628, %v3630
        %v3634 = vsel %vm1514, %v3630, %v3632
        %v3639 = vsel %vm2738, %v3626, 0
        %3641 = vmatprep.subr.bf16.mxu0 0
        %3642 = vmatpush1.bf16.msra.mxu0 0
        %3643 = vmatprep.subr.bf16.mxu0 0
        %3644 = vmatpush1.bf16.msra.mxu0 0
        %3645 = vmatprep.subr.bf16.mxu0 0
        %3646 = vmatpush1.bf16.msra.mxu0 0
        %3647 = vmatprep.subr.bf16.mxu0 0
        %3648 = vmatpush1.bf16.msra.mxu0 0
        %3649 = vmatprep.subr.bf16.mxu0 0
        %3650 = vmatpush1.bf16.msra.mxu0 0
        %3651 = vmatprep.subr.bf16.mxu0 0
        %3652 = vmatpush1.bf16.msra.mxu0 0
        %3653 = vmatprep.subr.bf16.mxu0 0
        %3654 = vmatpush1.bf16.msra.mxu0 0
        %3655 = vmatprep.subr.bf16.mxu0 %v3634
        %3656 = vmatpush1.bf16.msra.mxu0 %v3633
        %3657 = vmatprep.subr.bf16.mxu0 0
        %3658 = vmatpush2.bf16.msra.mxu0 0
        %3659 = vmatprep.subr.bf16.mxu0 0
        %3660 = vmatpush2.bf16.msra.mxu0 0
        %3661 = vmatprep.subr.bf16.mxu0 0
        %3662 = vmatpush2.bf16.msra.mxu0 0
        %3663 = vmatprep.subr.bf16.mxu0 0
        %3664 = vmatpush2.bf16.msra.mxu0 0
        %3665 = vmatprep.subr.bf16.mxu0 0
        %3666 = vmatpush2.bf16.msra.mxu0 0
        %3667 = vmatprep.subr.bf16.mxu0 0
        %3668 = vmatpush2.bf16.msra.mxu0 0
        %3669 = vmatprep.subr.bf16.mxu0 0
        %3670 = vmatpush2.bf16.msra.mxu0 0
        %3671 = vmatprep.subr.bf16.mxu0 0
        %3672 = vmatpush2.bf16.msra.mxu0 0
        %3673 = vmatprep.mubr.bf16.mxu0 0
        %3674 = vmatmul.mubr.bf16.gmra.mxu0 %v3639
        %v3675 = vpop.f32.mrf.mxu0
        %v3676 = vadd.f32 0.0, %v3675
        %v3677 = vpop.f32.mrf.mxu0
        %v3678 = vadd.f32 0.0, %v3677
        %v3679 = vpop.f32.mrf.mxu0
        %v3680 = vadd.f32 0.0, %v3679
        %v3681 = vpop.f32.mrf.mxu0
        %v3682 = vadd.f32 0.0, %v3681
        %3683 = vdwg.mxu0
        %3684 = vmatprep.subr.bf16.mxu0 0
        %3685 = vmatpush1.bf16.msra.mxu0 0
        %3686 = vmatprep.subr.bf16.mxu0 0
        %3687 = vmatpush1.bf16.msra.mxu0 0
        %3688 = vmatprep.subr.bf16.mxu0 0
        %3689 = vmatpush1.bf16.msra.mxu0 0
        %3690 = vmatprep.subr.bf16.mxu0 0
        %3691 = vmatpush1.bf16.msra.mxu0 0
        %3692 = vmatprep.subr.bf16.mxu0 0
        %3693 = vmatpush1.bf16.msra.mxu0 0
        %3694 = vmatprep.subr.bf16.mxu0 0
        %3695 = vmatpush1.bf16.msra.mxu0 0
        %3696 = vmatprep.subr.bf16.mxu0 0
        %3697 = vmatpush1.bf16.msra.mxu0 0
        %3698 = vmatprep.subr.bf16.mxu0 0
        %3699 = vmatpush1.bf16.msra.mxu0 %v3632
        %3700 = vmatprep.subr.bf16.mxu0 0
        %3701 = vmatpush2.bf16.msra.mxu0 0
        %3702 = vmatprep.subr.bf16.mxu0 0
        %3703 = vmatpush2.bf16.msra.mxu0 0
        %3704 = vmatprep.subr.bf16.mxu0 0
        %3705 = vmatpush2.bf16.msra.mxu0 0
        %3706 = vmatprep.subr.bf16.mxu0 0
        %3707 = vmatpush2.bf16.msra.mxu0 0
        %3708 = vmatprep.subr.bf16.mxu0 0
        %3709 = vmatpush2.bf16.msra.mxu0 0
        %3710 = vmatprep.subr.bf16.mxu0 0
        %3711 = vmatpush2.bf16.msra.mxu0 0
        %3712 = vmatprep.subr.bf16.mxu0 0
        %3713 = vmatpush2.bf16.msra.mxu0 0
        %3714 = vmatprep.subr.bf16.mxu0 0
        %3715 = vmatpush2.bf16.msra.mxu0 0
        %3716 = vmatprep.mubr.bf16.mxu0 0
        %3717 = vmatmul.mubr.bf16.gmra.mxu0 %v3639
        %v3718 = vpop.f32.mrf.mxu0
        %v3719 = vadd.f32 0.0, %v3718
        %v3720 = vpop.f32.mrf.mxu0
        %v3721 = vpop.f32.mrf.mxu0
        %v3722 = vadd.f32 0.0, %v3721
        %v3723 = vpop.f32.mrf.mxu0
        %3724 = vdwg.mxu0
        %v3725 = vadd.f32 %v3613, %v3676
        %v3726 = vadd.f32 %v3614, %v3678
        %v3727 = vadd.f32 %v3615, %v3719
        %v3728 = vadd.f32 %v3616, %v3680
        %v3729 = vadd.f32 %v3617, %v3682
        %v3730 = vadd.f32 %v3618, %v3722
        %v3731 = vld [vmem:[%s7] sm:$0xff]
        %v3732 = vld [vmem:[%s7 + $0x8] sm:$0xff]
        %3734 = vset.pattern.permute.xlu0 0
        %3735 = vperm.xlu0 %3734, %v3731
        %v3736 = vpop.permute.xlu0 %3735
        %3739 = vset.pattern.permute.xlu0 0
        %3740 = vperm.xlu0 %3739, %v3732
        %v3741 = vpop.permute.xlu0 %3740
        %v3743 = vmul.f32 %v3725, %v3736
        %v3744 = vmul.f32 %v3726, %v3736
        %v3745 = vmul.f32 %v3727, %v3736
        %v3746 = vmul.f32 %v3728, %v3741
        %v3747 = vmul.f32 %v3729, %v3741
        %v3748 = vmul.f32 %v3730, %v3741
        %v3749 = vld [vmem:[%s8] sm:$0xff]
        %v3750 = vld [vmem:[%s8 + $0x8] sm:$0xff]
        %3752 = vset.pattern.permute.xlu0 0
        %3753 = vperm.xlu0 %3752, %v3749
        %v3754 = vpop.permute.xlu0 %3753
        %3757 = vset.pattern.permute.xlu0 0
        %3758 = vperm.xlu0 %3757, %v3750
        %v3759 = vpop.permute.xlu0 %3758
        %v3761 = vadd.f32 %v3743, %v3754
        %v3762 = vadd.f32 %v3744, %v3754
        %v3763 = vadd.f32 %v3745, %v3754
        %v3764 = vadd.f32 %v3746, %v3759
        %v3765 = vadd.f32 %v3747, %v3759
        %v3766 = vadd.f32 %v3748, %v3759
        %v3767 = vmax.f32 %v3761, 0.0
        %v3768 = vmax.f32 %v3762, 0.0
        %v3769 = vmax.f32 %v3763, 0.0
        %v3770 = vmax.f32 %v3764, 0.0
        %v3771 = vmax.f32 %v3765, 0.0
        %v3772 = vmax.f32 %v3766, 0.0
        %v3773 = vsel %vm1647, %v3767, 0.0
        %v3774 = vsel %vm1648, %v3768, 0.0
        %v3775 = vsel %vm1649, %v3769, 0.0
        %v3776 = vsel %vm1647, %v3770, 0.0
        %v3777 = vsel %vm1648, %v3771, 0.0
        %v3778 = vsel %vm1649, %v3772, 0.0
        %v3779 = vpack.c.bf16 %v3776, %v3773
        %v3780 = vpack.c.bf16 %v3777, %v3774
        %v3781 = vpack.c.bf16 %v3778, %v3775
        %v3785 = vunpack.c.l.b16 %v3779
        %v3786 = vunpack.c.l.b16 %v3780
        %v3787 = vunpack.c.l.b16 %v3781
        %v3788 = vunpack.c.h.b16 %v3779
        %v3789 = vunpack.c.h.b16 %v3780
        %v3790 = vunpack.c.h.b16 %v3781
        %v3791 = vpack.c.b16 %v3786, %v3785
        %v3792 = vpack.c.b16 %v3787, %v3787
        %v3793 = vpack.c.b16 %v3789, %v3788
        %v3794 = vpack.c.b16 %v3790, %v3790
        %3799 = vst [vmem:[#allocation2 + $0x4] sm:$0xff] %v3791
        %3800 = vst.msk [vmem:[#allocation2 + $0xc] sm:$0xf] %vm2680, %v3792
        %3801 = vst [vmem:[#allocation2 + $0x14] sm:$0xff] %v3793
        %3802 = vst.msk [vmem:[#allocation2 + $0x1c] sm:$0xf] %vm2680, %v3794
        %v3803 = vld [vmem:[#allocation2] sm:$0xff]
        %v3804 = vld [vmem:[#allocation2 + $0x8] sm:$0xff]
        %v3805 = vld [vmem:[#allocation2 + $0x10] sm:$0xff]
        %v3806 = vld [vmem:[#allocation2 + $0x18] sm:$0xff]
        %v3807 = vld [vmem:[%s9] sm:$0xf]
        %v3808 = vld [vmem:[%s9 + $0x4] sm:$0xf]
        %s3809 = scalar_lea.vmem %s9, 8
        %v3810 = vld [vmem:[%s3809] sm:$0xf]
        %v3811 = vld [vmem:[%s3809 + $0x4] sm:$0xf]
        %v3814 = vunpack.c.l.b16 %v3810
        %v3815 = vunpack.c.l.b16 %v3811
        %v3816 = vpack.c.b16 %v3815, %v3814
        %v3821 = vunpack.c.l.b16 %v3803
        %v3822 = vunpack.c.h.b16 %v3803
        %v3823 = vunpack.c.l.b16 %v3804
        %v3824 = vunpack.c.h.b16 %v3804
        %v3825 = vunpack.c.l.b16 %v3805
        %v3826 = vunpack.c.h.b16 %v3805
        %v3827 = vunpack.c.l.b16 %v3806
        %v3828 = vunpack.c.h.b16 %v3806
        %v3829 = vpack.c.b16 %v3825, %v3821
        %v3830 = vpack.c.b16 %v3826, %v3822
        %v3831 = vpack.c.b16 %v3827, %v3823
        %v3832 = vpack.c.b16 %v3828, %v3824
        %3833 = vrot.lane.b32.xlu0 %v3829, 18
        %v3834 = vpop.permute.xlu0 %3833
        %3835 = vrot.lane.b32.xlu0 %v3830, 18
        %v3836 = vpop.permute.xlu0 %3835
        %3837 = vrot.lane.b32.xlu0 %v3831, 18
        %v3838 = vpop.permute.xlu0 %3837
        %3839 = vrot.lane.b32.xlu0 %v3832, 18
        %v3840 = vpop.permute.xlu0 %3839
        %v3841 = vsel %vm653, %v3834, %v3836
        %v3842 = vsel %vm653, %v3836, %v3838
        %v3843 = vsel %vm653, %v3838, %v3840
        %v3848 = vsel %vm2738, %v3816, 0
        %3850 = vmatprep.subr.bf16.mxu0 0
        %3851 = vmatpush1.bf16.msra.mxu0 0
        %3852 = vmatprep.subr.bf16.mxu0 0
        %3853 = vmatpush1.bf16.msra.mxu0 0
        %3854 = vmatprep.subr.bf16.mxu0 0
        %3855 = vmatpush1.bf16.msra.mxu0 0
        %3856 = vmatprep.subr.bf16.mxu0 0
        %3857 = vmatpush1.bf16.msra.mxu0 0
        %3858 = vmatprep.subr.bf16.mxu0 0
        %3859 = vmatpush1.bf16.msra.mxu0 0
        %3860 = vmatprep.subr.bf16.mxu0 0
        %3861 = vmatpush1.bf16.msra.mxu0 0
        %3862 = vmatprep.subr.bf16.mxu0 0
        %3863 = vmatpush1.bf16.msra.mxu0 0
        %3864 = vmatprep.subr.bf16.mxu0 %v3842
        %3865 = vmatpush1.bf16.msra.mxu0 %v3841
        %3866 = vmatprep.subr.bf16.mxu0 0
        %3867 = vmatpush2.bf16.msra.mxu0 0
        %3868 = vmatprep.subr.bf16.mxu0 0
        %3869 = vmatpush2.bf16.msra.mxu0 0
        %3870 = vmatprep.subr.bf16.mxu0 0
        %3871 = vmatpush2.bf16.msra.mxu0 0
        %3872 = vmatprep.subr.bf16.mxu0 0
        %3873 = vmatpush2.bf16.msra.mxu0 0
        %3874 = vmatprep.subr.bf16.mxu0 0
        %3875 = vmatpush2.bf16.msra.mxu0 0
        %3876 = vmatprep.subr.bf16.mxu0 0
        %3877 = vmatpush2.bf16.msra.mxu0 0
        %3878 = vmatprep.subr.bf16.mxu0 0
        %3879 = vmatpush2.bf16.msra.mxu0 0
        %3880 = vmatprep.subr.bf16.mxu0 0
        %3881 = vmatpush2.bf16.msra.mxu0 0
        %3882 = vmatprep.mubr.bf16.mxu0 0
        %3883 = vmatmul.mubr.bf16.gmra.mxu0 %v3848
        %v3884 = vpop.f32.mrf.mxu0
        %v3885 = vadd.f32 0.0, %v3884
        %v3886 = vpop.f32.mrf.mxu0
        %v3887 = vadd.f32 0.0, %v3886
        %v3888 = vpop.f32.mrf.mxu0
        %v3889 = vadd.f32 0.0, %v3888
        %v3890 = vpop.f32.mrf.mxu0
        %v3891 = vadd.f32 0.0, %v3890
        %3892 = vdwg.mxu0
        %3893 = vmatprep.subr.bf16.mxu0 0
        %3894 = vmatpush1.bf16.msra.mxu0 0
        %3895 = vmatprep.subr.bf16.mxu0 0
        %3896 = vmatpush1.bf16.msra.mxu0 0
        %3897 = vmatprep.subr.bf16.mxu0 0
        %3898 = vmatpush1.bf16.msra.mxu0 0
        %3899 = vmatprep.subr.bf16.mxu0 0
        %3900 = vmatpush1.bf16.msra.mxu0 0
        %3901 = vmatprep.subr.bf16.mxu0 0
        %3902 = vmatpush1.bf16.msra.mxu0 0
        %3903 = vmatprep.subr.bf16.mxu0 0
        %3904 = vmatpush1.bf16.msra.mxu0 0
        %3905 = vmatprep.subr.bf16.mxu0 0
        %3906 = vmatpush1.bf16.msra.mxu0 0
        %3907 = vmatprep.subr.bf16.mxu0 0
        %3908 = vmatpush1.bf16.msra.mxu0 %v3843
        %3909 = vmatprep.subr.bf16.mxu0 0
        %3910 = vmatpush2.bf16.msra.mxu0 0
        %3911 = vmatprep.subr.bf16.mxu0 0
        %3912 = vmatpush2.bf16.msra.mxu0 0
        %3913 = vmatprep.subr.bf16.mxu0 0
        %3914 = vmatpush2.bf16.msra.mxu0 0
        %3915 = vmatprep.subr.bf16.mxu0 0
        %3916 = vmatpush2.bf16.msra.mxu0 0
        %3917 = vmatprep.subr.bf16.mxu0 0
        %3918 = vmatpush2.bf16.msra.mxu0 0
        %3919 = vmatprep.subr.bf16.mxu0 0
        %3920 = vmatpush2.bf16.msra.mxu0 0
        %3921 = vmatprep.subr.bf16.mxu0 0
        %3922 = vmatpush2.bf16.msra.mxu0 0
        %3923 = vmatprep.subr.bf16.mxu0 0
        %3924 = vmatpush2.bf16.msra.mxu0 0
        %3925 = vmatprep.mubr.bf16.mxu0 0
        %3926 = vmatmul.mubr.bf16.gmra.mxu0 %v3848
        %v3927 = vpop.f32.mrf.mxu0
        %v3928 = vadd.f32 0.0, %v3927
        %v3929 = vpop.f32.mrf.mxu0
        %v3930 = vpop.f32.mrf.mxu0
        %v3931 = vadd.f32 0.0, %v3930
        %v3932 = vpop.f32.mrf.mxu0
        %3933 = vdwg.mxu0
        %v3936 = vunpack.c.l.b16 %v3807
        %v3937 = vunpack.c.l.b16 %v3808
        %v3938 = vpack.c.b16 %v3937, %v3936
        %3939 = vrot.lane.b32.xlu0 %v3829, 19
        %v3940 = vpop.permute.xlu0 %3939
        %3941 = vrot.lane.b32.xlu0 %v3830, 19
        %v3942 = vpop.permute.xlu0 %3941
        %3943 = vrot.lane.b32.xlu0 %v3831, 19
        %v3944 = vpop.permute.xlu0 %3943
        %3945 = vrot.lane.b32.xlu0 %v3832, 19
        %v3946 = vpop.permute.xlu0 %3945
        %v3947 = vsel %vm760, %v3940, %v3942
        %v3948 = vsel %vm760, %v3942, %v3944
        %v3949 = vsel %vm760, %v3944, %v3946
        %v3954 = vsel %vm2738, %v3938, 0
        %3956 = vmatprep.subr.bf16.mxu0 0
        %3957 = vmatpush1.bf16.msra.mxu0 0
        %3958 = vmatprep.subr.bf16.mxu0 0
        %3959 = vmatpush1.bf16.msra.mxu0 0
        %3960 = vmatprep.subr.bf16.mxu0 0
        %3961 = vmatpush1.bf16.msra.mxu0 0
        %3962 = vmatprep.subr.bf16.mxu0 0
        %3963 = vmatpush1.bf16.msra.mxu0 0
        %3964 = vmatprep.subr.bf16.mxu0 0
        %3965 = vmatpush1.bf16.msra.mxu0 0
        %3966 = vmatprep.subr.bf16.mxu0 0
        %3967 = vmatpush1.bf16.msra.mxu0 0
        %3968 = vmatprep.subr.bf16.mxu0 0
        %3969 = vmatpush1.bf16.msra.mxu0 0
        %3970 = vmatprep.subr.bf16.mxu0 %v3948
        %3971 = vmatpush1.bf16.msra.mxu0 %v3947
        %3972 = vmatprep.subr.bf16.mxu0 0
        %3973 = vmatpush2.bf16.msra.mxu0 0
        %3974 = vmatprep.subr.bf16.mxu0 0
        %3975 = vmatpush2.bf16.msra.mxu0 0
        %3976 = vmatprep.subr.bf16.mxu0 0
        %3977 = vmatpush2.bf16.msra.mxu0 0
        %3978 = vmatprep.subr.bf16.mxu0 0
        %3979 = vmatpush2.bf16.msra.mxu0 0
        %3980 = vmatprep.subr.bf16.mxu0 0
        %3981 = vmatpush2.bf16.msra.mxu0 0
        %3982 = vmatprep.subr.bf16.mxu0 0
        %3983 = vmatpush2.bf16.msra.mxu0 0
        %3984 = vmatprep.subr.bf16.mxu0 0
        %3985 = vmatpush2.bf16.msra.mxu0 0
        %3986 = vmatprep.subr.bf16.mxu0 0
        %3987 = vmatpush2.bf16.msra.mxu0 0
        %3988 = vmatprep.mubr.bf16.mxu0 0
        %3989 = vmatmul.mubr.bf16.gmra.mxu0 %v3954
        %v3990 = vpop.f32.mrf.mxu0
        %v3991 = vadd.f32 %v3885, %v3990
        %v3992 = vpop.f32.mrf.mxu0
        %v3993 = vadd.f32 %v3887, %v3992
        %v3994 = vpop.f32.mrf.mxu0
        %v3995 = vadd.f32 %v3889, %v3994
        %v3996 = vpop.f32.mrf.mxu0
        %v3997 = vadd.f32 %v3891, %v3996
        %3998 = vdwg.mxu0
        %3999 = vmatprep.subr.bf16.mxu0 0
        %4000 = vmatpush1.bf16.msra.mxu0 0
        %4001 = vmatprep.subr.bf16.mxu0 0
        %4002 = vmatpush1.bf16.msra.mxu0 0
        %4003 = vmatprep.subr.bf16.mxu0 0
        %4004 = vmatpush1.bf16.msra.mxu0 0
        %4005 = vmatprep.subr.bf16.mxu0 0
        %4006 = vmatpush1.bf16.msra.mxu0 0
        %4007 = vmatprep.subr.bf16.mxu0 0
        %4008 = vmatpush1.bf16.msra.mxu0 0
        %4009 = vmatprep.subr.bf16.mxu0 0
        %4010 = vmatpush1.bf16.msra.mxu0 0
        %4011 = vmatprep.subr.bf16.mxu0 0
        %4012 = vmatpush1.bf16.msra.mxu0 0
        %4013 = vmatprep.subr.bf16.mxu0 0
        %4014 = vmatpush1.bf16.msra.mxu0 %v3949
        %4015 = vmatprep.subr.bf16.mxu0 0
        %4016 = vmatpush2.bf16.msra.mxu0 0
        %4017 = vmatprep.subr.bf16.mxu0 0
        %4018 = vmatpush2.bf16.msra.mxu0 0
        %4019 = vmatprep.subr.bf16.mxu0 0
        %4020 = vmatpush2.bf16.msra.mxu0 0
        %4021 = vmatprep.subr.bf16.mxu0 0
        %4022 = vmatpush2.bf16.msra.mxu0 0
        %4023 = vmatprep.subr.bf16.mxu0 0
        %4024 = vmatpush2.bf16.msra.mxu0 0
        %4025 = vmatprep.subr.bf16.mxu0 0
        %4026 = vmatpush2.bf16.msra.mxu0 0
        %4027 = vmatprep.subr.bf16.mxu0 0
        %4028 = vmatpush2.bf16.msra.mxu0 0
        %4029 = vmatprep.subr.bf16.mxu0 0
        %4030 = vmatpush2.bf16.msra.mxu0 0
        %4031 = vmatprep.mubr.bf16.mxu0 0
        %4032 = vmatmul.mubr.bf16.gmra.mxu0 %v3954
        %v4033 = vpop.f32.mrf.mxu0
        %v4034 = vadd.f32 %v3928, %v4033
        %v4035 = vpop.f32.mrf.mxu0
        %v4036 = vpop.f32.mrf.mxu0
        %v4037 = vadd.f32 %v3931, %v4036
        %v4038 = vpop.f32.mrf.mxu0
        %4039 = vdwg.mxu0
        %s4040 = scalar_lea.vmem %s9, 16
        %v4041 = vld [vmem:[%s4040] sm:$0xf]
        %v4042 = vld [vmem:[%s4040 + $0x4] sm:$0xf]
        %v4045 = vunpack.c.l.b16 %v4041
        %v4046 = vunpack.c.l.b16 %v4042
        %v4047 = vpack.c.b16 %v4046, %v4045
        %4048 = vrot.lane.b32.xlu0 %v3829, 17
        %v4049 = vpop.permute.xlu0 %4048
        %4050 = vrot.lane.b32.xlu0 %v3830, 17
        %v4051 = vpop.permute.xlu0 %4050
        %4052 = vrot.lane.b32.xlu0 %v3831, 17
        %v4053 = vpop.permute.xlu0 %4052
        %4054 = vrot.lane.b32.xlu0 %v3832, 17
        %v4055 = vpop.permute.xlu0 %4054
        %v4056 = vsel %vm867, %v4049, %v4051
        %v4057 = vsel %vm867, %v4051, %v4053
        %v4058 = vsel %vm867, %v4053, %v4055
        %v4063 = vsel %vm2738, %v4047, 0
        %4065 = vmatprep.subr.bf16.mxu0 0
        %4066 = vmatpush1.bf16.msra.mxu0 0
        %4067 = vmatprep.subr.bf16.mxu0 0
        %4068 = vmatpush1.bf16.msra.mxu0 0
        %4069 = vmatprep.subr.bf16.mxu0 0
        %4070 = vmatpush1.bf16.msra.mxu0 0
        %4071 = vmatprep.subr.bf16.mxu0 0
        %4072 = vmatpush1.bf16.msra.mxu0 0
        %4073 = vmatprep.subr.bf16.mxu0 0
        %4074 = vmatpush1.bf16.msra.mxu0 0
        %4075 = vmatprep.subr.bf16.mxu0 0
        %4076 = vmatpush1.bf16.msra.mxu0 0
        %4077 = vmatprep.subr.bf16.mxu0 0
        %4078 = vmatpush1.bf16.msra.mxu0 0
        %4079 = vmatprep.subr.bf16.mxu0 %v4057
        %4080 = vmatpush1.bf16.msra.mxu0 %v4056
        %4081 = vmatprep.subr.bf16.mxu0 0
        %4082 = vmatpush2.bf16.msra.mxu0 0
        %4083 = vmatprep.subr.bf16.mxu0 0
        %4084 = vmatpush2.bf16.msra.mxu0 0
        %4085 = vmatprep.subr.bf16.mxu0 0
        %4086 = vmatpush2.bf16.msra.mxu0 0
        %4087 = vmatprep.subr.bf16.mxu0 0
        %4088 = vmatpush2.bf16.msra.mxu0 0
        %4089 = vmatprep.subr.bf16.mxu0 0
        %4090 = vmatpush2.bf16.msra.mxu0 0
        %4091 = vmatprep.subr.bf16.mxu0 0
        %4092 = vmatpush2.bf16.msra.mxu0 0
        %4093 = vmatprep.subr.bf16.mxu0 0
        %4094 = vmatpush2.bf16.msra.mxu0 0
        %4095 = vmatprep.subr.bf16.mxu0 0
        %4096 = vmatpush2.bf16.msra.mxu0 0
        %4097 = vmatprep.mubr.bf16.mxu0 0
        %4098 = vmatmul.mubr.bf16.gmra.mxu0 %v4063
        %v4099 = vpop.f32.mrf.mxu0
        %v4100 = vadd.f32 0.0, %v4099
        %v4101 = vpop.f32.mrf.mxu0
        %v4102 = vadd.f32 0.0, %v4101
        %v4103 = vpop.f32.mrf.mxu0
        %v4104 = vadd.f32 0.0, %v4103
        %v4105 = vpop.f32.mrf.mxu0
        %v4106 = vadd.f32 0.0, %v4105
        %4107 = vdwg.mxu0
        %4108 = vmatprep.subr.bf16.mxu0 0
        %4109 = vmatpush1.bf16.msra.mxu0 0
        %4110 = vmatprep.subr.bf16.mxu0 0
        %4111 = vmatpush1.bf16.msra.mxu0 0
        %4112 = vmatprep.subr.bf16.mxu0 0
        %4113 = vmatpush1.bf16.msra.mxu0 0
        %4114 = vmatprep.subr.bf16.mxu0 0
        %4115 = vmatpush1.bf16.msra.mxu0 0
        %4116 = vmatprep.subr.bf16.mxu0 0
        %4117 = vmatpush1.bf16.msra.mxu0 0
        %4118 = vmatprep.subr.bf16.mxu0 0
        %4119 = vmatpush1.bf16.msra.mxu0 0
        %4120 = vmatprep.subr.bf16.mxu0 0
        %4121 = vmatpush1.bf16.msra.mxu0 0
        %4122 = vmatprep.subr.bf16.mxu0 0
        %4123 = vmatpush1.bf16.msra.mxu0 %v4058
        %4124 = vmatprep.subr.bf16.mxu0 0
        %4125 = vmatpush2.bf16.msra.mxu0 0
        %4126 = vmatprep.subr.bf16.mxu0 0
        %4127 = vmatpush2.bf16.msra.mxu0 0
        %4128 = vmatprep.subr.bf16.mxu0 0
        %4129 = vmatpush2.bf16.msra.mxu0 0
        %4130 = vmatprep.subr.bf16.mxu0 0
        %4131 = vmatpush2.bf16.msra.mxu0 0
        %4132 = vmatprep.subr.bf16.mxu0 0
        %4133 = vmatpush2.bf16.msra.mxu0 0
        %4134 = vmatprep.subr.bf16.mxu0 0
        %4135 = vmatpush2.bf16.msra.mxu0 0
        %4136 = vmatprep.subr.bf16.mxu0 0
        %4137 = vmatpush2.bf16.msra.mxu0 0
        %4138 = vmatprep.subr.bf16.mxu0 0
        %4139 = vmatpush2.bf16.msra.mxu0 0
        %4140 = vmatprep.mubr.bf16.mxu0 0
        %4141 = vmatmul.mubr.bf16.gmra.mxu0 %v4063
        %v4142 = vpop.f32.mrf.mxu0
        %v4143 = vadd.f32 0.0, %v4142
        %v4144 = vpop.f32.mrf.mxu0
        %v4145 = vpop.f32.mrf.mxu0
        %v4146 = vadd.f32 0.0, %v4145
        %v4147 = vpop.f32.mrf.mxu0
        %4148 = vdwg.mxu0
        %v4149 = vadd.f32 %v3991, %v4100
        %v4150 = vadd.f32 %v3993, %v4102
        %v4151 = vadd.f32 %v4034, %v4143
        %v4152 = vadd.f32 %v3995, %v4104
        %v4153 = vadd.f32 %v3997, %v4106
        %v4154 = vadd.f32 %v4037, %v4146
        %s4155 = scalar_lea.vmem %s9, 24
        %v4156 = vld [vmem:[%s4155] sm:$0xf]
        %v4157 = vld [vmem:[%s4155 + $0x4] sm:$0xf]
        %v4160 = vunpack.c.l.b16 %v4156
        %v4161 = vunpack.c.l.b16 %v4157
        %v4162 = vpack.c.b16 %v4161, %v4160
        %4163 = vrot.lane.b32.xlu0 %v3829, 1
        %v4164 = vpop.permute.xlu0 %4163
        %4165 = vrot.lane.b32.xlu0 %v3830, 1
        %v4166 = vpop.permute.xlu0 %4165
        %4167 = vrot.lane.b32.xlu0 %v3831, 1
        %v4168 = vpop.permute.xlu0 %4167
        %4169 = vrot.lane.b32.xlu0 %v3832, 1
        %v4170 = vpop.permute.xlu0 %4169
        %v4171 = vsel %vm977, %v4164, %v4166
        %v4172 = vsel %vm977, %v4166, %v4168
        %v4173 = vsel %vm977, %v4168, %v4170
        %v4178 = vsel %vm2738, %v4162, 0
        %4180 = vmatprep.subr.bf16.mxu0 0
        %4181 = vmatpush1.bf16.msra.mxu0 0
        %4182 = vmatprep.subr.bf16.mxu0 0
        %4183 = vmatpush1.bf16.msra.mxu0 0
        %4184 = vmatprep.subr.bf16.mxu0 0
        %4185 = vmatpush1.bf16.msra.mxu0 0
        %4186 = vmatprep.subr.bf16.mxu0 0
        %4187 = vmatpush1.bf16.msra.mxu0 0
        %4188 = vmatprep.subr.bf16.mxu0 0
        %4189 = vmatpush1.bf16.msra.mxu0 0
        %4190 = vmatprep.subr.bf16.mxu0 0
        %4191 = vmatpush1.bf16.msra.mxu0 0
        %4192 = vmatprep.subr.bf16.mxu0 0
        %4193 = vmatpush1.bf16.msra.mxu0 0
        %4194 = vmatprep.subr.bf16.mxu0 %v4172
        %4195 = vmatpush1.bf16.msra.mxu0 %v4171
        %4196 = vmatprep.subr.bf16.mxu0 0
        %4197 = vmatpush2.bf16.msra.mxu0 0
        %4198 = vmatprep.subr.bf16.mxu0 0
        %4199 = vmatpush2.bf16.msra.mxu0 0
        %4200 = vmatprep.subr.bf16.mxu0 0
        %4201 = vmatpush2.bf16.msra.mxu0 0
        %4202 = vmatprep.subr.bf16.mxu0 0
        %4203 = vmatpush2.bf16.msra.mxu0 0
        %4204 = vmatprep.subr.bf16.mxu0 0
        %4205 = vmatpush2.bf16.msra.mxu0 0
        %4206 = vmatprep.subr.bf16.mxu0 0
        %4207 = vmatpush2.bf16.msra.mxu0 0
        %4208 = vmatprep.subr.bf16.mxu0 0
        %4209 = vmatpush2.bf16.msra.mxu0 0
        %4210 = vmatprep.subr.bf16.mxu0 0
        %4211 = vmatpush2.bf16.msra.mxu0 0
        %4212 = vmatprep.mubr.bf16.mxu0 0
        %4213 = vmatmul.mubr.bf16.gmra.mxu0 %v4178
        %v4214 = vpop.f32.mrf.mxu0
        %v4215 = vadd.f32 0.0, %v4214
        %v4216 = vpop.f32.mrf.mxu0
        %v4217 = vadd.f32 0.0, %v4216
        %v4218 = vpop.f32.mrf.mxu0
        %v4219 = vadd.f32 0.0, %v4218
        %v4220 = vpop.f32.mrf.mxu0
        %v4221 = vadd.f32 0.0, %v4220
        %4222 = vdwg.mxu0
        %4223 = vmatprep.subr.bf16.mxu0 0
        %4224 = vmatpush1.bf16.msra.mxu0 0
        %4225 = vmatprep.subr.bf16.mxu0 0
        %4226 = vmatpush1.bf16.msra.mxu0 0
        %4227 = vmatprep.subr.bf16.mxu0 0
        %4228 = vmatpush1.bf16.msra.mxu0 0
        %4229 = vmatprep.subr.bf16.mxu0 0
        %4230 = vmatpush1.bf16.msra.mxu0 0
        %4231 = vmatprep.subr.bf16.mxu0 0
        %4232 = vmatpush1.bf16.msra.mxu0 0
        %4233 = vmatprep.subr.bf16.mxu0 0
        %4234 = vmatpush1.bf16.msra.mxu0 0
        %4235 = vmatprep.subr.bf16.mxu0 0
        %4236 = vmatpush1.bf16.msra.mxu0 0
        %4237 = vmatprep.subr.bf16.mxu0 0
        %4238 = vmatpush1.bf16.msra.mxu0 %v4173
        %4239 = vmatprep.subr.bf16.mxu0 0
        %4240 = vmatpush2.bf16.msra.mxu0 0
        %4241 = vmatprep.subr.bf16.mxu0 0
        %4242 = vmatpush2.bf16.msra.mxu0 0
        %4243 = vmatprep.subr.bf16.mxu0 0
        %4244 = vmatpush2.bf16.msra.mxu0 0
        %4245 = vmatprep.subr.bf16.mxu0 0
        %4246 = vmatpush2.bf16.msra.mxu0 0
        %4247 = vmatprep.subr.bf16.mxu0 0
        %4248 = vmatpush2.bf16.msra.mxu0 0
        %4249 = vmatprep.subr.bf16.mxu0 0
        %4250 = vmatpush2.bf16.msra.mxu0 0
        %4251 = vmatprep.subr.bf16.mxu0 0
        %4252 = vmatpush2.bf16.msra.mxu0 0
        %4253 = vmatprep.subr.bf16.mxu0 0
        %4254 = vmatpush2.bf16.msra.mxu0 0
        %4255 = vmatprep.mubr.bf16.mxu0 0
        %4256 = vmatmul.mubr.bf16.gmra.mxu0 %v4178
        %v4257 = vpop.f32.mrf.mxu0
        %v4258 = vadd.f32 0.0, %v4257
        %v4259 = vpop.f32.mrf.mxu0
        %v4260 = vpop.f32.mrf.mxu0
        %v4261 = vadd.f32 0.0, %v4260
        %v4262 = vpop.f32.mrf.mxu0
        %4263 = vdwg.mxu0
        %v4264 = vadd.f32 %v4149, %v4215
        %v4265 = vadd.f32 %v4150, %v4217
        %v4266 = vadd.f32 %v4151, %v4258
        %v4267 = vadd.f32 %v4152, %v4219
        %v4268 = vadd.f32 %v4153, %v4221
        %v4269 = vadd.f32 %v4154, %v4261
        %v4270 = vld [vmem:[#allocation2 + $0x4] sm:$0xff]
        %v4271 = vld [vmem:[#allocation2 + $0xc] sm:$0xf]
        %v4272 = vld [vmem:[#allocation2 + $0x14] sm:$0xff]
        %v4273 = vld [vmem:[#allocation2 + $0x1c] sm:$0xf]
        %s4274 = scalar_lea.vmem %s9, 32
        %v4275 = vld [vmem:[%s4274] sm:$0xf]
        %v4276 = vld [vmem:[%s4274 + $0x4] sm:$0xf]
        %v4279 = vunpack.c.l.b16 %v4275
        %v4280 = vunpack.c.l.b16 %v4276
        %v4281 = vpack.c.b16 %v4280, %v4279
        %v4286 = vunpack.c.l.b16 %v4270
        %v4287 = vunpack.c.h.b16 %v4270
        %v4288 = vunpack.c.l.b16 %v4271
        %v4289 = vunpack.c.l.b16 %v4272
        %v4290 = vunpack.c.h.b16 %v4272
        %v4291 = vunpack.c.l.b16 %v4273
        %v4292 = vpack.c.b16 %v4289, %v4286
        %v4293 = vpack.c.b16 %v4290, %v4287
        %v4294 = vpack.c.b16 %v4291, %v4288
        %v4299 = vsel %vm2738, %v4281, 0
        %4301 = vmatprep.subr.bf16.mxu0 0
        %4302 = vmatpush1.bf16.msra.mxu0 0
        %4303 = vmatprep.subr.bf16.mxu0 0
        %4304 = vmatpush1.bf16.msra.mxu0 0
        %4305 = vmatprep.subr.bf16.mxu0 0
        %4306 = vmatpush1.bf16.msra.mxu0 0
        %4307 = vmatprep.subr.bf16.mxu0 0
        %4308 = vmatpush1.bf16.msra.mxu0 0
        %4309 = vmatprep.subr.bf16.mxu0 0
        %4310 = vmatpush1.bf16.msra.mxu0 0
        %4311 = vmatprep.subr.bf16.mxu0 0
        %4312 = vmatpush1.bf16.msra.mxu0 0
        %4313 = vmatprep.subr.bf16.mxu0 0
        %4314 = vmatpush1.bf16.msra.mxu0 0
        %4315 = vmatprep.subr.bf16.mxu0 %v4293
        %4316 = vmatpush1.bf16.msra.mxu0 %v4292
        %4317 = vmatprep.subr.bf16.mxu0 0
        %4318 = vmatpush2.bf16.msra.mxu0 0
        %4319 = vmatprep.subr.bf16.mxu0 0
        %4320 = vmatpush2.bf16.msra.mxu0 0
        %4321 = vmatprep.subr.bf16.mxu0 0
        %4322 = vmatpush2.bf16.msra.mxu0 0
        %4323 = vmatprep.subr.bf16.mxu0 0
        %4324 = vmatpush2.bf16.msra.mxu0 0
        %4325 = vmatprep.subr.bf16.mxu0 0
        %4326 = vmatpush2.bf16.msra.mxu0 0
        %4327 = vmatprep.subr.bf16.mxu0 0
        %4328 = vmatpush2.bf16.msra.mxu0 0
        %4329 = vmatprep.subr.bf16.mxu0 0
        %4330 = vmatpush2.bf16.msra.mxu0 0
        %4331 = vmatprep.subr.bf16.mxu0 0
        %4332 = vmatpush2.bf16.msra.mxu0 0
        %4333 = vmatprep.mubr.bf16.mxu0 0
        %4334 = vmatmul.mubr.bf16.gmra.mxu0 %v4299
        %v4335 = vpop.f32.mrf.mxu0
        %v4336 = vadd.f32 0.0, %v4335
        %v4337 = vpop.f32.mrf.mxu0
        %v4338 = vadd.f32 0.0, %v4337
        %v4339 = vpop.f32.mrf.mxu0
        %v4340 = vadd.f32 0.0, %v4339
        %v4341 = vpop.f32.mrf.mxu0
        %v4342 = vadd.f32 0.0, %v4341
        %4343 = vdwg.mxu0
        %4344 = vmatprep.subr.bf16.mxu0 0
        %4345 = vmatpush1.bf16.msra.mxu0 0
        %4346 = vmatprep.subr.bf16.mxu0 0
        %4347 = vmatpush1.bf16.msra.mxu0 0
        %4348 = vmatprep.subr.bf16.mxu0 0
        %4349 = vmatpush1.bf16.msra.mxu0 0
        %4350 = vmatprep.subr.bf16.mxu0 0
        %4351 = vmatpush1.bf16.msra.mxu0 0
        %4352 = vmatprep.subr.bf16.mxu0 0
        %4353 = vmatpush1.bf16.msra.mxu0 0
        %4354 = vmatprep.subr.bf16.mxu0 0
        %4355 = vmatpush1.bf16.msra.mxu0 0
        %4356 = vmatprep.subr.bf16.mxu0 0
        %4357 = vmatpush1.bf16.msra.mxu0 0
        %4358 = vmatprep.subr.bf16.mxu0 0
        %4359 = vmatpush1.bf16.msra.mxu0 %v4294
        %4360 = vmatprep.subr.bf16.mxu0 0
        %4361 = vmatpush2.bf16.msra.mxu0 0
        %4362 = vmatprep.subr.bf16.mxu0 0
        %4363 = vmatpush2.bf16.msra.mxu0 0
        %4364 = vmatprep.subr.bf16.mxu0 0
        %4365 = vmatpush2.bf16.msra.mxu0 0
        %4366 = vmatprep.subr.bf16.mxu0 0
        %4367 = vmatpush2.bf16.msra.mxu0 0
        %4368 = vmatprep.subr.bf16.mxu0 0
        %4369 = vmatpush2.bf16.msra.mxu0 0
        %4370 = vmatprep.subr.bf16.mxu0 0
        %4371 = vmatpush2.bf16.msra.mxu0 0
        %4372 = vmatprep.subr.bf16.mxu0 0
        %4373 = vmatpush2.bf16.msra.mxu0 0
        %4374 = vmatprep.subr.bf16.mxu0 0
        %4375 = vmatpush2.bf16.msra.mxu0 0
        %4376 = vmatprep.mubr.bf16.mxu0 0
        %4377 = vmatmul.mubr.bf16.gmra.mxu0 %v4299
        %v4378 = vpop.f32.mrf.mxu0
        %v4379 = vadd.f32 0.0, %v4378
        %v4380 = vpop.f32.mrf.mxu0
        %v4381 = vpop.f32.mrf.mxu0
        %v4382 = vadd.f32 0.0, %v4381
        %v4383 = vpop.f32.mrf.mxu0
        %4384 = vdwg.mxu0
        %v4385 = vadd.f32 %v4264, %v4336
        %v4386 = vadd.f32 %v4265, %v4338
        %v4387 = vadd.f32 %v4266, %v4379
        %v4388 = vadd.f32 %v4267, %v4340
        %v4389 = vadd.f32 %v4268, %v4342
        %v4390 = vadd.f32 %v4269, %v4382
        %s4391 = scalar_lea.vmem %s9, 40
        %v4392 = vld [vmem:[%s4391] sm:$0xf]
        %v4393 = vld [vmem:[%s4391 + $0x4] sm:$0xf]
        %v4396 = vunpack.c.l.b16 %v4392
        %v4397 = vunpack.c.l.b16 %v4393
        %v4398 = vpack.c.b16 %v4397, %v4396
        %4399 = vrot.lane.b32.xlu0 %v4292, 127
        %v4400 = vpop.permute.xlu0 %4399
        %4401 = vrot.lane.b32.xlu0 %v4293, 127
        %v4402 = vpop.permute.xlu0 %4401
        %4403 = vrot.lane.b32.xlu0 %v4294, 127
        %v4404 = vpop.permute.xlu0 %4403
        %v4405 = vsel %vm1193, %v4400, %v4402
        %v4406 = vsel %vm1193, %v4402, %v4404
        %v4411 = vsel %vm2738, %v4398, 0
        %4413 = vmatprep.subr.bf16.mxu0 0
        %4414 = vmatpush1.bf16.msra.mxu0 0
        %4415 = vmatprep.subr.bf16.mxu0 0
        %4416 = vmatpush1.bf16.msra.mxu0 0
        %4417 = vmatprep.subr.bf16.mxu0 0
        %4418 = vmatpush1.bf16.msra.mxu0 0
        %4419 = vmatprep.subr.bf16.mxu0 0
        %4420 = vmatpush1.bf16.msra.mxu0 0
        %4421 = vmatprep.subr.bf16.mxu0 0
        %4422 = vmatpush1.bf16.msra.mxu0 0
        %4423 = vmatprep.subr.bf16.mxu0 0
        %4424 = vmatpush1.bf16.msra.mxu0 0
        %4425 = vmatprep.subr.bf16.mxu0 0
        %4426 = vmatpush1.bf16.msra.mxu0 0
        %4427 = vmatprep.subr.bf16.mxu0 %v4406
        %4428 = vmatpush1.bf16.msra.mxu0 %v4405
        %4429 = vmatprep.subr.bf16.mxu0 0
        %4430 = vmatpush2.bf16.msra.mxu0 0
        %4431 = vmatprep.subr.bf16.mxu0 0
        %4432 = vmatpush2.bf16.msra.mxu0 0
        %4433 = vmatprep.subr.bf16.mxu0 0
        %4434 = vmatpush2.bf16.msra.mxu0 0
        %4435 = vmatprep.subr.bf16.mxu0 0
        %4436 = vmatpush2.bf16.msra.mxu0 0
        %4437 = vmatprep.subr.bf16.mxu0 0
        %4438 = vmatpush2.bf16.msra.mxu0 0
        %4439 = vmatprep.subr.bf16.mxu0 0
        %4440 = vmatpush2.bf16.msra.mxu0 0
        %4441 = vmatprep.subr.bf16.mxu0 0
        %4442 = vmatpush2.bf16.msra.mxu0 0
        %4443 = vmatprep.subr.bf16.mxu0 0
        %4444 = vmatpush2.bf16.msra.mxu0 0
        %4445 = vmatprep.mubr.bf16.mxu0 0
        %4446 = vmatmul.mubr.bf16.gmra.mxu0 %v4411
        %v4447 = vpop.f32.mrf.mxu0
        %v4448 = vadd.f32 0.0, %v4447
        %v4449 = vpop.f32.mrf.mxu0
        %v4450 = vadd.f32 0.0, %v4449
        %v4451 = vpop.f32.mrf.mxu0
        %v4452 = vadd.f32 0.0, %v4451
        %v4453 = vpop.f32.mrf.mxu0
        %v4454 = vadd.f32 0.0, %v4453
        %4455 = vdwg.mxu0
        %4456 = vmatprep.subr.bf16.mxu0 0
        %4457 = vmatpush1.bf16.msra.mxu0 0
        %4458 = vmatprep.subr.bf16.mxu0 0
        %4459 = vmatpush1.bf16.msra.mxu0 0
        %4460 = vmatprep.subr.bf16.mxu0 0
        %4461 = vmatpush1.bf16.msra.mxu0 0
        %4462 = vmatprep.subr.bf16.mxu0 0
        %4463 = vmatpush1.bf16.msra.mxu0 0
        %4464 = vmatprep.subr.bf16.mxu0 0
        %4465 = vmatpush1.bf16.msra.mxu0 0
        %4466 = vmatprep.subr.bf16.mxu0 0
        %4467 = vmatpush1.bf16.msra.mxu0 0
        %4468 = vmatprep.subr.bf16.mxu0 0
        %4469 = vmatpush1.bf16.msra.mxu0 0
        %4470 = vmatprep.subr.bf16.mxu0 0
        %4471 = vmatpush1.bf16.msra.mxu0 %v4404
        %4472 = vmatprep.subr.bf16.mxu0 0
        %4473 = vmatpush2.bf16.msra.mxu0 0
        %4474 = vmatprep.subr.bf16.mxu0 0
        %4475 = vmatpush2.bf16.msra.mxu0 0
        %4476 = vmatprep.subr.bf16.mxu0 0
        %4477 = vmatpush2.bf16.msra.mxu0 0
        %4478 = vmatprep.subr.bf16.mxu0 0
        %4479 = vmatpush2.bf16.msra.mxu0 0
        %4480 = vmatprep.subr.bf16.mxu0 0
        %4481 = vmatpush2.bf16.msra.mxu0 0
        %4482 = vmatprep.subr.bf16.mxu0 0
        %4483 = vmatpush2.bf16.msra.mxu0 0
        %4484 = vmatprep.subr.bf16.mxu0 0
        %4485 = vmatpush2.bf16.msra.mxu0 0
        %4486 = vmatprep.subr.bf16.mxu0 0
        %4487 = vmatpush2.bf16.msra.mxu0 0
        %4488 = vmatprep.mubr.bf16.mxu0 0
        %4489 = vmatmul.mubr.bf16.gmra.mxu0 %v4411
        %v4490 = vpop.f32.mrf.mxu0
        %v4491 = vadd.f32 0.0, %v4490
        %v4492 = vpop.f32.mrf.mxu0
        %v4493 = vpop.f32.mrf.mxu0
        %v4494 = vadd.f32 0.0, %v4493
        %v4495 = vpop.f32.mrf.mxu0
        %4496 = vdwg.mxu0
        %v4497 = vadd.f32 %v4385, %v4448
        %v4498 = vadd.f32 %v4386, %v4450
        %v4499 = vadd.f32 %v4387, %v4491
        %v4500 = vadd.f32 %v4388, %v4452
        %v4501 = vadd.f32 %v4389, %v4454
        %v4502 = vadd.f32 %v4390, %v4494
        %s4503 = scalar_lea.vmem %s9, 48
        %v4504 = vld [vmem:[%s4503] sm:$0xf]
        %v4505 = vld [vmem:[%s4503 + $0x4] sm:$0xf]
        %v4508 = vunpack.c.l.b16 %v4504
        %v4509 = vunpack.c.l.b16 %v4505
        %v4510 = vpack.c.b16 %v4509, %v4508
        %4511 = vrot.lane.b32.xlu0 %v4292, 111
        %v4512 = vpop.permute.xlu0 %4511
        %4513 = vrot.lane.b32.xlu0 %v4293, 111
        %v4514 = vpop.permute.xlu0 %4513
        %4515 = vrot.lane.b32.xlu0 %v4294, 111
        %v4516 = vpop.permute.xlu0 %4515
        %v4517 = vsel %vm1300, %v4512, %v4514
        %v4518 = vsel %vm1300, %v4514, %v4516
        %v4523 = vsel %vm2738, %v4510, 0
        %4525 = vmatprep.subr.bf16.mxu0 0
        %4526 = vmatpush1.bf16.msra.mxu0 0
        %4527 = vmatprep.subr.bf16.mxu0 0
        %4528 = vmatpush1.bf16.msra.mxu0 0
        %4529 = vmatprep.subr.bf16.mxu0 0
        %4530 = vmatpush1.bf16.msra.mxu0 0
        %4531 = vmatprep.subr.bf16.mxu0 0
        %4532 = vmatpush1.bf16.msra.mxu0 0
        %4533 = vmatprep.subr.bf16.mxu0 0
        %4534 = vmatpush1.bf16.msra.mxu0 0
        %4535 = vmatprep.subr.bf16.mxu0 0
        %4536 = vmatpush1.bf16.msra.mxu0 0
        %4537 = vmatprep.subr.bf16.mxu0 0
        %4538 = vmatpush1.bf16.msra.mxu0 0
        %4539 = vmatprep.subr.bf16.mxu0 %v4518
        %4540 = vmatpush1.bf16.msra.mxu0 %v4517
        %4541 = vmatprep.subr.bf16.mxu0 0
        %4542 = vmatpush2.bf16.msra.mxu0 0
        %4543 = vmatprep.subr.bf16.mxu0 0
        %4544 = vmatpush2.bf16.msra.mxu0 0
        %4545 = vmatprep.subr.bf16.mxu0 0
        %4546 = vmatpush2.bf16.msra.mxu0 0
        %4547 = vmatprep.subr.bf16.mxu0 0
        %4548 = vmatpush2.bf16.msra.mxu0 0
        %4549 = vmatprep.subr.bf16.mxu0 0
        %4550 = vmatpush2.bf16.msra.mxu0 0
        %4551 = vmatprep.subr.bf16.mxu0 0
        %4552 = vmatpush2.bf16.msra.mxu0 0
        %4553 = vmatprep.subr.bf16.mxu0 0
        %4554 = vmatpush2.bf16.msra.mxu0 0
        %4555 = vmatprep.subr.bf16.mxu0 0
        %4556 = vmatpush2.bf16.msra.mxu0 0
        %4557 = vmatprep.mubr.bf16.mxu0 0
        %4558 = vmatmul.mubr.bf16.gmra.mxu0 %v4523
        %v4559 = vpop.f32.mrf.mxu0
        %v4560 = vadd.f32 0.0, %v4559
        %v4561 = vpop.f32.mrf.mxu0
        %v4562 = vadd.f32 0.0, %v4561
        %v4563 = vpop.f32.mrf.mxu0
        %v4564 = vadd.f32 0.0, %v4563
        %v4565 = vpop.f32.mrf.mxu0
        %v4566 = vadd.f32 0.0, %v4565
        %4567 = vdwg.mxu0
        %4568 = vmatprep.subr.bf16.mxu0 0
        %4569 = vmatpush1.bf16.msra.mxu0 0
        %4570 = vmatprep.subr.bf16.mxu0 0
        %4571 = vmatpush1.bf16.msra.mxu0 0
        %4572 = vmatprep.subr.bf16.mxu0 0
        %4573 = vmatpush1.bf16.msra.mxu0 0
        %4574 = vmatprep.subr.bf16.mxu0 0
        %4575 = vmatpush1.bf16.msra.mxu0 0
        %4576 = vmatprep.subr.bf16.mxu0 0
        %4577 = vmatpush1.bf16.msra.mxu0 0
        %4578 = vmatprep.subr.bf16.mxu0 0
        %4579 = vmatpush1.bf16.msra.mxu0 0
        %4580 = vmatprep.subr.bf16.mxu0 0
        %4581 = vmatpush1.bf16.msra.mxu0 0
        %4582 = vmatprep.subr.bf16.mxu0 0
        %4583 = vmatpush1.bf16.msra.mxu0 %v4516
        %4584 = vmatprep.subr.bf16.mxu0 0
        %4585 = vmatpush2.bf16.msra.mxu0 0
        %4586 = vmatprep.subr.bf16.mxu0 0
        %4587 = vmatpush2.bf16.msra.mxu0 0
        %4588 = vmatprep.subr.bf16.mxu0 0
        %4589 = vmatpush2.bf16.msra.mxu0 0
        %4590 = vmatprep.subr.bf16.mxu0 0
        %4591 = vmatpush2.bf16.msra.mxu0 0
        %4592 = vmatprep.subr.bf16.mxu0 0
        %4593 = vmatpush2.bf16.msra.mxu0 0
        %4594 = vmatprep.subr.bf16.mxu0 0
        %4595 = vmatpush2.bf16.msra.mxu0 0
        %4596 = vmatprep.subr.bf16.mxu0 0
        %4597 = vmatpush2.bf16.msra.mxu0 0
        %4598 = vmatprep.subr.bf16.mxu0 0
        %4599 = vmatpush2.bf16.msra.mxu0 0
        %4600 = vmatprep.mubr.bf16.mxu0 0
        %4601 = vmatmul.mubr.bf16.gmra.mxu0 %v4523
        %v4602 = vpop.f32.mrf.mxu0
        %v4603 = vadd.f32 0.0, %v4602
        %v4604 = vpop.f32.mrf.mxu0
        %v4605 = vpop.f32.mrf.mxu0
        %v4606 = vadd.f32 0.0, %v4605
        %v4607 = vpop.f32.mrf.mxu0
        %4608 = vdwg.mxu0
        %v4609 = vadd.f32 %v4497, %v4560
        %v4610 = vadd.f32 %v4498, %v4562
        %v4611 = vadd.f32 %v4499, %v4603
        %v4612 = vadd.f32 %v4500, %v4564
        %v4613 = vadd.f32 %v4501, %v4566
        %v4614 = vadd.f32 %v4502, %v4606
        %s4615 = scalar_lea.vmem %s9, 56
        %v4616 = vld [vmem:[%s4615] sm:$0xf]
        %v4617 = vld [vmem:[%s4615 + $0x4] sm:$0xf]
        %v4620 = vunpack.c.l.b16 %v4616
        %v4621 = vunpack.c.l.b16 %v4617
        %v4622 = vpack.c.b16 %v4621, %v4620
        %4623 = vrot.lane.b32.xlu0 %v4292, 110
        %v4624 = vpop.permute.xlu0 %4623
        %4625 = vrot.lane.b32.xlu0 %v4293, 110
        %v4626 = vpop.permute.xlu0 %4625
        %4627 = vrot.lane.b32.xlu0 %v4294, 110
        %v4628 = vpop.permute.xlu0 %4627
        %v4629 = vsel %vm1407, %v4624, %v4626
        %v4630 = vsel %vm1407, %v4626, %v4628
        %v4635 = vsel %vm2738, %v4622, 0
        %4637 = vmatprep.subr.bf16.mxu0 0
        %4638 = vmatpush1.bf16.msra.mxu0 0
        %4639 = vmatprep.subr.bf16.mxu0 0
        %4640 = vmatpush1.bf16.msra.mxu0 0
        %4641 = vmatprep.subr.bf16.mxu0 0
        %4642 = vmatpush1.bf16.msra.mxu0 0
        %4643 = vmatprep.subr.bf16.mxu0 0
        %4644 = vmatpush1.bf16.msra.mxu0 0
        %4645 = vmatprep.subr.bf16.mxu0 0
        %4646 = vmatpush1.bf16.msra.mxu0 0
        %4647 = vmatprep.subr.bf16.mxu0 0
        %4648 = vmatpush1.bf16.msra.mxu0 0
        %4649 = vmatprep.subr.bf16.mxu0 0
        %4650 = vmatpush1.bf16.msra.mxu0 0
        %4651 = vmatprep.subr.bf16.mxu0 %v4630
        %4652 = vmatpush1.bf16.msra.mxu0 %v4629
        %4653 = vmatprep.subr.bf16.mxu0 0
        %4654 = vmatpush2.bf16.msra.mxu0 0
        %4655 = vmatprep.subr.bf16.mxu0 0
        %4656 = vmatpush2.bf16.msra.mxu0 0
        %4657 = vmatprep.subr.bf16.mxu0 0
        %4658 = vmatpush2.bf16.msra.mxu0 0
        %4659 = vmatprep.subr.bf16.mxu0 0
        %4660 = vmatpush2.bf16.msra.mxu0 0
        %4661 = vmatprep.subr.bf16.mxu0 0
        %4662 = vmatpush2.bf16.msra.mxu0 0
        %4663 = vmatprep.subr.bf16.mxu0 0
        %4664 = vmatpush2.bf16.msra.mxu0 0
        %4665 = vmatprep.subr.bf16.mxu0 0
        %4666 = vmatpush2.bf16.msra.mxu0 0
        %4667 = vmatprep.subr.bf16.mxu0 0
        %4668 = vmatpush2.bf16.msra.mxu0 0
        %4669 = vmatprep.mubr.bf16.mxu0 0
        %4670 = vmatmul.mubr.bf16.gmra.mxu0 %v4635
        %v4671 = vpop.f32.mrf.mxu0
        %v4672 = vadd.f32 0.0, %v4671
        %v4673 = vpop.f32.mrf.mxu0
        %v4674 = vadd.f32 0.0, %v4673
        %v4675 = vpop.f32.mrf.mxu0
        %v4676 = vadd.f32 0.0, %v4675
        %v4677 = vpop.f32.mrf.mxu0
        %v4678 = vadd.f32 0.0, %v4677
        %4679 = vdwg.mxu0
        %4680 = vmatprep.subr.bf16.mxu0 0
        %4681 = vmatpush1.bf16.msra.mxu0 0
        %4682 = vmatprep.subr.bf16.mxu0 0
        %4683 = vmatpush1.bf16.msra.mxu0 0
        %4684 = vmatprep.subr.bf16.mxu0 0
        %4685 = vmatpush1.bf16.msra.mxu0 0
        %4686 = vmatprep.subr.bf16.mxu0 0
        %4687 = vmatpush1.bf16.msra.mxu0 0
        %4688 = vmatprep.subr.bf16.mxu0 0
        %4689 = vmatpush1.bf16.msra.mxu0 0
        %4690 = vmatprep.subr.bf16.mxu0 0
        %4691 = vmatpush1.bf16.msra.mxu0 0
        %4692 = vmatprep.subr.bf16.mxu0 0
        %4693 = vmatpush1.bf16.msra.mxu0 0
        %4694 = vmatprep.subr.bf16.mxu0 0
        %4695 = vmatpush1.bf16.msra.mxu0 %v4628
        %4696 = vmatprep.subr.bf16.mxu0 0
        %4697 = vmatpush2.bf16.msra.mxu0 0
        %4698 = vmatprep.subr.bf16.mxu0 0
        %4699 = vmatpush2.bf16.msra.mxu0 0
        %4700 = vmatprep.subr.bf16.mxu0 0
        %4701 = vmatpush2.bf16.msra.mxu0 0
        %4702 = vmatprep.subr.bf16.mxu0 0
        %4703 = vmatpush2.bf16.msra.mxu0 0
        %4704 = vmatprep.subr.bf16.mxu0 0
        %4705 = vmatpush2.bf16.msra.mxu0 0
        %4706 = vmatprep.subr.bf16.mxu0 0
        %4707 = vmatpush2.bf16.msra.mxu0 0
        %4708 = vmatprep.subr.bf16.mxu0 0
        %4709 = vmatpush2.bf16.msra.mxu0 0
        %4710 = vmatprep.subr.bf16.mxu0 0
        %4711 = vmatpush2.bf16.msra.mxu0 0
        %4712 = vmatprep.mubr.bf16.mxu0 0
        %4713 = vmatmul.mubr.bf16.gmra.mxu0 %v4635
        %v4714 = vpop.f32.mrf.mxu0
        %v4715 = vadd.f32 0.0, %v4714
        %v4716 = vpop.f32.mrf.mxu0
        %v4717 = vpop.f32.mrf.mxu0
        %v4718 = vadd.f32 0.0, %v4717
        %v4719 = vpop.f32.mrf.mxu0
        %4720 = vdwg.mxu0
        %v4721 = vadd.f32 %v4609, %v4672
        %v4722 = vadd.f32 %v4610, %v4674
        %v4723 = vadd.f32 %v4611, %v4715
        %v4724 = vadd.f32 %v4612, %v4676
        %v4725 = vadd.f32 %v4613, %v4678
        %v4726 = vadd.f32 %v4614, %v4718
        %s4727 = scalar_lea.vmem %s9, 64
        %v4728 = vld [vmem:[%s4727] sm:$0xf]
        %v4729 = vld [vmem:[%s4727 + $0x4] sm:$0xf]
        %v4732 = vunpack.c.l.b16 %v4728
        %v4733 = vunpack.c.l.b16 %v4729
        %v4734 = vpack.c.b16 %v4733, %v4732
        %4735 = vrot.lane.b32.xlu0 %v4292, 109
        %v4736 = vpop.permute.xlu0 %4735
        %4737 = vrot.lane.b32.xlu0 %v4293, 109
        %v4738 = vpop.permute.xlu0 %4737
        %4739 = vrot.lane.b32.xlu0 %v4294, 109
        %v4740 = vpop.permute.xlu0 %4739
        %v4741 = vsel %vm1514, %v4736, %v4738
        %v4742 = vsel %vm1514, %v4738, %v4740
        %v4747 = vsel %vm2738, %v4734, 0
        %4749 = vmatprep.subr.bf16.mxu0 0
        %4750 = vmatpush1.bf16.msra.mxu0 0
        %4751 = vmatprep.subr.bf16.mxu0 0
        %4752 = vmatpush1.bf16.msra.mxu0 0
        %4753 = vmatprep.subr.bf16.mxu0 0
        %4754 = vmatpush1.bf16.msra.mxu0 0
        %4755 = vmatprep.subr.bf16.mxu0 0
        %4756 = vmatpush1.bf16.msra.mxu0 0
        %4757 = vmatprep.subr.bf16.mxu0 0
        %4758 = vmatpush1.bf16.msra.mxu0 0
        %4759 = vmatprep.subr.bf16.mxu0 0
        %4760 = vmatpush1.bf16.msra.mxu0 0
        %4761 = vmatprep.subr.bf16.mxu0 0
        %4762 = vmatpush1.bf16.msra.mxu0 0
        %4763 = vmatprep.subr.bf16.mxu0 %v4742
        %4764 = vmatpush1.bf16.msra.mxu0 %v4741
        %4765 = vmatprep.subr.bf16.mxu0 0
        %4766 = vmatpush2.bf16.msra.mxu0 0
        %4767 = vmatprep.subr.bf16.mxu0 0
        %4768 = vmatpush2.bf16.msra.mxu0 0
        %4769 = vmatprep.subr.bf16.mxu0 0
        %4770 = vmatpush2.bf16.msra.mxu0 0
        %4771 = vmatprep.subr.bf16.mxu0 0
        %4772 = vmatpush2.bf16.msra.mxu0 0
        %4773 = vmatprep.subr.bf16.mxu0 0
        %4774 = vmatpush2.bf16.msra.mxu0 0
        %4775 = vmatprep.subr.bf16.mxu0 0
        %4776 = vmatpush2.bf16.msra.mxu0 0
        %4777 = vmatprep.subr.bf16.mxu0 0
        %4778 = vmatpush2.bf16.msra.mxu0 0
        %4779 = vmatprep.subr.bf16.mxu0 0
        %4780 = vmatpush2.bf16.msra.mxu0 0
        %4781 = vmatprep.mubr.bf16.mxu0 0
        %4782 = vmatmul.mubr.bf16.gmra.mxu0 %v4747
        %v4783 = vpop.f32.mrf.mxu0
        %v4784 = vadd.f32 0.0, %v4783
        %v4785 = vpop.f32.mrf.mxu0
        %v4786 = vadd.f32 0.0, %v4785
        %v4787 = vpop.f32.mrf.mxu0
        %v4788 = vadd.f32 0.0, %v4787
        %v4789 = vpop.f32.mrf.mxu0
        %v4790 = vadd.f32 0.0, %v4789
        %4791 = vdwg.mxu0
        %4792 = vmatprep.subr.bf16.mxu0 0
        %4793 = vmatpush1.bf16.msra.mxu0 0
        %4794 = vmatprep.subr.bf16.mxu0 0
        %4795 = vmatpush1.bf16.msra.mxu0 0
        %4796 = vmatprep.subr.bf16.mxu0 0
        %4797 = vmatpush1.bf16.msra.mxu0 0
        %4798 = vmatprep.subr.bf16.mxu0 0
        %4799 = vmatpush1.bf16.msra.mxu0 0
        %4800 = vmatprep.subr.bf16.mxu0 0
        %4801 = vmatpush1.bf16.msra.mxu0 0
        %4802 = vmatprep.subr.bf16.mxu0 0
        %4803 = vmatpush1.bf16.msra.mxu0 0
        %4804 = vmatprep.subr.bf16.mxu0 0
        %4805 = vmatpush1.bf16.msra.mxu0 0
        %4806 = vmatprep.subr.bf16.mxu0 0
        %4807 = vmatpush1.bf16.msra.mxu0 %v4740
        %4808 = vmatprep.subr.bf16.mxu0 0
        %4809 = vmatpush2.bf16.msra.mxu0 0
        %4810 = vmatprep.subr.bf16.mxu0 0
        %4811 = vmatpush2.bf16.msra.mxu0 0
        %4812 = vmatprep.subr.bf16.mxu0 0
        %4813 = vmatpush2.bf16.msra.mxu0 0
        %4814 = vmatprep.subr.bf16.mxu0 0
        %4815 = vmatpush2.bf16.msra.mxu0 0
        %4816 = vmatprep.subr.bf16.mxu0 0
        %4817 = vmatpush2.bf16.msra.mxu0 0
        %4818 = vmatprep.subr.bf16.mxu0 0
        %4819 = vmatpush2.bf16.msra.mxu0 0
        %4820 = vmatprep.subr.bf16.mxu0 0
        %4821 = vmatpush2.bf16.msra.mxu0 0
        %4822 = vmatprep.subr.bf16.mxu0 0
        %4823 = vmatpush2.bf16.msra.mxu0 0
        %4824 = vmatprep.mubr.bf16.mxu0 0
        %4825 = vmatmul.mubr.bf16.gmra.mxu0 %v4747
        %v4826 = vpop.f32.mrf.mxu0
        %v4827 = vadd.f32 0.0, %v4826
        %v4828 = vpop.f32.mrf.mxu0
        %v4829 = vpop.f32.mrf.mxu0
        %v4830 = vadd.f32 0.0, %v4829
        %v4831 = vpop.f32.mrf.mxu0
        %4832 = vdwg.mxu0
        %v4833 = vadd.f32 %v4721, %v4784
        %v4834 = vadd.f32 %v4722, %v4786
        %v4835 = vadd.f32 %v4723, %v4827
        %v4836 = vadd.f32 %v4724, %v4788
        %v4837 = vadd.f32 %v4725, %v4790
        %v4838 = vadd.f32 %v4726, %v4830
        %v4839 = vld [vmem:[%s10] sm:$0xff]
        %v4840 = vld [vmem:[%s10 + $0x8] sm:$0xff]
        %4842 = vset.pattern.permute.xlu0 0
        %4843 = vperm.xlu0 %4842, %v4839
        %v4844 = vpop.permute.xlu0 %4843
        %4847 = vset.pattern.permute.xlu0 0
        %4848 = vperm.xlu0 %4847, %v4840
        %v4849 = vpop.permute.xlu0 %4848
        %v4851 = vmul.f32 %v4833, %v4844
        %v4852 = vmul.f32 %v4834, %v4844
        %v4853 = vmul.f32 %v4835, %v4844
        %v4854 = vmul.f32 %v4836, %v4849
        %v4855 = vmul.f32 %v4837, %v4849
        %v4856 = vmul.f32 %v4838, %v4849
        %v4857 = vld [vmem:[%s11] sm:$0xff]
        %v4858 = vld [vmem:[%s11 + $0x8] sm:$0xff]
        %4860 = vset.pattern.permute.xlu0 0
        %4861 = vperm.xlu0 %4860, %v4857
        %v4862 = vpop.permute.xlu0 %4861
        %4865 = vset.pattern.permute.xlu0 0
        %4866 = vperm.xlu0 %4865, %v4858
        %v4867 = vpop.permute.xlu0 %4866
        %v4869 = vadd.f32 %v4851, %v4862
        %v4870 = vadd.f32 %v4852, %v4862
        %v4871 = vadd.f32 %v4853, %v4862
        %v4872 = vadd.f32 %v4854, %v4867
        %v4873 = vadd.f32 %v4855, %v4867
        %v4874 = vadd.f32 %v4856, %v4867
        %v4875 = vmax.f32 %v4869, 0.0
        %v4876 = vmax.f32 %v4870, 0.0
        %v4877 = vmax.f32 %v4871, 0.0
        %v4878 = vmax.f32 %v4872, 0.0
        %v4879 = vmax.f32 %v4873, 0.0
        %v4880 = vmax.f32 %v4874, 0.0
        %v4881 = vsel %vm1647, %v4875, 0.0
        %v4882 = vsel %vm1648, %v4876, 0.0
        %v4883 = vsel %vm1649, %v4877, 0.0
        %v4884 = vsel %vm1647, %v4878, 0.0
        %v4885 = vsel %vm1648, %v4879, 0.0
        %v4886 = vsel %vm1649, %v4880, 0.0
        %v4887 = vpack.c.bf16 %v4884, %v4881
        %v4888 = vpack.c.bf16 %v4885, %v4882
        %v4889 = vpack.c.bf16 %v4886, %v4883
        %v4893 = vunpack.c.l.b16 %v4887
        %v4894 = vunpack.c.l.b16 %v4888
        %v4895 = vunpack.c.l.b16 %v4889
        %v4896 = vunpack.c.h.b16 %v4887
        %v4897 = vunpack.c.h.b16 %v4888
        %v4898 = vunpack.c.h.b16 %v4889
        %v4899 = vpack.c.b16 %v4894, %v4893
        %v4900 = vpack.c.b16 %v4895, %v4895
        %v4901 = vpack.c.b16 %v4897, %v4896
        %v4902 = vpack.c.b16 %v4898, %v4898
        %4907 = vst [vmem:[#allocation2 + $0x4] sm:$0xff] %v4899
        %4908 = vst.msk [vmem:[#allocation2 + $0xc] sm:$0xf] %vm2680, %v4900
        %4909 = vst [vmem:[#allocation2 + $0x14] sm:$0xff] %v4901
        %4910 = vst.msk [vmem:[#allocation2 + $0x1c] sm:$0xf] %vm2680, %v4902
        %v4911 = vld [vmem:[#allocation2] sm:$0xff]
        %v4912 = vld [vmem:[#allocation2 + $0x8] sm:$0xff]
        %v4913 = vld [vmem:[#allocation2 + $0x10] sm:$0xff]
        %v4914 = vld [vmem:[#allocation2 + $0x18] sm:$0xff]
        %v4915 = vld [vmem:[%s12] sm:$0xf]
        %s4916 = scalar_lea.vmem %s12, 4
        %v4917 = vld [vmem:[%s4916] sm:$0xf]
        %v4922 = vunpack.c.l.b16 %v4911
        %v4923 = vunpack.c.h.b16 %v4911
        %v4924 = vunpack.c.l.b16 %v4912
        %v4925 = vunpack.c.h.b16 %v4912
        %v4926 = vunpack.c.l.b16 %v4913
        %v4927 = vunpack.c.h.b16 %v4913
        %v4928 = vunpack.c.l.b16 %v4914
        %v4929 = vunpack.c.h.b16 %v4914
        %v4930 = vpack.c.b16 %v4926, %v4922
        %v4931 = vpack.c.b16 %v4927, %v4923
        %v4932 = vpack.c.b16 %v4928, %v4924
        %v4933 = vpack.c.b16 %v4929, %v4925
        %4934 = vrot.lane.b32.xlu0 %v4930, 18
        %v4935 = vpop.permute.xlu0 %4934
        %4936 = vrot.lane.b32.xlu0 %v4931, 18
        %v4937 = vpop.permute.xlu0 %4936
        %4938 = vrot.lane.b32.xlu0 %v4932, 18
        %v4939 = vpop.permute.xlu0 %4938
        %4940 = vrot.lane.b32.xlu0 %v4933, 18
        %v4941 = vpop.permute.xlu0 %4940
        %v4942 = vsel %vm653, %v4935, %v4937
        %v4943 = vsel %vm653, %v4937, %v4939
        %v4944 = vsel %vm653, %v4939, %v4941
        %v4949 = vsel %vm2738, %v4917, 0
        %4951 = vmatprep.subr.bf16.mxu0 0
        %4952 = vmatpush1.bf16.msra.mxu0 0
        %4953 = vmatprep.subr.bf16.mxu0 0
        %4954 = vmatpush1.bf16.msra.mxu0 0
        %4955 = vmatprep.subr.bf16.mxu0 0
        %4956 = vmatpush1.bf16.msra.mxu0 0
        %4957 = vmatprep.subr.bf16.mxu0 0
        %4958 = vmatpush1.bf16.msra.mxu0 0
        %4959 = vmatprep.subr.bf16.mxu0 0
        %4960 = vmatpush1.bf16.msra.mxu0 0
        %4961 = vmatprep.subr.bf16.mxu0 0
        %4962 = vmatpush1.bf16.msra.mxu0 0
        %4963 = vmatprep.subr.bf16.mxu0 0
        %4964 = vmatpush1.bf16.msra.mxu0 0
        %4965 = vmatprep.subr.bf16.mxu0 %v4943
        %4966 = vmatpush1.bf16.msra.mxu0 %v4942
        %4967 = vmatprep.subr.bf16.mxu0 0
        %4968 = vmatpush2.bf16.msra.mxu0 0
        %4969 = vmatprep.subr.bf16.mxu0 0
        %4970 = vmatpush2.bf16.msra.mxu0 0
        %4971 = vmatprep.subr.bf16.mxu0 0
        %4972 = vmatpush2.bf16.msra.mxu0 0
        %4973 = vmatprep.subr.bf16.mxu0 0
        %4974 = vmatpush2.bf16.msra.mxu0 0
        %4975 = vmatprep.subr.bf16.mxu0 0
        %4976 = vmatpush2.bf16.msra.mxu0 0
        %4977 = vmatprep.subr.bf16.mxu0 0
        %4978 = vmatpush2.bf16.msra.mxu0 0
        %4979 = vmatprep.subr.bf16.mxu0 0
        %4980 = vmatpush2.bf16.msra.mxu0 0
        %4981 = vmatprep.subr.bf16.mxu0 0
        %4982 = vmatpush2.bf16.msra.mxu0 0
        %4983 = vmatprep.mubr.bf16.mxu0 0
        %4984 = vmatmul.mubr.bf16.gmra.mxu0 %v4949
        %v4985 = vpop.f32.mrf.mxu0
        %v4986 = vadd.f32 0.0, %v4985
        %v4987 = vpop.f32.mrf.mxu0
        %v4988 = vadd.f32 0.0, %v4987
        %v4989 = vpop.f32.mrf.mxu0
        %v4990 = vpop.f32.mrf.mxu0
        %4991 = vdwg.mxu0
        %4992 = vmatprep.subr.bf16.mxu0 0
        %4993 = vmatpush1.bf16.msra.mxu0 0
        %4994 = vmatprep.subr.bf16.mxu0 0
        %4995 = vmatpush1.bf16.msra.mxu0 0
        %4996 = vmatprep.subr.bf16.mxu0 0
        %4997 = vmatpush1.bf16.msra.mxu0 0
        %4998 = vmatprep.subr.bf16.mxu0 0
        %4999 = vmatpush1.bf16.msra.mxu0 0
        %5000 = vmatprep.subr.bf16.mxu0 0
        %5001 = vmatpush1.bf16.msra.mxu0 0
        %5002 = vmatprep.subr.bf16.mxu0 0
        %5003 = vmatpush1.bf16.msra.mxu0 0
        %5004 = vmatprep.subr.bf16.mxu0 0
        %5005 = vmatpush1.bf16.msra.mxu0 0
        %5006 = vmatprep.subr.bf16.mxu0 0
        %5007 = vmatpush1.bf16.msra.mxu0 %v4944
        %5008 = vmatprep.subr.bf16.mxu0 0
        %5009 = vmatpush2.bf16.msra.mxu0 0
        %5010 = vmatprep.subr.bf16.mxu0 0
        %5011 = vmatpush2.bf16.msra.mxu0 0
        %5012 = vmatprep.subr.bf16.mxu0 0
        %5013 = vmatpush2.bf16.msra.mxu0 0
        %5014 = vmatprep.subr.bf16.mxu0 0
        %5015 = vmatpush2.bf16.msra.mxu0 0
        %5016 = vmatprep.subr.bf16.mxu0 0
        %5017 = vmatpush2.bf16.msra.mxu0 0
        %5018 = vmatprep.subr.bf16.mxu0 0
        %5019 = vmatpush2.bf16.msra.mxu0 0
        %5020 = vmatprep.subr.bf16.mxu0 0
        %5021 = vmatpush2.bf16.msra.mxu0 0
        %5022 = vmatprep.subr.bf16.mxu0 0
        %5023 = vmatpush2.bf16.msra.mxu0 0
        %5024 = vmatprep.mubr.bf16.mxu0 0
        %5025 = vmatmul.mubr.bf16.gmra.mxu0 %v4949
        %v5026 = vpop.f32.mrf.mxu0
        %v5027 = vadd.f32 0.0, %v5026
        %v5028 = vpop.f32.mrf.mxu0
        %v5029 = vpop.f32.mrf.mxu0
        %v5030 = vpop.f32.mrf.mxu0
        %5031 = vdwg.mxu0
        %5032 = vrot.lane.b32.xlu0 %v4930, 19
        %v5033 = vpop.permute.xlu0 %5032
        %5034 = vrot.lane.b32.xlu0 %v4931, 19
        %v5035 = vpop.permute.xlu0 %5034
        %5036 = vrot.lane.b32.xlu0 %v4932, 19
        %v5037 = vpop.permute.xlu0 %5036
        %5038 = vrot.lane.b32.xlu0 %v4933, 19
        %v5039 = vpop.permute.xlu0 %5038
        %v5040 = vsel %vm760, %v5033, %v5035
        %v5041 = vsel %vm760, %v5035, %v5037
        %v5042 = vsel %vm760, %v5037, %v5039
        %v5047 = vsel %vm2738, %v4915, 0
        %5049 = vmatprep.subr.bf16.mxu0 0
        %5050 = vmatpush1.bf16.msra.mxu0 0
        %5051 = vmatprep.subr.bf16.mxu0 0
        %5052 = vmatpush1.bf16.msra.mxu0 0
        %5053 = vmatprep.subr.bf16.mxu0 0
        %5054 = vmatpush1.bf16.msra.mxu0 0
        %5055 = vmatprep.subr.bf16.mxu0 0
        %5056 = vmatpush1.bf16.msra.mxu0 0
        %5057 = vmatprep.subr.bf16.mxu0 0
        %5058 = vmatpush1.bf16.msra.mxu0 0
        %5059 = vmatprep.subr.bf16.mxu0 0
        %5060 = vmatpush1.bf16.msra.mxu0 0
        %5061 = vmatprep.subr.bf16.mxu0 0
        %5062 = vmatpush1.bf16.msra.mxu0 0
        %5063 = vmatprep.subr.bf16.mxu0 %v5041
        %5064 = vmatpush1.bf16.msra.mxu0 %v5040
        %5065 = vmatprep.subr.bf16.mxu0 0
        %5066 = vmatpush2.bf16.msra.mxu0 0
        %5067 = vmatprep.subr.bf16.mxu0 0
        %5068 = vmatpush2.bf16.msra.mxu0 0
        %5069 = vmatprep.subr.bf16.mxu0 0
        %5070 = vmatpush2.bf16.msra.mxu0 0
        %5071 = vmatprep.subr.bf16.mxu0 0
        %5072 = vmatpush2.bf16.msra.mxu0 0
        %5073 = vmatprep.subr.bf16.mxu0 0
        %5074 = vmatpush2.bf16.msra.mxu0 0
        %5075 = vmatprep.subr.bf16.mxu0 0
        %5076 = vmatpush2.bf16.msra.mxu0 0
        %5077 = vmatprep.subr.bf16.mxu0 0
        %5078 = vmatpush2.bf16.msra.mxu0 0
        %5079 = vmatprep.subr.bf16.mxu0 0
        %5080 = vmatpush2.bf16.msra.mxu0 0
        %5081 = vmatprep.mubr.bf16.mxu0 0
        %5082 = vmatmul.mubr.bf16.gmra.mxu0 %v5047
        %v5083 = vpop.f32.mrf.mxu0
        %v5084 = vadd.f32 %v4986, %v5083
        %v5085 = vpop.f32.mrf.mxu0
        %v5086 = vadd.f32 %v4988, %v5085
        %v5087 = vpop.f32.mrf.mxu0
        %v5088 = vpop.f32.mrf.mxu0
        %5089 = vdwg.mxu0
        %5090 = vmatprep.subr.bf16.mxu0 0
        %5091 = vmatpush1.bf16.msra.mxu0 0
        %5092 = vmatprep.subr.bf16.mxu0 0
        %5093 = vmatpush1.bf16.msra.mxu0 0
        %5094 = vmatprep.subr.bf16.mxu0 0
        %5095 = vmatpush1.bf16.msra.mxu0 0
        %5096 = vmatprep.subr.bf16.mxu0 0
        %5097 = vmatpush1.bf16.msra.mxu0 0
        %5098 = vmatprep.subr.bf16.mxu0 0
        %5099 = vmatpush1.bf16.msra.mxu0 0
        %5100 = vmatprep.subr.bf16.mxu0 0
        %5101 = vmatpush1.bf16.msra.mxu0 0
        %5102 = vmatprep.subr.bf16.mxu0 0
        %5103 = vmatpush1.bf16.msra.mxu0 0
        %5104 = vmatprep.subr.bf16.mxu0 0
        %5105 = vmatpush1.bf16.msra.mxu0 %v5042
        %5106 = vmatprep.subr.bf16.mxu0 0
        %5107 = vmatpush2.bf16.msra.mxu0 0
        %5108 = vmatprep.subr.bf16.mxu0 0
        %5109 = vmatpush2.bf16.msra.mxu0 0
        %5110 = vmatprep.subr.bf16.mxu0 0
        %5111 = vmatpush2.bf16.msra.mxu0 0
        %5112 = vmatprep.subr.bf16.mxu0 0
        %5113 = vmatpush2.bf16.msra.mxu0 0
        %5114 = vmatprep.subr.bf16.mxu0 0
        %5115 = vmatpush2.bf16.msra.mxu0 0
        %5116 = vmatprep.subr.bf16.mxu0 0
        %5117 = vmatpush2.bf16.msra.mxu0 0
        %5118 = vmatprep.subr.bf16.mxu0 0
        %5119 = vmatpush2.bf16.msra.mxu0 0
        %5120 = vmatprep.subr.bf16.mxu0 0
        %5121 = vmatpush2.bf16.msra.mxu0 0
        %5122 = vmatprep.mubr.bf16.mxu0 0
        %5123 = vmatmul.mubr.bf16.gmra.mxu0 %v5047
        %v5124 = vpop.f32.mrf.mxu0
        %v5125 = vadd.f32 %v5027, %v5124
        %v5126 = vpop.f32.mrf.mxu0
        %v5127 = vpop.f32.mrf.mxu0
        %v5128 = vpop.f32.mrf.mxu0
        %5129 = vdwg.mxu0
        %s5130 = scalar_lea.vmem %s12, 8
        %v5131 = vld [vmem:[%s5130] sm:$0xf]
        %5132 = vrot.lane.b32.xlu0 %v4930, 17
        %v5133 = vpop.permute.xlu0 %5132
        %5134 = vrot.lane.b32.xlu0 %v4931, 17
        %v5135 = vpop.permute.xlu0 %5134
        %5136 = vrot.lane.b32.xlu0 %v4932, 17
        %v5137 = vpop.permute.xlu0 %5136
        %5138 = vrot.lane.b32.xlu0 %v4933, 17
        %v5139 = vpop.permute.xlu0 %5138
        %v5140 = vsel %vm867, %v5133, %v5135
        %v5141 = vsel %vm867, %v5135, %v5137
        %v5142 = vsel %vm867, %v5137, %v5139
        %v5147 = vsel %vm2738, %v5131, 0
        %5149 = vmatprep.subr.bf16.mxu0 0
        %5150 = vmatpush1.bf16.msra.mxu0 0
        %5151 = vmatprep.subr.bf16.mxu0 0
        %5152 = vmatpush1.bf16.msra.mxu0 0
        %5153 = vmatprep.subr.bf16.mxu0 0
        %5154 = vmatpush1.bf16.msra.mxu0 0
        %5155 = vmatprep.subr.bf16.mxu0 0
        %5156 = vmatpush1.bf16.msra.mxu0 0
        %5157 = vmatprep.subr.bf16.mxu0 0
        %5158 = vmatpush1.bf16.msra.mxu0 0
        %5159 = vmatprep.subr.bf16.mxu0 0
        %5160 = vmatpush1.bf16.msra.mxu0 0
        %5161 = vmatprep.subr.bf16.mxu0 0
        %5162 = vmatpush1.bf16.msra.mxu0 0
        %5163 = vmatprep.subr.bf16.mxu0 %v5141
        %5164 = vmatpush1.bf16.msra.mxu0 %v5140
        %5165 = vmatprep.subr.bf16.mxu0 0
        %5166 = vmatpush2.bf16.msra.mxu0 0
        %5167 = vmatprep.subr.bf16.mxu0 0
        %5168 = vmatpush2.bf16.msra.mxu0 0
        %5169 = vmatprep.subr.bf16.mxu0 0
        %5170 = vmatpush2.bf16.msra.mxu0 0
        %5171 = vmatprep.subr.bf16.mxu0 0
        %5172 = vmatpush2.bf16.msra.mxu0 0
        %5173 = vmatprep.subr.bf16.mxu0 0
        %5174 = vmatpush2.bf16.msra.mxu0 0
        %5175 = vmatprep.subr.bf16.mxu0 0
        %5176 = vmatpush2.bf16.msra.mxu0 0
        %5177 = vmatprep.subr.bf16.mxu0 0
        %5178 = vmatpush2.bf16.msra.mxu0 0
        %5179 = vmatprep.subr.bf16.mxu0 0
        %5180 = vmatpush2.bf16.msra.mxu0 0
        %5181 = vmatprep.mubr.bf16.mxu0 0
        %5182 = vmatmul.mubr.bf16.gmra.mxu0 %v5147
        %v5183 = vpop.f32.mrf.mxu0
        %v5184 = vadd.f32 0.0, %v5183
        %v5185 = vpop.f32.mrf.mxu0
        %v5186 = vadd.f32 0.0, %v5185
        %v5187 = vpop.f32.mrf.mxu0
        %v5188 = vpop.f32.mrf.mxu0
        %5189 = vdwg.mxu0
        %5190 = vmatprep.subr.bf16.mxu0 0
        %5191 = vmatpush1.bf16.msra.mxu0 0
        %5192 = vmatprep.subr.bf16.mxu0 0
        %5193 = vmatpush1.bf16.msra.mxu0 0
        %5194 = vmatprep.subr.bf16.mxu0 0
        %5195 = vmatpush1.bf16.msra.mxu0 0
        %5196 = vmatprep.subr.bf16.mxu0 0
        %5197 = vmatpush1.bf16.msra.mxu0 0
        %5198 = vmatprep.subr.bf16.mxu0 0
        %5199 = vmatpush1.bf16.msra.mxu0 0
        %5200 = vmatprep.subr.bf16.mxu0 0
        %5201 = vmatpush1.bf16.msra.mxu0 0
        %5202 = vmatprep.subr.bf16.mxu0 0
        %5203 = vmatpush1.bf16.msra.mxu0 0
        %5204 = vmatprep.subr.bf16.mxu0 0
        %5205 = vmatpush1.bf16.msra.mxu0 %v5142
        %5206 = vmatprep.subr.bf16.mxu0 0
        %5207 = vmatpush2.bf16.msra.mxu0 0
        %5208 = vmatprep.subr.bf16.mxu0 0
        %5209 = vmatpush2.bf16.msra.mxu0 0
        %5210 = vmatprep.subr.bf16.mxu0 0
        %5211 = vmatpush2.bf16.msra.mxu0 0
        %5212 = vmatprep.subr.bf16.mxu0 0
        %5213 = vmatpush2.bf16.msra.mxu0 0
        %5214 = vmatprep.subr.bf16.mxu0 0
        %5215 = vmatpush2.bf16.msra.mxu0 0
        %5216 = vmatprep.subr.bf16.mxu0 0
        %5217 = vmatpush2.bf16.msra.mxu0 0
        %5218 = vmatprep.subr.bf16.mxu0 0
        %5219 = vmatpush2.bf16.msra.mxu0 0
        %5220 = vmatprep.subr.bf16.mxu0 0
        %5221 = vmatpush2.bf16.msra.mxu0 0
        %5222 = vmatprep.mubr.bf16.mxu0 0
        %5223 = vmatmul.mubr.bf16.gmra.mxu0 %v5147
        %v5224 = vpop.f32.mrf.mxu0
        %v5225 = vadd.f32 0.0, %v5224
        %v5226 = vpop.f32.mrf.mxu0
        %v5227 = vpop.f32.mrf.mxu0
        %v5228 = vpop.f32.mrf.mxu0
        %5229 = vdwg.mxu0
        %v5230 = vadd.f32 %v5084, %v5184
        %v5231 = vadd.f32 %v5086, %v5186
        %v5232 = vadd.f32 %v5125, %v5225
        %s5233 = scalar_lea.vmem %s12, 12
        %v5234 = vld [vmem:[%s5233] sm:$0xf]
        %5235 = vrot.lane.b32.xlu0 %v4930, 1
        %v5236 = vpop.permute.xlu0 %5235
        %5237 = vrot.lane.b32.xlu0 %v4931, 1
        %v5238 = vpop.permute.xlu0 %5237
        %5239 = vrot.lane.b32.xlu0 %v4932, 1
        %v5240 = vpop.permute.xlu0 %5239
        %5241 = vrot.lane.b32.xlu0 %v4933, 1
        %v5242 = vpop.permute.xlu0 %5241
        %v5243 = vsel %vm977, %v5236, %v5238
        %v5244 = vsel %vm977, %v5238, %v5240
        %v5245 = vsel %vm977, %v5240, %v5242
        %v5250 = vsel %vm2738, %v5234, 0
        %5252 = vmatprep.subr.bf16.mxu0 0
        %5253 = vmatpush1.bf16.msra.mxu0 0
        %5254 = vmatprep.subr.bf16.mxu0 0
        %5255 = vmatpush1.bf16.msra.mxu0 0
        %5256 = vmatprep.subr.bf16.mxu0 0
        %5257 = vmatpush1.bf16.msra.mxu0 0
        %5258 = vmatprep.subr.bf16.mxu0 0
        %5259 = vmatpush1.bf16.msra.mxu0 0
        %5260 = vmatprep.subr.bf16.mxu0 0
        %5261 = vmatpush1.bf16.msra.mxu0 0
        %5262 = vmatprep.subr.bf16.mxu0 0
        %5263 = vmatpush1.bf16.msra.mxu0 0
        %5264 = vmatprep.subr.bf16.mxu0 0
        %5265 = vmatpush1.bf16.msra.mxu0 0
        %5266 = vmatprep.subr.bf16.mxu0 %v5244
        %5267 = vmatpush1.bf16.msra.mxu0 %v5243
        %5268 = vmatprep.subr.bf16.mxu0 0
        %5269 = vmatpush2.bf16.msra.mxu0 0
        %5270 = vmatprep.subr.bf16.mxu0 0
        %5271 = vmatpush2.bf16.msra.mxu0 0
        %5272 = vmatprep.subr.bf16.mxu0 0
        %5273 = vmatpush2.bf16.msra.mxu0 0
        %5274 = vmatprep.subr.bf16.mxu0 0
        %5275 = vmatpush2.bf16.msra.mxu0 0
        %5276 = vmatprep.subr.bf16.mxu0 0
        %5277 = vmatpush2.bf16.msra.mxu0 0
        %5278 = vmatprep.subr.bf16.mxu0 0
        %5279 = vmatpush2.bf16.msra.mxu0 0
        %5280 = vmatprep.subr.bf16.mxu0 0
        %5281 = vmatpush2.bf16.msra.mxu0 0
        %5282 = vmatprep.subr.bf16.mxu0 0
        %5283 = vmatpush2.bf16.msra.mxu0 0
        %5284 = vmatprep.mubr.bf16.mxu0 0
        %5285 = vmatmul.mubr.bf16.gmra.mxu0 %v5250
        %v5286 = vpop.f32.mrf.mxu0
        %v5287 = vadd.f32 0.0, %v5286
        %v5288 = vpop.f32.mrf.mxu0
        %v5289 = vadd.f32 0.0, %v5288
        %v5290 = vpop.f32.mrf.mxu0
        %v5291 = vpop.f32.mrf.mxu0
        %5292 = vdwg.mxu0
        %5293 = vmatprep.subr.bf16.mxu0 0
        %5294 = vmatpush1.bf16.msra.mxu0 0
        %5295 = vmatprep.subr.bf16.mxu0 0
        %5296 = vmatpush1.bf16.msra.mxu0 0
        %5297 = vmatprep.subr.bf16.mxu0 0
        %5298 = vmatpush1.bf16.msra.mxu0 0
        %5299 = vmatprep.subr.bf16.mxu0 0
        %5300 = vmatpush1.bf16.msra.mxu0 0
        %5301 = vmatprep.subr.bf16.mxu0 0
        %5302 = vmatpush1.bf16.msra.mxu0 0
        %5303 = vmatprep.subr.bf16.mxu0 0
        %5304 = vmatpush1.bf16.msra.mxu0 0
        %5305 = vmatprep.subr.bf16.mxu0 0
        %5306 = vmatpush1.bf16.msra.mxu0 0
        %5307 = vmatprep.subr.bf16.mxu0 0
        %5308 = vmatpush1.bf16.msra.mxu0 %v5245
        %5309 = vmatprep.subr.bf16.mxu0 0
        %5310 = vmatpush2.bf16.msra.mxu0 0
        %5311 = vmatprep.subr.bf16.mxu0 0
        %5312 = vmatpush2.bf16.msra.mxu0 0
        %5313 = vmatprep.subr.bf16.mxu0 0
        %5314 = vmatpush2.bf16.msra.mxu0 0
        %5315 = vmatprep.subr.bf16.mxu0 0
        %5316 = vmatpush2.bf16.msra.mxu0 0
        %5317 = vmatprep.subr.bf16.mxu0 0
        %5318 = vmatpush2.bf16.msra.mxu0 0
        %5319 = vmatprep.subr.bf16.mxu0 0
        %5320 = vmatpush2.bf16.msra.mxu0 0
        %5321 = vmatprep.subr.bf16.mxu0 0
        %5322 = vmatpush2.bf16.msra.mxu0 0
        %5323 = vmatprep.subr.bf16.mxu0 0
        %5324 = vmatpush2.bf16.msra.mxu0 0
        %5325 = vmatprep.mubr.bf16.mxu0 0
        %5326 = vmatmul.mubr.bf16.gmra.mxu0 %v5250
        %v5327 = vpop.f32.mrf.mxu0
        %v5328 = vadd.f32 0.0, %v5327
        %v5329 = vpop.f32.mrf.mxu0
        %v5330 = vpop.f32.mrf.mxu0
        %v5331 = vpop.f32.mrf.mxu0
        %5332 = vdwg.mxu0
        %v5333 = vadd.f32 %v5230, %v5287
        %v5334 = vadd.f32 %v5231, %v5289
        %v5335 = vadd.f32 %v5232, %v5328
        %v5336 = vld [vmem:[#allocation2 + $0x4] sm:$0xff]
        %v5337 = vld [vmem:[#allocation2 + $0xc] sm:$0xf]
        %v5338 = vld [vmem:[#allocation2 + $0x14] sm:$0xff]
        %v5339 = vld [vmem:[#allocation2 + $0x1c] sm:$0xf]
        %s5340 = scalar_lea.vmem %s12, 16
        %v5341 = vld [vmem:[%s5340] sm:$0xf]
        %v5346 = vunpack.c.l.b16 %v5336
        %v5347 = vunpack.c.h.b16 %v5336
        %v5348 = vunpack.c.l.b16 %v5337
        %v5349 = vunpack.c.l.b16 %v5338
        %v5350 = vunpack.c.h.b16 %v5338
        %v5351 = vunpack.c.l.b16 %v5339
        %v5352 = vpack.c.b16 %v5349, %v5346
        %v5353 = vpack.c.b16 %v5350, %v5347
        %v5354 = vpack.c.b16 %v5351, %v5348
        %v5359 = vsel %vm2738, %v5341, 0
        %5361 = vmatprep.subr.bf16.mxu0 0
        %5362 = vmatpush1.bf16.msra.mxu0 0
        %5363 = vmatprep.subr.bf16.mxu0 0
        %5364 = vmatpush1.bf16.msra.mxu0 0
        %5365 = vmatprep.subr.bf16.mxu0 0
        %5366 = vmatpush1.bf16.msra.mxu0 0
        %5367 = vmatprep.subr.bf16.mxu0 0
        %5368 = vmatpush1.bf16.msra.mxu0 0
        %5369 = vmatprep.subr.bf16.mxu0 0
        %5370 = vmatpush1.bf16.msra.mxu0 0
        %5371 = vmatprep.subr.bf16.mxu0 0
        %5372 = vmatpush1.bf16.msra.mxu0 0
        %5373 = vmatprep.subr.bf16.mxu0 0
        %5374 = vmatpush1.bf16.msra.mxu0 0
        %5375 = vmatprep.subr.bf16.mxu0 %v5353
        %5376 = vmatpush1.bf16.msra.mxu0 %v5352
        %5377 = vmatprep.subr.bf16.mxu0 0
        %5378 = vmatpush2.bf16.msra.mxu0 0
        %5379 = vmatprep.subr.bf16.mxu0 0
        %5380 = vmatpush2.bf16.msra.mxu0 0
        %5381 = vmatprep.subr.bf16.mxu0 0
        %5382 = vmatpush2.bf16.msra.mxu0 0
        %5383 = vmatprep.subr.bf16.mxu0 0
        %5384 = vmatpush2.bf16.msra.mxu0 0
        %5385 = vmatprep.subr.bf16.mxu0 0
        %5386 = vmatpush2.bf16.msra.mxu0 0
        %5387 = vmatprep.subr.bf16.mxu0 0
        %5388 = vmatpush2.bf16.msra.mxu0 0
        %5389 = vmatprep.subr.bf16.mxu0 0
        %5390 = vmatpush2.bf16.msra.mxu0 0
        %5391 = vmatprep.subr.bf16.mxu0 0
        %5392 = vmatpush2.bf16.msra.mxu0 0
        %5393 = vmatprep.mubr.bf16.mxu0 0
        %5394 = vmatmul.mubr.bf16.gmra.mxu0 %v5359
        %v5395 = vpop.f32.mrf.mxu0
        %v5396 = vadd.f32 0.0, %v5395
        %v5397 = vpop.f32.mrf.mxu0
        %v5398 = vadd.f32 0.0, %v5397
        %v5399 = vpop.f32.mrf.mxu0
        %v5400 = vpop.f32.mrf.mxu0
        %5401 = vdwg.mxu0
        %5402 = vmatprep.subr.bf16.mxu0 0
        %5403 = vmatpush1.bf16.msra.mxu0 0
        %5404 = vmatprep.subr.bf16.mxu0 0
        %5405 = vmatpush1.bf16.msra.mxu0 0
        %5406 = vmatprep.subr.bf16.mxu0 0
        %5407 = vmatpush1.bf16.msra.mxu0 0
        %5408 = vmatprep.subr.bf16.mxu0 0
        %5409 = vmatpush1.bf16.msra.mxu0 0
        %5410 = vmatprep.subr.bf16.mxu0 0
        %5411 = vmatpush1.bf16.msra.mxu0 0
        %5412 = vmatprep.subr.bf16.mxu0 0
        %5413 = vmatpush1.bf16.msra.mxu0 0
        %5414 = vmatprep.subr.bf16.mxu0 0
        %5415 = vmatpush1.bf16.msra.mxu0 0
        %5416 = vmatprep.subr.bf16.mxu0 0
        %5417 = vmatpush1.bf16.msra.mxu0 %v5354
        %5418 = vmatprep.subr.bf16.mxu0 0
        %5419 = vmatpush2.bf16.msra.mxu0 0
        %5420 = vmatprep.subr.bf16.mxu0 0
        %5421 = vmatpush2.bf16.msra.mxu0 0
        %5422 = vmatprep.subr.bf16.mxu0 0
        %5423 = vmatpush2.bf16.msra.mxu0 0
        %5424 = vmatprep.subr.bf16.mxu0 0
        %5425 = vmatpush2.bf16.msra.mxu0 0
        %5426 = vmatprep.subr.bf16.mxu0 0
        %5427 = vmatpush2.bf16.msra.mxu0 0
        %5428 = vmatprep.subr.bf16.mxu0 0
        %5429 = vmatpush2.bf16.msra.mxu0 0
        %5430 = vmatprep.subr.bf16.mxu0 0
        %5431 = vmatpush2.bf16.msra.mxu0 0
        %5432 = vmatprep.subr.bf16.mxu0 0
        %5433 = vmatpush2.bf16.msra.mxu0 0
        %5434 = vmatprep.mubr.bf16.mxu0 0
        %5435 = vmatmul.mubr.bf16.gmra.mxu0 %v5359
        %v5436 = vpop.f32.mrf.mxu0
        %v5437 = vadd.f32 0.0, %v5436
        %v5438 = vpop.f32.mrf.mxu0
        %v5439 = vpop.f32.mrf.mxu0
        %v5440 = vpop.f32.mrf.mxu0
        %5441 = vdwg.mxu0
        %v5442 = vadd.f32 %v5333, %v5396
        %v5443 = vadd.f32 %v5334, %v5398
        %v5444 = vadd.f32 %v5335, %v5437
        %s5445 = scalar_lea.vmem %s12, 20
        %v5446 = vld [vmem:[%s5445] sm:$0xf]
        %5447 = vrot.lane.b32.xlu0 %v5352, 127
        %v5448 = vpop.permute.xlu0 %5447
        %5449 = vrot.lane.b32.xlu0 %v5353, 127
        %v5450 = vpop.permute.xlu0 %5449
        %5451 = vrot.lane.b32.xlu0 %v5354, 127
        %v5452 = vpop.permute.xlu0 %5451
        %v5453 = vsel %vm1193, %v5448, %v5450
        %v5454 = vsel %vm1193, %v5450, %v5452
        %v5459 = vsel %vm2738, %v5446, 0
        %5461 = vmatprep.subr.bf16.mxu0 0
        %5462 = vmatpush1.bf16.msra.mxu0 0
        %5463 = vmatprep.subr.bf16.mxu0 0
        %5464 = vmatpush1.bf16.msra.mxu0 0
        %5465 = vmatprep.subr.bf16.mxu0 0
        %5466 = vmatpush1.bf16.msra.mxu0 0
        %5467 = vmatprep.subr.bf16.mxu0 0
        %5468 = vmatpush1.bf16.msra.mxu0 0
        %5469 = vmatprep.subr.bf16.mxu0 0
        %5470 = vmatpush1.bf16.msra.mxu0 0
        %5471 = vmatprep.subr.bf16.mxu0 0
        %5472 = vmatpush1.bf16.msra.mxu0 0
        %5473 = vmatprep.subr.bf16.mxu0 0
        %5474 = vmatpush1.bf16.msra.mxu0 0
        %5475 = vmatprep.subr.bf16.mxu0 %v5454
        %5476 = vmatpush1.bf16.msra.mxu0 %v5453
        %5477 = vmatprep.subr.bf16.mxu0 0
        %5478 = vmatpush2.bf16.msra.mxu0 0
        %5479 = vmatprep.subr.bf16.mxu0 0
        %5480 = vmatpush2.bf16.msra.mxu0 0
        %5481 = vmatprep.subr.bf16.mxu0 0
        %5482 = vmatpush2.bf16.msra.mxu0 0
        %5483 = vmatprep.subr.bf16.mxu0 0
        %5484 = vmatpush2.bf16.msra.mxu0 0
        %5485 = vmatprep.subr.bf16.mxu0 0
        %5486 = vmatpush2.bf16.msra.mxu0 0
        %5487 = vmatprep.subr.bf16.mxu0 0
        %5488 = vmatpush2.bf16.msra.mxu0 0
        %5489 = vmatprep.subr.bf16.mxu0 0
        %5490 = vmatpush2.bf16.msra.mxu0 0
        %5491 = vmatprep.subr.bf16.mxu0 0
        %5492 = vmatpush2.bf16.msra.mxu0 0
        %5493 = vmatprep.mubr.bf16.mxu0 0
        %5494 = vmatmul.mubr.bf16.gmra.mxu0 %v5459
        %v5495 = vpop.f32.mrf.mxu0
        %v5496 = vadd.f32 0.0, %v5495
        %v5497 = vpop.f32.mrf.mxu0
        %v5498 = vadd.f32 0.0, %v5497
        %v5499 = vpop.f32.mrf.mxu0
        %v5500 = vpop.f32.mrf.mxu0
        %5501 = vdwg.mxu0
        %5502 = vmatprep.subr.bf16.mxu0 0
        %5503 = vmatpush1.bf16.msra.mxu0 0
        %5504 = vmatprep.subr.bf16.mxu0 0
        %5505 = vmatpush1.bf16.msra.mxu0 0
        %5506 = vmatprep.subr.bf16.mxu0 0
        %5507 = vmatpush1.bf16.msra.mxu0 0
        %5508 = vmatprep.subr.bf16.mxu0 0
        %5509 = vmatpush1.bf16.msra.mxu0 0
        %5510 = vmatprep.subr.bf16.mxu0 0
        %5511 = vmatpush1.bf16.msra.mxu0 0
        %5512 = vmatprep.subr.bf16.mxu0 0
        %5513 = vmatpush1.bf16.msra.mxu0 0
        %5514 = vmatprep.subr.bf16.mxu0 0
        %5515 = vmatpush1.bf16.msra.mxu0 0
        %5516 = vmatprep.subr.bf16.mxu0 0
        %5517 = vmatpush1.bf16.msra.mxu0 %v5452
        %5518 = vmatprep.subr.bf16.mxu0 0
        %5519 = vmatpush2.bf16.msra.mxu0 0
        %5520 = vmatprep.subr.bf16.mxu0 0
        %5521 = vmatpush2.bf16.msra.mxu0 0
        %5522 = vmatprep.subr.bf16.mxu0 0
        %5523 = vmatpush2.bf16.msra.mxu0 0
        %5524 = vmatprep.subr.bf16.mxu0 0
        %5525 = vmatpush2.bf16.msra.mxu0 0
        %5526 = vmatprep.subr.bf16.mxu0 0
        %5527 = vmatpush2.bf16.msra.mxu0 0
        %5528 = vmatprep.subr.bf16.mxu0 0
        %5529 = vmatpush2.bf16.msra.mxu0 0
        %5530 = vmatprep.subr.bf16.mxu0 0
        %5531 = vmatpush2.bf16.msra.mxu0 0
        %5532 = vmatprep.subr.bf16.mxu0 0
        %5533 = vmatpush2.bf16.msra.mxu0 0
        %5534 = vmatprep.mubr.bf16.mxu0 0
        %5535 = vmatmul.mubr.bf16.gmra.mxu0 %v5459
        %v5536 = vpop.f32.mrf.mxu0
        %v5537 = vadd.f32 0.0, %v5536
        %v5538 = vpop.f32.mrf.mxu0
        %v5539 = vpop.f32.mrf.mxu0
        %v5540 = vpop.f32.mrf.mxu0
        %5541 = vdwg.mxu0
        %v5542 = vadd.f32 %v5442, %v5496
        %v5543 = vadd.f32 %v5443, %v5498
        %v5544 = vadd.f32 %v5444, %v5537
        %s5545 = scalar_lea.vmem %s12, 24
        %v5546 = vld [vmem:[%s5545] sm:$0xf]
        %5547 = vrot.lane.b32.xlu0 %v5352, 111
        %v5548 = vpop.permute.xlu0 %5547
        %5549 = vrot.lane.b32.xlu0 %v5353, 111
        %v5550 = vpop.permute.xlu0 %5549
        %5551 = vrot.lane.b32.xlu0 %v5354, 111
        %v5552 = vpop.permute.xlu0 %5551
        %v5553 = vsel %vm1300, %v5548, %v5550
        %v5554 = vsel %vm1300, %v5550, %v5552
        %v5559 = vsel %vm2738, %v5546, 0
        %5561 = vmatprep.subr.bf16.mxu0 0
        %5562 = vmatpush1.bf16.msra.mxu0 0
        %5563 = vmatprep.subr.bf16.mxu0 0
        %5564 = vmatpush1.bf16.msra.mxu0 0
        %5565 = vmatprep.subr.bf16.mxu0 0
        %5566 = vmatpush1.bf16.msra.mxu0 0
        %5567 = vmatprep.subr.bf16.mxu0 0
        %5568 = vmatpush1.bf16.msra.mxu0 0
        %5569 = vmatprep.subr.bf16.mxu0 0
        %5570 = vmatpush1.bf16.msra.mxu0 0
        %5571 = vmatprep.subr.bf16.mxu0 0
        %5572 = vmatpush1.bf16.msra.mxu0 0
        %5573 = vmatprep.subr.bf16.mxu0 0
        %5574 = vmatpush1.bf16.msra.mxu0 0
        %5575 = vmatprep.subr.bf16.mxu0 %v5554
        %5576 = vmatpush1.bf16.msra.mxu0 %v5553
        %5577 = vmatprep.subr.bf16.mxu0 0
        %5578 = vmatpush2.bf16.msra.mxu0 0
        %5579 = vmatprep.subr.bf16.mxu0 0
        %5580 = vmatpush2.bf16.msra.mxu0 0
        %5581 = vmatprep.subr.bf16.mxu0 0
        %5582 = vmatpush2.bf16.msra.mxu0 0
        %5583 = vmatprep.subr.bf16.mxu0 0
        %5584 = vmatpush2.bf16.msra.mxu0 0
        %5585 = vmatprep.subr.bf16.mxu0 0
        %5586 = vmatpush2.bf16.msra.mxu0 0
        %5587 = vmatprep.subr.bf16.mxu0 0
        %5588 = vmatpush2.bf16.msra.mxu0 0
        %5589 = vmatprep.subr.bf16.mxu0 0
        %5590 = vmatpush2.bf16.msra.mxu0 0
        %5591 = vmatprep.subr.bf16.mxu0 0
        %5592 = vmatpush2.bf16.msra.mxu0 0
        %5593 = vmatprep.mubr.bf16.mxu0 0
        %5594 = vmatmul.mubr.bf16.gmra.mxu0 %v5559
        %v5595 = vpop.f32.mrf.mxu0
        %v5596 = vadd.f32 0.0, %v5595
        %v5597 = vpop.f32.mrf.mxu0
        %v5598 = vadd.f32 0.0, %v5597
        %v5599 = vpop.f32.mrf.mxu0
        %v5600 = vpop.f32.mrf.mxu0
        %5601 = vdwg.mxu0
        %5602 = vmatprep.subr.bf16.mxu0 0
        %5603 = vmatpush1.bf16.msra.mxu0 0
        %5604 = vmatprep.subr.bf16.mxu0 0
        %5605 = vmatpush1.bf16.msra.mxu0 0
        %5606 = vmatprep.subr.bf16.mxu0 0
        %5607 = vmatpush1.bf16.msra.mxu0 0
        %5608 = vmatprep.subr.bf16.mxu0 0
        %5609 = vmatpush1.bf16.msra.mxu0 0
        %5610 = vmatprep.subr.bf16.mxu0 0
        %5611 = vmatpush1.bf16.msra.mxu0 0
        %5612 = vmatprep.subr.bf16.mxu0 0
        %5613 = vmatpush1.bf16.msra.mxu0 0
        %5614 = vmatprep.subr.bf16.mxu0 0
        %5615 = vmatpush1.bf16.msra.mxu0 0
        %5616 = vmatprep.subr.bf16.mxu0 0
        %5617 = vmatpush1.bf16.msra.mxu0 %v5552
        %5618 = vmatprep.subr.bf16.mxu0 0
        %5619 = vmatpush2.bf16.msra.mxu0 0
        %5620 = vmatprep.subr.bf16.mxu0 0
        %5621 = vmatpush2.bf16.msra.mxu0 0
        %5622 = vmatprep.subr.bf16.mxu0 0
        %5623 = vmatpush2.bf16.msra.mxu0 0
        %5624 = vmatprep.subr.bf16.mxu0 0
        %5625 = vmatpush2.bf16.msra.mxu0 0
        %5626 = vmatprep.subr.bf16.mxu0 0
        %5627 = vmatpush2.bf16.msra.mxu0 0
        %5628 = vmatprep.subr.bf16.mxu0 0
        %5629 = vmatpush2.bf16.msra.mxu0 0
        %5630 = vmatprep.subr.bf16.mxu0 0
        %5631 = vmatpush2.bf16.msra.mxu0 0
        %5632 = vmatprep.subr.bf16.mxu0 0
        %5633 = vmatpush2.bf16.msra.mxu0 0
        %5634 = vmatprep.mubr.bf16.mxu0 0
        %5635 = vmatmul.mubr.bf16.gmra.mxu0 %v5559
        %v5636 = vpop.f32.mrf.mxu0
        %v5637 = vadd.f32 0.0, %v5636
        %v5638 = vpop.f32.mrf.mxu0
        %v5639 = vpop.f32.mrf.mxu0
        %v5640 = vpop.f32.mrf.mxu0
        %5641 = vdwg.mxu0
        %v5642 = vadd.f32 %v5542, %v5596
        %v5643 = vadd.f32 %v5543, %v5598
        %v5644 = vadd.f32 %v5544, %v5637
        %s5645 = scalar_lea.vmem %s12, 28
        %v5646 = vld [vmem:[%s5645] sm:$0xf]
        %5647 = vrot.lane.b32.xlu0 %v5352, 110
        %v5648 = vpop.permute.xlu0 %5647
        %5649 = vrot.lane.b32.xlu0 %v5353, 110
        %v5650 = vpop.permute.xlu0 %5649
        %5651 = vrot.lane.b32.xlu0 %v5354, 110
        %v5652 = vpop.permute.xlu0 %5651
        %v5653 = vsel %vm1407, %v5648, %v5650
        %v5654 = vsel %vm1407, %v5650, %v5652
        %v5659 = vsel %vm2738, %v5646, 0
        %5661 = vmatprep.subr.bf16.mxu0 0
        %5662 = vmatpush1.bf16.msra.mxu0 0
        %5663 = vmatprep.subr.bf16.mxu0 0
        %5664 = vmatpush1.bf16.msra.mxu0 0
        %5665 = vmatprep.subr.bf16.mxu0 0
        %5666 = vmatpush1.bf16.msra.mxu0 0
        %5667 = vmatprep.subr.bf16.mxu0 0
        %5668 = vmatpush1.bf16.msra.mxu0 0
        %5669 = vmatprep.subr.bf16.mxu0 0
        %5670 = vmatpush1.bf16.msra.mxu0 0
        %5671 = vmatprep.subr.bf16.mxu0 0
        %5672 = vmatpush1.bf16.msra.mxu0 0
        %5673 = vmatprep.subr.bf16.mxu0 0
        %5674 = vmatpush1.bf16.msra.mxu0 0
        %5675 = vmatprep.subr.bf16.mxu0 %v5654
        %5676 = vmatpush1.bf16.msra.mxu0 %v5653
        %5677 = vmatprep.subr.bf16.mxu0 0
        %5678 = vmatpush2.bf16.msra.mxu0 0
        %5679 = vmatprep.subr.bf16.mxu0 0
        %5680 = vmatpush2.bf16.msra.mxu0 0
        %5681 = vmatprep.subr.bf16.mxu0 0
        %5682 = vmatpush2.bf16.msra.mxu0 0
        %5683 = vmatprep.subr.bf16.mxu0 0
        %5684 = vmatpush2.bf16.msra.mxu0 0
        %5685 = vmatprep.subr.bf16.mxu0 0
        %5686 = vmatpush2.bf16.msra.mxu0 0
        %5687 = vmatprep.subr.bf16.mxu0 0
        %5688 = vmatpush2.bf16.msra.mxu0 0
        %5689 = vmatprep.subr.bf16.mxu0 0
        %5690 = vmatpush2.bf16.msra.mxu0 0
        %5691 = vmatprep.subr.bf16.mxu0 0
        %5692 = vmatpush2.bf16.msra.mxu0 0
        %5693 = vmatprep.mubr.bf16.mxu0 0
        %5694 = vmatmul.mubr.bf16.gmra.mxu0 %v5659
        %v5695 = vpop.f32.mrf.mxu0
        %v5696 = vadd.f32 0.0, %v5695
        %v5697 = vpop.f32.mrf.mxu0
        %v5698 = vadd.f32 0.0, %v5697
        %v5699 = vpop.f32.mrf.mxu0
        %v5700 = vpop.f32.mrf.mxu0
        %5701 = vdwg.mxu0
        %5702 = vmatprep.subr.bf16.mxu0 0
        %5703 = vmatpush1.bf16.msra.mxu0 0
        %5704 = vmatprep.subr.bf16.mxu0 0
        %5705 = vmatpush1.bf16.msra.mxu0 0
        %5706 = vmatprep.subr.bf16.mxu0 0
        %5707 = vmatpush1.bf16.msra.mxu0 0
        %5708 = vmatprep.subr.bf16.mxu0 0
        %5709 = vmatpush1.bf16.msra.mxu0 0
        %5710 = vmatprep.subr.bf16.mxu0 0
        %5711 = vmatpush1.bf16.msra.mxu0 0
        %5712 = vmatprep.subr.bf16.mxu0 0
        %5713 = vmatpush1.bf16.msra.mxu0 0
        %5714 = vmatprep.subr.bf16.mxu0 0
        %5715 = vmatpush1.bf16.msra.mxu0 0
        %5716 = vmatprep.subr.bf16.mxu0 0
        %5717 = vmatpush1.bf16.msra.mxu0 %v5652
        %5718 = vmatprep.subr.bf16.mxu0 0
        %5719 = vmatpush2.bf16.msra.mxu0 0
        %5720 = vmatprep.subr.bf16.mxu0 0
        %5721 = vmatpush2.bf16.msra.mxu0 0
        %5722 = vmatprep.subr.bf16.mxu0 0
        %5723 = vmatpush2.bf16.msra.mxu0 0
        %5724 = vmatprep.subr.bf16.mxu0 0
        %5725 = vmatpush2.bf16.msra.mxu0 0
        %5726 = vmatprep.subr.bf16.mxu0 0
        %5727 = vmatpush2.bf16.msra.mxu0 0
        %5728 = vmatprep.subr.bf16.mxu0 0
        %5729 = vmatpush2.bf16.msra.mxu0 0
        %5730 = vmatprep.subr.bf16.mxu0 0
        %5731 = vmatpush2.bf16.msra.mxu0 0
        %5732 = vmatprep.subr.bf16.mxu0 0
        %5733 = vmatpush2.bf16.msra.mxu0 0
        %5734 = vmatprep.mubr.bf16.mxu0 0
        %5735 = vmatmul.mubr.bf16.gmra.mxu0 %v5659
        %v5736 = vpop.f32.mrf.mxu0
        %v5737 = vadd.f32 0.0, %v5736
        %v5738 = vpop.f32.mrf.mxu0
        %v5739 = vpop.f32.mrf.mxu0
        %v5740 = vpop.f32.mrf.mxu0
        %5741 = vdwg.mxu0
        %v5742 = vadd.f32 %v5642, %v5696
        %v5743 = vadd.f32 %v5643, %v5698
        %v5744 = vadd.f32 %v5644, %v5737
        %s5745 = scalar_lea.vmem %s12, 32
        %v5746 = vld [vmem:[%s5745] sm:$0xf]
        %5747 = vrot.lane.b32.xlu0 %v5352, 109
        %v5748 = vpop.permute.xlu0 %5747
        %5749 = vrot.lane.b32.xlu0 %v5353, 109
        %v5750 = vpop.permute.xlu0 %5749
        %5751 = vrot.lane.b32.xlu0 %v5354, 109
        %v5752 = vpop.permute.xlu0 %5751
        %v5753 = vsel %vm1514, %v5748, %v5750
        %v5754 = vsel %vm1514, %v5750, %v5752
        %v5759 = vsel %vm2738, %v5746, 0
        %5761 = vmatprep.subr.bf16.mxu0 0
        %5762 = vmatpush1.bf16.msra.mxu0 0
        %5763 = vmatprep.subr.bf16.mxu0 0
        %5764 = vmatpush1.bf16.msra.mxu0 0
        %5765 = vmatprep.subr.bf16.mxu0 0
        %5766 = vmatpush1.bf16.msra.mxu0 0
        %5767 = vmatprep.subr.bf16.mxu0 0
        %5768 = vmatpush1.bf16.msra.mxu0 0
        %5769 = vmatprep.subr.bf16.mxu0 0
        %5770 = vmatpush1.bf16.msra.mxu0 0
        %5771 = vmatprep.subr.bf16.mxu0 0
        %5772 = vmatpush1.bf16.msra.mxu0 0
        %5773 = vmatprep.subr.bf16.mxu0 0
        %5774 = vmatpush1.bf16.msra.mxu0 0
        %5775 = vmatprep.subr.bf16.mxu0 %v5754
        %5776 = vmatpush1.bf16.msra.mxu0 %v5753
        %5777 = vmatprep.subr.bf16.mxu0 0
        %5778 = vmatpush2.bf16.msra.mxu0 0
        %5779 = vmatprep.subr.bf16.mxu0 0
        %5780 = vmatpush2.bf16.msra.mxu0 0
        %5781 = vmatprep.subr.bf16.mxu0 0
        %5782 = vmatpush2.bf16.msra.mxu0 0
        %5783 = vmatprep.subr.bf16.mxu0 0
        %5784 = vmatpush2.bf16.msra.mxu0 0
        %5785 = vmatprep.subr.bf16.mxu0 0
        %5786 = vmatpush2.bf16.msra.mxu0 0
        %5787 = vmatprep.subr.bf16.mxu0 0
        %5788 = vmatpush2.bf16.msra.mxu0 0
        %5789 = vmatprep.subr.bf16.mxu0 0
        %5790 = vmatpush2.bf16.msra.mxu0 0
        %5791 = vmatprep.subr.bf16.mxu0 0
        %5792 = vmatpush2.bf16.msra.mxu0 0
        %5793 = vmatprep.mubr.bf16.mxu0 0
        %5794 = vmatmul.mubr.bf16.gmra.mxu0 %v5759
        %v5795 = vpop.f32.mrf.mxu0
        %v5796 = vadd.f32 0.0, %v5795
        %v5797 = vpop.f32.mrf.mxu0
        %v5798 = vadd.f32 0.0, %v5797
        %v5799 = vpop.f32.mrf.mxu0
        %v5800 = vpop.f32.mrf.mxu0
        %5801 = vdwg.mxu0
        %5802 = vmatprep.subr.bf16.mxu0 0
        %5803 = vmatpush1.bf16.msra.mxu0 0
        %5804 = vmatprep.subr.bf16.mxu0 0
        %5805 = vmatpush1.bf16.msra.mxu0 0
        %5806 = vmatprep.subr.bf16.mxu0 0
        %5807 = vmatpush1.bf16.msra.mxu0 0
        %5808 = vmatprep.subr.bf16.mxu0 0
        %5809 = vmatpush1.bf16.msra.mxu0 0
        %5810 = vmatprep.subr.bf16.mxu0 0
        %5811 = vmatpush1.bf16.msra.mxu0 0
        %5812 = vmatprep.subr.bf16.mxu0 0
        %5813 = vmatpush1.bf16.msra.mxu0 0
        %5814 = vmatprep.subr.bf16.mxu0 0
        %5815 = vmatpush1.bf16.msra.mxu0 0
        %5816 = vmatprep.subr.bf16.mxu0 0
        %5817 = vmatpush1.bf16.msra.mxu0 %v5752
        %5818 = vmatprep.subr.bf16.mxu0 0
        %5819 = vmatpush2.bf16.msra.mxu0 0
        %5820 = vmatprep.subr.bf16.mxu0 0
        %5821 = vmatpush2.bf16.msra.mxu0 0
        %5822 = vmatprep.subr.bf16.mxu0 0
        %5823 = vmatpush2.bf16.msra.mxu0 0
        %5824 = vmatprep.subr.bf16.mxu0 0
        %5825 = vmatpush2.bf16.msra.mxu0 0
        %5826 = vmatprep.subr.bf16.mxu0 0
        %5827 = vmatpush2.bf16.msra.mxu0 0
        %5828 = vmatprep.subr.bf16.mxu0 0
        %5829 = vmatpush2.bf16.msra.mxu0 0
        %5830 = vmatprep.subr.bf16.mxu0 0
        %5831 = vmatpush2.bf16.msra.mxu0 0
        %5832 = vmatprep.subr.bf16.mxu0 0
        %5833 = vmatpush2.bf16.msra.mxu0 0
        %5834 = vmatprep.mubr.bf16.mxu0 0
        %5835 = vmatmul.mubr.bf16.gmra.mxu0 %v5759
        %v5836 = vpop.f32.mrf.mxu0
        %v5837 = vadd.f32 0.0, %v5836
        %v5838 = vpop.f32.mrf.mxu0
        %v5839 = vpop.f32.mrf.mxu0
        %v5840 = vpop.f32.mrf.mxu0
        %5841 = vdwg.mxu0
        %v5842 = vadd.f32 %v5742, %v5796
        %v5843 = vadd.f32 %v5743, %v5798
        %v5844 = vadd.f32 %v5744, %v5837
        %v5846 = vrot.slane %v5842, 7
        %5847 = vrot.lane.b32.xlu0 %v5846, 110
        %v5848 = vpop.permute.xlu0 %5847
        %v5850 = vrot.slane %v5842, 6
        %5851 = vrot.lane.b32.xlu0 %v5850, 92
        %v5852 = vpop.permute.xlu0 %5851
        %v5854 = vrot.slane %v5842, 5
        %5855 = vrot.lane.b32.xlu0 %v5854, 74
        %v5856 = vpop.permute.xlu0 %5855
        %v5858 = vrot.slane %v5842, 4
        %5859 = vrot.lane.b32.xlu0 %v5858, 56
        %v5860 = vpop.permute.xlu0 %5859
        %v5862 = vrot.slane %v5842, 3
        %5863 = vrot.lane.b32.xlu0 %v5862, 38
        %v5864 = vpop.permute.xlu0 %5863
        %v5867 = vrot.slane %v5842, 2
        %v5868 = vrot.slane %v5843, 2
        %5869 = vrot.lane.b32.xlu0 %v5867, 20
        %v5870 = vpop.permute.xlu0 %5869
        %5871 = vrot.lane.b32.xlu0 %v5868, 20
        %v5872 = vpop.permute.xlu0 %5871
        %vm5873 = vcmask 162816
        %v5874 = vsel %vm5873, %v5870, %v5872
        %v5876 = vrot.slane %v5843, 1
        %5877 = vrot.lane.b32.xlu0 %v5876, 2
        %v5878 = vpop.permute.xlu0 %5877
        %5880 = vrot.lane.b32.xlu0 %v5843, 112
        %v5881 = vpop.permute.xlu0 %5880
        %v5883 = vrot.slane %v5843, 7
        %5884 = vrot.lane.b32.xlu0 %v5883, 94
        %v5885 = vpop.permute.xlu0 %5884
        %v5887 = vrot.slane %v5843, 6
        %5888 = vrot.lane.b32.xlu0 %v5887, 76
        %v5889 = vpop.permute.xlu0 %5888
        %v5891 = vrot.slane %v5843, 5
        %5892 = vrot.lane.b32.xlu0 %v5891, 58
        %v5893 = vpop.permute.xlu0 %5892
        %v5895 = vrot.slane %v5843, 4
        %5896 = vrot.lane.b32.xlu0 %v5895, 40
        %v5897 = vpop.permute.xlu0 %5896
        %v5900 = vrot.slane %v5843, 3
        %v5901 = vrot.slane %v5844, 3
        %5902 = vrot.lane.b32.xlu0 %v5900, 22
        %v5903 = vpop.permute.xlu0 %5902
        %5904 = vrot.lane.b32.xlu0 %v5901, 22
        %v5905 = vpop.permute.xlu0 %5904
        %vm5906 = vcmask 179200
        %v5907 = vsel %vm5906, %v5903, %v5905
        %v5909 = vrot.slane %v5844, 2
        %5910 = vrot.lane.b32.xlu0 %v5909, 4
        %v5911 = vpop.permute.xlu0 %5910
        %v5913 = vrot.slane %v5844, 1
        %5914 = vrot.lane.b32.xlu0 %v5913, 114
        %v5915 = vpop.permute.xlu0 %5914
        %vm5917 = vcmask 1040384
        %v5918 = vsel %vm5917, %v5842, %v5848
        %v5919 = vsel %vm661, %v5918, %v5852
        %vm5920 = vcmask 1042432
        %v5921 = vsel %vm5920, %v5919, %v5856
        %vm5922 = vcmask 1043456
        %v5923 = vsel %vm5922, %v5921, %v5860
        %vm5924 = vcmask 1044480
        %v5925 = vsel %vm5924, %v5923, %v5864
        %vm5926 = vcmask 1045504
        %v5927 = vsel %vm5926, %v5925, %v5874
        %vm5928 = vcmask 1046528
        %v5929 = vsel %vm5928, %v5927, %v5878
        %v5930 = vsel %vm5917, %v5881, %v5885
        %v5931 = vsel %vm661, %v5930, %v5889
        %v5932 = vsel %vm5920, %v5931, %v5893
        %v5933 = vsel %vm5922, %v5932, %v5897
        %v5934 = vsel %vm5924, %v5933, %v5907
        %v5935 = vsel %vm5926, %v5934, %v5911
        %v5936 = vsel %vm5928, %v5935, %v5915
        %v5937 = vld [vmem:[#allocation3] sm:$0x1]
        %v5939 = vlaneseq
        %v5940 = vshrl.u32 %v5939, 7
        %v5941 = vsub.s32 0, %v5940
        %v5942 = vrot.slane %v5937, %v5941
        %5943 = vset.pattern.permute.xlu0 0
        %5944 = vperm.xlu0 %5943, %v5942
        %v5945 = vpop.permute.xlu0 %5944
        %v5947 = vadd.f32 %v5929, %v5945
        %v5948 = vadd.f32 %v5936, %v5945
        %v5949 = vld [vmem:[%s14] sm:$0xf]
        %v5950 = vld [vmem:[%s14 + $0x4] sm:$0xf]
        %v5951 = vld [vmem:[%s14 + $0x8] sm:$0xf]
        %v5952 = vld [vmem:[%s14 + $0xc] sm:$0xf]
        %v5953 = vld [vmem:[%s14 + $0x10] sm:$0xf]
        %v5954 = vld [vmem:[%s14 + $0x14] sm:$0xf]
        %v5955 = vld [vmem:[%s14 + $0x18] sm:$0xf]
        %v5956 = vld [vmem:[%s14 + $0x1c] sm:$0xf]
        %v5957 = vpack.c.bf16 %v5948, %v5947
        %v5966 = vunpack.c.l.b16 %v5949
        %v5967 = vunpack.c.l.b16 %v5950
        %v5968 = vunpack.c.l.b16 %v5951
        %v5969 = vunpack.c.l.b16 %v5952
        %v5970 = vunpack.c.l.b16 %v5953
        %v5971 = vunpack.c.l.b16 %v5954
        %v5972 = vunpack.c.l.b16 %v5955
        %v5973 = vunpack.c.l.b16 %v5956
        %v5974 = vpack.c.b16 %v5967, %v5966
        %v5975 = vpack.c.b16 %v5969, %v5968
        %v5976 = vpack.c.b16 %v5971, %v5970
        %v5977 = vpack.c.b16 %v5973, %v5972
        %5979 = vrot.lane.b32.xlu0 %v5957, 109
        %v5980 = vpop.permute.xlu0 %5979
        %v5983 = vsel %vm2738, %v5974, 0
        %v5986 = vsel %vm2738, %v5975, 0
        %v5989 = vsel %vm2738, %v5976, 0
        %v5992 = vsel %vm2738, %v5977, 0
        %5994 = vmatprep.subr.bf16.mxu0 0
        %5995 = vmatpush1.bf16.msra.mxu0 0
        %5996 = vmatprep.subr.bf16.mxu0 0
        %5997 = vmatpush1.bf16.msra.mxu0 0
        %5998 = vmatprep.subr.bf16.mxu0 0
        %5999 = vmatpush1.bf16.msra.mxu0 0
        %6000 = vmatprep.subr.bf16.mxu0 0
        %6001 = vmatpush1.bf16.msra.mxu0 0
        %6002 = vmatprep.subr.bf16.mxu0 0
        %6003 = vmatpush1.bf16.msra.mxu0 0
        %6004 = vmatprep.subr.bf16.mxu0 0
        %6005 = vmatpush1.bf16.msra.mxu0 0
        %6006 = vmatprep.subr.bf16.mxu0 0
        %6007 = vmatpush1.bf16.msra.mxu0 0
        %6008 = vmatprep.subr.bf16.mxu0 0
        %6009 = vmatpush1.bf16.msra.mxu0 %v5980
        %6010 = vmatprep.subr.bf16.mxu0 0
        %6011 = vmatpush2.bf16.msra.mxu0 0
        %6012 = vmatprep.subr.bf16.mxu0 0
        %6013 = vmatpush2.bf16.msra.mxu0 0
        %6014 = vmatprep.subr.bf16.mxu0 0
        %6015 = vmatpush2.bf16.msra.mxu0 0
        %6016 = vmatprep.subr.bf16.mxu0 0
        %6017 = vmatpush2.bf16.msra.mxu0 0
        %6018 = vmatprep.subr.bf16.mxu0 0
        %6019 = vmatpush2.bf16.msra.mxu0 0
        %6020 = vmatprep.subr.bf16.mxu0 0
        %6021 = vmatpush2.bf16.msra.mxu0 0
        %6022 = vmatprep.subr.bf16.mxu0 0
        %6023 = vmatpush2.bf16.msra.mxu0 0
        %6024 = vmatprep.subr.bf16.mxu0 0
        %6025 = vmatpush2.bf16.msra.mxu0 0
        %6026 = vmatprep.mubr.bf16.mxu0 0
        %6027 = vmatmul.mubr.bf16.gmra.mxu0 %v5983
        %v6028 = vpop.f32.mrf.mxu0
        %v6029 = vadd.f32 0.0, %v6028
        %v6030 = vpop.f32.mrf.mxu0
        %v6031 = vpop.f32.mrf.mxu0
        %v6032 = vadd.f32 0.0, %v6031
        %v6033 = vpop.f32.mrf.mxu0
        %6034 = vmatprep.mubr.bf16.mxu0 0
        %6035 = vmatmul.mubr.bf16.gmra.mxu0 %v5986
        %v6036 = vpop.f32.mrf.mxu0
        %v6037 = vadd.f32 0.0, %v6036
        %v6038 = vpop.f32.mrf.mxu0
        %v6039 = vpop.f32.mrf.mxu0
        %v6040 = vadd.f32 0.0, %v6039
        %v6041 = vpop.f32.mrf.mxu0
        %6042 = vmatprep.mubr.bf16.mxu0 0
        %6043 = vmatmul.mubr.bf16.gmra.mxu0 %v5989
        %v6044 = vpop.f32.mrf.mxu0
        %v6045 = vadd.f32 0.0, %v6044
        %v6046 = vpop.f32.mrf.mxu0
        %v6047 = vpop.f32.mrf.mxu0
        %v6048 = vadd.f32 0.0, %v6047
        %v6049 = vpop.f32.mrf.mxu0
        %6050 = vmatprep.mubr.bf16.mxu0 0
        %6051 = vmatmul.mubr.bf16.gmra.mxu0 %v5992
        %v6052 = vpop.f32.mrf.mxu0
        %v6053 = vadd.f32 0.0, %v6052
        %v6054 = vpop.f32.mrf.mxu0
        %v6055 = vpop.f32.mrf.mxu0
        %v6056 = vadd.f32 0.0, %v6055
        %v6057 = vpop.f32.mrf.mxu0
        %6058 = vdwg.mxu0
        %v6059 = vpack.c.bf16 %v6032, %v6029
        %v6060 = vpack.c.bf16 %v6040, %v6037
        %v6061 = vpack.c.bf16 %v6048, %v6045
        %v6062 = vpack.c.bf16 %v6056, %v6053
        %v6063 = vld [vmem:[%s15] sm:$0xf]
        %v6064 = vld [vmem:[%s15 + $0x4] sm:$0xf]
        %v6067 = vunpack.c.l.b16 %v6063
        %v6068 = vunpack.c.l.b16 %v6064
        %v6069 = vpack.c.b16 %v6068, %v6067
        %v6072 = vsel %vm2738, %v6059, 0
        %v6075 = vsel %vm2738, %v6060, 0
        %v6078 = vsel %vm2738, %v6061, 0
        %v6081 = vsel %vm2738, %v6062, 0
        %6083 = vmatprep.subr.bf16.mxu0 0
        %6084 = vmatpush1.bf16.msra.mxu0 0
        %6085 = vmatprep.subr.bf16.mxu0 0
        %6086 = vmatpush1.bf16.msra.mxu0 0
        %6087 = vmatprep.subr.bf16.mxu0 0
        %6088 = vmatpush1.bf16.msra.mxu0 0
        %6089 = vmatprep.subr.bf16.mxu0 0
        %6090 = vmatpush1.bf16.msra.mxu0 0
        %6091 = vmatprep.subr.bf16.mxu0 0
        %6092 = vmatpush1.bf16.msra.mxu0 0
        %6093 = vmatprep.subr.bf16.mxu0 0
        %6094 = vmatpush1.bf16.msra.mxu0 0
        %6095 = vmatprep.subr.bf16.mxu0 0
        %6096 = vmatpush1.bf16.msra.mxu0 0
        %6097 = vmatprep.subr.bf16.mxu0 0
        %6098 = vmatpush1.bf16.msra.mxu0 %v6069
        %6099 = vmatprep.subr.bf16.mxu0 0
        %6100 = vmatpush2.bf16.msra.mxu0 0
        %6101 = vmatprep.subr.bf16.mxu0 0
        %6102 = vmatpush2.bf16.msra.mxu0 0
        %6103 = vmatprep.subr.bf16.mxu0 0
        %6104 = vmatpush2.bf16.msra.mxu0 0
        %6105 = vmatprep.subr.bf16.mxu0 0
        %6106 = vmatpush2.bf16.msra.mxu0 0
        %6107 = vmatprep.subr.bf16.mxu0 0
        %6108 = vmatpush2.bf16.msra.mxu0 0
        %6109 = vmatprep.subr.bf16.mxu0 0
        %6110 = vmatpush2.bf16.msra.mxu0 0
        %6111 = vmatprep.subr.bf16.mxu0 0
        %6112 = vmatpush2.bf16.msra.mxu0 0
        %6113 = vmatprep.subr.bf16.mxu0 0
        %6114 = vmatpush2.bf16.msra.mxu0 0
        %6115 = vmatprep.mubr.bf16.mxu0 0
        %6116 = vmatmul.mubr.bf16.gmra.mxu0 %v6072
        %v6117 = vpop.f32.mrf.mxu0
        %v6118 = vadd.f32 0.0, %v6117
        %v6119 = vpop.f32.mrf.mxu0
        %v6120 = vpop.f32.mrf.mxu0
        %v6121 = vadd.f32 0.0, %v6120
        %v6122 = vpop.f32.mrf.mxu0
        %6123 = vmatprep.mubr.bf16.mxu0 0
        %6124 = vmatmul.mubr.bf16.gmra.mxu0 %v6075
        %v6125 = vpop.f32.mrf.mxu0
        %v6126 = vadd.f32 0.0, %v6125
        %v6127 = vpop.f32.mrf.mxu0
        %v6128 = vpop.f32.mrf.mxu0
        %v6129 = vadd.f32 0.0, %v6128
        %v6130 = vpop.f32.mrf.mxu0
        %6131 = vmatprep.mubr.bf16.mxu0 0
        %6132 = vmatmul.mubr.bf16.gmra.mxu0 %v6078
        %v6133 = vpop.f32.mrf.mxu0
        %v6134 = vadd.f32 0.0, %v6133
        %v6135 = vpop.f32.mrf.mxu0
        %v6136 = vpop.f32.mrf.mxu0
        %v6137 = vadd.f32 0.0, %v6136
        %v6138 = vpop.f32.mrf.mxu0
        %6139 = vmatprep.mubr.bf16.mxu0 0
        %6140 = vmatmul.mubr.bf16.gmra.mxu0 %v6081
        %v6141 = vpop.f32.mrf.mxu0
        %v6142 = vadd.f32 0.0, %v6141
        %v6143 = vpop.f32.mrf.mxu0
        %v6144 = vpop.f32.mrf.mxu0
        %v6145 = vadd.f32 0.0, %v6144
        %v6146 = vpop.f32.mrf.mxu0
        %6147 = vdwg.mxu0
        %v6148 = vxor.u32 %v6118, 2147483648
        %v6149 = vxor.u32 %v6121, 2147483648
        %v6150 = vxor.u32 %v6126, 2147483648
        %v6151 = vxor.u32 %v6129, 2147483648
        %v6152 = vxor.u32 %v6134, 2147483648
        %v6153 = vxor.u32 %v6137, 2147483648
        %v6154 = vxor.u32 %v6142, 2147483648
        %v6155 = vxor.u32 %v6145, 2147483648
        %v6156 = vmul.f32 %v6148, 1.442695
        %v6157 = vpow.pop %v6156
        %v6158 = vmul.f32 %v6149, 1.442695
        %v6159 = vpow.pop %v6158
        %v6160 = vmul.f32 %v6150, 1.442695
        %v6161 = vpow.pop %v6160
        %v6162 = vmul.f32 %v6151, 1.442695
        %v6163 = vpow.pop %v6162
        %v6164 = vmul.f32 %v6152, 1.442695
        %v6165 = vpow.pop %v6164
        %v6166 = vmul.f32 %v6153, 1.442695
        %v6167 = vpow.pop %v6166
        %v6168 = vmul.f32 %v6154, 1.442695
        %v6169 = vpow.pop %v6168
        %v6170 = vmul.f32 %v6155, 1.442695
        %v6171 = vpow.pop %v6170
        %v6172 = vadd.f32 %v6157, 1.0
        %v6173 = vadd.f32 %v6159, 1.0
        %v6174 = vadd.f32 %v6161, 1.0
        %v6175 = vadd.f32 %v6163, 1.0
        %v6176 = vadd.f32 %v6165, 1.0
        %v6177 = vadd.f32 %v6167, 1.0
        %v6178 = vadd.f32 %v6169, 1.0
        %v6179 = vadd.f32 %v6171, 1.0
        %v6180 = vrcp.pop %v6172
        %v6181 = vmul.f32 1.0, %v6180
        %v6182 = vrcp.pop %v6173
        %v6183 = vmul.f32 1.0, %v6182
        %v6184 = vrcp.pop %v6174
        %v6185 = vmul.f32 1.0, %v6184
        %v6186 = vrcp.pop %v6175
        %v6187 = vmul.f32 1.0, %v6186
        %v6188 = vrcp.pop %v6176
        %v6189 = vmul.f32 1.0, %v6188
        %v6190 = vrcp.pop %v6177
        %v6191 = vmul.f32 1.0, %v6190
        %v6192 = vrcp.pop %v6178
        %v6193 = vmul.f32 1.0, %v6192
        %v6194 = vrcp.pop %v6179
        %v6195 = vmul.f32 1.0, %v6194
        %vm6196 = vcmask 523264
        %6197 = vst.msk [vmem:[%s604] sm:$0xff] %vm6196, %v6181
        %6198 = vst.msk [vmem:[%s604 + $0x8] sm:$0xff] %vm6196, %v6183
        %6199 = vst.msk [vmem:[%s604 + $0x10] sm:$0xff] %vm6196, %v6185
        %6200 = vst.msk [vmem:[%s604 + $0x18] sm:$0xff] %vm6196, %v6187
        %6201 = vst.msk [vmem:[%s604 + $0x20] sm:$0xff] %vm6196, %v6189
        %6202 = vst.msk [vmem:[%s604 + $0x28] sm:$0xff] %vm6196, %v6191
        %6203 = vst.msk [vmem:[%s604 + $0x30] sm:$0xff] %vm6196, %v6193
        %6204 = vst.msk [vmem:[%s604 + $0x38] sm:$0xff] %vm6196, %v6195
        %s6205 = sand.u32 %s406, 1
        %s6206 = scalar_lea.sflag [#allocation6], %s6205
        %s6207 = sand.u32 %s406, 1
        %s6208 = smul.addr %s6207, 64
        %s6209 = scalar_lea.vmem [#allocation10], %s6208
        // Predicated region
        $region97: #{tpu_custom_call.1} parent=83 // pred_check
          %p6210 = pneg %p416
        $region98: #{tpu_custom_call.1} parent=83 // pred_check_branch
          %6212 = sbr.rel (%p6210) target = $region100
        $region99: #{tpu_custom_call.1} parent=83 // pred_region
          %s6214 = ssub.s32 1024, 1024
          %6215 = vsyncadd %s6206, %s6214
          %s6216 = smul.addr %s43, 8
          %s6217 = smul.addr %s42, 8
          %s6218 = sadd.s32 %s6216, %s6217
          %s6219 = smul.addr %s6218, 128
          %s6220 = scalar_lea.hbm %s16, %s6219
          %s6221 = sshll.u32 %s6209, 4
          %s6222 = int_to_ptr.vmem [resolvable:$true] %s6221
          %6227 = dma.vmem_to_hbm [thread:$0]  %s6222, 1024, %s6220, %s6206, 128, 128, 8
        $region100: #{tpu_custom_call.1} parent=83 // pred_fallthru
          _
      $region84: #{tpu_custom_call.1} parent=5 // pred_fallthru
        _
      %p6228 = scmp.le.s32.totalorder 2, %s33
      // Predicated region
      $region101: #{tpu_custom_call.1} parent=5 // pred_check
        %p6229 = pneg %p6228
      $region102: #{tpu_custom_call.1} parent=5 // pred_check_branch
        %6231 = sbr.rel (%p6229) target = $region104
      $region103: #{tpu_custom_call.1} parent=5 // pred_region
        %s6232 = ssub.s32 %s33, 2
        // Predicated region
        $region105: #{tpu_custom_call.1} parent=103 // pred_check
          %p6233 = pneg %p422
        $region106: #{tpu_custom_call.1} parent=103 // pred_check_branch
          %6235 = sbr.rel (%p6233) target = $region108
        $region107: #{tpu_custom_call.1} parent=103 // pred_region
          %s6236 = sand.u32 %s407, 1
          %s6237 = scalar_lea.sflag [#allocation6], %s6236
          %s6238 = sand.u32 %s407, 1
          %s6239 = smul.addr %s6238, 64
          %s6240 = scalar_lea.vmem [#allocation10], %s6239
          %6241 = dma.done %s6237, 1024
        $region108: #{tpu_custom_call.1} parent=103 // pred_fallthru
          _
      $region104: #{tpu_custom_call.1} parent=5 // pred_fallthru
        _
    $region6: #{tpu_custom_call.1} parent=1 // loop_footer
      %s37 = sadd.s32 1, %s33
    $region7: #{tpu_custom_call.1} parent=1 // loop_footer_branch
      %32 = sbr.rel target = $region3
    $region8: #{tpu_custom_call.1} parent=1 // loop_exit
      _
    %6242 = vsyncpa [#allocation5], 1
    %s6243 = scalar_lea.sflag [#allocation5], 1
    %6244 = vsyncpa %s6243, 1
    %6245 = vsyncpa [#allocation8], 1
    %s6246 = scalar_lea.sflag [#allocation8], 1
    %6247 = vsyncpa %s6246, 1
    %6248 = vsyncpa [#allocation6], 1
    %s6249 = scalar_lea.sflag [#allocation6], 1
    %6250 = vsyncpa %s6249, 1

</llo_original>
